<compile_context>
chip_gen: v5e
topology: v5e:2x2
jax: 0.10.0
libtpu: 0.0.40
codegen_flags: <defaults>
</compile_context>

<pallas_src>
import functools
import numpy as np
import jax
import jax.numpy as jnp
from jax.experimental import pallas as pl
from jax.experimental.pallas import tpu as pltpu


# rows of the per-layer packed small-vector operand (all f32)
_ROW_B1, _ROW_B2, _ROW_B3 = 0, 1, 2        # complex-MLP biases tiled over Fh (width Fh*2D)
_ROW_FC1B, _ROW_FC2B, _ROW_FC3B = 3, 4, 5  # fc biases (widths N*64, N*H, P)
_ROW_GAMMA, _ROW_BETA = 6, 7               # BatchNorm affine (width P)
_NUM_VEC_ROWS = 8
_LAM = 0.01                                # FGN sparsity_threshold (softshrink lambda)
_OPS_PER_LAYER = 6                         # dft_emb, w_big, g_all, fc2, fc3, vec


# ----------------------------------------------------------------------------
# DFT matrices implementing torch.fft.rfft / irfft with norm="ortho" (host side)
# ----------------------------------------------------------------------------
def dft_matrices(nl):
    fh = nl // 2 + 1
    n = np.arange(nl)
    k = np.arange(fh)
    s = 1.0 / np.sqrt(nl)
    ang_f = 2.0 * np.pi * np.outer(k, n) / nl          # (fh, nl)
    dft_r = np.cos(ang_f) * s
    dft_i = -np.sin(ang_f) * s
    w = np.full((fh,), 2.0)
    w[0] = 1.0
    if nl % 2 == 0:
        w[-1] = 1.0
    ang_b = 2.0 * np.pi * np.outer(n, k) / nl          # (nl, fh)
    idft_r = np.cos(ang_b) * w[None, :] * s
    idft_i = -np.sin(ang_b) * w[None, :] * s
    return dft_r, dft_i, idft_r, idft_i


# ----------------------------------------------------------------------------
# One FGN layer + ReLU + BatchNorm1d(batch stats) epilogue, fully in-register/VMEM
# ----------------------------------------------------------------------------
def _fgn_layer_body(x, dft_ref, w_ref, g_ref, fc2_ref, fc3_ref, vec_ref):
    f32, bf16 = jnp.float32, jnp.bfloat16
    W = dft_ref.shape[1]       # Fh * 2D  (packed [re | im] per frequency, f-major)
    H1 = g_ref.shape[1]        # N * 64
    H2 = fc2_ref.shape[1]      # N * hidden
    P = fc3_ref.shape[1]

    # rfft(norm="ortho") with tokenEmb folded in: one lane-dense f32 matmul -> packed spectrum
    a = jnp.dot(x, dft_ref[...], preferred_element_type=f32)            # (nb, Fh*2D)

    # 3-layer frequency-domain complex MLP (block-diagonal packed weights) with
    # softshrink residual chain kept as a running accumulator.
    o = a
    z = a                                                                # + pre-MLP spectrum
    for l in range(3):
        w_l = w_ref[l * W:(l + 1) * W, :]                                # (W, W) bf16
        b_l = vec_ref[_ROW_B1 + l:_ROW_B1 + l + 1, :W]                   # (1, W)
        o = jnp.maximum(jnp.dot(o.astype(bf16), w_l,
                                preferred_element_type=f32) + b_l, 0.0)
        z = z + (o - jnp.clip(o, -_LAM, _LAM))                           # softshrink(o)

    def leaky(v):
        return jnp.where(v > 0, v, 0.01 * v)

    # irfft(ortho) + embeddings_10 + fc[0].weight folded into g_all, then fc[1]/fc[2].
    fc1b = vec_ref[_ROW_FC1B:_ROW_FC1B + 1, :H1]
    h1 = leaky(jnp.dot(z.astype(bf16), g_ref[...],
                       preferred_element_type=f32) + fc1b)               # (nb, N*64)
    fc2b = vec_ref[_ROW_FC2B:_ROW_FC2B + 1, :H2]
    h2 = leaky(jnp.dot(h1.astype(bf16), fc2_ref[...],                    # block-diag over N
                       preferred_element_type=f32) + fc2b)               # (nb, N*H)
    fc3b = vec_ref[_ROW_FC3B:_ROW_FC3B + 1, :P]
    # fc3_ref is fc[2].weight tiled over N, so this matmul also sums over the hypervariate axis.
    # TODO(synk): fc[2] bias is added once (post-sum); identical to the old per-n add for N=1.
    out = jnp.dot(h2.astype(bf16), fc3_ref[...], preferred_element_type=f32) + fc3b

    # fused epilogue: F.relu -> BatchNorm1d (training-mode batch stats, two-pass variance)
    zr = jnp.maximum(out, 0.0)
    mean = jnp.mean(zr, axis=0, keepdims=True)
    d = zr - mean
    var = jnp.mean(d * d, axis=0, keepdims=True)
    gamma = vec_ref[_ROW_GAMMA:_ROW_GAMMA + 1, :P]
    beta = vec_ref[_ROW_BETA:_ROW_BETA + 1, :P]
    return d * (gamma * jax.lax.rsqrt(var + 1e-5)) + beta


# ----------------------------------------------------------------------------
# Whole-stack fused kernel: all FGN layers + BN + global_add_pool + concat in one program
# ----------------------------------------------------------------------------
def fgn_conv_kernel(num_layers, x_ref, *refs):
    layer_refs = [refs[i * _OPS_PER_LAYER:(i + 1) * _OPS_PER_LAYER]
                  for i in range(num_layers)]
    oh_ref = refs[num_layers * _OPS_PER_LAYER]
    z_ref = refs[num_layers * _OPS_PER_LAYER + 1]
    g_ref = refs[num_layers * _OPS_PER_LAYER + 2]

    z = x_ref[...]
    zs = []
    for li in range(num_layers):          # static unroll; running z never leaves the chip
        z = _fgn_layer_body(z, *layer_refs[li])
        zs.append(z)
    z_all = zs[0] if num_layers == 1 else jnp.concatenate(zs, axis=1)
    z_ref[...] = z_all                    # one store of the (nodes, num_layers*P) slab
    # global_add_pool for every layer at once: one (G, nodes) x (nodes, num_layers*P) matmul
    g_ref[...] = jnp.dot(oh_ref[...], z_all, preferred_element_type=jnp.float32)


def fgn_conv_forward(x, edge_index, batch_onehot, packed_layers):
    del edge_index                        # the dense Fourier graph operator ignores edges
    num_layers = len(packed_layers)
    num_nodes = x.shape[0]
    G = batch_onehot.shape[0]
    P = packed_layers[0]["fc3"].shape[1]

    operands = [x]
    for pk in packed_layers:
        operands += [pk["dft_emb"], pk["w_big"], pk["g_all"], pk["fc2"], pk["fc3"], pk["vec"]]
    operands.append(batch_onehot)

    full = lambda s: pl.BlockSpec(s, lambda i, _nd=len(s): (0,) * _nd)
    return pl.pallas_call(
        functools.partial(fgn_conv_kernel, num_layers),
        out_shape=(jax.ShapeDtypeStruct((num_nodes, num_layers * P), jnp.float32),
                   jax.ShapeDtypeStruct((G, num_layers * P), jnp.float32)),
        grid=(1,),
        in_specs=[full(op.shape) for op in operands],
        out_specs=(full((num_nodes, num_layers * P)), full((G, num_layers * P))),
        compiler_params=pltpu.CompilerParams(
            dimension_semantics=("arbitrary",),
            vmem_limit_bytes=32 * 1024 * 1024),
    )(*operands)


# ----------------------------------------------------------------------------
# Host-side parameter folding/packing: one FGN layer -> 6 consolidated operands
# ----------------------------------------------------------------------------
def pack_fgn_layer(p, gamma, beta, f_in, seq_length):
    L = seq_length
    NL = f_in
    assert NL % L == 0, "feature dim must be a multiple of seq_length"
    N = NL // L
    Fh = NL // 2 + 1
    D = int(p["emb"].shape[1])
    D2 = 2 * D
    W = Fh * D2
    H64 = int(p["fc1_w"].shape[1])
    H = int(p["fc2_w"].shape[1])
    P = int(p["fc3_w"].shape[1])

    npf = lambda a: np.asarray(a, np.float32)
    dft_r, dft_i, idft_r, idft_i = dft_matrices(NL)
    emb = npf(p["emb"])[0]                                             # (D,)

    # tokenEmb folded into the rfft(ortho) DFT: x @ dft_emb == packed [re|im] spectrum
    de = np.zeros((NL, Fh, D2), np.float32)
    de[:, :, :D] = dft_r.T[:, :, None] * emb[None, None, :]
    de[:, :, D:] = dft_i.T[:, :, None] * emb[None, None, :]
    dft_emb = de.reshape(NL, W)

    # complex MLP weights: packed [[Wr,Wi],[-Wi,Wr]] block, replicated block-diag over Fh
    def pack_w(w):
        wr, wi = npf(w[0]), npf(w[1])
        blk = np.block([[wr, wi], [-wi, wr]])                          # (2D, 2D)
        big = np.zeros((W, W), np.float32)
        for f in range(Fh):
            big[f * D2:(f + 1) * D2, f * D2:(f + 1) * D2] = blk
        return big

    w_big = np.concatenate([pack_w(p["w1"]), pack_w(p["w2"]), pack_w(p["w3"])], axis=0)

    # irfft(ortho) + embeddings_10 + fc[0].weight folded into one (Fh*2D, N*64) matrix
    wc = np.einsum("le,deo->ldo", npf(p["emb10"]),
                   npf(p["fc1_w"]).reshape(D, -1, H64))                # (L, D, 64)
    gr = np.einsum("nlk,ldo->nkdo", idft_r.reshape(N, L, Fh), wc)      # (N, Fh, D, 64)
    gi = np.einsum("nlk,ldo->nkdo", idft_i.reshape(N, L, Fh), wc)
    g_all = np.concatenate([gr, gi], axis=2)                           # (N, Fh, 2D, 64)
    g_all = np.transpose(g_all, (1, 2, 0, 3)).reshape(W, N * H64)

    # fc[1] block-diagonal over N, fc[2] tiled over N (its matmul performs the N-sum)
    fc2 = np.zeros((N * H64, N * H), np.float32)
    for n in range(N):
        fc2[n * H64:(n + 1) * H64, n * H:(n + 1) * H] = npf(p["fc2_w"])
    fc3 = np.tile(npf(p["fc3_w"]), (N, 1))                             # (N*H, P)

    width = max(W, N * H64, N * H, P)
    vec = np.zeros((_NUM_VEC_ROWS, width), np.float32)
    for row, b in zip((_ROW_B1, _ROW_B2, _ROW_B3), (p["b1"], p["b2"], p["b3"])):
        vec[row, :W] = np.tile(np.concatenate([npf(b[0][0]), npf(b[1][0])]), Fh)
    vec[_ROW_FC1B, :N * H64] = np.tile(npf(p["fc1_b"])[0], N)
    vec[_ROW_FC2B, :N * H] = np.tile(npf(p["fc2_b"])[0], N)
    vec[_ROW_FC3B, :P] = npf(p["fc3_b"])[0]
    vec[_ROW_GAMMA, :P] = npf(gamma)[0]
    vec[_ROW_BETA, :P] = npf(beta)[0]

    bf = jnp.bfloat16
    return {"dft_emb": jnp.asarray(dft_emb, jnp.float32),   # first matmul kept f32 for accuracy
            "w_big": jnp.asarray(w_big, bf),
            "g_all": jnp.asarray(g_all, bf),
            "fc2": jnp.asarray(fc2, bf),
            "fc3": jnp.asarray(fc3, bf),
            "vec": jnp.asarray(vec, jnp.float32)}


# ----------------------------------------------------------------------------
# Deterministic parameter construction (shapes follow FGN.__init__)
# ----------------------------------------------------------------------------
def init_fgn_params(key, f_in, embed_size, seq_length, hidden_size, pre_length):
    del f_in
    D, L, H, P = embed_size, seq_length, hidden_size, pre_length
    ks = jax.random.split(key, 11)
    scale = 0.02

    def lin(k, fin, fout):
        k1, k2 = jax.random.split(k)
        bound = 1.0 / np.sqrt(fin)
        w = jax.random.uniform(k1, (fin, fout), jnp.float32, -bound, bound)
        b = jax.random.uniform(k2, (1, fout), jnp.float32, -bound, bound)
        return w, b

    p = {
        "emb": jax.random.normal(ks[0], (1, D), jnp.float32),
        "w1": scale * jax.random.normal(ks[1], (2, D, D), jnp.float32),
        "b1": scale * jax.random.normal(ks[2], (2, 1, D), jnp.float32),
        "w2": scale * jax.random.normal(ks[3], (2, D, D), jnp.float32),
        "b2": scale * jax.random.normal(ks[4], (2, 1, D), jnp.float32),
        "w3": scale * jax.random.normal(ks[5], (2, D, D), jnp.float32),
        "b3": scale * jax.random.normal(ks[6], (2, 1, D), jnp.float32),
        "emb10": jax.random.normal(ks[7], (L, 8), jnp.float32),
    }
    p["fc1_w"], p["fc1_b"] = lin(ks[8], D * 8, 64)
    p["fc2_w"], p["fc2_b"] = lin(ks[9], 64, H)
    p["fc3_w"], p["fc3_b"] = lin(ks[10], H, P)
    return p


if __name__ == "__main__":
    key = jax.random.PRNGKey(0)
    num_nodes, num_graphs = 32, 4
    input_dim = 16       # per-node feature dim; viewed as N * seq_length with N = 1
    seq_length = 16
    embed_size = 32
    hidden_dim = 32
    pre_length = 16      # per-layer output channels (== next layer's input dim)
    num_layers = 2

    kx, ke, kp = jax.random.split(key, 3)
    x = jax.random.normal(kx, (num_nodes, input_dim), jnp.float32)
    edge_index = jax.random.randint(ke, (2, 64), 0, num_nodes)          # unused
    batch = jnp.repeat(jnp.arange(num_graphs, dtype=jnp.int32), num_nodes // num_graphs)
    batch_onehot = jax.nn.one_hot(batch, num_graphs, dtype=jnp.float32).T  # (G, num_nodes)

    layer_keys = jax.random.split(kp, num_layers)
    packed_layers = []
    for i in range(num_layers):
        # TODO(synk): the module builds layer i>0 with feature_size=hidden_dim, but the data
        #             flow feeds it the previous layer's pre_length-wide output; we use that.
        f_in = input_dim if i == 0 else pre_length
        p = init_fgn_params(layer_keys[i], f_in, embed_size,
                            seq_length, hidden_dim, pre_length)
        # BatchNorm1d(pre_length) defaults: weight = 1, bias = 0
        gamma = jnp.ones((1, pre_length), jnp.float32)
        beta = jnp.zeros((1, pre_length), jnp.float32)
        packed_layers.append(pack_fgn_layer(p, gamma, beta, f_in, seq_length))

    z, g = fgn_conv_forward(x, edge_index, batch_onehot, packed_layers)
    jax.block_until_ready((z, g))

    assert z.shape == (num_nodes, pre_length * num_layers)
    assert g.shape == (num_graphs, pre_length * num_layers)
    assert bool(jnp.all(jnp.isfinite(z))) and bool(jnp.all(jnp.isfinite(g)))
    print("KERNEL_OK")
</pallas_src>

<mosaic_0001>
module attributes {stable_mosaic.version = 11 : i64} {
  func.func @fgn_conv_kernel(%arg0: i32, %arg1: memref<32x16xf32, #tpu.memory_space<vmem>>, %arg2: memref<16x576xf32, #tpu.memory_space<vmem>>, %arg3: memref<1728x576xbf16, #tpu.memory_space<vmem>>, %arg4: memref<576x64xbf16, #tpu.memory_space<vmem>>, %arg5: memref<64x32xbf16, #tpu.memory_space<vmem>>, %arg6: memref<32x16xbf16, #tpu.memory_space<vmem>>, %arg7: memref<8x576xf32, #tpu.memory_space<vmem>>, %arg8: memref<16x576xf32, #tpu.memory_space<vmem>>, %arg9: memref<1728x576xbf16, #tpu.memory_space<vmem>>, %arg10: memref<576x64xbf16, #tpu.memory_space<vmem>>, %arg11: memref<64x32xbf16, #tpu.memory_space<vmem>>, %arg12: memref<32x16xbf16, #tpu.memory_space<vmem>>, %arg13: memref<8x576xf32, #tpu.memory_space<vmem>>, %arg14: memref<4x32xf32, #tpu.memory_space<vmem>>, %arg15: memref<32x32xf32, #tpu.memory_space<vmem>>, %arg16: memref<4x32xf32, #tpu.memory_space<vmem>>) attributes {dimension_semantics = [#tpu.dimension_semantics<arbitrary>], iteration_bounds = array<i64: 1>, scalar_prefetch = 0 : i64, scratch_operands = 0 : i64, tpu.core_type = #tpu.core_type<tc>, window_params = [{pipeline_mode = #tpu.pipeline_mode<synchronous>, transform_indices = @transform_0, window_bounds = array<i64: 32, 16>}, {pipeline_mode = #tpu.pipeline_mode<synchronous>, transform_indices = @transform_1, window_bounds = array<i64: 16, 576>}, {pipeline_mode = #tpu.pipeline_mode<synchronous>, transform_indices = @transform_2, window_bounds = array<i64: 1728, 576>}, {pipeline_mode = #tpu.pipeline_mode<synchronous>, transform_indices = @transform_3, window_bounds = array<i64: 576, 64>}, {pipeline_mode = #tpu.pipeline_mode<synchronous>, transform_indices = @transform_4, window_bounds = array<i64: 64, 32>}, {pipeline_mode = #tpu.pipeline_mode<synchronous>, transform_indices = @transform_5, window_bounds = array<i64: 32, 16>}, {pipeline_mode = #tpu.pipeline_mode<synchronous>, transform_indices = @transform_6, window_bounds = array<i64: 8, 576>}, {pipeline_mode = #tpu.pipeline_mode<synchronous>, transform_indices = @transform_7, window_bounds = array<i64: 16, 576>}, {pipeline_mode = #tpu.pipeline_mode<synchronous>, transform_indices = @transform_8, window_bounds = array<i64: 1728, 576>}, {pipeline_mode = #tpu.pipeline_mode<synchronous>, transform_indices = @transform_9, window_bounds = array<i64: 576, 64>}, {pipeline_mode = #tpu.pipeline_mode<synchronous>, transform_indices = @transform_10, window_bounds = array<i64: 64, 32>}, {pipeline_mode = #tpu.pipeline_mode<synchronous>, transform_indices = @transform_11, window_bounds = array<i64: 32, 16>}, {pipeline_mode = #tpu.pipeline_mode<synchronous>, transform_indices = @transform_12, window_bounds = array<i64: 8, 576>}, {pipeline_mode = #tpu.pipeline_mode<synchronous>, transform_indices = @transform_13, window_bounds = array<i64: 4, 32>}, {pipeline_mode = #tpu.pipeline_mode<synchronous>, transform_indices = @transform_14, window_bounds = array<i64: 32, 32>}, {pipeline_mode = #tpu.pipeline_mode<synchronous>, transform_indices = @transform_15, window_bounds = array<i64: 4, 32>}]} {
    %c0 = arith.constant 0 : index
    %c0_0 = arith.constant 0 : index
    %0 = vector.load %arg1[%c0, %c0_0] : memref<32x16xf32, #tpu.memory_space<vmem>>, vector<32x16xf32>
    %c0_1 = arith.constant 0 : index
    %c0_2 = arith.constant 0 : index
    %1 = vector.load %arg2[%c0_1, %c0_2] : memref<16x576xf32, #tpu.memory_space<vmem>>, vector<16x576xf32>
    %cst = arith.constant dense<0.000000e+00> : vector<32x576xf32>
    %2 = tpu.matmul %0, %1, %cst {dimension_numbers = #tpu.dot_dimension_numbers<[1], [0], [0], [1], [0, 0, 1, 1], [], []>} : vector<32x16xf32>, vector<16x576xf32>, vector<32x576xf32> -> vector<32x576xf32>
    %c0_3 = arith.constant 0 : index
    %c0_4 = arith.constant 0 : index
    %3 = vector.load %arg3[%c0_3, %c0_4] : memref<1728x576xbf16, #tpu.memory_space<vmem>>, vector<576x576xbf16>
    %c0_5 = arith.constant 0 : index
    %c0_6 = arith.constant 0 : index
    %4 = vector.load %arg7[%c0_5, %c0_6] : memref<8x576xf32, #tpu.memory_space<vmem>>, vector<1x576xf32>
    %5 = arith.truncf %2 : vector<32x576xf32> to vector<32x576xbf16>
    %cst_7 = arith.constant dense<0.000000e+00> : vector<32x576xf32>
    %6 = tpu.matmul %5, %3, %cst_7 {dimension_numbers = #tpu.dot_dimension_numbers<[1], [0], [0], [1], [0, 0, 1, 1], [], []>} : vector<32x576xbf16>, vector<576x576xbf16>, vector<32x576xf32> -> vector<32x576xf32>
    %7 = vector.broadcast %4 : vector<1x576xf32> to vector<32x576xf32>
    %8 = arith.addf %6, %7 : vector<32x576xf32>
    %cst_8 = arith.constant 0.000000e+00 : f32
    %9 = vector.broadcast %cst_8 : f32 to vector<32x576xf32>
    %10 = arith.maximumf %8, %9 : vector<32x576xf32>
    %cst_9 = arith.constant -0.00999999977 : f32
    %cst_10 = arith.constant 0.00999999977 : f32
    %11 = vector.broadcast %cst_9 : f32 to vector<32x576xf32>
    %12 = arith.maximumf %11, %10 : vector<32x576xf32>
    %13 = vector.broadcast %cst_10 : f32 to vector<32x576xf32>
    %14 = arith.minimumf %13, %12 : vector<32x576xf32>
    %15 = arith.subf %10, %14 : vector<32x576xf32>
    %16 = arith.addf %2, %15 : vector<32x576xf32>
    %c576 = arith.constant 576 : index
    %c0_11 = arith.constant 0 : index
    %17 = vector.load %arg3[%c576, %c0_11] : memref<1728x576xbf16, #tpu.memory_space<vmem>>, vector<576x576xbf16>
    %c1 = arith.constant 1 : index
    %c0_12 = arith.constant 0 : index
    %18 = vector.load %arg7[%c1, %c0_12] : memref<8x576xf32, #tpu.memory_space<vmem>>, vector<1x576xf32>
    %19 = arith.truncf %10 : vector<32x576xf32> to vector<32x576xbf16>
    %cst_13 = arith.constant dense<0.000000e+00> : vector<32x576xf32>
    %20 = tpu.matmul %19, %17, %cst_13 {dimension_numbers = #tpu.dot_dimension_numbers<[1], [0], [0], [1], [0, 0, 1, 1], [], []>} : vector<32x576xbf16>, vector<576x576xbf16>, vector<32x576xf32> -> vector<32x576xf32>
    %21 = vector.broadcast %18 : vector<1x576xf32> to vector<32x576xf32>
    %22 = arith.addf %20, %21 : vector<32x576xf32>
    %cst_14 = arith.constant 0.000000e+00 : f32
    %23 = vector.broadcast %cst_14 : f32 to vector<32x576xf32>
    %24 = arith.maximumf %22, %23 : vector<32x576xf32>
    %cst_15 = arith.constant -0.00999999977 : f32
    %cst_16 = arith.constant 0.00999999977 : f32
    %25 = vector.broadcast %cst_15 : f32 to vector<32x576xf32>
    %26 = arith.maximumf %25, %24 : vector<32x576xf32>
    %27 = vector.broadcast %cst_16 : f32 to vector<32x576xf32>
    %28 = arith.minimumf %27, %26 : vector<32x576xf32>
    %29 = arith.subf %24, %28 : vector<32x576xf32>
    %30 = arith.addf %16, %29 : vector<32x576xf32>
    %c1152 = arith.constant 1152 : index
    %c0_17 = arith.constant 0 : index
    %31 = vector.load %arg3[%c1152, %c0_17] : memref<1728x576xbf16, #tpu.memory_space<vmem>>, vector<576x576xbf16>
    %c2 = arith.constant 2 : index
    %c0_18 = arith.constant 0 : index
    %32 = vector.load %arg7[%c2, %c0_18] : memref<8x576xf32, #tpu.memory_space<vmem>>, vector<1x576xf32>
    %33 = arith.truncf %24 : vector<32x576xf32> to vector<32x576xbf16>
    %cst_19 = arith.constant dense<0.000000e+00> : vector<32x576xf32>
    %34 = tpu.matmul %33, %31, %cst_19 {dimension_numbers = #tpu.dot_dimension_numbers<[1], [0], [0], [1], [0, 0, 1, 1], [], []>} : vector<32x576xbf16>, vector<576x576xbf16>, vector<32x576xf32> -> vector<32x576xf32>
    %35 = vector.broadcast %32 : vector<1x576xf32> to vector<32x576xf32>
    %36 = arith.addf %34, %35 : vector<32x576xf32>
    %cst_20 = arith.constant 0.000000e+00 : f32
    %37 = vector.broadcast %cst_20 : f32 to vector<32x576xf32>
    %38 = arith.maximumf %36, %37 : vector<32x576xf32>
    %cst_21 = arith.constant -0.00999999977 : f32
    %cst_22 = arith.constant 0.00999999977 : f32
    %39 = vector.broadcast %cst_21 : f32 to vector<32x576xf32>
    %40 = arith.maximumf %39, %38 : vector<32x576xf32>
    %41 = vector.broadcast %cst_22 : f32 to vector<32x576xf32>
    %42 = arith.minimumf %41, %40 : vector<32x576xf32>
    %43 = arith.subf %38, %42 : vector<32x576xf32>
    %44 = arith.addf %30, %43 : vector<32x576xf32>
    %c3 = arith.constant 3 : index
    %c0_23 = arith.constant 0 : index
    %45 = vector.load %arg7[%c3, %c0_23] : memref<8x576xf32, #tpu.memory_space<vmem>>, vector<1x64xf32>
    %46 = arith.truncf %44 : vector<32x576xf32> to vector<32x576xbf16>
    %c0_24 = arith.constant 0 : index
    %c0_25 = arith.constant 0 : index
    %47 = vector.load %arg4[%c0_24, %c0_25] : memref<576x64xbf16, #tpu.memory_space<vmem>>, vector<576x64xbf16>
    %cst_26 = arith.constant dense<0.000000e+00> : vector<32x64xf32>
    %48 = tpu.matmul %46, %47, %cst_26 {dimension_numbers = #tpu.dot_dimension_numbers<[1], [0], [0], [1], [0, 0, 1, 1], [], []>} : vector<32x576xbf16>, vector<576x64xbf16>, vector<32x64xf32> -> vector<32x64xf32>
    %49 = vector.broadcast %45 : vector<1x64xf32> to vector<32x64xf32>
    %50 = arith.addf %48, %49 : vector<32x64xf32>
    %cst_27 = arith.constant 0.000000e+00 : f32
    %51 = vector.broadcast %cst_27 : f32 to vector<32x64xf32>
    %52 = arith.cmpf ogt, %50, %51 : vector<32x64xf32>
    %cst_28 = arith.constant 0.00999999977 : f32
    %53 = vector.broadcast %cst_28 : f32 to vector<32x64xf32>
    %54 = arith.mulf %53, %50 : vector<32x64xf32>
    %55 = arith.select %52, %50, %54 : vector<32x64xi1>, vector<32x64xf32>
    %c4 = arith.constant 4 : index
    %c0_29 = arith.constant 0 : index
    %56 = vector.load %arg7[%c4, %c0_29] : memref<8x576xf32, #tpu.memory_space<vmem>>, vector<1x32xf32>
    %57 = arith.truncf %55 : vector<32x64xf32> to vector<32x64xbf16>
    %c0_30 = arith.constant 0 : index
    %c0_31 = arith.constant 0 : index
    %58 = vector.load %arg5[%c0_30, %c0_31] : memref<64x32xbf16, #tpu.memory_space<vmem>>, vector<64x32xbf16>
    %cst_32 = arith.constant dense<0.000000e+00> : vector<32x32xf32>
    %59 = tpu.matmul %57, %58, %cst_32 {dimension_numbers = #tpu.dot_dimension_numbers<[1], [0], [0], [1], [0, 0, 1, 1], [], []>} : vector<32x64xbf16>, vector<64x32xbf16>, vector<32x32xf32> -> vector<32x32xf32>
    %60 = vector.broadcast %56 : vector<1x32xf32> to vector<32x32xf32>
    %61 = arith.addf %59, %60 : vector<32x32xf32>
    %cst_33 = arith.constant 0.000000e+00 : f32
    %62 = vector.broadcast %cst_33 : f32 to vector<32x32xf32>
    %63 = arith.cmpf ogt, %61, %62 : vector<32x32xf32>
    %cst_34 = arith.constant 0.00999999977 : f32
    %64 = vector.broadcast %cst_34 : f32 to vector<32x32xf32>
    %65 = arith.mulf %64, %61 : vector<32x32xf32>
    %66 = arith.select %63, %61, %65 : vector<32x32xi1>, vector<32x32xf32>
    %c5 = arith.constant 5 : index
    %c0_35 = arith.constant 0 : index
    %67 = vector.load %arg7[%c5, %c0_35] : memref<8x576xf32, #tpu.memory_space<vmem>>, vector<1x16xf32>
    %68 = arith.truncf %66 : vector<32x32xf32> to vector<32x32xbf16>
    %c0_36 = arith.constant 0 : index
    %c0_37 = arith.constant 0 : index
    %69 = vector.load %arg6[%c0_36, %c0_37] : memref<32x16xbf16, #tpu.memory_space<vmem>>, vector<32x16xbf16>
    %cst_38 = arith.constant dense<0.000000e+00> : vector<32x16xf32>
    %70 = tpu.matmul %68, %69, %cst_38 {dimension_numbers = #tpu.dot_dimension_numbers<[1], [0], [0], [1], [0, 0, 1, 1], [], []>} : vector<32x32xbf16>, vector<32x16xbf16>, vector<32x16xf32> -> vector<32x16xf32>
    %71 = vector.broadcast %67 : vector<1x16xf32> to vector<32x16xf32>
    %72 = arith.addf %70, %71 : vector<32x16xf32>
    %cst_39 = arith.constant 0.000000e+00 : f32
    %73 = vector.broadcast %cst_39 : f32 to vector<32x16xf32>
    %74 = arith.maximumf %72, %73 : vector<32x16xf32>
    %cst_40 = arith.constant dense<0.000000e+00> : vector<16xf32>
    %75 = vector.multi_reduction <add>, %74, %cst_40 [0] : vector<32x16xf32> to vector<16xf32>
    %76 = vector.shape_cast %75 : vector<16xf32> to vector<1x16xf32>
    %cst_41 = arith.constant 3.200000e+01 : f32
    %77 = vector.broadcast %cst_41 : f32 to vector<1x16xf32>
    %78 = arith.divf %76, %77 : vector<1x16xf32>
    %79 = vector.broadcast %78 : vector<1x16xf32> to vector<32x16xf32>
    %80 = arith.subf %74, %79 : vector<32x16xf32>
    %81 = arith.mulf %80, %80 : vector<32x16xf32>
    %cst_42 = arith.constant dense<0.000000e+00> : vector<16xf32>
    %82 = vector.multi_reduction <add>, %81, %cst_42 [0] : vector<32x16xf32> to vector<16xf32>
    %83 = vector.shape_cast %82 : vector<16xf32> to vector<1x16xf32>
    %cst_43 = arith.constant 3.200000e+01 : f32
    %84 = vector.broadcast %cst_43 : f32 to vector<1x16xf32>
    %85 = arith.divf %83, %84 : vector<1x16xf32>
    %c6 = arith.constant 6 : index
    %c0_44 = arith.constant 0 : index
    %86 = vector.load %arg7[%c6, %c0_44] : memref<8x576xf32, #tpu.memory_space<vmem>>, vector<1x16xf32>
    %c7 = arith.constant 7 : index
    %c0_45 = arith.constant 0 : index
    %87 = vector.load %arg7[%c7, %c0_45] : memref<8x576xf32, #tpu.memory_space<vmem>>, vector<1x16xf32>
    %cst_46 = arith.constant 9.99999974E-6 : f32
    %88 = vector.broadcast %cst_46 : f32 to vector<1x16xf32>
    %89 = arith.addf %85, %88 : vector<1x16xf32>
    %90 = math.rsqrt %89 : vector<1x16xf32>
    %91 = arith.mulf %86, %90 : vector<1x16xf32>
    %92 = vector.broadcast %91 : vector<1x16xf32> to vector<32x16xf32>
    %93 = arith.mulf %80, %92 : vector<32x16xf32>
    %94 = vector.broadcast %87 : vector<1x16xf32> to vector<32x16xf32>
    %95 = arith.addf %93, %94 : vector<32x16xf32>
    %c0_47 = arith.constant 0 : index
    %c0_48 = arith.constant 0 : index
    %96 = vector.load %arg8[%c0_47, %c0_48] : memref<16x576xf32, #tpu.memory_space<vmem>>, vector<16x576xf32>
    %cst_49 = arith.constant dense<0.000000e+00> : vector<32x576xf32>
    %97 = tpu.matmul %95, %96, %cst_49 {dimension_numbers = #tpu.dot_dimension_numbers<[1], [0], [0], [1], [0, 0, 1, 1], [], []>} : vector<32x16xf32>, vector<16x576xf32>, vector<32x576xf32> -> vector<32x576xf32>
    %c0_50 = arith.constant 0 : index
    %c0_51 = arith.constant 0 : index
    %98 = vector.load %arg9[%c0_50, %c0_51] : memref<1728x576xbf16, #tpu.memory_space<vmem>>, vector<576x576xbf16>
    %c0_52 = arith.constant 0 : index
    %c0_53 = arith.constant 0 : index
    %99 = vector.load %arg13[%c0_52, %c0_53] : memref<8x576xf32, #tpu.memory_space<vmem>>, vector<1x576xf32>
    %100 = arith.truncf %97 : vector<32x576xf32> to vector<32x576xbf16>
    %cst_54 = arith.constant dense<0.000000e+00> : vector<32x576xf32>
    %101 = tpu.matmul %100, %98, %cst_54 {dimension_numbers = #tpu.dot_dimension_numbers<[1], [0], [0], [1], [0, 0, 1, 1], [], []>} : vector<32x576xbf16>, vector<576x576xbf16>, vector<32x576xf32> -> vector<32x576xf32>
    %102 = vector.broadcast %99 : vector<1x576xf32> to vector<32x576xf32>
    %103 = arith.addf %101, %102 : vector<32x576xf32>
    %cst_55 = arith.constant 0.000000e+00 : f32
    %104 = vector.broadcast %cst_55 : f32 to vector<32x576xf32>
    %105 = arith.maximumf %103, %104 : vector<32x576xf32>
    %cst_56 = arith.constant -0.00999999977 : f32
    %cst_57 = arith.constant 0.00999999977 : f32
    %106 = vector.broadcast %cst_56 : f32 to vector<32x576xf32>
    %107 = arith.maximumf %106, %105 : vector<32x576xf32>
    %108 = vector.broadcast %cst_57 : f32 to vector<32x576xf32>
    %109 = arith.minimumf %108, %107 : vector<32x576xf32>
    %110 = arith.subf %105, %109 : vector<32x576xf32>
    %111 = arith.addf %97, %110 : vector<32x576xf32>
    %c576_58 = arith.constant 576 : index
    %c0_59 = arith.constant 0 : index
    %112 = vector.load %arg9[%c576_58, %c0_59] : memref<1728x576xbf16, #tpu.memory_space<vmem>>, vector<576x576xbf16>
    %c1_60 = arith.constant 1 : index
    %c0_61 = arith.constant 0 : index
    %113 = vector.load %arg13[%c1_60, %c0_61] : memref<8x576xf32, #tpu.memory_space<vmem>>, vector<1x576xf32>
    %114 = arith.truncf %105 : vector<32x576xf32> to vector<32x576xbf16>
    %cst_62 = arith.constant dense<0.000000e+00> : vector<32x576xf32>
    %115 = tpu.matmul %114, %112, %cst_62 {dimension_numbers = #tpu.dot_dimension_numbers<[1], [0], [0], [1], [0, 0, 1, 1], [], []>} : vector<32x576xbf16>, vector<576x576xbf16>, vector<32x576xf32> -> vector<32x576xf32>
    %116 = vector.broadcast %113 : vector<1x576xf32> to vector<32x576xf32>
    %117 = arith.addf %115, %116 : vector<32x576xf32>
    %cst_63 = arith.constant 0.000000e+00 : f32
    %118 = vector.broadcast %cst_63 : f32 to vector<32x576xf32>
    %119 = arith.maximumf %117, %118 : vector<32x576xf32>
    %cst_64 = arith.constant -0.00999999977 : f32
    %cst_65 = arith.constant 0.00999999977 : f32
    %120 = vector.broadcast %cst_64 : f32 to vector<32x576xf32>
    %121 = arith.maximumf %120, %119 : vector<32x576xf32>
    %122 = vector.broadcast %cst_65 : f32 to vector<32x576xf32>
    %123 = arith.minimumf %122, %121 : vector<32x576xf32>
    %124 = arith.subf %119, %123 : vector<32x576xf32>
    %125 = arith.addf %111, %124 : vector<32x576xf32>
    %c1152_66 = arith.constant 1152 : index
    %c0_67 = arith.constant 0 : index
    %126 = vector.load %arg9[%c1152_66, %c0_67] : memref<1728x576xbf16, #tpu.memory_space<vmem>>, vector<576x576xbf16>
    %c2_68 = arith.constant 2 : index
    %c0_69 = arith.constant 0 : index
    %127 = vector.load %arg13[%c2_68, %c0_69] : memref<8x576xf32, #tpu.memory_space<vmem>>, vector<1x576xf32>
    %128 = arith.truncf %119 : vector<32x576xf32> to vector<32x576xbf16>
    %cst_70 = arith.constant dense<0.000000e+00> : vector<32x576xf32>
    %129 = tpu.matmul %128, %126, %cst_70 {dimension_numbers = #tpu.dot_dimension_numbers<[1], [0], [0], [1], [0, 0, 1, 1], [], []>} : vector<32x576xbf16>, vector<576x576xbf16>, vector<32x576xf32> -> vector<32x576xf32>
    %130 = vector.broadcast %127 : vector<1x576xf32> to vector<32x576xf32>
    %131 = arith.addf %129, %130 : vector<32x576xf32>
    %cst_71 = arith.constant 0.000000e+00 : f32
    %132 = vector.broadcast %cst_71 : f32 to vector<32x576xf32>
    %133 = arith.maximumf %131, %132 : vector<32x576xf32>
    %cst_72 = arith.constant -0.00999999977 : f32
    %cst_73 = arith.constant 0.00999999977 : f32
    %134 = vector.broadcast %cst_72 : f32 to vector<32x576xf32>
    %135 = arith.maximumf %134, %133 : vector<32x576xf32>
    %136 = vector.broadcast %cst_73 : f32 to vector<32x576xf32>
    %137 = arith.minimumf %136, %135 : vector<32x576xf32>
    %138 = arith.subf %133, %137 : vector<32x576xf32>
    %139 = arith.addf %125, %138 : vector<32x576xf32>
    %c3_74 = arith.constant 3 : index
    %c0_75 = arith.constant 0 : index
    %140 = vector.load %arg13[%c3_74, %c0_75] : memref<8x576xf32, #tpu.memory_space<vmem>>, vector<1x64xf32>
    %141 = arith.truncf %139 : vector<32x576xf32> to vector<32x576xbf16>
    %c0_76 = arith.constant 0 : index
    %c0_77 = arith.constant 0 : index
    %142 = vector.load %arg10[%c0_76, %c0_77] : memref<576x64xbf16, #tpu.memory_space<vmem>>, vector<576x64xbf16>
    %cst_78 = arith.constant dense<0.000000e+00> : vector<32x64xf32>
    %143 = tpu.matmul %141, %142, %cst_78 {dimension_numbers = #tpu.dot_dimension_numbers<[1], [0], [0], [1], [0, 0, 1, 1], [], []>} : vector<32x576xbf16>, vector<576x64xbf16>, vector<32x64xf32> -> vector<32x64xf32>
    %144 = vector.broadcast %140 : vector<1x64xf32> to vector<32x64xf32>
    %145 = arith.addf %143, %144 : vector<32x64xf32>
    %cst_79 = arith.constant 0.000000e+00 : f32
    %146 = vector.broadcast %cst_79 : f32 to vector<32x64xf32>
    %147 = arith.cmpf ogt, %145, %146 : vector<32x64xf32>
    %cst_80 = arith.constant 0.00999999977 : f32
    %148 = vector.broadcast %cst_80 : f32 to vector<32x64xf32>
    %149 = arith.mulf %148, %145 : vector<32x64xf32>
    %150 = arith.select %147, %145, %149 : vector<32x64xi1>, vector<32x64xf32>
    %c4_81 = arith.constant 4 : index
    %c0_82 = arith.constant 0 : index
    %151 = vector.load %arg13[%c4_81, %c0_82] : memref<8x576xf32, #tpu.memory_space<vmem>>, vector<1x32xf32>
    %152 = arith.truncf %150 : vector<32x64xf32> to vector<32x64xbf16>
    %c0_83 = arith.constant 0 : index
    %c0_84 = arith.constant 0 : index
    %153 = vector.load %arg11[%c0_83, %c0_84] : memref<64x32xbf16, #tpu.memory_space<vmem>>, vector<64x32xbf16>
    %cst_85 = arith.constant dense<0.000000e+00> : vector<32x32xf32>
    %154 = tpu.matmul %152, %153, %cst_85 {dimension_numbers = #tpu.dot_dimension_numbers<[1], [0], [0], [1], [0, 0, 1, 1], [], []>} : vector<32x64xbf16>, vector<64x32xbf16>, vector<32x32xf32> -> vector<32x32xf32>
    %155 = vector.broadcast %151 : vector<1x32xf32> to vector<32x32xf32>
    %156 = arith.addf %154, %155 : vector<32x32xf32>
    %cst_86 = arith.constant 0.000000e+00 : f32
    %157 = vector.broadcast %cst_86 : f32 to vector<32x32xf32>
    %158 = arith.cmpf ogt, %156, %157 : vector<32x32xf32>
    %cst_87 = arith.constant 0.00999999977 : f32
    %159 = vector.broadcast %cst_87 : f32 to vector<32x32xf32>
    %160 = arith.mulf %159, %156 : vector<32x32xf32>
    %161 = arith.select %158, %156, %160 : vector<32x32xi1>, vector<32x32xf32>
    %c5_88 = arith.constant 5 : index
    %c0_89 = arith.constant 0 : index
    %162 = vector.load %arg13[%c5_88, %c0_89] : memref<8x576xf32, #tpu.memory_space<vmem>>, vector<1x16xf32>
    %163 = arith.truncf %161 : vector<32x32xf32> to vector<32x32xbf16>
    %c0_90 = arith.constant 0 : index
    %c0_91 = arith.constant 0 : index
    %164 = vector.load %arg12[%c0_90, %c0_91] : memref<32x16xbf16, #tpu.memory_space<vmem>>, vector<32x16xbf16>
    %cst_92 = arith.constant dense<0.000000e+00> : vector<32x16xf32>
    %165 = tpu.matmul %163, %164, %cst_92 {dimension_numbers = #tpu.dot_dimension_numbers<[1], [0], [0], [1], [0, 0, 1, 1], [], []>} : vector<32x32xbf16>, vector<32x16xbf16>, vector<32x16xf32> -> vector<32x16xf32>
    %166 = vector.broadcast %162 : vector<1x16xf32> to vector<32x16xf32>
    %167 = arith.addf %165, %166 : vector<32x16xf32>
    %cst_93 = arith.constant 0.000000e+00 : f32
    %168 = vector.broadcast %cst_93 : f32 to vector<32x16xf32>
    %169 = arith.maximumf %167, %168 : vector<32x16xf32>
    %cst_94 = arith.constant dense<0.000000e+00> : vector<16xf32>
    %170 = vector.multi_reduction <add>, %169, %cst_94 [0] : vector<32x16xf32> to vector<16xf32>
    %171 = vector.shape_cast %170 : vector<16xf32> to vector<1x16xf32>
    %cst_95 = arith.constant 3.200000e+01 : f32
    %172 = vector.broadcast %cst_95 : f32 to vector<1x16xf32>
    %173 = arith.divf %171, %172 : vector<1x16xf32>
    %174 = vector.broadcast %173 : vector<1x16xf32> to vector<32x16xf32>
    %175 = arith.subf %169, %174 : vector<32x16xf32>
    %176 = arith.mulf %175, %175 : vector<32x16xf32>
    %cst_96 = arith.constant dense<0.000000e+00> : vector<16xf32>
    %177 = vector.multi_reduction <add>, %176, %cst_96 [0] : vector<32x16xf32> to vector<16xf32>
    %178 = vector.shape_cast %177 : vector<16xf32> to vector<1x16xf32>
    %cst_97 = arith.constant 3.200000e+01 : f32
    %179 = vector.broadcast %cst_97 : f32 to vector<1x16xf32>
    %180 = arith.divf %178, %179 : vector<1x16xf32>
    %c6_98 = arith.constant 6 : index
    %c0_99 = arith.constant 0 : index
    %181 = vector.load %arg13[%c6_98, %c0_99] : memref<8x576xf32, #tpu.memory_space<vmem>>, vector<1x16xf32>
    %c7_100 = arith.constant 7 : index
    %c0_101 = arith.constant 0 : index
    %182 = vector.load %arg13[%c7_100, %c0_101] : memref<8x576xf32, #tpu.memory_space<vmem>>, vector<1x16xf32>
    %cst_102 = arith.constant 9.99999974E-6 : f32
    %183 = vector.broadcast %cst_102 : f32 to vector<1x16xf32>
    %184 = arith.addf %180, %183 : vector<1x16xf32>
    %185 = math.rsqrt %184 : vector<1x16xf32>
    %186 = arith.mulf %181, %185 : vector<1x16xf32>
    %187 = vector.broadcast %186 : vector<1x16xf32> to vector<32x16xf32>
    %188 = arith.mulf %175, %187 : vector<32x16xf32>
    %189 = vector.broadcast %182 : vector<1x16xf32> to vector<32x16xf32>
    %190 = arith.addf %188, %189 : vector<32x16xf32>
    %191 = tpu.concatenate %95, %190 in 1 : vector<32x16xf32>, vector<32x16xf32> -> vector<32x32xf32>
    %c0_103 = arith.constant 0 : index
    %c0_104 = arith.constant 0 : index
    %192 = vector.load %arg15[%c0_103, %c0_104] : memref<32x32xf32, #tpu.memory_space<vmem>>, vector<32x32xf32>
    tpu.vector_store %arg15[%c0_103, %c0_104], %191 {strides = array<i32>} : memref<32x32xf32, #tpu.memory_space<vmem>>, vector<32x32xf32>,
    %c0_105 = arith.constant 0 : index
    %c0_106 = arith.constant 0 : index
    %193 = vector.load %arg14[%c0_105, %c0_106] : memref<4x32xf32, #tpu.memory_space<vmem>>, vector<4x32xf32>
    %cst_107 = arith.constant dense<0.000000e+00> : vector<4x32xf32>
    %194 = tpu.matmul %193, %191, %cst_107 {dimension_numbers = #tpu.dot_dimension_numbers<[1], [0], [0], [1], [0, 0, 1, 1], [], []>} : vector<4x32xf32>, vector<32x32xf32>, vector<4x32xf32> -> vector<4x32xf32>
    %c0_108 = arith.constant 0 : index
    %c0_109 = arith.constant 0 : index
    %195 = vector.load %arg16[%c0_108, %c0_109] : memref<4x32xf32, #tpu.memory_space<vmem>>, vector<4x32xf32>
    tpu.vector_store %arg16[%c0_108, %c0_109], %194 {strides = array<i32>} : memref<4x32xf32, #tpu.memory_space<vmem>>, vector<4x32xf32>,
    return
  }
  func.func @transform_0(%arg0: i32) -> (i32, i32) {
    %c0_i32 = arith.constant 0 : i32
    %c0_i32_0 = arith.constant 0 : i32
    %c0_i32_1 = arith.constant 0 : i32
    return %c0_i32, %c0_i32_0 : i32, i32
  }
  func.func @transform_1(%arg0: i32) -> (i32, i32) {
    %c0_i32 = arith.constant 0 : i32
    %c0_i32_0 = arith.constant 0 : i32
    %c0_i32_1 = arith.constant 0 : i32
    return %c0_i32, %c0_i32_0 : i32, i32
  }
  func.func @transform_2(%arg0: i32) -> (i32, i32) {
    %c0_i32 = arith.constant 0 : i32
    %c0_i32_0 = arith.constant 0 : i32
    %c0_i32_1 = arith.constant 0 : i32
    return %c0_i32, %c0_i32_0 : i32, i32
  }
  func.func @transform_3(%arg0: i32) -> (i32, i32) {
    %c0_i32 = arith.constant 0 : i32
    %c0_i32_0 = arith.constant 0 : i32
    %c0_i32_1 = arith.constant 0 : i32
    return %c0_i32, %c0_i32_0 : i32, i32
  }
  func.func @transform_4(%arg0: i32) -> (i32, i32) {
    %c0_i32 = arith.constant 0 : i32
    %c0_i32_0 = arith.constant 0 : i32
    %c0_i32_1 = arith.constant 0 : i32
    return %c0_i32, %c0_i32_0 : i32, i32
  }
  func.func @transform_5(%arg0: i32) -> (i32, i32) {
    %c0_i32 = arith.constant 0 : i32
    %c0_i32_0 = arith.constant 0 : i32
    %c0_i32_1 = arith.constant 0 : i32
    return %c0_i32, %c0_i32_0 : i32, i32
  }
  func.func @transform_6(%arg0: i32) -> (i32, i32) {
    %c0_i32 = arith.constant 0 : i32
    %c0_i32_0 = arith.constant 0 : i32
    %c0_i32_1 = arith.constant 0 : i32
    return %c0_i32, %c0_i32_0 : i32, i32
  }
  func.func @transform_7(%arg0: i32) -> (i32, i32) {
    %c0_i32 = arith.constant 0 : i32
    %c0_i32_0 = arith.constant 0 : i32
    %c0_i32_1 = arith.constant 0 : i32
    return %c0_i32, %c0_i32_0 : i32, i32
  }
  func.func @transform_8(%arg0: i32) -> (i32, i32) {
    %c0_i32 = arith.constant 0 : i32
    %c0_i32_0 = arith.constant 0 : i32
    %c0_i32_1 = arith.constant 0 : i32
    return %c0_i32, %c0_i32_0 : i32, i32
  }
  func.func @transform_9(%arg0: i32) -> (i32, i32) {
    %c0_i32 = arith.constant 0 : i32
    %c0_i32_0 = arith.constant 0 : i32
    %c0_i32_1 = arith.constant 0 : i32
    return %c0_i32, %c0_i32_0 : i32, i32
  }
  func.func @transform_10(%arg0: i32) -> (i32, i32) {
    %c0_i32 = arith.constant 0 : i32
    %c0_i32_0 = arith.constant 0 : i32
    %c0_i32_1 = arith.constant 0 : i32
    return %c0_i32, %c0_i32_0 : i32, i32
  }
  func.func @transform_11(%arg0: i32) -> (i32, i32) {
    %c0_i32 = arith.constant 0 : i32
    %c0_i32_0 = arith.constant 0 : i32
    %c0_i32_1 = arith.constant 0 : i32
    return %c0_i32, %c0_i32_0 : i32, i32
  }
  func.func @transform_12(%arg0: i32) -> (i32, i32) {
    %c0_i32 = arith.constant 0 : i32
    %c0_i32_0 = arith.constant 0 : i32
    %c0_i32_1 = arith.constant 0 : i32
    return %c0_i32, %c0_i32_0 : i32, i32
  }
  func.func @transform_13(%arg0: i32) -> (i32, i32) {
    %c0_i32 = arith.constant 0 : i32
    %c0_i32_0 = arith.constant 0 : i32
    %c0_i32_1 = arith.constant 0 : i32
    return %c0_i32, %c0_i32_0 : i32, i32
  }
  func.func @transform_14(%arg0: i32) -> (i32, i32) {
    %c0_i32 = arith.constant 0 : i32
    %c0_i32_0 = arith.constant 0 : i32
    %c0_i32_1 = arith.constant 0 : i32
    return %c0_i32, %c0_i32_0 : i32, i32
  }
  func.func @transform_15(%arg0: i32) -> (i32, i32) {
    %c0_i32 = arith.constant 0 : i32
    %c0_i32_0 = arith.constant 0 : i32
    %c0_i32_1 = arith.constant 0 : i32
    return %c0_i32, %c0_i32_0 : i32, i32
  }
}

</mosaic_0001>

<llo_original>
// kernel: tpu_custom_call.1
$region0: #{tpu_custom_call.1}
  #allocation0 [shape = 'u32[]', space=smem, size = 0x4, offset = 0x4, fixed_abs, tag = 'smem constant byte address 0x4 - core index']
  #allocation1 [shape = 'u32[72,128]{1,0:T(1,128)}', space=vmem, size = 0x9000, scoped, tag = 'internal scratch']
  %s0 = inlined_call_operand.vmem [shape: f32[32,16], index: 0, kind: input, shape index: {}]
  %s1 = inlined_call_operand.vmem [shape: f32[16,576], index: 1, kind: input, shape index: {}]
  %s2 = inlined_call_operand.vmem [shape: bf16[1728,576], index: 2, kind: input, shape index: {}]
  %s3 = inlined_call_operand.vmem [shape: bf16[576,64], index: 3, kind: input, shape index: {}]
  %s4 = inlined_call_operand.vmem [shape: bf16[64,32], index: 4, kind: input, shape index: {}]
  %s5 = inlined_call_operand.vmem [shape: bf16[32,16], index: 5, kind: input, shape index: {}]
  %s6 = inlined_call_operand.vmem [shape: f32[8,576], index: 6, kind: input, shape index: {}]
  %s7 = inlined_call_operand.vmem [shape: f32[16,576], index: 7, kind: input, shape index: {}]
  %s8 = inlined_call_operand.vmem [shape: bf16[1728,576], index: 8, kind: input, shape index: {}]
  %s9 = inlined_call_operand.vmem [shape: bf16[576,64], index: 9, kind: input, shape index: {}]
  %s10 = inlined_call_operand.vmem [shape: bf16[64,32], index: 10, kind: input, shape index: {}]
  %s11 = inlined_call_operand.vmem [shape: bf16[32,16], index: 11, kind: input, shape index: {}]
  %s12 = inlined_call_operand.vmem [shape: f32[8,576], index: 12, kind: input, shape index: {}]
  %s13 = inlined_call_operand.vmem [shape: f32[4,32], index: 13, kind: input, shape index: {}]
  %s14 = inlined_call_operand.hbm [shape: f32[32,32], index: 14, kind: output, shape index: {0}]
  %s15 = inlined_call_operand.hbm [shape: f32[4,32], index: 15, kind: output, shape index: {1}]
  %16 = xla_tuple %s14, %s15
  %s17 = sld [smem:[#allocation0]]
  $region74: #{tpu_custom_call.1} parent=0
    _
  %s19 = ssub.s32 1, %s17
  %s20 = scalar_select 0, %s19, %s17
  $region1: #{tpu_custom_call.1} parent=0
    #allocation2 [shape = 'u8[16384]{0}', space=vmem, size = 0x4000, scoped, tag = 'output window, operand 0, single buffered']
    #allocation3 [shape = 's32[1]{0}', space=sflag, size = 0x4, scoped, tag = 'scoped memory for tpu_custom_call.1']
    #allocation4 [shape = 'u8[2048]{0}', space=vmem, size = 0x800, scoped, tag = 'output window, operand 1, single buffered']
    #allocation5 [shape = 's32[1]{0}', space=sflag, size = 0x4, scoped, tag = 'scoped memory for tpu_custom_call.1']
    %21 = vsyncpa [#allocation3], 0
    %22 = vsyncpa [#allocation5], 0
    // Predicated region
    $region2: #{tpu_custom_call.1} parent=1 // pred_check
      _
    $region3: #{tpu_custom_call.1} parent=1 // pred_check_branch
      %24 = sbr.rel (0) target = $region5
    $region4: #{tpu_custom_call.1} parent=1 // pred_region
      _
    $region5: #{tpu_custom_call.1} parent=1 // pred_fallthru
      _
    // Predicated region
    $region6: #{tpu_custom_call.1} parent=1 // pred_check
      _
    $region7: #{tpu_custom_call.1} parent=1 // pred_check_branch
      %26 = sbr.rel (0) target = $region9
    $region8: #{tpu_custom_call.1} parent=1 // pred_region
      _
    $region9: #{tpu_custom_call.1} parent=1 // pred_fallthru
      _
    // Predicated region
    $region10: #{tpu_custom_call.1} parent=1 // pred_check
      _
    $region11: #{tpu_custom_call.1} parent=1 // pred_check_branch
      %28 = sbr.rel (0) target = $region13
    $region12: #{tpu_custom_call.1} parent=1 // pred_region
      _
    $region13: #{tpu_custom_call.1} parent=1 // pred_fallthru
      _
    // Predicated region
    $region14: #{tpu_custom_call.1} parent=1 // pred_check
      _
    $region15: #{tpu_custom_call.1} parent=1 // pred_check_branch
      %30 = sbr.rel (0) target = $region17
    $region16: #{tpu_custom_call.1} parent=1 // pred_region
      _
    $region17: #{tpu_custom_call.1} parent=1 // pred_fallthru
      _
    // Predicated region
    $region18: #{tpu_custom_call.1} parent=1 // pred_check
      _
    $region19: #{tpu_custom_call.1} parent=1 // pred_check_branch
      %32 = sbr.rel (0) target = $region21
    $region20: #{tpu_custom_call.1} parent=1 // pred_region
      _
    $region21: #{tpu_custom_call.1} parent=1 // pred_fallthru
      _
    // Predicated region
    $region22: #{tpu_custom_call.1} parent=1 // pred_check
      _
    $region23: #{tpu_custom_call.1} parent=1 // pred_check_branch
      %34 = sbr.rel (0) target = $region25
    $region24: #{tpu_custom_call.1} parent=1 // pred_region
      _
    $region25: #{tpu_custom_call.1} parent=1 // pred_fallthru
      _
    // Predicated region
    $region26: #{tpu_custom_call.1} parent=1 // pred_check
      _
    $region27: #{tpu_custom_call.1} parent=1 // pred_check_branch
      %36 = sbr.rel (0) target = $region29
    $region28: #{tpu_custom_call.1} parent=1 // pred_region
      _
    $region29: #{tpu_custom_call.1} parent=1 // pred_fallthru
      _
    // Predicated region
    $region30: #{tpu_custom_call.1} parent=1 // pred_check
      _
    $region31: #{tpu_custom_call.1} parent=1 // pred_check_branch
      %38 = sbr.rel (0) target = $region33
    $region32: #{tpu_custom_call.1} parent=1 // pred_region
      _
    $region33: #{tpu_custom_call.1} parent=1 // pred_fallthru
      _
    // Predicated region
    $region34: #{tpu_custom_call.1} parent=1 // pred_check
      _
    $region35: #{tpu_custom_call.1} parent=1 // pred_check_branch
      %40 = sbr.rel (0) target = $region37
    $region36: #{tpu_custom_call.1} parent=1 // pred_region
      _
    $region37: #{tpu_custom_call.1} parent=1 // pred_fallthru
      _
    // Predicated region
    $region38: #{tpu_custom_call.1} parent=1 // pred_check
      _
    $region39: #{tpu_custom_call.1} parent=1 // pred_check_branch
      %42 = sbr.rel (0) target = $region41
    $region40: #{tpu_custom_call.1} parent=1 // pred_region
      _
    $region41: #{tpu_custom_call.1} parent=1 // pred_fallthru
      _
    // Predicated region
    $region42: #{tpu_custom_call.1} parent=1 // pred_check
      _
    $region43: #{tpu_custom_call.1} parent=1 // pred_check_branch
      %44 = sbr.rel (0) target = $region45
    $region44: #{tpu_custom_call.1} parent=1 // pred_region
      _
    $region45: #{tpu_custom_call.1} parent=1 // pred_fallthru
      _
    // Predicated region
    $region46: #{tpu_custom_call.1} parent=1 // pred_check
      _
    $region47: #{tpu_custom_call.1} parent=1 // pred_check_branch
      %46 = sbr.rel (0) target = $region49
    $region48: #{tpu_custom_call.1} parent=1 // pred_region
      _
    $region49: #{tpu_custom_call.1} parent=1 // pred_fallthru
      _
    // Predicated region
    $region50: #{tpu_custom_call.1} parent=1 // pred_check
      _
    $region51: #{tpu_custom_call.1} parent=1 // pred_check_branch
      %48 = sbr.rel (0) target = $region53
    $region52: #{tpu_custom_call.1} parent=1 // pred_region
      _
    $region53: #{tpu_custom_call.1} parent=1 // pred_fallthru
      _
    // Predicated region
    $region54: #{tpu_custom_call.1} parent=1 // pred_check
      _
    $region55: #{tpu_custom_call.1} parent=1 // pred_check_branch
      %50 = sbr.rel (0) target = $region57
    $region56: #{tpu_custom_call.1} parent=1 // pred_region
      _
    $region57: #{tpu_custom_call.1} parent=1 // pred_fallthru
      _
    %v52 = vld [vmem:[%s0] sm:$0xff]
    %v53 = vld [vmem:[%s0 + $0x8] sm:$0xff]
    %v54 = vld [vmem:[%s0 + $0x10] sm:$0xff]
    %v55 = vld [vmem:[%s0 + $0x18] sm:$0xff]
    %v56 = vld [vmem:[%s1] sm:$0xff]
    %v57 = vld [vmem:[%s1 + $0x8] sm:$0xff]
    %v58 = vld [vmem:[%s1 + $0x10] sm:$0xff]
    %v59 = vld [vmem:[%s1 + $0x18] sm:$0xff]
    %v60 = vld [vmem:[%s1 + $0x20] sm:$0xff]
    %v61 = vld [vmem:[%s1 + $0x28] sm:$0xff]
    %v62 = vld [vmem:[%s1 + $0x30] sm:$0xff]
    %v63 = vld [vmem:[%s1 + $0x38] sm:$0xff]
    %v64 = vld [vmem:[%s1 + $0x40] sm:$0xff]
    %v65 = vld [vmem:[%s1 + $0x48] sm:$0xff]
    %vm66 = vcmask 130048
    %v68 = vsel %vm66, %v52, 0
    %v71 = vsel %vm66, %v53, 0
    %v74 = vsel %vm66, %v54, 0
    %v77 = vsel %vm66, %v55, 0
    %79 = vmatpush.msra.mxu0 0.0
    %80 = vmatpush.msra.mxu0 0.0
    %81 = vmatpush.msra.mxu0 0.0
    %82 = vmatpush.msra.mxu0 0.0
    %83 = vmatpush.msra.mxu0 0.0
    %84 = vmatpush.msra.mxu0 0.0
    %85 = vmatpush.msra.mxu0 0.0
    %86 = vmatpush.msra.mxu0 0.0
    %87 = vmatpush.msra.mxu0 0.0
    %88 = vmatpush.msra.mxu0 0.0
    %89 = vmatpush.msra.mxu0 0.0
    %90 = vmatpush.msra.mxu0 0.0
    %91 = vmatpush.msra.mxu0 0.0
    %92 = vmatpush.msra.mxu0 0.0
    %93 = vmatpush.msra.mxu0 %v61
    %94 = vmatpush.msra.mxu0 %v56
    %95 = vmatmul.f32.gmra.mxu0 %v68
    %v96 = vpop.f32.mrf.mxu0
    %v97 = vadd.f32 0.0, %v96
    %98 = vmatmul.f32.gmra.mxu0 %v71
    %v99 = vpop.f32.mrf.mxu0
    %v100 = vadd.f32 0.0, %v99
    %101 = vmatmul.f32.gmra.mxu0 %v74
    %v102 = vpop.f32.mrf.mxu0
    %v103 = vadd.f32 0.0, %v102
    %104 = vmatmul.f32.gmra.mxu0 %v77
    %v105 = vpop.f32.mrf.mxu0
    %v106 = vadd.f32 0.0, %v105
    %107 = vdwg.mxu0
    %108 = vmatpush.msra.mxu0 0.0
    %109 = vmatpush.msra.mxu0 0.0
    %110 = vmatpush.msra.mxu0 0.0
    %111 = vmatpush.msra.mxu0 0.0
    %112 = vmatpush.msra.mxu0 0.0
    %113 = vmatpush.msra.mxu0 0.0
    %114 = vmatpush.msra.mxu0 0.0
    %115 = vmatpush.msra.mxu0 0.0
    %116 = vmatpush.msra.mxu0 0.0
    %117 = vmatpush.msra.mxu0 0.0
    %118 = vmatpush.msra.mxu0 0.0
    %119 = vmatpush.msra.mxu0 0.0
    %120 = vmatpush.msra.mxu0 0.0
    %121 = vmatpush.msra.mxu0 0.0
    %122 = vmatpush.msra.mxu0 %v62
    %123 = vmatpush.msra.mxu0 %v57
    %124 = vmatmul.f32.gmra.mxu0 %v68
    %v125 = vpop.f32.mrf.mxu0
    %v126 = vadd.f32 0.0, %v125
    %127 = vmatmul.f32.gmra.mxu0 %v71
    %v128 = vpop.f32.mrf.mxu0
    %v129 = vadd.f32 0.0, %v128
    %130 = vmatmul.f32.gmra.mxu0 %v74
    %v131 = vpop.f32.mrf.mxu0
    %v132 = vadd.f32 0.0, %v131
    %133 = vmatmul.f32.gmra.mxu0 %v77
    %v134 = vpop.f32.mrf.mxu0
    %v135 = vadd.f32 0.0, %v134
    %136 = vdwg.mxu0
    %137 = vmatpush.msra.mxu0 0.0
    %138 = vmatpush.msra.mxu0 0.0
    %139 = vmatpush.msra.mxu0 0.0
    %140 = vmatpush.msra.mxu0 0.0
    %141 = vmatpush.msra.mxu0 0.0
    %142 = vmatpush.msra.mxu0 0.0
    %143 = vmatpush.msra.mxu0 0.0
    %144 = vmatpush.msra.mxu0 0.0
    %145 = vmatpush.msra.mxu0 0.0
    %146 = vmatpush.msra.mxu0 0.0
    %147 = vmatpush.msra.mxu0 0.0
    %148 = vmatpush.msra.mxu0 0.0
    %149 = vmatpush.msra.mxu0 0.0
    %150 = vmatpush.msra.mxu0 0.0
    %151 = vmatpush.msra.mxu0 %v63
    %152 = vmatpush.msra.mxu0 %v58
    %153 = vmatmul.f32.gmra.mxu0 %v68
    %v154 = vpop.f32.mrf.mxu0
    %v155 = vadd.f32 0.0, %v154
    %156 = vmatmul.f32.gmra.mxu0 %v71
    %v157 = vpop.f32.mrf.mxu0
    %v158 = vadd.f32 0.0, %v157
    %159 = vmatmul.f32.gmra.mxu0 %v74
    %v160 = vpop.f32.mrf.mxu0
    %v161 = vadd.f32 0.0, %v160
    %162 = vmatmul.f32.gmra.mxu0 %v77
    %v163 = vpop.f32.mrf.mxu0
    %v164 = vadd.f32 0.0, %v163
    %165 = vdwg.mxu0
    %166 = vmatpush.msra.mxu0 0.0
    %167 = vmatpush.msra.mxu0 0.0
    %168 = vmatpush.msra.mxu0 0.0
    %169 = vmatpush.msra.mxu0 0.0
    %170 = vmatpush.msra.mxu0 0.0
    %171 = vmatpush.msra.mxu0 0.0
    %172 = vmatpush.msra.mxu0 0.0
    %173 = vmatpush.msra.mxu0 0.0
    %174 = vmatpush.msra.mxu0 0.0
    %175 = vmatpush.msra.mxu0 0.0
    %176 = vmatpush.msra.mxu0 0.0
    %177 = vmatpush.msra.mxu0 0.0
    %178 = vmatpush.msra.mxu0 0.0
    %179 = vmatpush.msra.mxu0 0.0
    %180 = vmatpush.msra.mxu0 %v64
    %181 = vmatpush.msra.mxu0 %v59
    %182 = vmatmul.f32.gmra.mxu0 %v68
    %v183 = vpop.f32.mrf.mxu0
    %v184 = vadd.f32 0.0, %v183
    %185 = vmatmul.f32.gmra.mxu0 %v71
    %v186 = vpop.f32.mrf.mxu0
    %v187 = vadd.f32 0.0, %v186
    %188 = vmatmul.f32.gmra.mxu0 %v74
    %v189 = vpop.f32.mrf.mxu0
    %v190 = vadd.f32 0.0, %v189
    %191 = vmatmul.f32.gmra.mxu0 %v77
    %v192 = vpop.f32.mrf.mxu0
    %v193 = vadd.f32 0.0, %v192
    %194 = vdwg.mxu0
    %195 = vmatpush.msra.mxu0 0.0
    %196 = vmatpush.msra.mxu0 0.0
    %197 = vmatpush.msra.mxu0 0.0
    %198 = vmatpush.msra.mxu0 0.0
    %199 = vmatpush.msra.mxu0 0.0
    %200 = vmatpush.msra.mxu0 0.0
    %201 = vmatpush.msra.mxu0 0.0
    %202 = vmatpush.msra.mxu0 0.0
    %203 = vmatpush.msra.mxu0 0.0
    %204 = vmatpush.msra.mxu0 0.0
    %205 = vmatpush.msra.mxu0 0.0
    %206 = vmatpush.msra.mxu0 0.0
    %207 = vmatpush.msra.mxu0 0.0
    %208 = vmatpush.msra.mxu0 0.0
    %209 = vmatpush.msra.mxu0 %v65
    %210 = vmatpush.msra.mxu0 %v60
    %211 = vmatmul.f32.gmra.mxu0 %v68
    %v212 = vpop.f32.mrf.mxu0
    %v213 = vadd.f32 0.0, %v212
    %214 = vmatmul.f32.gmra.mxu0 %v71
    %v215 = vpop.f32.mrf.mxu0
    %v216 = vadd.f32 0.0, %v215
    %217 = vmatmul.f32.gmra.mxu0 %v74
    %v218 = vpop.f32.mrf.mxu0
    %v219 = vadd.f32 0.0, %v218
    %220 = vmatmul.f32.gmra.mxu0 %v77
    %v221 = vpop.f32.mrf.mxu0
    %v222 = vadd.f32 0.0, %v221
    %223 = vdwg.mxu0
    %v224 = vld [vmem:[%s2] sm:$0xff]
    %v225 = vld [vmem:[%s2 + $0x8] sm:$0xff]
    %v226 = vld [vmem:[%s2 + $0x10] sm:$0xf]
    %v227 = vld [vmem:[%s2 + $0x14] sm:$0xff]
    %v228 = vld [vmem:[%s2 + $0x1c] sm:$0xff]
    %v229 = vld [vmem:[%s2 + $0x24] sm:$0xf]
    %v230 = vld [vmem:[%s2 + $0x28] sm:$0xff]
    %v231 = vld [vmem:[%s2 + $0x30] sm:$0xff]
    %v232 = vld [vmem:[%s2 + $0x38] sm:$0xf]
    %v233 = vld [vmem:[%s2 + $0x3c] sm:$0xff]
    %v234 = vld [vmem:[%s2 + $0x44] sm:$0xff]
    %v235 = vld [vmem:[%s2 + $0x4c] sm:$0xf]
    %v236 = vld [vmem:[%s2 + $0x50] sm:$0xff]
    %v237 = vld [vmem:[%s2 + $0x58] sm:$0xff]
    %v238 = vld [vmem:[%s2 + $0x60] sm:$0xf]
    %v239 = vld [vmem:[%s2 + $0x64] sm:$0xff]
    %v240 = vld [vmem:[%s2 + $0x6c] sm:$0xff]
    %v241 = vld [vmem:[%s2 + $0x74] sm:$0xf]
    %v242 = vld [vmem:[%s2 + $0x78] sm:$0xff]
    %v243 = vld [vmem:[%s2 + $0x80] sm:$0xff]
    %v244 = vld [vmem:[%s2 + $0x88] sm:$0xf]
    %v245 = vld [vmem:[%s2 + $0x8c] sm:$0xff]
    %v246 = vld [vmem:[%s2 + $0x94] sm:$0xff]
    %v247 = vld [vmem:[%s2 + $0x9c] sm:$0xf]
    %v248 = vld [vmem:[%s2 + $0xa0] sm:$0xff]
    %v249 = vld [vmem:[%s2 + $0xa8] sm:$0xff]
    %v250 = vld [vmem:[%s2 + $0xb0] sm:$0xf]
    %v251 = vld [vmem:[%s2 + $0xb4] sm:$0xff]
    %v252 = vld [vmem:[%s2 + $0xbc] sm:$0xff]
    %v253 = vld [vmem:[%s2 + $0xc4] sm:$0xf]
    %v254 = vld [vmem:[%s2 + $0xc8] sm:$0xff]
    %v255 = vld [vmem:[%s2 + $0xd0] sm:$0xff]
    %v256 = vld [vmem:[%s2 + $0xd8] sm:$0xf]
    %v257 = vld [vmem:[%s2 + $0xdc] sm:$0xff]
    %v258 = vld [vmem:[%s2 + $0xe4] sm:$0xff]
    %v259 = vld [vmem:[%s2 + $0xec] sm:$0xf]
    %v260 = vld [vmem:[%s2 + $0xf0] sm:$0xff]
    %v261 = vld [vmem:[%s2 + $0xf8] sm:$0xff]
    %v262 = vld [vmem:[%s2 + $0x100] sm:$0xf]
    %v263 = vld [vmem:[%s2 + $0x104] sm:$0xff]
    %v264 = vld [vmem:[%s2 + $0x10c] sm:$0xff]
    %v265 = vld [vmem:[%s2 + $0x114] sm:$0xf]
    %v266 = vld [vmem:[%s2 + $0x118] sm:$0xff]
    %v267 = vld [vmem:[%s2 + $0x120] sm:$0xff]
    %v268 = vld [vmem:[%s2 + $0x128] sm:$0xf]
    %v269 = vld [vmem:[%s2 + $0x12c] sm:$0xff]
    %v270 = vld [vmem:[%s2 + $0x134] sm:$0xff]
    %v271 = vld [vmem:[%s2 + $0x13c] sm:$0xf]
    %v272 = vld [vmem:[%s2 + $0x140] sm:$0xff]
    %v273 = vld [vmem:[%s2 + $0x148] sm:$0xff]
    %v274 = vld [vmem:[%s2 + $0x150] sm:$0xf]
    %v275 = vld [vmem:[%s2 + $0x154] sm:$0xff]
    %v276 = vld [vmem:[%s2 + $0x15c] sm:$0xff]
    %v277 = vld [vmem:[%s2 + $0x164] sm:$0xf]
    %v278 = vld [vmem:[%s2 + $0x168] sm:$0xff]
    %v279 = vld [vmem:[%s2 + $0x170] sm:$0xff]
    %v280 = vld [vmem:[%s2 + $0x178] sm:$0xf]
    %v281 = vld [vmem:[%s2 + $0x17c] sm:$0xff]
    %v282 = vld [vmem:[%s2 + $0x184] sm:$0xff]
    %v283 = vld [vmem:[%s2 + $0x18c] sm:$0xf]
    %v284 = vld [vmem:[%s2 + $0x190] sm:$0xff]
    %v285 = vld [vmem:[%s2 + $0x198] sm:$0xff]
    %v286 = vld [vmem:[%s2 + $0x1a0] sm:$0xf]
    %v287 = vld [vmem:[%s2 + $0x1a4] sm:$0xff]
    %v288 = vld [vmem:[%s2 + $0x1ac] sm:$0xff]
    %v289 = vld [vmem:[%s2 + $0x1b4] sm:$0xf]
    %v290 = vld [vmem:[%s2 + $0x1b8] sm:$0xff]
    %v291 = vld [vmem:[%s2 + $0x1c0] sm:$0xff]
    %v292 = vld [vmem:[%s2 + $0x1c8] sm:$0xf]
    %v293 = vld [vmem:[%s2 + $0x1cc] sm:$0xff]
    %v294 = vld [vmem:[%s2 + $0x1d4] sm:$0xff]
    %v295 = vld [vmem:[%s2 + $0x1dc] sm:$0xf]
    %v296 = vld [vmem:[%s2 + $0x1e0] sm:$0xff]
    %v297 = vld [vmem:[%s2 + $0x1e8] sm:$0xff]
    %v298 = vld [vmem:[%s2 + $0x1f0] sm:$0xf]
    %v299 = vld [vmem:[%s2 + $0x1f4] sm:$0xff]
    %v300 = vld [vmem:[%s2 + $0x1fc] sm:$0xff]
    %v301 = vld [vmem:[%s2 + $0x204] sm:$0xf]
    %v302 = vld [vmem:[%s2 + $0x208] sm:$0xff]
    %v303 = vld [vmem:[%s2 + $0x210] sm:$0xff]
    %v304 = vld [vmem:[%s2 + $0x218] sm:$0xf]
    %v305 = vld [vmem:[%s2 + $0x21c] sm:$0xff]
    %v306 = vld [vmem:[%s2 + $0x224] sm:$0xff]
    %v307 = vld [vmem:[%s2 + $0x22c] sm:$0xf]
    %v308 = vld [vmem:[%s2 + $0x230] sm:$0xff]
    %v309 = vld [vmem:[%s2 + $0x238] sm:$0xff]
    %v310 = vld [vmem:[%s2 + $0x240] sm:$0xf]
    %v311 = vld [vmem:[%s2 + $0x244] sm:$0xff]
    %v312 = vld [vmem:[%s2 + $0x24c] sm:$0xff]
    %v313 = vld [vmem:[%s2 + $0x254] sm:$0xf]
    %v314 = vld [vmem:[%s2 + $0x258] sm:$0xff]
    %v315 = vld [vmem:[%s2 + $0x260] sm:$0xff]
    %v316 = vld [vmem:[%s2 + $0x268] sm:$0xf]
    %v317 = vld [vmem:[%s2 + $0x26c] sm:$0xff]
    %v318 = vld [vmem:[%s2 + $0x274] sm:$0xff]
    %v319 = vld [vmem:[%s2 + $0x27c] sm:$0xf]
    %v320 = vld [vmem:[%s2 + $0x280] sm:$0xff]
    %v321 = vld [vmem:[%s2 + $0x288] sm:$0xff]
    %v322 = vld [vmem:[%s2 + $0x290] sm:$0xf]
    %v323 = vld [vmem:[%s2 + $0x294] sm:$0xff]
    %v324 = vld [vmem:[%s2 + $0x29c] sm:$0xff]
    %v325 = vld [vmem:[%s2 + $0x2a4] sm:$0xf]
    %v326 = vld [vmem:[%s2 + $0x2a8] sm:$0xff]
    %v327 = vld [vmem:[%s2 + $0x2b0] sm:$0xff]
    %v328 = vld [vmem:[%s2 + $0x2b8] sm:$0xf]
    %v329 = vld [vmem:[%s2 + $0x2bc] sm:$0xff]
    %v330 = vld [vmem:[%s2 + $0x2c4] sm:$0xff]
    %v331 = vld [vmem:[%s2 + $0x2cc] sm:$0xf]
    %v332 = vld [vmem:[%s2 + $0x2d0] sm:$0xff]
    %v333 = vld [vmem:[%s2 + $0x2d8] sm:$0xff]
    %v334 = vld [vmem:[%s2 + $0x2e0] sm:$0xf]
    %v335 = vld [vmem:[%s2 + $0x2e4] sm:$0xff]
    %v336 = vld [vmem:[%s2 + $0x2ec] sm:$0xff]
    %v337 = vld [vmem:[%s2 + $0x2f4] sm:$0xf]
    %v338 = vld [vmem:[%s2 + $0x2f8] sm:$0xff]
    %v339 = vld [vmem:[%s2 + $0x300] sm:$0xff]
    %v340 = vld [vmem:[%s2 + $0x308] sm:$0xf]
    %v341 = vld [vmem:[%s2 + $0x30c] sm:$0xff]
    %v342 = vld [vmem:[%s2 + $0x314] sm:$0xff]
    %v343 = vld [vmem:[%s2 + $0x31c] sm:$0xf]
    %v344 = vld [vmem:[%s2 + $0x320] sm:$0xff]
    %v345 = vld [vmem:[%s2 + $0x328] sm:$0xff]
    %v346 = vld [vmem:[%s2 + $0x330] sm:$0xf]
    %v347 = vld [vmem:[%s2 + $0x334] sm:$0xff]
    %v348 = vld [vmem:[%s2 + $0x33c] sm:$0xff]
    %v349 = vld [vmem:[%s2 + $0x344] sm:$0xf]
    %v350 = vld [vmem:[%s2 + $0x348] sm:$0xff]
    %v351 = vld [vmem:[%s2 + $0x350] sm:$0xff]
    %v352 = vld [vmem:[%s2 + $0x358] sm:$0xf]
    %v353 = vld [vmem:[%s2 + $0x35c] sm:$0xff]
    %v354 = vld [vmem:[%s2 + $0x364] sm:$0xff]
    %v355 = vld [vmem:[%s2 + $0x36c] sm:$0xf]
    %v356 = vld [vmem:[%s2 + $0x370] sm:$0xff]
    %v357 = vld [vmem:[%s2 + $0x378] sm:$0xff]
    %v358 = vld [vmem:[%s2 + $0x380] sm:$0xf]
    %v359 = vld [vmem:[%s2 + $0x384] sm:$0xff]
    %v360 = vld [vmem:[%s2 + $0x38c] sm:$0xff]
    %v361 = vld [vmem:[%s2 + $0x394] sm:$0xf]
    %v362 = vld [vmem:[%s2 + $0x398] sm:$0xff]
    %v363 = vld [vmem:[%s2 + $0x3a0] sm:$0xff]
    %v364 = vld [vmem:[%s2 + $0x3a8] sm:$0xf]
    %v365 = vld [vmem:[%s2 + $0x3ac] sm:$0xff]
    %v366 = vld [vmem:[%s2 + $0x3b4] sm:$0xff]
    %v367 = vld [vmem:[%s2 + $0x3bc] sm:$0xf]
    %v368 = vld [vmem:[%s2 + $0x3c0] sm:$0xff]
    %v369 = vld [vmem:[%s2 + $0x3c8] sm:$0xff]
    %v370 = vld [vmem:[%s2 + $0x3d0] sm:$0xf]
    %v371 = vld [vmem:[%s2 + $0x3d4] sm:$0xff]
    %v372 = vld [vmem:[%s2 + $0x3dc] sm:$0xff]
    %v373 = vld [vmem:[%s2 + $0x3e4] sm:$0xf]
    %v374 = vld [vmem:[%s2 + $0x3e8] sm:$0xff]
    %v375 = vld [vmem:[%s2 + $0x3f0] sm:$0xff]
    %v376 = vld [vmem:[%s2 + $0x3f8] sm:$0xf]
    %v377 = vld [vmem:[%s2 + $0x3fc] sm:$0xff]
    %v378 = vld [vmem:[%s2 + $0x404] sm:$0xff]
    %v379 = vld [vmem:[%s2 + $0x40c] sm:$0xf]
    %v380 = vld [vmem:[%s2 + $0x410] sm:$0xff]
    %v381 = vld [vmem:[%s2 + $0x418] sm:$0xff]
    %v382 = vld [vmem:[%s2 + $0x420] sm:$0xf]
    %v383 = vld [vmem:[%s2 + $0x424] sm:$0xff]
    %v384 = vld [vmem:[%s2 + $0x42c] sm:$0xff]
    %v385 = vld [vmem:[%s2 + $0x434] sm:$0xf]
    %v386 = vld [vmem:[%s2 + $0x438] sm:$0xff]
    %v387 = vld [vmem:[%s2 + $0x440] sm:$0xff]
    %v388 = vld [vmem:[%s2 + $0x448] sm:$0xf]
    %v389 = vld [vmem:[%s2 + $0x44c] sm:$0xff]
    %v390 = vld [vmem:[%s2 + $0x454] sm:$0xff]
    %v391 = vld [vmem:[%s2 + $0x45c] sm:$0xf]
    %v392 = vld [vmem:[%s2 + $0x460] sm:$0xff]
    %v393 = vld [vmem:[%s2 + $0x468] sm:$0xff]
    %v394 = vld [vmem:[%s2 + $0x470] sm:$0xf]
    %v395 = vld [vmem:[%s2 + $0x474] sm:$0xff]
    %v396 = vld [vmem:[%s2 + $0x47c] sm:$0xff]
    %v397 = vld [vmem:[%s2 + $0x484] sm:$0xf]
    %v398 = vld [vmem:[%s2 + $0x488] sm:$0xff]
    %v399 = vld [vmem:[%s2 + $0x490] sm:$0xff]
    %v400 = vld [vmem:[%s2 + $0x498] sm:$0xf]
    %v401 = vld [vmem:[%s2 + $0x49c] sm:$0xff]
    %v402 = vld [vmem:[%s2 + $0x4a4] sm:$0xff]
    %v403 = vld [vmem:[%s2 + $0x4ac] sm:$0xf]
    %v404 = vld [vmem:[%s2 + $0x4b0] sm:$0xff]
    %v405 = vld [vmem:[%s2 + $0x4b8] sm:$0xff]
    %v406 = vld [vmem:[%s2 + $0x4c0] sm:$0xf]
    %v407 = vld [vmem:[%s2 + $0x4c4] sm:$0xff]
    %v408 = vld [vmem:[%s2 + $0x4cc] sm:$0xff]
    %v409 = vld [vmem:[%s2 + $0x4d4] sm:$0xf]
    %v410 = vld [vmem:[%s2 + $0x4d8] sm:$0xff]
    %v411 = vld [vmem:[%s2 + $0x4e0] sm:$0xff]
    %v412 = vld [vmem:[%s2 + $0x4e8] sm:$0xf]
    %v413 = vld [vmem:[%s2 + $0x4ec] sm:$0xff]
    %v414 = vld [vmem:[%s2 + $0x4f4] sm:$0xff]
    %v415 = vld [vmem:[%s2 + $0x4fc] sm:$0xf]
    %v416 = vld [vmem:[%s2 + $0x500] sm:$0xff]
    %v417 = vld [vmem:[%s2 + $0x508] sm:$0xff]
    %v418 = vld [vmem:[%s2 + $0x510] sm:$0xf]
    %v419 = vld [vmem:[%s2 + $0x514] sm:$0xff]
    %v420 = vld [vmem:[%s2 + $0x51c] sm:$0xff]
    %v421 = vld [vmem:[%s2 + $0x524] sm:$0xf]
    %v422 = vld [vmem:[%s2 + $0x528] sm:$0xff]
    %v423 = vld [vmem:[%s2 + $0x530] sm:$0xff]
    %v424 = vld [vmem:[%s2 + $0x538] sm:$0xf]
    %v425 = vld [vmem:[%s2 + $0x53c] sm:$0xff]
    %v426 = vld [vmem:[%s2 + $0x544] sm:$0xff]
    %v427 = vld [vmem:[%s2 + $0x54c] sm:$0xf]
    %v428 = vld [vmem:[%s2 + $0x550] sm:$0xff]
    %v429 = vld [vmem:[%s2 + $0x558] sm:$0xff]
    %v430 = vld [vmem:[%s2 + $0x560] sm:$0xf]
    %v431 = vld [vmem:[%s2 + $0x564] sm:$0xff]
    %v432 = vld [vmem:[%s2 + $0x56c] sm:$0xff]
    %v433 = vld [vmem:[%s2 + $0x574] sm:$0xf]
    %v434 = vld [vmem:[%s2 + $0x578] sm:$0xff]
    %v435 = vld [vmem:[%s2 + $0x580] sm:$0xff]
    %v436 = vld [vmem:[%s2 + $0x588] sm:$0xf]
    %v437 = vld [vmem:[%s2 + $0x58c] sm:$0xff]
    %v438 = vld [vmem:[%s2 + $0x594] sm:$0xff]
    %v439 = vld [vmem:[%s2 + $0x59c] sm:$0xf]
    %v440 = vld [vmem:[%s6] ss:$8 sm:$0xf]
    %v441 = vld [vmem:[%s6] ss:$8 sm:$0x10]
    %v442 = vor.u32 %v440, %v441
    %v443 = vpack.c.bf16 %v100, %v97
    %v444 = vpack.c.bf16 %v129, %v126
    %v445 = vpack.c.bf16 %v158, %v155
    %v446 = vpack.c.bf16 %v187, %v184
    %v447 = vpack.c.bf16 %v216, %v213
    %v448 = vpack.c.bf16 %v106, %v103
    %v449 = vpack.c.bf16 %v135, %v132
    %v450 = vpack.c.bf16 %v164, %v161
    %v451 = vpack.c.bf16 %v193, %v190
    %v452 = vpack.c.bf16 %v222, %v219
    %v454 = vperm.slane %v442, 0
    %v455 = vperm.slane %v442, 1
    %v456 = vperm.slane %v442, 2
    %v457 = vperm.slane %v442, 3
    %v458 = vperm.slane %v442, 4
    %v680 = vunpack.c.l.b16 %v224
    %v681 = vunpack.c.h.b16 %v224
    %v682 = vunpack.c.l.b16 %v225
    %v683 = vunpack.c.h.b16 %v225
    %v684 = vunpack.c.l.b16 %v226
    %v685 = vunpack.c.l.b16 %v227
    %v686 = vunpack.c.h.b16 %v227
    %v687 = vunpack.c.l.b16 %v228
    %v688 = vunpack.c.h.b16 %v228
    %v689 = vunpack.c.l.b16 %v229
    %v690 = vunpack.c.l.b16 %v230
    %v691 = vunpack.c.h.b16 %v230
    %v692 = vunpack.c.l.b16 %v231
    %v693 = vunpack.c.h.b16 %v231
    %v694 = vunpack.c.l.b16 %v232
    %v695 = vunpack.c.l.b16 %v233
    %v696 = vunpack.c.h.b16 %v233
    %v697 = vunpack.c.l.b16 %v234
    %v698 = vunpack.c.h.b16 %v234
    %v699 = vunpack.c.l.b16 %v235
    %v700 = vunpack.c.l.b16 %v236
    %v701 = vunpack.c.h.b16 %v236
    %v702 = vunpack.c.l.b16 %v237
    %v703 = vunpack.c.h.b16 %v237
    %v704 = vunpack.c.l.b16 %v238
    %v705 = vunpack.c.l.b16 %v239
    %v706 = vunpack.c.h.b16 %v239
    %v707 = vunpack.c.l.b16 %v240
    %v708 = vunpack.c.h.b16 %v240
    %v709 = vunpack.c.l.b16 %v241
    %v710 = vunpack.c.l.b16 %v242
    %v711 = vunpack.c.h.b16 %v242
    %v712 = vunpack.c.l.b16 %v243
    %v713 = vunpack.c.h.b16 %v243
    %v714 = vunpack.c.l.b16 %v244
    %v715 = vunpack.c.l.b16 %v245
    %v716 = vunpack.c.h.b16 %v245
    %v717 = vunpack.c.l.b16 %v246
    %v718 = vunpack.c.h.b16 %v246
    %v719 = vunpack.c.l.b16 %v247
    %v720 = vunpack.c.l.b16 %v248
    %v721 = vunpack.c.h.b16 %v248
    %v722 = vunpack.c.l.b16 %v249
    %v723 = vunpack.c.h.b16 %v249
    %v724 = vunpack.c.l.b16 %v250
    %v725 = vunpack.c.l.b16 %v251
    %v726 = vunpack.c.h.b16 %v251
    %v727 = vunpack.c.l.b16 %v252
    %v728 = vunpack.c.h.b16 %v252
    %v729 = vunpack.c.l.b16 %v253
    %v730 = vunpack.c.l.b16 %v254
    %v731 = vunpack.c.h.b16 %v254
    %v732 = vunpack.c.l.b16 %v255
    %v733 = vunpack.c.h.b16 %v255
    %v734 = vunpack.c.l.b16 %v256
    %v735 = vunpack.c.l.b16 %v257
    %v736 = vunpack.c.h.b16 %v257
    %v737 = vunpack.c.l.b16 %v258
    %v738 = vunpack.c.h.b16 %v258
    %v739 = vunpack.c.l.b16 %v259
    %v740 = vunpack.c.l.b16 %v260
    %v741 = vunpack.c.h.b16 %v260
    %v742 = vunpack.c.l.b16 %v261
    %v743 = vunpack.c.h.b16 %v261
    %v744 = vunpack.c.l.b16 %v262
    %v745 = vunpack.c.l.b16 %v263
    %v746 = vunpack.c.h.b16 %v263
    %v747 = vunpack.c.l.b16 %v264
    %v748 = vunpack.c.h.b16 %v264
    %v749 = vunpack.c.l.b16 %v265
    %v750 = vunpack.c.l.b16 %v266
    %v751 = vunpack.c.h.b16 %v266
    %v752 = vunpack.c.l.b16 %v267
    %v753 = vunpack.c.h.b16 %v267
    %v754 = vunpack.c.l.b16 %v268
    %v755 = vunpack.c.l.b16 %v269
    %v756 = vunpack.c.h.b16 %v269
    %v757 = vunpack.c.l.b16 %v270
    %v758 = vunpack.c.h.b16 %v270
    %v759 = vunpack.c.l.b16 %v271
    %v760 = vunpack.c.l.b16 %v272
    %v761 = vunpack.c.h.b16 %v272
    %v762 = vunpack.c.l.b16 %v273
    %v763 = vunpack.c.h.b16 %v273
    %v764 = vunpack.c.l.b16 %v274
    %v765 = vunpack.c.l.b16 %v275
    %v766 = vunpack.c.h.b16 %v275
    %v767 = vunpack.c.l.b16 %v276
    %v768 = vunpack.c.h.b16 %v276
    %v769 = vunpack.c.l.b16 %v277
    %v770 = vunpack.c.l.b16 %v278
    %v771 = vunpack.c.h.b16 %v278
    %v772 = vunpack.c.l.b16 %v279
    %v773 = vunpack.c.h.b16 %v279
    %v774 = vunpack.c.l.b16 %v280
    %v775 = vunpack.c.l.b16 %v281
    %v776 = vunpack.c.h.b16 %v281
    %v777 = vunpack.c.l.b16 %v282
    %v778 = vunpack.c.h.b16 %v282
    %v779 = vunpack.c.l.b16 %v283
    %v780 = vunpack.c.l.b16 %v284
    %v781 = vunpack.c.h.b16 %v284
    %v782 = vunpack.c.l.b16 %v285
    %v783 = vunpack.c.h.b16 %v285
    %v784 = vunpack.c.l.b16 %v286
    %v785 = vunpack.c.l.b16 %v287
    %v786 = vunpack.c.h.b16 %v287
    %v787 = vunpack.c.l.b16 %v288
    %v788 = vunpack.c.h.b16 %v288
    %v789 = vunpack.c.l.b16 %v289
    %v790 = vunpack.c.l.b16 %v290
    %v791 = vunpack.c.h.b16 %v290
    %v792 = vunpack.c.l.b16 %v291
    %v793 = vunpack.c.h.b16 %v291
    %v794 = vunpack.c.l.b16 %v292
    %v795 = vunpack.c.l.b16 %v293
    %v796 = vunpack.c.h.b16 %v293
    %v797 = vunpack.c.l.b16 %v294
    %v798 = vunpack.c.h.b16 %v294
    %v799 = vunpack.c.l.b16 %v295
    %v800 = vunpack.c.l.b16 %v296
    %v801 = vunpack.c.h.b16 %v296
    %v802 = vunpack.c.l.b16 %v297
    %v803 = vunpack.c.h.b16 %v297
    %v804 = vunpack.c.l.b16 %v298
    %v805 = vunpack.c.l.b16 %v299
    %v806 = vunpack.c.h.b16 %v299
    %v807 = vunpack.c.l.b16 %v300
    %v808 = vunpack.c.h.b16 %v300
    %v809 = vunpack.c.l.b16 %v301
    %v810 = vunpack.c.l.b16 %v302
    %v811 = vunpack.c.h.b16 %v302
    %v812 = vunpack.c.l.b16 %v303
    %v813 = vunpack.c.h.b16 %v303
    %v814 = vunpack.c.l.b16 %v304
    %v815 = vunpack.c.l.b16 %v305
    %v816 = vunpack.c.h.b16 %v305
    %v817 = vunpack.c.l.b16 %v306
    %v818 = vunpack.c.h.b16 %v306
    %v819 = vunpack.c.l.b16 %v307
    %v820 = vunpack.c.l.b16 %v308
    %v821 = vunpack.c.h.b16 %v308
    %v822 = vunpack.c.l.b16 %v309
    %v823 = vunpack.c.h.b16 %v309
    %v824 = vunpack.c.l.b16 %v310
    %v825 = vunpack.c.l.b16 %v311
    %v826 = vunpack.c.h.b16 %v311
    %v827 = vunpack.c.l.b16 %v312
    %v828 = vunpack.c.h.b16 %v312
    %v829 = vunpack.c.l.b16 %v313
    %v830 = vunpack.c.l.b16 %v314
    %v831 = vunpack.c.h.b16 %v314
    %v832 = vunpack.c.l.b16 %v315
    %v833 = vunpack.c.h.b16 %v315
    %v834 = vunpack.c.l.b16 %v316
    %v835 = vunpack.c.l.b16 %v317
    %v836 = vunpack.c.h.b16 %v317
    %v837 = vunpack.c.l.b16 %v318
    %v838 = vunpack.c.h.b16 %v318
    %v839 = vunpack.c.l.b16 %v319
    %v840 = vunpack.c.l.b16 %v320
    %v841 = vunpack.c.h.b16 %v320
    %v842 = vunpack.c.l.b16 %v321
    %v843 = vunpack.c.h.b16 %v321
    %v844 = vunpack.c.l.b16 %v322
    %v845 = vunpack.c.l.b16 %v323
    %v846 = vunpack.c.h.b16 %v323
    %v847 = vunpack.c.l.b16 %v324
    %v848 = vunpack.c.h.b16 %v324
    %v849 = vunpack.c.l.b16 %v325
    %v850 = vunpack.c.l.b16 %v326
    %v851 = vunpack.c.h.b16 %v326
    %v852 = vunpack.c.l.b16 %v327
    %v853 = vunpack.c.h.b16 %v327
    %v854 = vunpack.c.l.b16 %v328
    %v855 = vunpack.c.l.b16 %v329
    %v856 = vunpack.c.h.b16 %v329
    %v857 = vunpack.c.l.b16 %v330
    %v858 = vunpack.c.h.b16 %v330
    %v859 = vunpack.c.l.b16 %v331
    %v860 = vunpack.c.l.b16 %v332
    %v861 = vunpack.c.h.b16 %v332
    %v862 = vunpack.c.l.b16 %v333
    %v863 = vunpack.c.h.b16 %v333
    %v864 = vunpack.c.l.b16 %v334
    %v865 = vunpack.c.l.b16 %v335
    %v866 = vunpack.c.h.b16 %v335
    %v867 = vunpack.c.l.b16 %v336
    %v868 = vunpack.c.h.b16 %v336
    %v869 = vunpack.c.l.b16 %v337
    %v870 = vunpack.c.l.b16 %v338
    %v871 = vunpack.c.h.b16 %v338
    %v872 = vunpack.c.l.b16 %v339
    %v873 = vunpack.c.h.b16 %v339
    %v874 = vunpack.c.l.b16 %v340
    %v875 = vunpack.c.l.b16 %v341
    %v876 = vunpack.c.h.b16 %v341
    %v877 = vunpack.c.l.b16 %v342
    %v878 = vunpack.c.h.b16 %v342
    %v879 = vunpack.c.l.b16 %v343
    %v880 = vunpack.c.l.b16 %v344
    %v881 = vunpack.c.h.b16 %v344
    %v882 = vunpack.c.l.b16 %v345
    %v883 = vunpack.c.h.b16 %v345
    %v884 = vunpack.c.l.b16 %v346
    %v885 = vunpack.c.l.b16 %v347
    %v886 = vunpack.c.h.b16 %v347
    %v887 = vunpack.c.l.b16 %v348
    %v888 = vunpack.c.h.b16 %v348
    %v889 = vunpack.c.l.b16 %v349
    %v890 = vunpack.c.l.b16 %v350
    %v891 = vunpack.c.h.b16 %v350
    %v892 = vunpack.c.l.b16 %v351
    %v893 = vunpack.c.h.b16 %v351
    %v894 = vunpack.c.l.b16 %v352
    %v895 = vunpack.c.l.b16 %v353
    %v896 = vunpack.c.h.b16 %v353
    %v897 = vunpack.c.l.b16 %v354
    %v898 = vunpack.c.h.b16 %v354
    %v899 = vunpack.c.l.b16 %v355
    %v900 = vunpack.c.l.b16 %v356
    %v901 = vunpack.c.h.b16 %v356
    %v902 = vunpack.c.l.b16 %v357
    %v903 = vunpack.c.h.b16 %v357
    %v904 = vunpack.c.l.b16 %v358
    %v905 = vunpack.c.l.b16 %v359
    %v906 = vunpack.c.h.b16 %v359
    %v907 = vunpack.c.l.b16 %v360
    %v908 = vunpack.c.h.b16 %v360
    %v909 = vunpack.c.l.b16 %v361
    %v910 = vunpack.c.l.b16 %v362
    %v911 = vunpack.c.h.b16 %v362
    %v912 = vunpack.c.l.b16 %v363
    %v913 = vunpack.c.h.b16 %v363
    %v914 = vunpack.c.l.b16 %v364
    %v915 = vunpack.c.l.b16 %v365
    %v916 = vunpack.c.h.b16 %v365
    %v917 = vunpack.c.l.b16 %v366
    %v918 = vunpack.c.h.b16 %v366
    %v919 = vunpack.c.l.b16 %v367
    %v920 = vunpack.c.l.b16 %v368
    %v921 = vunpack.c.h.b16 %v368
    %v922 = vunpack.c.l.b16 %v369
    %v923 = vunpack.c.h.b16 %v369
    %v924 = vunpack.c.l.b16 %v370
    %v925 = vunpack.c.l.b16 %v371
    %v926 = vunpack.c.h.b16 %v371
    %v927 = vunpack.c.l.b16 %v372
    %v928 = vunpack.c.h.b16 %v372
    %v929 = vunpack.c.l.b16 %v373
    %v930 = vunpack.c.l.b16 %v374
    %v931 = vunpack.c.h.b16 %v374
    %v932 = vunpack.c.l.b16 %v375
    %v933 = vunpack.c.h.b16 %v375
    %v934 = vunpack.c.l.b16 %v376
    %v935 = vunpack.c.l.b16 %v377
    %v936 = vunpack.c.h.b16 %v377
    %v937 = vunpack.c.l.b16 %v378
    %v938 = vunpack.c.h.b16 %v378
    %v939 = vunpack.c.l.b16 %v379
    %v940 = vunpack.c.l.b16 %v380
    %v941 = vunpack.c.h.b16 %v380
    %v942 = vunpack.c.l.b16 %v381
    %v943 = vunpack.c.h.b16 %v381
    %v944 = vunpack.c.l.b16 %v382
    %v945 = vunpack.c.l.b16 %v383
    %v946 = vunpack.c.h.b16 %v383
    %v947 = vunpack.c.l.b16 %v384
    %v948 = vunpack.c.h.b16 %v384
    %v949 = vunpack.c.l.b16 %v385
    %v950 = vunpack.c.l.b16 %v386
    %v951 = vunpack.c.h.b16 %v386
    %v952 = vunpack.c.l.b16 %v387
    %v953 = vunpack.c.h.b16 %v387
    %v954 = vunpack.c.l.b16 %v388
    %v955 = vunpack.c.l.b16 %v389
    %v956 = vunpack.c.h.b16 %v389
    %v957 = vunpack.c.l.b16 %v390
    %v958 = vunpack.c.h.b16 %v390
    %v959 = vunpack.c.l.b16 %v391
    %v960 = vunpack.c.l.b16 %v392
    %v961 = vunpack.c.h.b16 %v392
    %v962 = vunpack.c.l.b16 %v393
    %v963 = vunpack.c.h.b16 %v393
    %v964 = vunpack.c.l.b16 %v394
    %v965 = vunpack.c.l.b16 %v395
    %v966 = vunpack.c.h.b16 %v395
    %v967 = vunpack.c.l.b16 %v396
    %v968 = vunpack.c.h.b16 %v396
    %v969 = vunpack.c.l.b16 %v397
    %v970 = vunpack.c.l.b16 %v398
    %v971 = vunpack.c.h.b16 %v398
    %v972 = vunpack.c.l.b16 %v399
    %v973 = vunpack.c.h.b16 %v399
    %v974 = vunpack.c.l.b16 %v400
    %v975 = vunpack.c.l.b16 %v401
    %v976 = vunpack.c.h.b16 %v401
    %v977 = vunpack.c.l.b16 %v402
    %v978 = vunpack.c.h.b16 %v402
    %v979 = vunpack.c.l.b16 %v403
    %v980 = vunpack.c.l.b16 %v404
    %v981 = vunpack.c.h.b16 %v404
    %v982 = vunpack.c.l.b16 %v405
    %v983 = vunpack.c.h.b16 %v405
    %v984 = vunpack.c.l.b16 %v406
    %v985 = vunpack.c.l.b16 %v407
    %v986 = vunpack.c.h.b16 %v407
    %v987 = vunpack.c.l.b16 %v408
    %v988 = vunpack.c.h.b16 %v408
    %v989 = vunpack.c.l.b16 %v409
    %v990 = vunpack.c.l.b16 %v410
    %v991 = vunpack.c.h.b16 %v410
    %v992 = vunpack.c.l.b16 %v411
    %v993 = vunpack.c.h.b16 %v411
    %v994 = vunpack.c.l.b16 %v412
    %v995 = vunpack.c.l.b16 %v413
    %v996 = vunpack.c.h.b16 %v413
    %v997 = vunpack.c.l.b16 %v414
    %v998 = vunpack.c.h.b16 %v414
    %v999 = vunpack.c.l.b16 %v415
    %v1000 = vunpack.c.l.b16 %v416
    %v1001 = vunpack.c.h.b16 %v416
    %v1002 = vunpack.c.l.b16 %v417
    %v1003 = vunpack.c.h.b16 %v417
    %v1004 = vunpack.c.l.b16 %v418
    %v1005 = vunpack.c.l.b16 %v419
    %v1006 = vunpack.c.h.b16 %v419
    %v1007 = vunpack.c.l.b16 %v420
    %v1008 = vunpack.c.h.b16 %v420
    %v1009 = vunpack.c.l.b16 %v421
    %v1010 = vunpack.c.l.b16 %v422
    %v1011 = vunpack.c.h.b16 %v422
    %v1012 = vunpack.c.l.b16 %v423
    %v1013 = vunpack.c.h.b16 %v423
    %v1014 = vunpack.c.l.b16 %v424
    %v1015 = vunpack.c.l.b16 %v425
    %v1016 = vunpack.c.h.b16 %v425
    %v1017 = vunpack.c.l.b16 %v426
    %v1018 = vunpack.c.h.b16 %v426
    %v1019 = vunpack.c.l.b16 %v427
    %v1020 = vunpack.c.l.b16 %v428
    %v1021 = vunpack.c.h.b16 %v428
    %v1022 = vunpack.c.l.b16 %v429
    %v1023 = vunpack.c.h.b16 %v429
    %v1024 = vunpack.c.l.b16 %v430
    %v1025 = vunpack.c.l.b16 %v431
    %v1026 = vunpack.c.h.b16 %v431
    %v1027 = vunpack.c.l.b16 %v432
    %v1028 = vunpack.c.h.b16 %v432
    %v1029 = vunpack.c.l.b16 %v433
    %v1030 = vunpack.c.l.b16 %v434
    %v1031 = vunpack.c.h.b16 %v434
    %v1032 = vunpack.c.l.b16 %v435
    %v1033 = vunpack.c.h.b16 %v435
    %v1034 = vunpack.c.l.b16 %v436
    %v1035 = vunpack.c.l.b16 %v437
    %v1036 = vunpack.c.h.b16 %v437
    %v1037 = vunpack.c.l.b16 %v438
    %v1038 = vunpack.c.h.b16 %v438
    %v1039 = vunpack.c.l.b16 %v439
    %v1040 = vpack.c.b16 %v685, %v680
    %v1041 = vpack.c.b16 %v686, %v681
    %v1042 = vpack.c.b16 %v687, %v682
    %v1043 = vpack.c.b16 %v688, %v683
    %v1044 = vpack.c.b16 %v689, %v684
    %v1045 = vpack.c.b16 %v695, %v690
    %v1046 = vpack.c.b16 %v696, %v691
    %v1047 = vpack.c.b16 %v697, %v692
    %v1048 = vpack.c.b16 %v698, %v693
    %v1049 = vpack.c.b16 %v699, %v694
    %v1050 = vpack.c.b16 %v705, %v700
    %v1051 = vpack.c.b16 %v706, %v701
    %v1052 = vpack.c.b16 %v707, %v702
    %v1053 = vpack.c.b16 %v708, %v703
    %v1054 = vpack.c.b16 %v709, %v704
    %v1055 = vpack.c.b16 %v715, %v710
    %v1056 = vpack.c.b16 %v716, %v711
    %v1057 = vpack.c.b16 %v717, %v712
    %v1058 = vpack.c.b16 %v718, %v713
    %v1059 = vpack.c.b16 %v719, %v714
    %v1060 = vpack.c.b16 %v725, %v720
    %v1061 = vpack.c.b16 %v726, %v721
    %v1062 = vpack.c.b16 %v727, %v722
    %v1063 = vpack.c.b16 %v728, %v723
    %v1064 = vpack.c.b16 %v729, %v724
    %v1065 = vpack.c.b16 %v735, %v730
    %v1066 = vpack.c.b16 %v736, %v731
    %v1067 = vpack.c.b16 %v737, %v732
    %v1068 = vpack.c.b16 %v738, %v733
    %v1069 = vpack.c.b16 %v739, %v734
    %v1070 = vpack.c.b16 %v745, %v740
    %v1071 = vpack.c.b16 %v746, %v741
    %v1072 = vpack.c.b16 %v747, %v742
    %v1073 = vpack.c.b16 %v748, %v743
    %v1074 = vpack.c.b16 %v749, %v744
    %v1075 = vpack.c.b16 %v755, %v750
    %v1076 = vpack.c.b16 %v756, %v751
    %v1077 = vpack.c.b16 %v757, %v752
    %v1078 = vpack.c.b16 %v758, %v753
    %v1079 = vpack.c.b16 %v759, %v754
    %v1080 = vpack.c.b16 %v765, %v760
    %v1081 = vpack.c.b16 %v766, %v761
    %v1082 = vpack.c.b16 %v767, %v762
    %v1083 = vpack.c.b16 %v768, %v763
    %v1084 = vpack.c.b16 %v769, %v764
    %v1085 = vpack.c.b16 %v775, %v770
    %v1086 = vpack.c.b16 %v776, %v771
    %v1087 = vpack.c.b16 %v777, %v772
    %v1088 = vpack.c.b16 %v778, %v773
    %v1089 = vpack.c.b16 %v779, %v774
    %v1090 = vpack.c.b16 %v785, %v780
    %v1091 = vpack.c.b16 %v786, %v781
    %v1092 = vpack.c.b16 %v787, %v782
    %v1093 = vpack.c.b16 %v788, %v783
    %v1094 = vpack.c.b16 %v789, %v784
    %v1095 = vpack.c.b16 %v795, %v790
    %v1096 = vpack.c.b16 %v796, %v791
    %v1097 = vpack.c.b16 %v797, %v792
    %v1098 = vpack.c.b16 %v798, %v793
    %v1099 = vpack.c.b16 %v799, %v794
    %v1100 = vpack.c.b16 %v805, %v800
    %v1101 = vpack.c.b16 %v806, %v801
    %v1102 = vpack.c.b16 %v807, %v802
    %v1103 = vpack.c.b16 %v808, %v803
    %v1104 = vpack.c.b16 %v809, %v804
    %v1105 = vpack.c.b16 %v815, %v810
    %v1106 = vpack.c.b16 %v816, %v811
    %v1107 = vpack.c.b16 %v817, %v812
    %v1108 = vpack.c.b16 %v818, %v813
    %v1109 = vpack.c.b16 %v819, %v814
    %v1110 = vpack.c.b16 %v825, %v820
    %v1111 = vpack.c.b16 %v826, %v821
    %v1112 = vpack.c.b16 %v827, %v822
    %v1113 = vpack.c.b16 %v828, %v823
    %v1114 = vpack.c.b16 %v829, %v824
    %v1115 = vpack.c.b16 %v835, %v830
    %v1116 = vpack.c.b16 %v836, %v831
    %v1117 = vpack.c.b16 %v837, %v832
    %v1118 = vpack.c.b16 %v838, %v833
    %v1119 = vpack.c.b16 %v839, %v834
    %v1120 = vpack.c.b16 %v845, %v840
    %v1121 = vpack.c.b16 %v846, %v841
    %v1122 = vpack.c.b16 %v847, %v842
    %v1123 = vpack.c.b16 %v848, %v843
    %v1124 = vpack.c.b16 %v849, %v844
    %v1125 = vpack.c.b16 %v855, %v850
    %v1126 = vpack.c.b16 %v856, %v851
    %v1127 = vpack.c.b16 %v857, %v852
    %v1128 = vpack.c.b16 %v858, %v853
    %v1129 = vpack.c.b16 %v859, %v854
    %v1130 = vpack.c.b16 %v865, %v860
    %v1131 = vpack.c.b16 %v866, %v861
    %v1132 = vpack.c.b16 %v867, %v862
    %v1133 = vpack.c.b16 %v868, %v863
    %v1134 = vpack.c.b16 %v869, %v864
    %v1135 = vpack.c.b16 %v875, %v870
    %v1136 = vpack.c.b16 %v876, %v871
    %v1137 = vpack.c.b16 %v877, %v872
    %v1138 = vpack.c.b16 %v878, %v873
    %v1139 = vpack.c.b16 %v879, %v874
    %v1140 = vpack.c.b16 %v885, %v880
    %v1141 = vpack.c.b16 %v886, %v881
    %v1142 = vpack.c.b16 %v887, %v882
    %v1143 = vpack.c.b16 %v888, %v883
    %v1144 = vpack.c.b16 %v889, %v884
    %v1145 = vpack.c.b16 %v895, %v890
    %v1146 = vpack.c.b16 %v896, %v891
    %v1147 = vpack.c.b16 %v897, %v892
    %v1148 = vpack.c.b16 %v898, %v893
    %v1149 = vpack.c.b16 %v899, %v894
    %v1150 = vpack.c.b16 %v905, %v900
    %v1151 = vpack.c.b16 %v906, %v901
    %v1152 = vpack.c.b16 %v907, %v902
    %v1153 = vpack.c.b16 %v908, %v903
    %v1154 = vpack.c.b16 %v909, %v904
    %v1155 = vpack.c.b16 %v915, %v910
    %v1156 = vpack.c.b16 %v916, %v911
    %v1157 = vpack.c.b16 %v917, %v912
    %v1158 = vpack.c.b16 %v918, %v913
    %v1159 = vpack.c.b16 %v919, %v914
    %v1160 = vpack.c.b16 %v925, %v920
    %v1161 = vpack.c.b16 %v926, %v921
    %v1162 = vpack.c.b16 %v927, %v922
    %v1163 = vpack.c.b16 %v928, %v923
    %v1164 = vpack.c.b16 %v929, %v924
    %v1165 = vpack.c.b16 %v935, %v930
    %v1166 = vpack.c.b16 %v936, %v931
    %v1167 = vpack.c.b16 %v937, %v932
    %v1168 = vpack.c.b16 %v938, %v933
    %v1169 = vpack.c.b16 %v939, %v934
    %v1170 = vpack.c.b16 %v945, %v940
    %v1171 = vpack.c.b16 %v946, %v941
    %v1172 = vpack.c.b16 %v947, %v942
    %v1173 = vpack.c.b16 %v948, %v943
    %v1174 = vpack.c.b16 %v949, %v944
    %v1175 = vpack.c.b16 %v955, %v950
    %v1176 = vpack.c.b16 %v956, %v951
    %v1177 = vpack.c.b16 %v957, %v952
    %v1178 = vpack.c.b16 %v958, %v953
    %v1179 = vpack.c.b16 %v959, %v954
    %v1180 = vpack.c.b16 %v965, %v960
    %v1181 = vpack.c.b16 %v966, %v961
    %v1182 = vpack.c.b16 %v967, %v962
    %v1183 = vpack.c.b16 %v968, %v963
    %v1184 = vpack.c.b16 %v969, %v964
    %v1185 = vpack.c.b16 %v975, %v970
    %v1186 = vpack.c.b16 %v976, %v971
    %v1187 = vpack.c.b16 %v977, %v972
    %v1188 = vpack.c.b16 %v978, %v973
    %v1189 = vpack.c.b16 %v979, %v974
    %v1190 = vpack.c.b16 %v985, %v980
    %v1191 = vpack.c.b16 %v986, %v981
    %v1192 = vpack.c.b16 %v987, %v982
    %v1193 = vpack.c.b16 %v988, %v983
    %v1194 = vpack.c.b16 %v989, %v984
    %v1195 = vpack.c.b16 %v995, %v990
    %v1196 = vpack.c.b16 %v996, %v991
    %v1197 = vpack.c.b16 %v997, %v992
    %v1198 = vpack.c.b16 %v998, %v993
    %v1199 = vpack.c.b16 %v999, %v994
    %v1200 = vpack.c.b16 %v1005, %v1000
    %v1201 = vpack.c.b16 %v1006, %v1001
    %v1202 = vpack.c.b16 %v1007, %v1002
    %v1203 = vpack.c.b16 %v1008, %v1003
    %v1204 = vpack.c.b16 %v1009, %v1004
    %v1205 = vpack.c.b16 %v1015, %v1010
    %v1206 = vpack.c.b16 %v1016, %v1011
    %v1207 = vpack.c.b16 %v1017, %v1012
    %v1208 = vpack.c.b16 %v1018, %v1013
    %v1209 = vpack.c.b16 %v1019, %v1014
    %v1210 = vpack.c.b16 %v1025, %v1020
    %v1211 = vpack.c.b16 %v1026, %v1021
    %v1212 = vpack.c.b16 %v1027, %v1022
    %v1213 = vpack.c.b16 %v1028, %v1023
    %v1214 = vpack.c.b16 %v1029, %v1024
    %v1215 = vpack.c.b16 %v1035, %v1030
    %v1216 = vpack.c.b16 %v1036, %v1031
    %v1217 = vpack.c.b16 %v1037, %v1032
    %v1218 = vpack.c.b16 %v1038, %v1033
    %v1219 = vpack.c.b16 %v1039, %v1034
    %vm1400 = vcmask 523264
    %v1402 = vsel %vm1400, %v447, 0
    %v1405 = vsel %vm1400, %v452, 0
    %1407 = vmatpush.bf16.msra.mxu0 %v1075
    %1408 = vmatpush.bf16.msra.mxu0 %v1070
    %1409 = vmatpush.bf16.msra.mxu0 %v1065
    %1410 = vmatpush.bf16.msra.mxu0 %v1060
    %1411 = vmatpush.bf16.msra.mxu0 %v1055
    %1412 = vmatpush.bf16.msra.mxu0 %v1050
    %1413 = vmatpush.bf16.msra.mxu0 %v1045
    %1414 = vmatpush.bf16.msra.mxu0 %v1040
    %1415 = vmatmul.bf16.gmra.mxu0 %v443
    %v1416 = vpop.f32.mrf.mxu0
    %v1417 = vadd.f32 %v454, %v1416
    %v1418 = vpop.f32.mrf.mxu0
    %v1419 = vadd.f32 %v454, %v1418
    %1420 = vmatmul.bf16.gmra.mxu0 %v448
    %v1421 = vpop.f32.mrf.mxu0
    %v1422 = vadd.f32 %v454, %v1421
    %v1423 = vpop.f32.mrf.mxu0
    %v1424 = vadd.f32 %v454, %v1423
    %1425 = vdwg.mxu0
    %1426 = vmatpush.bf16.msra.mxu0 %v1115
    %1427 = vmatpush.bf16.msra.mxu0 %v1110
    %1428 = vmatpush.bf16.msra.mxu0 %v1105
    %1429 = vmatpush.bf16.msra.mxu0 %v1100
    %1430 = vmatpush.bf16.msra.mxu0 %v1095
    %1431 = vmatpush.bf16.msra.mxu0 %v1090
    %1432 = vmatpush.bf16.msra.mxu0 %v1085
    %1433 = vmatpush.bf16.msra.mxu0 %v1080
    %1434 = vmatmul.bf16.gmra.mxu0 %v444
    %v1435 = vpop.f32.mrf.mxu0
    %v1436 = vadd.f32 %v1417, %v1435
    %v1437 = vpop.f32.mrf.mxu0
    %v1438 = vadd.f32 %v1419, %v1437
    %1439 = vmatmul.bf16.gmra.mxu0 %v449
    %v1440 = vpop.f32.mrf.mxu0
    %v1441 = vadd.f32 %v1422, %v1440
    %v1442 = vpop.f32.mrf.mxu0
    %v1443 = vadd.f32 %v1424, %v1442
    %1444 = vdwg.mxu0
    %1445 = vmatpush.bf16.msra.mxu0 %v1155
    %1446 = vmatpush.bf16.msra.mxu0 %v1150
    %1447 = vmatpush.bf16.msra.mxu0 %v1145
    %1448 = vmatpush.bf16.msra.mxu0 %v1140
    %1449 = vmatpush.bf16.msra.mxu0 %v1135
    %1450 = vmatpush.bf16.msra.mxu0 %v1130
    %1451 = vmatpush.bf16.msra.mxu0 %v1125
    %1452 = vmatpush.bf16.msra.mxu0 %v1120
    %1453 = vmatmul.bf16.gmra.mxu0 %v445
    %v1454 = vpop.f32.mrf.mxu0
    %v1455 = vadd.f32 %v1436, %v1454
    %v1456 = vpop.f32.mrf.mxu0
    %v1457 = vadd.f32 %v1438, %v1456
    %1458 = vmatmul.bf16.gmra.mxu0 %v450
    %v1459 = vpop.f32.mrf.mxu0
    %v1460 = vadd.f32 %v1441, %v1459
    %v1461 = vpop.f32.mrf.mxu0
    %v1462 = vadd.f32 %v1443, %v1461
    %1463 = vdwg.mxu0
    %1464 = vmatpush.bf16.msra.mxu0 %v1195
    %1465 = vmatpush.bf16.msra.mxu0 %v1190
    %1466 = vmatpush.bf16.msra.mxu0 %v1185
    %1467 = vmatpush.bf16.msra.mxu0 %v1180
    %1468 = vmatpush.bf16.msra.mxu0 %v1175
    %1469 = vmatpush.bf16.msra.mxu0 %v1170
    %1470 = vmatpush.bf16.msra.mxu0 %v1165
    %1471 = vmatpush.bf16.msra.mxu0 %v1160
    %1472 = vmatmul.bf16.gmra.mxu0 %v446
    %v1473 = vpop.f32.mrf.mxu0
    %v1474 = vadd.f32 %v1455, %v1473
    %v1475 = vpop.f32.mrf.mxu0
    %v1476 = vadd.f32 %v1457, %v1475
    %1477 = vmatmul.bf16.gmra.mxu0 %v451
    %v1478 = vpop.f32.mrf.mxu0
    %v1479 = vadd.f32 %v1460, %v1478
    %v1480 = vpop.f32.mrf.mxu0
    %v1481 = vadd.f32 %v1462, %v1480
    %1482 = vdwg.mxu0
    %1483 = vmatpush.bf16.msra.mxu0 0
    %1484 = vmatpush.bf16.msra.mxu0 0
    %1485 = vmatpush.bf16.msra.mxu0 0
    %1486 = vmatpush.bf16.msra.mxu0 0
    %1487 = vmatpush.bf16.msra.mxu0 %v1215
    %1488 = vmatpush.bf16.msra.mxu0 %v1210
    %1489 = vmatpush.bf16.msra.mxu0 %v1205
    %1490 = vmatpush.bf16.msra.mxu0 %v1200
    %1491 = vmatmul.bf16.gmra.mxu0 %v1402
    %v1492 = vpop.f32.mrf.mxu0
    %v1493 = vadd.f32 %v1474, %v1492
    %v1494 = vpop.f32.mrf.mxu0
    %v1495 = vadd.f32 %v1476, %v1494
    %1496 = vmatmul.bf16.gmra.mxu0 %v1405
    %v1497 = vpop.f32.mrf.mxu0
    %v1498 = vadd.f32 %v1479, %v1497
    %v1499 = vpop.f32.mrf.mxu0
    %v1500 = vadd.f32 %v1481, %v1499
    %1501 = vdwg.mxu0
    %1502 = vmatpush.bf16.msra.mxu0 %v1076
    %1503 = vmatpush.bf16.msra.mxu0 %v1071
    %1504 = vmatpush.bf16.msra.mxu0 %v1066
    %1505 = vmatpush.bf16.msra.mxu0 %v1061
    %1506 = vmatpush.bf16.msra.mxu0 %v1056
    %1507 = vmatpush.bf16.msra.mxu0 %v1051
    %1508 = vmatpush.bf16.msra.mxu0 %v1046
    %1509 = vmatpush.bf16.msra.mxu0 %v1041
    %1510 = vmatmul.bf16.gmra.mxu0 %v443
    %v1511 = vpop.f32.mrf.mxu0
    %v1512 = vadd.f32 %v455, %v1511
    %v1513 = vpop.f32.mrf.mxu0
    %v1514 = vadd.f32 %v455, %v1513
    %1515 = vmatmul.bf16.gmra.mxu0 %v448
    %v1516 = vpop.f32.mrf.mxu0
    %v1517 = vadd.f32 %v455, %v1516
    %v1518 = vpop.f32.mrf.mxu0
    %v1519 = vadd.f32 %v455, %v1518
    %1520 = vdwg.mxu0
    %1521 = vmatpush.bf16.msra.mxu0 %v1116
    %1522 = vmatpush.bf16.msra.mxu0 %v1111
    %1523 = vmatpush.bf16.msra.mxu0 %v1106
    %1524 = vmatpush.bf16.msra.mxu0 %v1101
    %1525 = vmatpush.bf16.msra.mxu0 %v1096
    %1526 = vmatpush.bf16.msra.mxu0 %v1091
    %1527 = vmatpush.bf16.msra.mxu0 %v1086
    %1528 = vmatpush.bf16.msra.mxu0 %v1081
    %1529 = vmatmul.bf16.gmra.mxu0 %v444
    %v1530 = vpop.f32.mrf.mxu0
    %v1531 = vadd.f32 %v1512, %v1530
    %v1532 = vpop.f32.mrf.mxu0
    %v1533 = vadd.f32 %v1514, %v1532
    %1534 = vmatmul.bf16.gmra.mxu0 %v449
    %v1535 = vpop.f32.mrf.mxu0
    %v1536 = vadd.f32 %v1517, %v1535
    %v1537 = vpop.f32.mrf.mxu0
    %v1538 = vadd.f32 %v1519, %v1537
    %1539 = vdwg.mxu0
    %1540 = vmatpush.bf16.msra.mxu0 %v1156
    %1541 = vmatpush.bf16.msra.mxu0 %v1151
    %1542 = vmatpush.bf16.msra.mxu0 %v1146
    %1543 = vmatpush.bf16.msra.mxu0 %v1141
    %1544 = vmatpush.bf16.msra.mxu0 %v1136
    %1545 = vmatpush.bf16.msra.mxu0 %v1131
    %1546 = vmatpush.bf16.msra.mxu0 %v1126
    %1547 = vmatpush.bf16.msra.mxu0 %v1121
    %1548 = vmatmul.bf16.gmra.mxu0 %v445
    %v1549 = vpop.f32.mrf.mxu0
    %v1550 = vadd.f32 %v1531, %v1549
    %v1551 = vpop.f32.mrf.mxu0
    %v1552 = vadd.f32 %v1533, %v1551
    %1553 = vmatmul.bf16.gmra.mxu0 %v450
    %v1554 = vpop.f32.mrf.mxu0
    %v1555 = vadd.f32 %v1536, %v1554
    %v1556 = vpop.f32.mrf.mxu0
    %v1557 = vadd.f32 %v1538, %v1556
    %1558 = vdwg.mxu0
    %1559 = vmatpush.bf16.msra.mxu0 %v1196
    %1560 = vmatpush.bf16.msra.mxu0 %v1191
    %1561 = vmatpush.bf16.msra.mxu0 %v1186
    %1562 = vmatpush.bf16.msra.mxu0 %v1181
    %1563 = vmatpush.bf16.msra.mxu0 %v1176
    %1564 = vmatpush.bf16.msra.mxu0 %v1171
    %1565 = vmatpush.bf16.msra.mxu0 %v1166
    %1566 = vmatpush.bf16.msra.mxu0 %v1161
    %1567 = vmatmul.bf16.gmra.mxu0 %v446
    %v1568 = vpop.f32.mrf.mxu0
    %v1569 = vadd.f32 %v1550, %v1568
    %v1570 = vpop.f32.mrf.mxu0
    %v1571 = vadd.f32 %v1552, %v1570
    %1572 = vmatmul.bf16.gmra.mxu0 %v451
    %v1573 = vpop.f32.mrf.mxu0
    %v1574 = vadd.f32 %v1555, %v1573
    %v1575 = vpop.f32.mrf.mxu0
    %v1576 = vadd.f32 %v1557, %v1575
    %1577 = vdwg.mxu0
    %1578 = vmatpush.bf16.msra.mxu0 0
    %1579 = vmatpush.bf16.msra.mxu0 0
    %1580 = vmatpush.bf16.msra.mxu0 0
    %1581 = vmatpush.bf16.msra.mxu0 0
    %1582 = vmatpush.bf16.msra.mxu0 %v1216
    %1583 = vmatpush.bf16.msra.mxu0 %v1211
    %1584 = vmatpush.bf16.msra.mxu0 %v1206
    %1585 = vmatpush.bf16.msra.mxu0 %v1201
    %1586 = vmatmul.bf16.gmra.mxu0 %v1402
    %v1587 = vpop.f32.mrf.mxu0
    %v1588 = vadd.f32 %v1569, %v1587
    %v1589 = vpop.f32.mrf.mxu0
    %v1590 = vadd.f32 %v1571, %v1589
    %1591 = vmatmul.bf16.gmra.mxu0 %v1405
    %v1592 = vpop.f32.mrf.mxu0
    %v1593 = vadd.f32 %v1574, %v1592
    %v1594 = vpop.f32.mrf.mxu0
    %v1595 = vadd.f32 %v1576, %v1594
    %1596 = vdwg.mxu0
    %1597 = vmatpush.bf16.msra.mxu0 %v1077
    %1598 = vmatpush.bf16.msra.mxu0 %v1072
    %1599 = vmatpush.bf16.msra.mxu0 %v1067
    %1600 = vmatpush.bf16.msra.mxu0 %v1062
    %1601 = vmatpush.bf16.msra.mxu0 %v1057
    %1602 = vmatpush.bf16.msra.mxu0 %v1052
    %1603 = vmatpush.bf16.msra.mxu0 %v1047
    %1604 = vmatpush.bf16.msra.mxu0 %v1042
    %1605 = vmatmul.bf16.gmra.mxu0 %v443
    %v1606 = vpop.f32.mrf.mxu0
    %v1607 = vadd.f32 %v456, %v1606
    %v1608 = vpop.f32.mrf.mxu0
    %v1609 = vadd.f32 %v456, %v1608
    %1610 = vmatmul.bf16.gmra.mxu0 %v448
    %v1611 = vpop.f32.mrf.mxu0
    %v1612 = vadd.f32 %v456, %v1611
    %v1613 = vpop.f32.mrf.mxu0
    %v1614 = vadd.f32 %v456, %v1613
    %1615 = vdwg.mxu0
    %1616 = vmatpush.bf16.msra.mxu0 %v1117
    %1617 = vmatpush.bf16.msra.mxu0 %v1112
    %1618 = vmatpush.bf16.msra.mxu0 %v1107
    %1619 = vmatpush.bf16.msra.mxu0 %v1102
    %1620 = vmatpush.bf16.msra.mxu0 %v1097
    %1621 = vmatpush.bf16.msra.mxu0 %v1092
    %1622 = vmatpush.bf16.msra.mxu0 %v1087
    %1623 = vmatpush.bf16.msra.mxu0 %v1082
    %1624 = vmatmul.bf16.gmra.mxu0 %v444
    %v1625 = vpop.f32.mrf.mxu0
    %v1626 = vadd.f32 %v1607, %v1625
    %v1627 = vpop.f32.mrf.mxu0
    %v1628 = vadd.f32 %v1609, %v1627
    %1629 = vmatmul.bf16.gmra.mxu0 %v449
    %v1630 = vpop.f32.mrf.mxu0
    %v1631 = vadd.f32 %v1612, %v1630
    %v1632 = vpop.f32.mrf.mxu0
    %v1633 = vadd.f32 %v1614, %v1632
    %1634 = vdwg.mxu0
    %1635 = vmatpush.bf16.msra.mxu0 %v1157
    %1636 = vmatpush.bf16.msra.mxu0 %v1152
    %1637 = vmatpush.bf16.msra.mxu0 %v1147
    %1638 = vmatpush.bf16.msra.mxu0 %v1142
    %1639 = vmatpush.bf16.msra.mxu0 %v1137
    %1640 = vmatpush.bf16.msra.mxu0 %v1132
    %1641 = vmatpush.bf16.msra.mxu0 %v1127
    %1642 = vmatpush.bf16.msra.mxu0 %v1122
    %1643 = vmatmul.bf16.gmra.mxu0 %v445
    %v1644 = vpop.f32.mrf.mxu0
    %v1645 = vadd.f32 %v1626, %v1644
    %v1646 = vpop.f32.mrf.mxu0
    %v1647 = vadd.f32 %v1628, %v1646
    %1648 = vmatmul.bf16.gmra.mxu0 %v450
    %v1649 = vpop.f32.mrf.mxu0
    %v1650 = vadd.f32 %v1631, %v1649
    %v1651 = vpop.f32.mrf.mxu0
    %v1652 = vadd.f32 %v1633, %v1651
    %1653 = vdwg.mxu0
    %1654 = vmatpush.bf16.msra.mxu0 %v1197
    %1655 = vmatpush.bf16.msra.mxu0 %v1192
    %1656 = vmatpush.bf16.msra.mxu0 %v1187
    %1657 = vmatpush.bf16.msra.mxu0 %v1182
    %1658 = vmatpush.bf16.msra.mxu0 %v1177
    %1659 = vmatpush.bf16.msra.mxu0 %v1172
    %1660 = vmatpush.bf16.msra.mxu0 %v1167
    %1661 = vmatpush.bf16.msra.mxu0 %v1162
    %1662 = vmatmul.bf16.gmra.mxu0 %v446
    %v1663 = vpop.f32.mrf.mxu0
    %v1664 = vadd.f32 %v1645, %v1663
    %v1665 = vpop.f32.mrf.mxu0
    %v1666 = vadd.f32 %v1647, %v1665
    %1667 = vmatmul.bf16.gmra.mxu0 %v451
    %v1668 = vpop.f32.mrf.mxu0
    %v1669 = vadd.f32 %v1650, %v1668
    %v1670 = vpop.f32.mrf.mxu0
    %v1671 = vadd.f32 %v1652, %v1670
    %1672 = vdwg.mxu0
    %1673 = vmatpush.bf16.msra.mxu0 0
    %1674 = vmatpush.bf16.msra.mxu0 0
    %1675 = vmatpush.bf16.msra.mxu0 0
    %1676 = vmatpush.bf16.msra.mxu0 0
    %1677 = vmatpush.bf16.msra.mxu0 %v1217
    %1678 = vmatpush.bf16.msra.mxu0 %v1212
    %1679 = vmatpush.bf16.msra.mxu0 %v1207
    %1680 = vmatpush.bf16.msra.mxu0 %v1202
    %1681 = vmatmul.bf16.gmra.mxu0 %v1402
    %v1682 = vpop.f32.mrf.mxu0
    %v1683 = vadd.f32 %v1664, %v1682
    %v1684 = vpop.f32.mrf.mxu0
    %v1685 = vadd.f32 %v1666, %v1684
    %1686 = vmatmul.bf16.gmra.mxu0 %v1405
    %v1687 = vpop.f32.mrf.mxu0
    %v1688 = vadd.f32 %v1669, %v1687
    %v1689 = vpop.f32.mrf.mxu0
    %v1690 = vadd.f32 %v1671, %v1689
    %1691 = vdwg.mxu0
    %1692 = vmatpush.bf16.msra.mxu0 %v1078
    %1693 = vmatpush.bf16.msra.mxu0 %v1073
    %1694 = vmatpush.bf16.msra.mxu0 %v1068
    %1695 = vmatpush.bf16.msra.mxu0 %v1063
    %1696 = vmatpush.bf16.msra.mxu0 %v1058
    %1697 = vmatpush.bf16.msra.mxu0 %v1053
    %1698 = vmatpush.bf16.msra.mxu0 %v1048
    %1699 = vmatpush.bf16.msra.mxu0 %v1043
    %1700 = vmatmul.bf16.gmra.mxu0 %v443
    %v1701 = vpop.f32.mrf.mxu0
    %v1702 = vadd.f32 %v457, %v1701
    %v1703 = vpop.f32.mrf.mxu0
    %v1704 = vadd.f32 %v457, %v1703
    %1705 = vmatmul.bf16.gmra.mxu0 %v448
    %v1706 = vpop.f32.mrf.mxu0
    %v1707 = vadd.f32 %v457, %v1706
    %v1708 = vpop.f32.mrf.mxu0
    %v1709 = vadd.f32 %v457, %v1708
    %1710 = vdwg.mxu0
    %1711 = vmatpush.bf16.msra.mxu0 %v1118
    %1712 = vmatpush.bf16.msra.mxu0 %v1113
    %1713 = vmatpush.bf16.msra.mxu0 %v1108
    %1714 = vmatpush.bf16.msra.mxu0 %v1103
    %1715 = vmatpush.bf16.msra.mxu0 %v1098
    %1716 = vmatpush.bf16.msra.mxu0 %v1093
    %1717 = vmatpush.bf16.msra.mxu0 %v1088
    %1718 = vmatpush.bf16.msra.mxu0 %v1083
    %1719 = vmatmul.bf16.gmra.mxu0 %v444
    %v1720 = vpop.f32.mrf.mxu0
    %v1721 = vadd.f32 %v1702, %v1720
    %v1722 = vpop.f32.mrf.mxu0
    %v1723 = vadd.f32 %v1704, %v1722
    %1724 = vmatmul.bf16.gmra.mxu0 %v449
    %v1725 = vpop.f32.mrf.mxu0
    %v1726 = vadd.f32 %v1707, %v1725
    %v1727 = vpop.f32.mrf.mxu0
    %v1728 = vadd.f32 %v1709, %v1727
    %1729 = vdwg.mxu0
    %1730 = vmatpush.bf16.msra.mxu0 %v1158
    %1731 = vmatpush.bf16.msra.mxu0 %v1153
    %1732 = vmatpush.bf16.msra.mxu0 %v1148
    %1733 = vmatpush.bf16.msra.mxu0 %v1143
    %1734 = vmatpush.bf16.msra.mxu0 %v1138
    %1735 = vmatpush.bf16.msra.mxu0 %v1133
    %1736 = vmatpush.bf16.msra.mxu0 %v1128
    %1737 = vmatpush.bf16.msra.mxu0 %v1123
    %1738 = vmatmul.bf16.gmra.mxu0 %v445
    %v1739 = vpop.f32.mrf.mxu0
    %v1740 = vadd.f32 %v1721, %v1739
    %v1741 = vpop.f32.mrf.mxu0
    %v1742 = vadd.f32 %v1723, %v1741
    %1743 = vmatmul.bf16.gmra.mxu0 %v450
    %v1744 = vpop.f32.mrf.mxu0
    %v1745 = vadd.f32 %v1726, %v1744
    %v1746 = vpop.f32.mrf.mxu0
    %v1747 = vadd.f32 %v1728, %v1746
    %1748 = vdwg.mxu0
    %1749 = vmatpush.bf16.msra.mxu0 %v1198
    %1750 = vmatpush.bf16.msra.mxu0 %v1193
    %1751 = vmatpush.bf16.msra.mxu0 %v1188
    %1752 = vmatpush.bf16.msra.mxu0 %v1183
    %1753 = vmatpush.bf16.msra.mxu0 %v1178
    %1754 = vmatpush.bf16.msra.mxu0 %v1173
    %1755 = vmatpush.bf16.msra.mxu0 %v1168
    %1756 = vmatpush.bf16.msra.mxu0 %v1163
    %1757 = vmatmul.bf16.gmra.mxu0 %v446
    %v1758 = vpop.f32.mrf.mxu0
    %v1759 = vadd.f32 %v1740, %v1758
    %v1760 = vpop.f32.mrf.mxu0
    %v1761 = vadd.f32 %v1742, %v1760
    %1762 = vmatmul.bf16.gmra.mxu0 %v451
    %v1763 = vpop.f32.mrf.mxu0
    %v1764 = vadd.f32 %v1745, %v1763
    %v1765 = vpop.f32.mrf.mxu0
    %v1766 = vadd.f32 %v1747, %v1765
    %1767 = vdwg.mxu0
    %1768 = vmatpush.bf16.msra.mxu0 0
    %1769 = vmatpush.bf16.msra.mxu0 0
    %1770 = vmatpush.bf16.msra.mxu0 0
    %1771 = vmatpush.bf16.msra.mxu0 0
    %1772 = vmatpush.bf16.msra.mxu0 %v1218
    %1773 = vmatpush.bf16.msra.mxu0 %v1213
    %1774 = vmatpush.bf16.msra.mxu0 %v1208
    %1775 = vmatpush.bf16.msra.mxu0 %v1203
    %1776 = vmatmul.bf16.gmra.mxu0 %v1402
    %v1777 = vpop.f32.mrf.mxu0
    %v1778 = vadd.f32 %v1759, %v1777
    %v1779 = vpop.f32.mrf.mxu0
    %v1780 = vadd.f32 %v1761, %v1779
    %1781 = vmatmul.bf16.gmra.mxu0 %v1405
    %v1782 = vpop.f32.mrf.mxu0
    %v1783 = vadd.f32 %v1764, %v1782
    %v1784 = vpop.f32.mrf.mxu0
    %v1785 = vadd.f32 %v1766, %v1784
    %1786 = vdwg.mxu0
    %1787 = vmatpush.bf16.msra.mxu0 %v1079
    %1788 = vmatpush.bf16.msra.mxu0 %v1074
    %1789 = vmatpush.bf16.msra.mxu0 %v1069
    %1790 = vmatpush.bf16.msra.mxu0 %v1064
    %1791 = vmatpush.bf16.msra.mxu0 %v1059
    %1792 = vmatpush.bf16.msra.mxu0 %v1054
    %1793 = vmatpush.bf16.msra.mxu0 %v1049
    %1794 = vmatpush.bf16.msra.mxu0 %v1044
    %1795 = vmatmul.bf16.gmra.mxu0 %v443
    %v1796 = vpop.f32.mrf.mxu0
    %v1797 = vadd.f32 %v458, %v1796
    %v1798 = vpop.f32.mrf.mxu0
    %v1799 = vadd.f32 %v458, %v1798
    %1800 = vmatmul.bf16.gmra.mxu0 %v448
    %v1801 = vpop.f32.mrf.mxu0
    %v1802 = vadd.f32 %v458, %v1801
    %v1803 = vpop.f32.mrf.mxu0
    %v1804 = vadd.f32 %v458, %v1803
    %1805 = vdwg.mxu0
    %1806 = vmatpush.bf16.msra.mxu0 %v1119
    %1807 = vmatpush.bf16.msra.mxu0 %v1114
    %1808 = vmatpush.bf16.msra.mxu0 %v1109
    %1809 = vmatpush.bf16.msra.mxu0 %v1104
    %1810 = vmatpush.bf16.msra.mxu0 %v1099
    %1811 = vmatpush.bf16.msra.mxu0 %v1094
    %1812 = vmatpush.bf16.msra.mxu0 %v1089
    %1813 = vmatpush.bf16.msra.mxu0 %v1084
    %1814 = vmatmul.bf16.gmra.mxu0 %v444
    %v1815 = vpop.f32.mrf.mxu0
    %v1816 = vadd.f32 %v1797, %v1815
    %v1817 = vpop.f32.mrf.mxu0
    %v1818 = vadd.f32 %v1799, %v1817
    %1819 = vmatmul.bf16.gmra.mxu0 %v449
    %v1820 = vpop.f32.mrf.mxu0
    %v1821 = vadd.f32 %v1802, %v1820
    %v1822 = vpop.f32.mrf.mxu0
    %v1823 = vadd.f32 %v1804, %v1822
    %1824 = vdwg.mxu0
    %1825 = vmatpush.bf16.msra.mxu0 %v1159
    %1826 = vmatpush.bf16.msra.mxu0 %v1154
    %1827 = vmatpush.bf16.msra.mxu0 %v1149
    %1828 = vmatpush.bf16.msra.mxu0 %v1144
    %1829 = vmatpush.bf16.msra.mxu0 %v1139
    %1830 = vmatpush.bf16.msra.mxu0 %v1134
    %1831 = vmatpush.bf16.msra.mxu0 %v1129
    %1832 = vmatpush.bf16.msra.mxu0 %v1124
    %1833 = vmatmul.bf16.gmra.mxu0 %v445
    %v1834 = vpop.f32.mrf.mxu0
    %v1835 = vadd.f32 %v1816, %v1834
    %v1836 = vpop.f32.mrf.mxu0
    %v1837 = vadd.f32 %v1818, %v1836
    %1838 = vmatmul.bf16.gmra.mxu0 %v450
    %v1839 = vpop.f32.mrf.mxu0
    %v1840 = vadd.f32 %v1821, %v1839
    %v1841 = vpop.f32.mrf.mxu0
    %v1842 = vadd.f32 %v1823, %v1841
    %1843 = vdwg.mxu0
    %1844 = vmatpush.bf16.msra.mxu0 %v1199
    %1845 = vmatpush.bf16.msra.mxu0 %v1194
    %1846 = vmatpush.bf16.msra.mxu0 %v1189
    %1847 = vmatpush.bf16.msra.mxu0 %v1184
    %1848 = vmatpush.bf16.msra.mxu0 %v1179
    %1849 = vmatpush.bf16.msra.mxu0 %v1174
    %1850 = vmatpush.bf16.msra.mxu0 %v1169
    %1851 = vmatpush.bf16.msra.mxu0 %v1164
    %1852 = vmatmul.bf16.gmra.mxu0 %v446
    %v1853 = vpop.f32.mrf.mxu0
    %v1854 = vadd.f32 %v1835, %v1853
    %v1855 = vpop.f32.mrf.mxu0
    %v1856 = vadd.f32 %v1837, %v1855
    %1857 = vmatmul.bf16.gmra.mxu0 %v451
    %v1858 = vpop.f32.mrf.mxu0
    %v1859 = vadd.f32 %v1840, %v1858
    %v1860 = vpop.f32.mrf.mxu0
    %v1861 = vadd.f32 %v1842, %v1860
    %1862 = vdwg.mxu0
    %1863 = vmatpush.bf16.msra.mxu0 0
    %1864 = vmatpush.bf16.msra.mxu0 0
    %1865 = vmatpush.bf16.msra.mxu0 0
    %1866 = vmatpush.bf16.msra.mxu0 0
    %1867 = vmatpush.bf16.msra.mxu0 %v1219
    %1868 = vmatpush.bf16.msra.mxu0 %v1214
    %1869 = vmatpush.bf16.msra.mxu0 %v1209
    %1870 = vmatpush.bf16.msra.mxu0 %v1204
    %1871 = vmatmul.bf16.gmra.mxu0 %v1402
    %v1872 = vpop.f32.mrf.mxu0
    %v1873 = vadd.f32 %v1854, %v1872
    %v1874 = vpop.f32.mrf.mxu0
    %v1875 = vadd.f32 %v1856, %v1874
    %1876 = vmatmul.bf16.gmra.mxu0 %v1405
    %v1877 = vpop.f32.mrf.mxu0
    %v1878 = vadd.f32 %v1859, %v1877
    %v1879 = vpop.f32.mrf.mxu0
    %v1880 = vadd.f32 %v1861, %v1879
    %1881 = vdwg.mxu0
    %v1882 = vmax.f32 %v1493, 0.0
    %v1883 = vmax.f32 %v1588, 0.0
    %v1884 = vmax.f32 %v1683, 0.0
    %v1885 = vmax.f32 %v1778, 0.0
    %v1886 = vmax.f32 %v1873, 0.0
    %v1887 = vmax.f32 %v1495, 0.0
    %v1888 = vmax.f32 %v1590, 0.0
    %v1889 = vmax.f32 %v1685, 0.0
    %v1890 = vmax.f32 %v1780, 0.0
    %v1891 = vmax.f32 %v1875, 0.0
    %v1892 = vmax.f32 %v1498, 0.0
    %v1893 = vmax.f32 %v1593, 0.0
    %v1894 = vmax.f32 %v1688, 0.0
    %v1895 = vmax.f32 %v1783, 0.0
    %v1896 = vmax.f32 %v1878, 0.0
    %v1897 = vmax.f32 %v1500, 0.0
    %v1898 = vmax.f32 %v1595, 0.0
    %v1899 = vmax.f32 %v1690, 0.0
    %v1900 = vmax.f32 %v1785, 0.0
    %v1901 = vmax.f32 %v1880, 0.0
    %v1902 = vmax.f32 %v1882, -0.01
    %v1903 = vmax.f32 %v1883, -0.01
    %v1904 = vmax.f32 %v1884, -0.01
    %v1905 = vmax.f32 %v1885, -0.01
    %v1906 = vmax.f32 %v1886, -0.01
    %v1907 = vmax.f32 %v1887, -0.01
    %v1908 = vmax.f32 %v1888, -0.01
    %v1909 = vmax.f32 %v1889, -0.01
    %v1910 = vmax.f32 %v1890, -0.01
    %v1911 = vmax.f32 %v1891, -0.01
    %v1912 = vmax.f32 %v1892, -0.01
    %v1913 = vmax.f32 %v1893, -0.01
    %v1914 = vmax.f32 %v1894, -0.01
    %v1915 = vmax.f32 %v1895, -0.01
    %v1916 = vmax.f32 %v1896, -0.01
    %v1917 = vmax.f32 %v1897, -0.01
    %v1918 = vmax.f32 %v1898, -0.01
    %v1919 = vmax.f32 %v1899, -0.01
    %v1920 = vmax.f32 %v1900, -0.01
    %v1921 = vmax.f32 %v1901, -0.01
    %v1922 = vmin.f32 %v1902, 0.01
    %v1923 = vmin.f32 %v1903, 0.01
    %v1924 = vmin.f32 %v1904, 0.01
    %v1925 = vmin.f32 %v1905, 0.01
    %v1926 = vmin.f32 %v1906, 0.01
    %v1927 = vmin.f32 %v1907, 0.01
    %v1928 = vmin.f32 %v1908, 0.01
    %v1929 = vmin.f32 %v1909, 0.01
    %v1930 = vmin.f32 %v1910, 0.01
    %v1931 = vmin.f32 %v1911, 0.01
    %v1932 = vmin.f32 %v1912, 0.01
    %v1933 = vmin.f32 %v1913, 0.01
    %v1934 = vmin.f32 %v1914, 0.01
    %v1935 = vmin.f32 %v1915, 0.01
    %v1936 = vmin.f32 %v1916, 0.01
    %v1937 = vmin.f32 %v1917, 0.01
    %v1938 = vmin.f32 %v1918, 0.01
    %v1939 = vmin.f32 %v1919, 0.01
    %v1940 = vmin.f32 %v1920, 0.01
    %v1941 = vmin.f32 %v1921, 0.01
    %v1942 = vsub.f32 %v1882, %v1922
    %v1943 = vsub.f32 %v1883, %v1923
    %v1944 = vsub.f32 %v1884, %v1924
    %v1945 = vsub.f32 %v1885, %v1925
    %v1946 = vsub.f32 %v1886, %v1926
    %v1947 = vsub.f32 %v1887, %v1927
    %v1948 = vsub.f32 %v1888, %v1928
    %v1949 = vsub.f32 %v1889, %v1929
    %v1950 = vsub.f32 %v1890, %v1930
    %v1951 = vsub.f32 %v1891, %v1931
    %v1952 = vsub.f32 %v1892, %v1932
    %v1953 = vsub.f32 %v1893, %v1933
    %v1954 = vsub.f32 %v1894, %v1934
    %v1955 = vsub.f32 %v1895, %v1935
    %v1956 = vsub.f32 %v1896, %v1936
    %v1957 = vsub.f32 %v1897, %v1937
    %v1958 = vsub.f32 %v1898, %v1938
    %v1959 = vsub.f32 %v1899, %v1939
    %v1960 = vsub.f32 %v1900, %v1940
    %v1961 = vsub.f32 %v1901, %v1941
    %v1962 = vadd.f32 %v97, %v1942
    %v1963 = vadd.f32 %v126, %v1943
    %v1964 = vadd.f32 %v155, %v1944
    %v1965 = vadd.f32 %v184, %v1945
    %v1966 = vadd.f32 %v213, %v1946
    %v1967 = vadd.f32 %v100, %v1947
    %v1968 = vadd.f32 %v129, %v1948
    %v1969 = vadd.f32 %v158, %v1949
    %v1970 = vadd.f32 %v187, %v1950
    %v1971 = vadd.f32 %v216, %v1951
    %v1972 = vadd.f32 %v103, %v1952
    %v1973 = vadd.f32 %v132, %v1953
    %v1974 = vadd.f32 %v161, %v1954
    %v1975 = vadd.f32 %v190, %v1955
    %v1976 = vadd.f32 %v219, %v1956
    %v1977 = vadd.f32 %v106, %v1957
    %v1978 = vadd.f32 %v135, %v1958
    %v1979 = vadd.f32 %v164, %v1959
    %v1980 = vadd.f32 %v193, %v1960
    %v1981 = vadd.f32 %v222, %v1961
    %v1982 = vld [vmem:[%s2 + $0x5a0] sm:$0xff]
    %v1983 = vld [vmem:[%s2 + $0x5a8] sm:$0xff]
    %v1984 = vld [vmem:[%s2 + $0x5b0] sm:$0xf]
    %v1985 = vld [vmem:[%s2 + $0x5b4] sm:$0xff]
    %v1986 = vld [vmem:[%s2 + $0x5bc] sm:$0xff]
    %v1987 = vld [vmem:[%s2 + $0x5c4] sm:$0xf]
    %v1988 = vld [vmem:[%s2 + $0x5c8] sm:$0xff]
    %v1989 = vld [vmem:[%s2 + $0x5d0] sm:$0xff]
    %v1990 = vld [vmem:[%s2 + $0x5d8] sm:$0xf]
    %v1991 = vld [vmem:[%s2 + $0x5dc] sm:$0xff]
    %v1992 = vld [vmem:[%s2 + $0x5e4] sm:$0xff]
    %v1993 = vld [vmem:[%s2 + $0x5ec] sm:$0xf]
    %v1994 = vld [vmem:[%s2 + $0x5f0] sm:$0xff]
    %v1995 = vld [vmem:[%s2 + $0x5f8] sm:$0xff]
    %v1996 = vld [vmem:[%s2 + $0x600] sm:$0xf]
    %v1997 = vld [vmem:[%s2 + $0x604] sm:$0xff]
    %v1998 = vld [vmem:[%s2 + $0x60c] sm:$0xff]
    %v1999 = vld [vmem:[%s2 + $0x614] sm:$0xf]
    %v2000 = vld [vmem:[%s2 + $0x618] sm:$0xff]
    %v2001 = vld [vmem:[%s2 + $0x620] sm:$0xff]
    %v2002 = vld [vmem:[%s2 + $0x628] sm:$0xf]
    %v2003 = vld [vmem:[%s2 + $0x62c] sm:$0xff]
    %v2004 = vld [vmem:[%s2 + $0x634] sm:$0xff]
    %v2005 = vld [vmem:[%s2 + $0x63c] sm:$0xf]
    %v2006 = vld [vmem:[%s2 + $0x640] sm:$0xff]
    %v2007 = vld [vmem:[%s2 + $0x648] sm:$0xff]
    %v2008 = vld [vmem:[%s2 + $0x650] sm:$0xf]
    %v2009 = vld [vmem:[%s2 + $0x654] sm:$0xff]
    %v2010 = vld [vmem:[%s2 + $0x65c] sm:$0xff]
    %v2011 = vld [vmem:[%s2 + $0x664] sm:$0xf]
    %v2012 = vld [vmem:[%s2 + $0x668] sm:$0xff]
    %v2013 = vld [vmem:[%s2 + $0x670] sm:$0xff]
    %v2014 = vld [vmem:[%s2 + $0x678] sm:$0xf]
    %v2015 = vld [vmem:[%s2 + $0x67c] sm:$0xff]
    %v2016 = vld [vmem:[%s2 + $0x684] sm:$0xff]
    %v2017 = vld [vmem:[%s2 + $0x68c] sm:$0xf]
    %v2018 = vld [vmem:[%s2 + $0x690] sm:$0xff]
    %v2019 = vld [vmem:[%s2 + $0x698] sm:$0xff]
    %v2020 = vld [vmem:[%s2 + $0x6a0] sm:$0xf]
    %v2021 = vld [vmem:[%s2 + $0x6a4] sm:$0xff]
    %v2022 = vld [vmem:[%s2 + $0x6ac] sm:$0xff]
    %v2023 = vld [vmem:[%s2 + $0x6b4] sm:$0xf]
    %v2024 = vld [vmem:[%s2 + $0x6b8] sm:$0xff]
    %v2025 = vld [vmem:[%s2 + $0x6c0] sm:$0xff]
    %v2026 = vld [vmem:[%s2 + $0x6c8] sm:$0xf]
    %v2027 = vld [vmem:[%s2 + $0x6cc] sm:$0xff]
    %v2028 = vld [vmem:[%s2 + $0x6d4] sm:$0xff]
    %v2029 = vld [vmem:[%s2 + $0x6dc] sm:$0xf]
    %v2030 = vld [vmem:[%s2 + $0x6e0] sm:$0xff]
    %v2031 = vld [vmem:[%s2 + $0x6e8] sm:$0xff]
    %v2032 = vld [vmem:[%s2 + $0x6f0] sm:$0xf]
    %v2033 = vld [vmem:[%s2 + $0x6f4] sm:$0xff]
    %v2034 = vld [vmem:[%s2 + $0x6fc] sm:$0xff]
    %v2035 = vld [vmem:[%s2 + $0x704] sm:$0xf]
    %v2036 = vld [vmem:[%s2 + $0x708] sm:$0xff]
    %v2037 = vld [vmem:[%s2 + $0x710] sm:$0xff]
    %v2038 = vld [vmem:[%s2 + $0x718] sm:$0xf]
    %v2039 = vld [vmem:[%s2 + $0x71c] sm:$0xff]
    %v2040 = vld [vmem:[%s2 + $0x724] sm:$0xff]
    %v2041 = vld [vmem:[%s2 + $0x72c] sm:$0xf]
    %v2042 = vld [vmem:[%s2 + $0x730] sm:$0xff]
    %v2043 = vld [vmem:[%s2 + $0x738] sm:$0xff]
    %v2044 = vld [vmem:[%s2 + $0x740] sm:$0xf]
    %v2045 = vld [vmem:[%s2 + $0x744] sm:$0xff]
    %v2046 = vld [vmem:[%s2 + $0x74c] sm:$0xff]
    %v2047 = vld [vmem:[%s2 + $0x754] sm:$0xf]
    %v2048 = vld [vmem:[%s2 + $0x758] sm:$0xff]
    %v2049 = vld [vmem:[%s2 + $0x760] sm:$0xff]
    %v2050 = vld [vmem:[%s2 + $0x768] sm:$0xf]
    %v2051 = vld [vmem:[%s2 + $0x76c] sm:$0xff]
    %v2052 = vld [vmem:[%s2 + $0x774] sm:$0xff]
    %v2053 = vld [vmem:[%s2 + $0x77c] sm:$0xf]
    %v2054 = vld [vmem:[%s2 + $0x780] sm:$0xff]
    %v2055 = vld [vmem:[%s2 + $0x788] sm:$0xff]
    %v2056 = vld [vmem:[%s2 + $0x790] sm:$0xf]
    %v2057 = vld [vmem:[%s2 + $0x794] sm:$0xff]
    %v2058 = vld [vmem:[%s2 + $0x79c] sm:$0xff]
    %v2059 = vld [vmem:[%s2 + $0x7a4] sm:$0xf]
    %v2060 = vld [vmem:[%s2 + $0x7a8] sm:$0xff]
    %v2061 = vld [vmem:[%s2 + $0x7b0] sm:$0xff]
    %v2062 = vld [vmem:[%s2 + $0x7b8] sm:$0xf]
    %v2063 = vld [vmem:[%s2 + $0x7bc] sm:$0xff]
    %v2064 = vld [vmem:[%s2 + $0x7c4] sm:$0xff]
    %v2065 = vld [vmem:[%s2 + $0x7cc] sm:$0xf]
    %v2066 = vld [vmem:[%s2 + $0x7d0] sm:$0xff]
    %v2067 = vld [vmem:[%s2 + $0x7d8] sm:$0xff]
    %v2068 = vld [vmem:[%s2 + $0x7e0] sm:$0xf]
    %v2069 = vld [vmem:[%s2 + $0x7e4] sm:$0xff]
    %v2070 = vld [vmem:[%s2 + $0x7ec] sm:$0xff]
    %v2071 = vld [vmem:[%s2 + $0x7f4] sm:$0xf]
    %v2072 = vld [vmem:[%s2 + $0x7f8] sm:$0xff]
    %v2073 = vld [vmem:[%s2 + $0x800] sm:$0xff]
    %v2074 = vld [vmem:[%s2 + $0x808] sm:$0xf]
    %v2075 = vld [vmem:[%s2 + $0x80c] sm:$0xff]
    %v2076 = vld [vmem:[%s2 + $0x814] sm:$0xff]
    %v2077 = vld [vmem:[%s2 + $0x81c] sm:$0xf]
    %v2078 = vld [vmem:[%s2 + $0x820] sm:$0xff]
    %v2079 = vld [vmem:[%s2 + $0x828] sm:$0xff]
    %v2080 = vld [vmem:[%s2 + $0x830] sm:$0xf]
    %v2081 = vld [vmem:[%s2 + $0x834] sm:$0xff]
    %v2082 = vld [vmem:[%s2 + $0x83c] sm:$0xff]
    %v2083 = vld [vmem:[%s2 + $0x844] sm:$0xf]
    %v2084 = vld [vmem:[%s2 + $0x848] sm:$0xff]
    %v2085 = vld [vmem:[%s2 + $0x850] sm:$0xff]
    %v2086 = vld [vmem:[%s2 + $0x858] sm:$0xf]
    %v2087 = vld [vmem:[%s2 + $0x85c] sm:$0xff]
    %v2088 = vld [vmem:[%s2 + $0x864] sm:$0xff]
    %v2089 = vld [vmem:[%s2 + $0x86c] sm:$0xf]
    %v2090 = vld [vmem:[%s2 + $0x870] sm:$0xff]
    %v2091 = vld [vmem:[%s2 + $0x878] sm:$0xff]
    %v2092 = vld [vmem:[%s2 + $0x880] sm:$0xf]
    %v2093 = vld [vmem:[%s2 + $0x884] sm:$0xff]
    %v2094 = vld [vmem:[%s2 + $0x88c] sm:$0xff]
    %v2095 = vld [vmem:[%s2 + $0x894] sm:$0xf]
    %v2096 = vld [vmem:[%s2 + $0x898] sm:$0xff]
    %v2097 = vld [vmem:[%s2 + $0x8a0] sm:$0xff]
    %v2098 = vld [vmem:[%s2 + $0x8a8] sm:$0xf]
    %v2099 = vld [vmem:[%s2 + $0x8ac] sm:$0xff]
    %v2100 = vld [vmem:[%s2 + $0x8b4] sm:$0xff]
    %v2101 = vld [vmem:[%s2 + $0x8bc] sm:$0xf]
    %v2102 = vld [vmem:[%s2 + $0x8c0] sm:$0xff]
    %v2103 = vld [vmem:[%s2 + $0x8c8] sm:$0xff]
    %v2104 = vld [vmem:[%s2 + $0x8d0] sm:$0xf]
    %v2105 = vld [vmem:[%s2 + $0x8d4] sm:$0xff]
    %v2106 = vld [vmem:[%s2 + $0x8dc] sm:$0xff]
    %v2107 = vld [vmem:[%s2 + $0x8e4] sm:$0xf]
    %v2108 = vld [vmem:[%s2 + $0x8e8] sm:$0xff]
    %v2109 = vld [vmem:[%s2 + $0x8f0] sm:$0xff]
    %v2110 = vld [vmem:[%s2 + $0x8f8] sm:$0xf]
    %v2111 = vld [vmem:[%s2 + $0x8fc] sm:$0xff]
    %v2112 = vld [vmem:[%s2 + $0x904] sm:$0xff]
    %v2113 = vld [vmem:[%s2 + $0x90c] sm:$0xf]
    %v2114 = vld [vmem:[%s2 + $0x910] sm:$0xff]
    %v2115 = vld [vmem:[%s2 + $0x918] sm:$0xff]
    %v2116 = vld [vmem:[%s2 + $0x920] sm:$0xf]
    %v2117 = vld [vmem:[%s2 + $0x924] sm:$0xff]
    %v2118 = vld [vmem:[%s2 + $0x92c] sm:$0xff]
    %v2119 = vld [vmem:[%s2 + $0x934] sm:$0xf]
    %v2120 = vld [vmem:[%s2 + $0x938] sm:$0xff]
    %v2121 = vld [vmem:[%s2 + $0x940] sm:$0xff]
    %v2122 = vld [vmem:[%s2 + $0x948] sm:$0xf]
    %v2123 = vld [vmem:[%s2 + $0x94c] sm:$0xff]
    %v2124 = vld [vmem:[%s2 + $0x954] sm:$0xff]
    %v2125 = vld [vmem:[%s2 + $0x95c] sm:$0xf]
    %v2126 = vld [vmem:[%s2 + $0x960] sm:$0xff]
    %v2127 = vld [vmem:[%s2 + $0x968] sm:$0xff]
    %v2128 = vld [vmem:[%s2 + $0x970] sm:$0xf]
    %v2129 = vld [vmem:[%s2 + $0x974] sm:$0xff]
    %v2130 = vld [vmem:[%s2 + $0x97c] sm:$0xff]
    %v2131 = vld [vmem:[%s2 + $0x984] sm:$0xf]
    %v2132 = vld [vmem:[%s2 + $0x988] sm:$0xff]
    %v2133 = vld [vmem:[%s2 + $0x990] sm:$0xff]
    %v2134 = vld [vmem:[%s2 + $0x998] sm:$0xf]
    %v2135 = vld [vmem:[%s2 + $0x99c] sm:$0xff]
    %v2136 = vld [vmem:[%s2 + $0x9a4] sm:$0xff]
    %v2137 = vld [vmem:[%s2 + $0x9ac] sm:$0xf]
    %v2138 = vld [vmem:[%s2 + $0x9b0] sm:$0xff]
    %v2139 = vld [vmem:[%s2 + $0x9b8] sm:$0xff]
    %v2140 = vld [vmem:[%s2 + $0x9c0] sm:$0xf]
    %v2141 = vld [vmem:[%s2 + $0x9c4] sm:$0xff]
    %v2142 = vld [vmem:[%s2 + $0x9cc] sm:$0xff]
    %v2143 = vld [vmem:[%s2 + $0x9d4] sm:$0xf]
    %v2144 = vld [vmem:[%s2 + $0x9d8] sm:$0xff]
    %v2145 = vld [vmem:[%s2 + $0x9e0] sm:$0xff]
    %v2146 = vld [vmem:[%s2 + $0x9e8] sm:$0xf]
    %v2147 = vld [vmem:[%s2 + $0x9ec] sm:$0xff]
    %v2148 = vld [vmem:[%s2 + $0x9f4] sm:$0xff]
    %v2149 = vld [vmem:[%s2 + $0x9fc] sm:$0xf]
    %v2150 = vld [vmem:[%s2 + $0xa00] sm:$0xff]
    %v2151 = vld [vmem:[%s2 + $0xa08] sm:$0xff]
    %v2152 = vld [vmem:[%s2 + $0xa10] sm:$0xf]
    %v2153 = vld [vmem:[%s2 + $0xa14] sm:$0xff]
    %v2154 = vld [vmem:[%s2 + $0xa1c] sm:$0xff]
    %v2155 = vld [vmem:[%s2 + $0xa24] sm:$0xf]
    %v2156 = vld [vmem:[%s2 + $0xa28] sm:$0xff]
    %v2157 = vld [vmem:[%s2 + $0xa30] sm:$0xff]
    %v2158 = vld [vmem:[%s2 + $0xa38] sm:$0xf]
    %v2159 = vld [vmem:[%s2 + $0xa3c] sm:$0xff]
    %v2160 = vld [vmem:[%s2 + $0xa44] sm:$0xff]
    %v2161 = vld [vmem:[%s2 + $0xa4c] sm:$0xf]
    %v2162 = vld [vmem:[%s2 + $0xa50] sm:$0xff]
    %v2163 = vld [vmem:[%s2 + $0xa58] sm:$0xff]
    %v2164 = vld [vmem:[%s2 + $0xa60] sm:$0xf]
    %v2165 = vld [vmem:[%s2 + $0xa64] sm:$0xff]
    %v2166 = vld [vmem:[%s2 + $0xa6c] sm:$0xff]
    %v2167 = vld [vmem:[%s2 + $0xa74] sm:$0xf]
    %v2168 = vld [vmem:[%s2 + $0xa78] sm:$0xff]
    %v2169 = vld [vmem:[%s2 + $0xa80] sm:$0xff]
    %v2170 = vld [vmem:[%s2 + $0xa88] sm:$0xf]
    %v2171 = vld [vmem:[%s2 + $0xa8c] sm:$0xff]
    %v2172 = vld [vmem:[%s2 + $0xa94] sm:$0xff]
    %v2173 = vld [vmem:[%s2 + $0xa9c] sm:$0xf]
    %v2174 = vld [vmem:[%s2 + $0xaa0] sm:$0xff]
    %v2175 = vld [vmem:[%s2 + $0xaa8] sm:$0xff]
    %v2176 = vld [vmem:[%s2 + $0xab0] sm:$0xf]
    %v2177 = vld [vmem:[%s2 + $0xab4] sm:$0xff]
    %v2178 = vld [vmem:[%s2 + $0xabc] sm:$0xff]
    %v2179 = vld [vmem:[%s2 + $0xac4] sm:$0xf]
    %v2180 = vld [vmem:[%s2 + $0xac8] sm:$0xff]
    %v2181 = vld [vmem:[%s2 + $0xad0] sm:$0xff]
    %v2182 = vld [vmem:[%s2 + $0xad8] sm:$0xf]
    %v2183 = vld [vmem:[%s2 + $0xadc] sm:$0xff]
    %v2184 = vld [vmem:[%s2 + $0xae4] sm:$0xff]
    %v2185 = vld [vmem:[%s2 + $0xaec] sm:$0xf]
    %v2186 = vld [vmem:[%s2 + $0xaf0] sm:$0xff]
    %v2187 = vld [vmem:[%s2 + $0xaf8] sm:$0xff]
    %v2188 = vld [vmem:[%s2 + $0xb00] sm:$0xf]
    %v2189 = vld [vmem:[%s2 + $0xb04] sm:$0xff]
    %v2190 = vld [vmem:[%s2 + $0xb0c] sm:$0xff]
    %v2191 = vld [vmem:[%s2 + $0xb14] sm:$0xf]
    %v2192 = vld [vmem:[%s2 + $0xb18] sm:$0xff]
    %v2193 = vld [vmem:[%s2 + $0xb20] sm:$0xff]
    %v2194 = vld [vmem:[%s2 + $0xb28] sm:$0xf]
    %v2195 = vld [vmem:[%s2 + $0xb2c] sm:$0xff]
    %v2196 = vld [vmem:[%s2 + $0xb34] sm:$0xff]
    %v2197 = vld [vmem:[%s2 + $0xb3c] sm:$0xf]
    %s2198 = scalar_lea.vmem %s6, 1
    %v2199 = vld [vmem:[%s2198] ss:$8 sm:$0xf]
    %v2200 = vld [vmem:[%s2198] ss:$8 sm:$0x10]
    %v2201 = vor.u32 %v2199, %v2200
    %v2202 = vpack.c.bf16 %v1887, %v1882
    %v2203 = vpack.c.bf16 %v1888, %v1883
    %v2204 = vpack.c.bf16 %v1889, %v1884
    %v2205 = vpack.c.bf16 %v1890, %v1885
    %v2206 = vpack.c.bf16 %v1891, %v1886
    %v2207 = vpack.c.bf16 %v1897, %v1892
    %v2208 = vpack.c.bf16 %v1898, %v1893
    %v2209 = vpack.c.bf16 %v1899, %v1894
    %v2210 = vpack.c.bf16 %v1900, %v1895
    %v2211 = vpack.c.bf16 %v1901, %v1896
    %v2213 = vperm.slane %v2201, 0
    %v2214 = vperm.slane %v2201, 1
    %v2215 = vperm.slane %v2201, 2
    %v2216 = vperm.slane %v2201, 3
    %v2217 = vperm.slane %v2201, 4
    %v2439 = vunpack.c.l.b16 %v1982
    %v2440 = vunpack.c.h.b16 %v1982
    %v2441 = vunpack.c.l.b16 %v1983
    %v2442 = vunpack.c.h.b16 %v1983
    %v2443 = vunpack.c.l.b16 %v1984
    %v2444 = vunpack.c.l.b16 %v1985
    %v2445 = vunpack.c.h.b16 %v1985
    %v2446 = vunpack.c.l.b16 %v1986
    %v2447 = vunpack.c.h.b16 %v1986
    %v2448 = vunpack.c.l.b16 %v1987
    %v2449 = vunpack.c.l.b16 %v1988
    %v2450 = vunpack.c.h.b16 %v1988
    %v2451 = vunpack.c.l.b16 %v1989
    %v2452 = vunpack.c.h.b16 %v1989
    %v2453 = vunpack.c.l.b16 %v1990
    %v2454 = vunpack.c.l.b16 %v1991
    %v2455 = vunpack.c.h.b16 %v1991
    %v2456 = vunpack.c.l.b16 %v1992
    %v2457 = vunpack.c.h.b16 %v1992
    %v2458 = vunpack.c.l.b16 %v1993
    %v2459 = vunpack.c.l.b16 %v1994
    %v2460 = vunpack.c.h.b16 %v1994
    %v2461 = vunpack.c.l.b16 %v1995
    %v2462 = vunpack.c.h.b16 %v1995
    %v2463 = vunpack.c.l.b16 %v1996
    %v2464 = vunpack.c.l.b16 %v1997
    %v2465 = vunpack.c.h.b16 %v1997
    %v2466 = vunpack.c.l.b16 %v1998
    %v2467 = vunpack.c.h.b16 %v1998
    %v2468 = vunpack.c.l.b16 %v1999
    %v2469 = vunpack.c.l.b16 %v2000
    %v2470 = vunpack.c.h.b16 %v2000
    %v2471 = vunpack.c.l.b16 %v2001
    %v2472 = vunpack.c.h.b16 %v2001
    %v2473 = vunpack.c.l.b16 %v2002
    %v2474 = vunpack.c.l.b16 %v2003
    %v2475 = vunpack.c.h.b16 %v2003
    %v2476 = vunpack.c.l.b16 %v2004
    %v2477 = vunpack.c.h.b16 %v2004
    %v2478 = vunpack.c.l.b16 %v2005
    %v2479 = vunpack.c.l.b16 %v2006
    %v2480 = vunpack.c.h.b16 %v2006
    %v2481 = vunpack.c.l.b16 %v2007
    %v2482 = vunpack.c.h.b16 %v2007
    %v2483 = vunpack.c.l.b16 %v2008
    %v2484 = vunpack.c.l.b16 %v2009
    %v2485 = vunpack.c.h.b16 %v2009
    %v2486 = vunpack.c.l.b16 %v2010
    %v2487 = vunpack.c.h.b16 %v2010
    %v2488 = vunpack.c.l.b16 %v2011
    %v2489 = vunpack.c.l.b16 %v2012
    %v2490 = vunpack.c.h.b16 %v2012
    %v2491 = vunpack.c.l.b16 %v2013
    %v2492 = vunpack.c.h.b16 %v2013
    %v2493 = vunpack.c.l.b16 %v2014
    %v2494 = vunpack.c.l.b16 %v2015
    %v2495 = vunpack.c.h.b16 %v2015
    %v2496 = vunpack.c.l.b16 %v2016
    %v2497 = vunpack.c.h.b16 %v2016
    %v2498 = vunpack.c.l.b16 %v2017
    %v2499 = vunpack.c.l.b16 %v2018
    %v2500 = vunpack.c.h.b16 %v2018
    %v2501 = vunpack.c.l.b16 %v2019
    %v2502 = vunpack.c.h.b16 %v2019
    %v2503 = vunpack.c.l.b16 %v2020
    %v2504 = vunpack.c.l.b16 %v2021
    %v2505 = vunpack.c.h.b16 %v2021
    %v2506 = vunpack.c.l.b16 %v2022
    %v2507 = vunpack.c.h.b16 %v2022
    %v2508 = vunpack.c.l.b16 %v2023
    %v2509 = vunpack.c.l.b16 %v2024
    %v2510 = vunpack.c.h.b16 %v2024
    %v2511 = vunpack.c.l.b16 %v2025
    %v2512 = vunpack.c.h.b16 %v2025
    %v2513 = vunpack.c.l.b16 %v2026
    %v2514 = vunpack.c.l.b16 %v2027
    %v2515 = vunpack.c.h.b16 %v2027
    %v2516 = vunpack.c.l.b16 %v2028
    %v2517 = vunpack.c.h.b16 %v2028
    %v2518 = vunpack.c.l.b16 %v2029
    %v2519 = vunpack.c.l.b16 %v2030
    %v2520 = vunpack.c.h.b16 %v2030
    %v2521 = vunpack.c.l.b16 %v2031
    %v2522 = vunpack.c.h.b16 %v2031
    %v2523 = vunpack.c.l.b16 %v2032
    %v2524 = vunpack.c.l.b16 %v2033
    %v2525 = vunpack.c.h.b16 %v2033
    %v2526 = vunpack.c.l.b16 %v2034
    %v2527 = vunpack.c.h.b16 %v2034
    %v2528 = vunpack.c.l.b16 %v2035
    %v2529 = vunpack.c.l.b16 %v2036
    %v2530 = vunpack.c.h.b16 %v2036
    %v2531 = vunpack.c.l.b16 %v2037
    %v2532 = vunpack.c.h.b16 %v2037
    %v2533 = vunpack.c.l.b16 %v2038
    %v2534 = vunpack.c.l.b16 %v2039
    %v2535 = vunpack.c.h.b16 %v2039
    %v2536 = vunpack.c.l.b16 %v2040
    %v2537 = vunpack.c.h.b16 %v2040
    %v2538 = vunpack.c.l.b16 %v2041
    %v2539 = vunpack.c.l.b16 %v2042
    %v2540 = vunpack.c.h.b16 %v2042
    %v2541 = vunpack.c.l.b16 %v2043
    %v2542 = vunpack.c.h.b16 %v2043
    %v2543 = vunpack.c.l.b16 %v2044
    %v2544 = vunpack.c.l.b16 %v2045
    %v2545 = vunpack.c.h.b16 %v2045
    %v2546 = vunpack.c.l.b16 %v2046
    %v2547 = vunpack.c.h.b16 %v2046
    %v2548 = vunpack.c.l.b16 %v2047
    %v2549 = vunpack.c.l.b16 %v2048
    %v2550 = vunpack.c.h.b16 %v2048
    %v2551 = vunpack.c.l.b16 %v2049
    %v2552 = vunpack.c.h.b16 %v2049
    %v2553 = vunpack.c.l.b16 %v2050
    %v2554 = vunpack.c.l.b16 %v2051
    %v2555 = vunpack.c.h.b16 %v2051
    %v2556 = vunpack.c.l.b16 %v2052
    %v2557 = vunpack.c.h.b16 %v2052
    %v2558 = vunpack.c.l.b16 %v2053
    %v2559 = vunpack.c.l.b16 %v2054
    %v2560 = vunpack.c.h.b16 %v2054
    %v2561 = vunpack.c.l.b16 %v2055
    %v2562 = vunpack.c.h.b16 %v2055
    %v2563 = vunpack.c.l.b16 %v2056
    %v2564 = vunpack.c.l.b16 %v2057
    %v2565 = vunpack.c.h.b16 %v2057
    %v2566 = vunpack.c.l.b16 %v2058
    %v2567 = vunpack.c.h.b16 %v2058
    %v2568 = vunpack.c.l.b16 %v2059
    %v2569 = vunpack.c.l.b16 %v2060
    %v2570 = vunpack.c.h.b16 %v2060
    %v2571 = vunpack.c.l.b16 %v2061
    %v2572 = vunpack.c.h.b16 %v2061
    %v2573 = vunpack.c.l.b16 %v2062
    %v2574 = vunpack.c.l.b16 %v2063
    %v2575 = vunpack.c.h.b16 %v2063
    %v2576 = vunpack.c.l.b16 %v2064
    %v2577 = vunpack.c.h.b16 %v2064
    %v2578 = vunpack.c.l.b16 %v2065
    %v2579 = vunpack.c.l.b16 %v2066
    %v2580 = vunpack.c.h.b16 %v2066
    %v2581 = vunpack.c.l.b16 %v2067
    %v2582 = vunpack.c.h.b16 %v2067
    %v2583 = vunpack.c.l.b16 %v2068
    %v2584 = vunpack.c.l.b16 %v2069
    %v2585 = vunpack.c.h.b16 %v2069
    %v2586 = vunpack.c.l.b16 %v2070
    %v2587 = vunpack.c.h.b16 %v2070
    %v2588 = vunpack.c.l.b16 %v2071
    %v2589 = vunpack.c.l.b16 %v2072
    %v2590 = vunpack.c.h.b16 %v2072
    %v2591 = vunpack.c.l.b16 %v2073
    %v2592 = vunpack.c.h.b16 %v2073
    %v2593 = vunpack.c.l.b16 %v2074
    %v2594 = vunpack.c.l.b16 %v2075
    %v2595 = vunpack.c.h.b16 %v2075
    %v2596 = vunpack.c.l.b16 %v2076
    %v2597 = vunpack.c.h.b16 %v2076
    %v2598 = vunpack.c.l.b16 %v2077
    %v2599 = vunpack.c.l.b16 %v2078
    %v2600 = vunpack.c.h.b16 %v2078
    %v2601 = vunpack.c.l.b16 %v2079
    %v2602 = vunpack.c.h.b16 %v2079
    %v2603 = vunpack.c.l.b16 %v2080
    %v2604 = vunpack.c.l.b16 %v2081
    %v2605 = vunpack.c.h.b16 %v2081
    %v2606 = vunpack.c.l.b16 %v2082
    %v2607 = vunpack.c.h.b16 %v2082
    %v2608 = vunpack.c.l.b16 %v2083
    %v2609 = vunpack.c.l.b16 %v2084
    %v2610 = vunpack.c.h.b16 %v2084
    %v2611 = vunpack.c.l.b16 %v2085
    %v2612 = vunpack.c.h.b16 %v2085
    %v2613 = vunpack.c.l.b16 %v2086
    %v2614 = vunpack.c.l.b16 %v2087
    %v2615 = vunpack.c.h.b16 %v2087
    %v2616 = vunpack.c.l.b16 %v2088
    %v2617 = vunpack.c.h.b16 %v2088
    %v2618 = vunpack.c.l.b16 %v2089
    %v2619 = vunpack.c.l.b16 %v2090
    %v2620 = vunpack.c.h.b16 %v2090
    %v2621 = vunpack.c.l.b16 %v2091
    %v2622 = vunpack.c.h.b16 %v2091
    %v2623 = vunpack.c.l.b16 %v2092
    %v2624 = vunpack.c.l.b16 %v2093
    %v2625 = vunpack.c.h.b16 %v2093
    %v2626 = vunpack.c.l.b16 %v2094
    %v2627 = vunpack.c.h.b16 %v2094
    %v2628 = vunpack.c.l.b16 %v2095
    %v2629 = vunpack.c.l.b16 %v2096
    %v2630 = vunpack.c.h.b16 %v2096
    %v2631 = vunpack.c.l.b16 %v2097
    %v2632 = vunpack.c.h.b16 %v2097
    %v2633 = vunpack.c.l.b16 %v2098
    %v2634 = vunpack.c.l.b16 %v2099
    %v2635 = vunpack.c.h.b16 %v2099
    %v2636 = vunpack.c.l.b16 %v2100
    %v2637 = vunpack.c.h.b16 %v2100
    %v2638 = vunpack.c.l.b16 %v2101
    %v2639 = vunpack.c.l.b16 %v2102
    %v2640 = vunpack.c.h.b16 %v2102
    %v2641 = vunpack.c.l.b16 %v2103
    %v2642 = vunpack.c.h.b16 %v2103
    %v2643 = vunpack.c.l.b16 %v2104
    %v2644 = vunpack.c.l.b16 %v2105
    %v2645 = vunpack.c.h.b16 %v2105
    %v2646 = vunpack.c.l.b16 %v2106
    %v2647 = vunpack.c.h.b16 %v2106
    %v2648 = vunpack.c.l.b16 %v2107
    %v2649 = vunpack.c.l.b16 %v2108
    %v2650 = vunpack.c.h.b16 %v2108
    %v2651 = vunpack.c.l.b16 %v2109
    %v2652 = vunpack.c.h.b16 %v2109
    %v2653 = vunpack.c.l.b16 %v2110
    %v2654 = vunpack.c.l.b16 %v2111
    %v2655 = vunpack.c.h.b16 %v2111
    %v2656 = vunpack.c.l.b16 %v2112
    %v2657 = vunpack.c.h.b16 %v2112
    %v2658 = vunpack.c.l.b16 %v2113
    %v2659 = vunpack.c.l.b16 %v2114
    %v2660 = vunpack.c.h.b16 %v2114
    %v2661 = vunpack.c.l.b16 %v2115
    %v2662 = vunpack.c.h.b16 %v2115
    %v2663 = vunpack.c.l.b16 %v2116
    %v2664 = vunpack.c.l.b16 %v2117
    %v2665 = vunpack.c.h.b16 %v2117
    %v2666 = vunpack.c.l.b16 %v2118
    %v2667 = vunpack.c.h.b16 %v2118
    %v2668 = vunpack.c.l.b16 %v2119
    %v2669 = vunpack.c.l.b16 %v2120
    %v2670 = vunpack.c.h.b16 %v2120
    %v2671 = vunpack.c.l.b16 %v2121
    %v2672 = vunpack.c.h.b16 %v2121
    %v2673 = vunpack.c.l.b16 %v2122
    %v2674 = vunpack.c.l.b16 %v2123
    %v2675 = vunpack.c.h.b16 %v2123
    %v2676 = vunpack.c.l.b16 %v2124
    %v2677 = vunpack.c.h.b16 %v2124
    %v2678 = vunpack.c.l.b16 %v2125
    %v2679 = vunpack.c.l.b16 %v2126
    %v2680 = vunpack.c.h.b16 %v2126
    %v2681 = vunpack.c.l.b16 %v2127
    %v2682 = vunpack.c.h.b16 %v2127
    %v2683 = vunpack.c.l.b16 %v2128
    %v2684 = vunpack.c.l.b16 %v2129
    %v2685 = vunpack.c.h.b16 %v2129
    %v2686 = vunpack.c.l.b16 %v2130
    %v2687 = vunpack.c.h.b16 %v2130
    %v2688 = vunpack.c.l.b16 %v2131
    %v2689 = vunpack.c.l.b16 %v2132
    %v2690 = vunpack.c.h.b16 %v2132
    %v2691 = vunpack.c.l.b16 %v2133
    %v2692 = vunpack.c.h.b16 %v2133
    %v2693 = vunpack.c.l.b16 %v2134
    %v2694 = vunpack.c.l.b16 %v2135
    %v2695 = vunpack.c.h.b16 %v2135
    %v2696 = vunpack.c.l.b16 %v2136
    %v2697 = vunpack.c.h.b16 %v2136
    %v2698 = vunpack.c.l.b16 %v2137
    %v2699 = vunpack.c.l.b16 %v2138
    %v2700 = vunpack.c.h.b16 %v2138
    %v2701 = vunpack.c.l.b16 %v2139
    %v2702 = vunpack.c.h.b16 %v2139
    %v2703 = vunpack.c.l.b16 %v2140
    %v2704 = vunpack.c.l.b16 %v2141
    %v2705 = vunpack.c.h.b16 %v2141
    %v2706 = vunpack.c.l.b16 %v2142
    %v2707 = vunpack.c.h.b16 %v2142
    %v2708 = vunpack.c.l.b16 %v2143
    %v2709 = vunpack.c.l.b16 %v2144
    %v2710 = vunpack.c.h.b16 %v2144
    %v2711 = vunpack.c.l.b16 %v2145
    %v2712 = vunpack.c.h.b16 %v2145
    %v2713 = vunpack.c.l.b16 %v2146
    %v2714 = vunpack.c.l.b16 %v2147
    %v2715 = vunpack.c.h.b16 %v2147
    %v2716 = vunpack.c.l.b16 %v2148
    %v2717 = vunpack.c.h.b16 %v2148
    %v2718 = vunpack.c.l.b16 %v2149
    %v2719 = vunpack.c.l.b16 %v2150
    %v2720 = vunpack.c.h.b16 %v2150
    %v2721 = vunpack.c.l.b16 %v2151
    %v2722 = vunpack.c.h.b16 %v2151
    %v2723 = vunpack.c.l.b16 %v2152
    %v2724 = vunpack.c.l.b16 %v2153
    %v2725 = vunpack.c.h.b16 %v2153
    %v2726 = vunpack.c.l.b16 %v2154
    %v2727 = vunpack.c.h.b16 %v2154
    %v2728 = vunpack.c.l.b16 %v2155
    %v2729 = vunpack.c.l.b16 %v2156
    %v2730 = vunpack.c.h.b16 %v2156
    %v2731 = vunpack.c.l.b16 %v2157
    %v2732 = vunpack.c.h.b16 %v2157
    %v2733 = vunpack.c.l.b16 %v2158
    %v2734 = vunpack.c.l.b16 %v2159
    %v2735 = vunpack.c.h.b16 %v2159
    %v2736 = vunpack.c.l.b16 %v2160
    %v2737 = vunpack.c.h.b16 %v2160
    %v2738 = vunpack.c.l.b16 %v2161
    %v2739 = vunpack.c.l.b16 %v2162
    %v2740 = vunpack.c.h.b16 %v2162
    %v2741 = vunpack.c.l.b16 %v2163
    %v2742 = vunpack.c.h.b16 %v2163
    %v2743 = vunpack.c.l.b16 %v2164
    %v2744 = vunpack.c.l.b16 %v2165
    %v2745 = vunpack.c.h.b16 %v2165
    %v2746 = vunpack.c.l.b16 %v2166
    %v2747 = vunpack.c.h.b16 %v2166
    %v2748 = vunpack.c.l.b16 %v2167
    %v2749 = vunpack.c.l.b16 %v2168
    %v2750 = vunpack.c.h.b16 %v2168
    %v2751 = vunpack.c.l.b16 %v2169
    %v2752 = vunpack.c.h.b16 %v2169
    %v2753 = vunpack.c.l.b16 %v2170
    %v2754 = vunpack.c.l.b16 %v2171
    %v2755 = vunpack.c.h.b16 %v2171
    %v2756 = vunpack.c.l.b16 %v2172
    %v2757 = vunpack.c.h.b16 %v2172
    %v2758 = vunpack.c.l.b16 %v2173
    %v2759 = vunpack.c.l.b16 %v2174
    %v2760 = vunpack.c.h.b16 %v2174
    %v2761 = vunpack.c.l.b16 %v2175
    %v2762 = vunpack.c.h.b16 %v2175
    %v2763 = vunpack.c.l.b16 %v2176
    %v2764 = vunpack.c.l.b16 %v2177
    %v2765 = vunpack.c.h.b16 %v2177
    %v2766 = vunpack.c.l.b16 %v2178
    %v2767 = vunpack.c.h.b16 %v2178
    %v2768 = vunpack.c.l.b16 %v2179
    %v2769 = vunpack.c.l.b16 %v2180
    %v2770 = vunpack.c.h.b16 %v2180
    %v2771 = vunpack.c.l.b16 %v2181
    %v2772 = vunpack.c.h.b16 %v2181
    %v2773 = vunpack.c.l.b16 %v2182
    %v2774 = vunpack.c.l.b16 %v2183
    %v2775 = vunpack.c.h.b16 %v2183
    %v2776 = vunpack.c.l.b16 %v2184
    %v2777 = vunpack.c.h.b16 %v2184
    %v2778 = vunpack.c.l.b16 %v2185
    %v2779 = vunpack.c.l.b16 %v2186
    %v2780 = vunpack.c.h.b16 %v2186
    %v2781 = vunpack.c.l.b16 %v2187
    %v2782 = vunpack.c.h.b16 %v2187
    %v2783 = vunpack.c.l.b16 %v2188
    %v2784 = vunpack.c.l.b16 %v2189
    %v2785 = vunpack.c.h.b16 %v2189
    %v2786 = vunpack.c.l.b16 %v2190
    %v2787 = vunpack.c.h.b16 %v2190
    %v2788 = vunpack.c.l.b16 %v2191
    %v2789 = vunpack.c.l.b16 %v2192
    %v2790 = vunpack.c.h.b16 %v2192
    %v2791 = vunpack.c.l.b16 %v2193
    %v2792 = vunpack.c.h.b16 %v2193
    %v2793 = vunpack.c.l.b16 %v2194
    %v2794 = vunpack.c.l.b16 %v2195
    %v2795 = vunpack.c.h.b16 %v2195
    %v2796 = vunpack.c.l.b16 %v2196
    %v2797 = vunpack.c.h.b16 %v2196
    %v2798 = vunpack.c.l.b16 %v2197
    %v2799 = vpack.c.b16 %v2444, %v2439
    %v2800 = vpack.c.b16 %v2445, %v2440
    %v2801 = vpack.c.b16 %v2446, %v2441
    %v2802 = vpack.c.b16 %v2447, %v2442
    %v2803 = vpack.c.b16 %v2448, %v2443
    %v2804 = vpack.c.b16 %v2454, %v2449
    %v2805 = vpack.c.b16 %v2455, %v2450
    %v2806 = vpack.c.b16 %v2456, %v2451
    %v2807 = vpack.c.b16 %v2457, %v2452
    %v2808 = vpack.c.b16 %v2458, %v2453
    %v2809 = vpack.c.b16 %v2464, %v2459
    %v2810 = vpack.c.b16 %v2465, %v2460
    %v2811 = vpack.c.b16 %v2466, %v2461
    %v2812 = vpack.c.b16 %v2467, %v2462
    %v2813 = vpack.c.b16 %v2468, %v2463
    %v2814 = vpack.c.b16 %v2474, %v2469
    %v2815 = vpack.c.b16 %v2475, %v2470
    %v2816 = vpack.c.b16 %v2476, %v2471
    %v2817 = vpack.c.b16 %v2477, %v2472
    %v2818 = vpack.c.b16 %v2478, %v2473
    %v2819 = vpack.c.b16 %v2484, %v2479
    %v2820 = vpack.c.b16 %v2485, %v2480
    %v2821 = vpack.c.b16 %v2486, %v2481
    %v2822 = vpack.c.b16 %v2487, %v2482
    %v2823 = vpack.c.b16 %v2488, %v2483
    %v2824 = vpack.c.b16 %v2494, %v2489
    %v2825 = vpack.c.b16 %v2495, %v2490
    %v2826 = vpack.c.b16 %v2496, %v2491
    %v2827 = vpack.c.b16 %v2497, %v2492
    %v2828 = vpack.c.b16 %v2498, %v2493
    %v2829 = vpack.c.b16 %v2504, %v2499
    %v2830 = vpack.c.b16 %v2505, %v2500
    %v2831 = vpack.c.b16 %v2506, %v2501
    %v2832 = vpack.c.b16 %v2507, %v2502
    %v2833 = vpack.c.b16 %v2508, %v2503
    %v2834 = vpack.c.b16 %v2514, %v2509
    %v2835 = vpack.c.b16 %v2515, %v2510
    %v2836 = vpack.c.b16 %v2516, %v2511
    %v2837 = vpack.c.b16 %v2517, %v2512
    %v2838 = vpack.c.b16 %v2518, %v2513
    %v2839 = vpack.c.b16 %v2524, %v2519
    %v2840 = vpack.c.b16 %v2525, %v2520
    %v2841 = vpack.c.b16 %v2526, %v2521
    %v2842 = vpack.c.b16 %v2527, %v2522
    %v2843 = vpack.c.b16 %v2528, %v2523
    %v2844 = vpack.c.b16 %v2534, %v2529
    %v2845 = vpack.c.b16 %v2535, %v2530
    %v2846 = vpack.c.b16 %v2536, %v2531
    %v2847 = vpack.c.b16 %v2537, %v2532
    %v2848 = vpack.c.b16 %v2538, %v2533
    %v2849 = vpack.c.b16 %v2544, %v2539
    %v2850 = vpack.c.b16 %v2545, %v2540
    %v2851 = vpack.c.b16 %v2546, %v2541
    %v2852 = vpack.c.b16 %v2547, %v2542
    %v2853 = vpack.c.b16 %v2548, %v2543
    %v2854 = vpack.c.b16 %v2554, %v2549
    %v2855 = vpack.c.b16 %v2555, %v2550
    %v2856 = vpack.c.b16 %v2556, %v2551
    %v2857 = vpack.c.b16 %v2557, %v2552
    %v2858 = vpack.c.b16 %v2558, %v2553
    %v2859 = vpack.c.b16 %v2564, %v2559
    %v2860 = vpack.c.b16 %v2565, %v2560
    %v2861 = vpack.c.b16 %v2566, %v2561
    %v2862 = vpack.c.b16 %v2567, %v2562
    %v2863 = vpack.c.b16 %v2568, %v2563
    %v2864 = vpack.c.b16 %v2574, %v2569
    %v2865 = vpack.c.b16 %v2575, %v2570
    %v2866 = vpack.c.b16 %v2576, %v2571
    %v2867 = vpack.c.b16 %v2577, %v2572
    %v2868 = vpack.c.b16 %v2578, %v2573
    %v2869 = vpack.c.b16 %v2584, %v2579
    %v2870 = vpack.c.b16 %v2585, %v2580
    %v2871 = vpack.c.b16 %v2586, %v2581
    %v2872 = vpack.c.b16 %v2587, %v2582
    %v2873 = vpack.c.b16 %v2588, %v2583
    %v2874 = vpack.c.b16 %v2594, %v2589
    %v2875 = vpack.c.b16 %v2595, %v2590
    %v2876 = vpack.c.b16 %v2596, %v2591
    %v2877 = vpack.c.b16 %v2597, %v2592
    %v2878 = vpack.c.b16 %v2598, %v2593
    %v2879 = vpack.c.b16 %v2604, %v2599
    %v2880 = vpack.c.b16 %v2605, %v2600
    %v2881 = vpack.c.b16 %v2606, %v2601
    %v2882 = vpack.c.b16 %v2607, %v2602
    %v2883 = vpack.c.b16 %v2608, %v2603
    %v2884 = vpack.c.b16 %v2614, %v2609
    %v2885 = vpack.c.b16 %v2615, %v2610
    %v2886 = vpack.c.b16 %v2616, %v2611
    %v2887 = vpack.c.b16 %v2617, %v2612
    %v2888 = vpack.c.b16 %v2618, %v2613
    %v2889 = vpack.c.b16 %v2624, %v2619
    %v2890 = vpack.c.b16 %v2625, %v2620
    %v2891 = vpack.c.b16 %v2626, %v2621
    %v2892 = vpack.c.b16 %v2627, %v2622
    %v2893 = vpack.c.b16 %v2628, %v2623
    %v2894 = vpack.c.b16 %v2634, %v2629
    %v2895 = vpack.c.b16 %v2635, %v2630
    %v2896 = vpack.c.b16 %v2636, %v2631
    %v2897 = vpack.c.b16 %v2637, %v2632
    %v2898 = vpack.c.b16 %v2638, %v2633
    %v2899 = vpack.c.b16 %v2644, %v2639
    %v2900 = vpack.c.b16 %v2645, %v2640
    %v2901 = vpack.c.b16 %v2646, %v2641
    %v2902 = vpack.c.b16 %v2647, %v2642
    %v2903 = vpack.c.b16 %v2648, %v2643
    %v2904 = vpack.c.b16 %v2654, %v2649
    %v2905 = vpack.c.b16 %v2655, %v2650
    %v2906 = vpack.c.b16 %v2656, %v2651
    %v2907 = vpack.c.b16 %v2657, %v2652
    %v2908 = vpack.c.b16 %v2658, %v2653
    %v2909 = vpack.c.b16 %v2664, %v2659
    %v2910 = vpack.c.b16 %v2665, %v2660
    %v2911 = vpack.c.b16 %v2666, %v2661
    %v2912 = vpack.c.b16 %v2667, %v2662
    %v2913 = vpack.c.b16 %v2668, %v2663
    %v2914 = vpack.c.b16 %v2674, %v2669
    %v2915 = vpack.c.b16 %v2675, %v2670
    %v2916 = vpack.c.b16 %v2676, %v2671
    %v2917 = vpack.c.b16 %v2677, %v2672
    %v2918 = vpack.c.b16 %v2678, %v2673
    %v2919 = vpack.c.b16 %v2684, %v2679
    %v2920 = vpack.c.b16 %v2685, %v2680
    %v2921 = vpack.c.b16 %v2686, %v2681
    %v2922 = vpack.c.b16 %v2687, %v2682
    %v2923 = vpack.c.b16 %v2688, %v2683
    %v2924 = vpack.c.b16 %v2694, %v2689
    %v2925 = vpack.c.b16 %v2695, %v2690
    %v2926 = vpack.c.b16 %v2696, %v2691
    %v2927 = vpack.c.b16 %v2697, %v2692
    %v2928 = vpack.c.b16 %v2698, %v2693
    %v2929 = vpack.c.b16 %v2704, %v2699
    %v2930 = vpack.c.b16 %v2705, %v2700
    %v2931 = vpack.c.b16 %v2706, %v2701
    %v2932 = vpack.c.b16 %v2707, %v2702
    %v2933 = vpack.c.b16 %v2708, %v2703
    %v2934 = vpack.c.b16 %v2714, %v2709
    %v2935 = vpack.c.b16 %v2715, %v2710
    %v2936 = vpack.c.b16 %v2716, %v2711
    %v2937 = vpack.c.b16 %v2717, %v2712
    %v2938 = vpack.c.b16 %v2718, %v2713
    %v2939 = vpack.c.b16 %v2724, %v2719
    %v2940 = vpack.c.b16 %v2725, %v2720
    %v2941 = vpack.c.b16 %v2726, %v2721
    %v2942 = vpack.c.b16 %v2727, %v2722
    %v2943 = vpack.c.b16 %v2728, %v2723
    %v2944 = vpack.c.b16 %v2734, %v2729
    %v2945 = vpack.c.b16 %v2735, %v2730
    %v2946 = vpack.c.b16 %v2736, %v2731
    %v2947 = vpack.c.b16 %v2737, %v2732
    %v2948 = vpack.c.b16 %v2738, %v2733
    %v2949 = vpack.c.b16 %v2744, %v2739
    %v2950 = vpack.c.b16 %v2745, %v2740
    %v2951 = vpack.c.b16 %v2746, %v2741
    %v2952 = vpack.c.b16 %v2747, %v2742
    %v2953 = vpack.c.b16 %v2748, %v2743
    %v2954 = vpack.c.b16 %v2754, %v2749
    %v2955 = vpack.c.b16 %v2755, %v2750
    %v2956 = vpack.c.b16 %v2756, %v2751
    %v2957 = vpack.c.b16 %v2757, %v2752
    %v2958 = vpack.c.b16 %v2758, %v2753
    %v2959 = vpack.c.b16 %v2764, %v2759
    %v2960 = vpack.c.b16 %v2765, %v2760
    %v2961 = vpack.c.b16 %v2766, %v2761
    %v2962 = vpack.c.b16 %v2767, %v2762
    %v2963 = vpack.c.b16 %v2768, %v2763
    %v2964 = vpack.c.b16 %v2774, %v2769
    %v2965 = vpack.c.b16 %v2775, %v2770
    %v2966 = vpack.c.b16 %v2776, %v2771
    %v2967 = vpack.c.b16 %v2777, %v2772
    %v2968 = vpack.c.b16 %v2778, %v2773
    %v2969 = vpack.c.b16 %v2784, %v2779
    %v2970 = vpack.c.b16 %v2785, %v2780
    %v2971 = vpack.c.b16 %v2786, %v2781
    %v2972 = vpack.c.b16 %v2787, %v2782
    %v2973 = vpack.c.b16 %v2788, %v2783
    %v2974 = vpack.c.b16 %v2794, %v2789
    %v2975 = vpack.c.b16 %v2795, %v2790
    %v2976 = vpack.c.b16 %v2796, %v2791
    %v2977 = vpack.c.b16 %v2797, %v2792
    %v2978 = vpack.c.b16 %v2798, %v2793
    %v3160 = vsel %vm1400, %v2206, 0
    %v3163 = vsel %vm1400, %v2211, 0
    %3165 = vmatpush.bf16.msra.mxu0 %v2834
    %3166 = vmatpush.bf16.msra.mxu0 %v2829
    %3167 = vmatpush.bf16.msra.mxu0 %v2824
    %3168 = vmatpush.bf16.msra.mxu0 %v2819
    %3169 = vmatpush.bf16.msra.mxu0 %v2814
    %3170 = vmatpush.bf16.msra.mxu0 %v2809
    %3171 = vmatpush.bf16.msra.mxu0 %v2804
    %3172 = vmatpush.bf16.msra.mxu0 %v2799
    %3173 = vmatmul.bf16.gmra.mxu0 %v2202
    %v3174 = vpop.f32.mrf.mxu0
    %v3175 = vadd.f32 %v2213, %v3174
    %v3176 = vpop.f32.mrf.mxu0
    %v3177 = vadd.f32 %v2213, %v3176
    %3178 = vmatmul.bf16.gmra.mxu0 %v2207
    %v3179 = vpop.f32.mrf.mxu0
    %v3180 = vadd.f32 %v2213, %v3179
    %v3181 = vpop.f32.mrf.mxu0
    %v3182 = vadd.f32 %v2213, %v3181
    %3183 = vdwg.mxu0
    %3184 = vmatpush.bf16.msra.mxu0 %v2874
    %3185 = vmatpush.bf16.msra.mxu0 %v2869
    %3186 = vmatpush.bf16.msra.mxu0 %v2864
    %3187 = vmatpush.bf16.msra.mxu0 %v2859
    %3188 = vmatpush.bf16.msra.mxu0 %v2854
    %3189 = vmatpush.bf16.msra.mxu0 %v2849
    %3190 = vmatpush.bf16.msra.mxu0 %v2844
    %3191 = vmatpush.bf16.msra.mxu0 %v2839
    %3192 = vmatmul.bf16.gmra.mxu0 %v2203
    %v3193 = vpop.f32.mrf.mxu0
    %v3194 = vadd.f32 %v3175, %v3193
    %v3195 = vpop.f32.mrf.mxu0
    %v3196 = vadd.f32 %v3177, %v3195
    %3197 = vmatmul.bf16.gmra.mxu0 %v2208
    %v3198 = vpop.f32.mrf.mxu0
    %v3199 = vadd.f32 %v3180, %v3198
    %v3200 = vpop.f32.mrf.mxu0
    %v3201 = vadd.f32 %v3182, %v3200
    %3202 = vdwg.mxu0
    %3203 = vmatpush.bf16.msra.mxu0 %v2914
    %3204 = vmatpush.bf16.msra.mxu0 %v2909
    %3205 = vmatpush.bf16.msra.mxu0 %v2904
    %3206 = vmatpush.bf16.msra.mxu0 %v2899
    %3207 = vmatpush.bf16.msra.mxu0 %v2894
    %3208 = vmatpush.bf16.msra.mxu0 %v2889
    %3209 = vmatpush.bf16.msra.mxu0 %v2884
    %3210 = vmatpush.bf16.msra.mxu0 %v2879
    %3211 = vmatmul.bf16.gmra.mxu0 %v2204
    %v3212 = vpop.f32.mrf.mxu0
    %v3213 = vadd.f32 %v3194, %v3212
    %v3214 = vpop.f32.mrf.mxu0
    %v3215 = vadd.f32 %v3196, %v3214
    %3216 = vmatmul.bf16.gmra.mxu0 %v2209
    %v3217 = vpop.f32.mrf.mxu0
    %v3218 = vadd.f32 %v3199, %v3217
    %v3219 = vpop.f32.mrf.mxu0
    %v3220 = vadd.f32 %v3201, %v3219
    %3221 = vdwg.mxu0
    %3222 = vmatpush.bf16.msra.mxu0 %v2954
    %3223 = vmatpush.bf16.msra.mxu0 %v2949
    %3224 = vmatpush.bf16.msra.mxu0 %v2944
    %3225 = vmatpush.bf16.msra.mxu0 %v2939
    %3226 = vmatpush.bf16.msra.mxu0 %v2934
    %3227 = vmatpush.bf16.msra.mxu0 %v2929
    %3228 = vmatpush.bf16.msra.mxu0 %v2924
    %3229 = vmatpush.bf16.msra.mxu0 %v2919
    %3230 = vmatmul.bf16.gmra.mxu0 %v2205
    %v3231 = vpop.f32.mrf.mxu0
    %v3232 = vadd.f32 %v3213, %v3231
    %v3233 = vpop.f32.mrf.mxu0
    %v3234 = vadd.f32 %v3215, %v3233
    %3235 = vmatmul.bf16.gmra.mxu0 %v2210
    %v3236 = vpop.f32.mrf.mxu0
    %v3237 = vadd.f32 %v3218, %v3236
    %v3238 = vpop.f32.mrf.mxu0
    %v3239 = vadd.f32 %v3220, %v3238
    %3240 = vdwg.mxu0
    %3241 = vmatpush.bf16.msra.mxu0 0
    %3242 = vmatpush.bf16.msra.mxu0 0
    %3243 = vmatpush.bf16.msra.mxu0 0
    %3244 = vmatpush.bf16.msra.mxu0 0
    %3245 = vmatpush.bf16.msra.mxu0 %v2974
    %3246 = vmatpush.bf16.msra.mxu0 %v2969
    %3247 = vmatpush.bf16.msra.mxu0 %v2964
    %3248 = vmatpush.bf16.msra.mxu0 %v2959
    %3249 = vmatmul.bf16.gmra.mxu0 %v3160
    %v3250 = vpop.f32.mrf.mxu0
    %v3251 = vadd.f32 %v3232, %v3250
    %v3252 = vpop.f32.mrf.mxu0
    %v3253 = vadd.f32 %v3234, %v3252
    %3254 = vmatmul.bf16.gmra.mxu0 %v3163
    %v3255 = vpop.f32.mrf.mxu0
    %v3256 = vadd.f32 %v3237, %v3255
    %v3257 = vpop.f32.mrf.mxu0
    %v3258 = vadd.f32 %v3239, %v3257
    %3259 = vdwg.mxu0
    %3260 = vmatpush.bf16.msra.mxu0 %v2835
    %3261 = vmatpush.bf16.msra.mxu0 %v2830
    %3262 = vmatpush.bf16.msra.mxu0 %v2825
    %3263 = vmatpush.bf16.msra.mxu0 %v2820
    %3264 = vmatpush.bf16.msra.mxu0 %v2815
    %3265 = vmatpush.bf16.msra.mxu0 %v2810
    %3266 = vmatpush.bf16.msra.mxu0 %v2805
    %3267 = vmatpush.bf16.msra.mxu0 %v2800
    %3268 = vmatmul.bf16.gmra.mxu0 %v2202
    %v3269 = vpop.f32.mrf.mxu0
    %v3270 = vadd.f32 %v2214, %v3269
    %v3271 = vpop.f32.mrf.mxu0
    %v3272 = vadd.f32 %v2214, %v3271
    %3273 = vmatmul.bf16.gmra.mxu0 %v2207
    %v3274 = vpop.f32.mrf.mxu0
    %v3275 = vadd.f32 %v2214, %v3274
    %v3276 = vpop.f32.mrf.mxu0
    %v3277 = vadd.f32 %v2214, %v3276
    %3278 = vdwg.mxu0
    %3279 = vmatpush.bf16.msra.mxu0 %v2875
    %3280 = vmatpush.bf16.msra.mxu0 %v2870
    %3281 = vmatpush.bf16.msra.mxu0 %v2865
    %3282 = vmatpush.bf16.msra.mxu0 %v2860
    %3283 = vmatpush.bf16.msra.mxu0 %v2855
    %3284 = vmatpush.bf16.msra.mxu0 %v2850
    %3285 = vmatpush.bf16.msra.mxu0 %v2845
    %3286 = vmatpush.bf16.msra.mxu0 %v2840
    %3287 = vmatmul.bf16.gmra.mxu0 %v2203
    %v3288 = vpop.f32.mrf.mxu0
    %v3289 = vadd.f32 %v3270, %v3288
    %v3290 = vpop.f32.mrf.mxu0
    %v3291 = vadd.f32 %v3272, %v3290
    %3292 = vmatmul.bf16.gmra.mxu0 %v2208
    %v3293 = vpop.f32.mrf.mxu0
    %v3294 = vadd.f32 %v3275, %v3293
    %v3295 = vpop.f32.mrf.mxu0
    %v3296 = vadd.f32 %v3277, %v3295
    %3297 = vdwg.mxu0
    %3298 = vmatpush.bf16.msra.mxu0 %v2915
    %3299 = vmatpush.bf16.msra.mxu0 %v2910
    %3300 = vmatpush.bf16.msra.mxu0 %v2905
    %3301 = vmatpush.bf16.msra.mxu0 %v2900
    %3302 = vmatpush.bf16.msra.mxu0 %v2895
    %3303 = vmatpush.bf16.msra.mxu0 %v2890
    %3304 = vmatpush.bf16.msra.mxu0 %v2885
    %3305 = vmatpush.bf16.msra.mxu0 %v2880
    %3306 = vmatmul.bf16.gmra.mxu0 %v2204
    %v3307 = vpop.f32.mrf.mxu0
    %v3308 = vadd.f32 %v3289, %v3307
    %v3309 = vpop.f32.mrf.mxu0
    %v3310 = vadd.f32 %v3291, %v3309
    %3311 = vmatmul.bf16.gmra.mxu0 %v2209
    %v3312 = vpop.f32.mrf.mxu0
    %v3313 = vadd.f32 %v3294, %v3312
    %v3314 = vpop.f32.mrf.mxu0
    %v3315 = vadd.f32 %v3296, %v3314
    %3316 = vdwg.mxu0
    %3317 = vmatpush.bf16.msra.mxu0 %v2955
    %3318 = vmatpush.bf16.msra.mxu0 %v2950
    %3319 = vmatpush.bf16.msra.mxu0 %v2945
    %3320 = vmatpush.bf16.msra.mxu0 %v2940
    %3321 = vmatpush.bf16.msra.mxu0 %v2935
    %3322 = vmatpush.bf16.msra.mxu0 %v2930
    %3323 = vmatpush.bf16.msra.mxu0 %v2925
    %3324 = vmatpush.bf16.msra.mxu0 %v2920
    %3325 = vmatmul.bf16.gmra.mxu0 %v2205
    %v3326 = vpop.f32.mrf.mxu0
    %v3327 = vadd.f32 %v3308, %v3326
    %v3328 = vpop.f32.mrf.mxu0
    %v3329 = vadd.f32 %v3310, %v3328
    %3330 = vmatmul.bf16.gmra.mxu0 %v2210
    %v3331 = vpop.f32.mrf.mxu0
    %v3332 = vadd.f32 %v3313, %v3331
    %v3333 = vpop.f32.mrf.mxu0
    %v3334 = vadd.f32 %v3315, %v3333
    %3335 = vdwg.mxu0
    %3336 = vmatpush.bf16.msra.mxu0 0
    %3337 = vmatpush.bf16.msra.mxu0 0
    %3338 = vmatpush.bf16.msra.mxu0 0
    %3339 = vmatpush.bf16.msra.mxu0 0
    %3340 = vmatpush.bf16.msra.mxu0 %v2975
    %3341 = vmatpush.bf16.msra.mxu0 %v2970
    %3342 = vmatpush.bf16.msra.mxu0 %v2965
    %3343 = vmatpush.bf16.msra.mxu0 %v2960
    %3344 = vmatmul.bf16.gmra.mxu0 %v3160
    %v3345 = vpop.f32.mrf.mxu0
    %v3346 = vadd.f32 %v3327, %v3345
    %v3347 = vpop.f32.mrf.mxu0
    %v3348 = vadd.f32 %v3329, %v3347
    %3349 = vmatmul.bf16.gmra.mxu0 %v3163
    %v3350 = vpop.f32.mrf.mxu0
    %v3351 = vadd.f32 %v3332, %v3350
    %v3352 = vpop.f32.mrf.mxu0
    %v3353 = vadd.f32 %v3334, %v3352
    %3354 = vdwg.mxu0
    %3355 = vmatpush.bf16.msra.mxu0 %v2836
    %3356 = vmatpush.bf16.msra.mxu0 %v2831
    %3357 = vmatpush.bf16.msra.mxu0 %v2826
    %3358 = vmatpush.bf16.msra.mxu0 %v2821
    %3359 = vmatpush.bf16.msra.mxu0 %v2816
    %3360 = vmatpush.bf16.msra.mxu0 %v2811
    %3361 = vmatpush.bf16.msra.mxu0 %v2806
    %3362 = vmatpush.bf16.msra.mxu0 %v2801
    %3363 = vmatmul.bf16.gmra.mxu0 %v2202
    %v3364 = vpop.f32.mrf.mxu0
    %v3365 = vadd.f32 %v2215, %v3364
    %v3366 = vpop.f32.mrf.mxu0
    %v3367 = vadd.f32 %v2215, %v3366
    %3368 = vmatmul.bf16.gmra.mxu0 %v2207
    %v3369 = vpop.f32.mrf.mxu0
    %v3370 = vadd.f32 %v2215, %v3369
    %v3371 = vpop.f32.mrf.mxu0
    %v3372 = vadd.f32 %v2215, %v3371
    %3373 = vdwg.mxu0
    %3374 = vmatpush.bf16.msra.mxu0 %v2876
    %3375 = vmatpush.bf16.msra.mxu0 %v2871
    %3376 = vmatpush.bf16.msra.mxu0 %v2866
    %3377 = vmatpush.bf16.msra.mxu0 %v2861
    %3378 = vmatpush.bf16.msra.mxu0 %v2856
    %3379 = vmatpush.bf16.msra.mxu0 %v2851
    %3380 = vmatpush.bf16.msra.mxu0 %v2846
    %3381 = vmatpush.bf16.msra.mxu0 %v2841
    %3382 = vmatmul.bf16.gmra.mxu0 %v2203
    %v3383 = vpop.f32.mrf.mxu0
    %v3384 = vadd.f32 %v3365, %v3383
    %v3385 = vpop.f32.mrf.mxu0
    %v3386 = vadd.f32 %v3367, %v3385
    %3387 = vmatmul.bf16.gmra.mxu0 %v2208
    %v3388 = vpop.f32.mrf.mxu0
    %v3389 = vadd.f32 %v3370, %v3388
    %v3390 = vpop.f32.mrf.mxu0
    %v3391 = vadd.f32 %v3372, %v3390
    %3392 = vdwg.mxu0
    %3393 = vmatpush.bf16.msra.mxu0 %v2916
    %3394 = vmatpush.bf16.msra.mxu0 %v2911
    %3395 = vmatpush.bf16.msra.mxu0 %v2906
    %3396 = vmatpush.bf16.msra.mxu0 %v2901
    %3397 = vmatpush.bf16.msra.mxu0 %v2896
    %3398 = vmatpush.bf16.msra.mxu0 %v2891
    %3399 = vmatpush.bf16.msra.mxu0 %v2886
    %3400 = vmatpush.bf16.msra.mxu0 %v2881
    %3401 = vmatmul.bf16.gmra.mxu0 %v2204
    %v3402 = vpop.f32.mrf.mxu0
    %v3403 = vadd.f32 %v3384, %v3402
    %v3404 = vpop.f32.mrf.mxu0
    %v3405 = vadd.f32 %v3386, %v3404
    %3406 = vmatmul.bf16.gmra.mxu0 %v2209
    %v3407 = vpop.f32.mrf.mxu0
    %v3408 = vadd.f32 %v3389, %v3407
    %v3409 = vpop.f32.mrf.mxu0
    %v3410 = vadd.f32 %v3391, %v3409
    %3411 = vdwg.mxu0
    %3412 = vmatpush.bf16.msra.mxu0 %v2956
    %3413 = vmatpush.bf16.msra.mxu0 %v2951
    %3414 = vmatpush.bf16.msra.mxu0 %v2946
    %3415 = vmatpush.bf16.msra.mxu0 %v2941
    %3416 = vmatpush.bf16.msra.mxu0 %v2936
    %3417 = vmatpush.bf16.msra.mxu0 %v2931
    %3418 = vmatpush.bf16.msra.mxu0 %v2926
    %3419 = vmatpush.bf16.msra.mxu0 %v2921
    %3420 = vmatmul.bf16.gmra.mxu0 %v2205
    %v3421 = vpop.f32.mrf.mxu0
    %v3422 = vadd.f32 %v3403, %v3421
    %v3423 = vpop.f32.mrf.mxu0
    %v3424 = vadd.f32 %v3405, %v3423
    %3425 = vmatmul.bf16.gmra.mxu0 %v2210
    %v3426 = vpop.f32.mrf.mxu0
    %v3427 = vadd.f32 %v3408, %v3426
    %v3428 = vpop.f32.mrf.mxu0
    %v3429 = vadd.f32 %v3410, %v3428
    %3430 = vdwg.mxu0
    %3431 = vmatpush.bf16.msra.mxu0 0
    %3432 = vmatpush.bf16.msra.mxu0 0
    %3433 = vmatpush.bf16.msra.mxu0 0
    %3434 = vmatpush.bf16.msra.mxu0 0
    %3435 = vmatpush.bf16.msra.mxu0 %v2976
    %3436 = vmatpush.bf16.msra.mxu0 %v2971
    %3437 = vmatpush.bf16.msra.mxu0 %v2966
    %3438 = vmatpush.bf16.msra.mxu0 %v2961
    %3439 = vmatmul.bf16.gmra.mxu0 %v3160
    %v3440 = vpop.f32.mrf.mxu0
    %v3441 = vadd.f32 %v3422, %v3440
    %v3442 = vpop.f32.mrf.mxu0
    %v3443 = vadd.f32 %v3424, %v3442
    %3444 = vmatmul.bf16.gmra.mxu0 %v3163
    %v3445 = vpop.f32.mrf.mxu0
    %v3446 = vadd.f32 %v3427, %v3445
    %v3447 = vpop.f32.mrf.mxu0
    %v3448 = vadd.f32 %v3429, %v3447
    %3449 = vdwg.mxu0
    %3450 = vmatpush.bf16.msra.mxu0 %v2837
    %3451 = vmatpush.bf16.msra.mxu0 %v2832
    %3452 = vmatpush.bf16.msra.mxu0 %v2827
    %3453 = vmatpush.bf16.msra.mxu0 %v2822
    %3454 = vmatpush.bf16.msra.mxu0 %v2817
    %3455 = vmatpush.bf16.msra.mxu0 %v2812
    %3456 = vmatpush.bf16.msra.mxu0 %v2807
    %3457 = vmatpush.bf16.msra.mxu0 %v2802
    %3458 = vmatmul.bf16.gmra.mxu0 %v2202
    %v3459 = vpop.f32.mrf.mxu0
    %v3460 = vadd.f32 %v2216, %v3459
    %v3461 = vpop.f32.mrf.mxu0
    %v3462 = vadd.f32 %v2216, %v3461
    %3463 = vmatmul.bf16.gmra.mxu0 %v2207
    %v3464 = vpop.f32.mrf.mxu0
    %v3465 = vadd.f32 %v2216, %v3464
    %v3466 = vpop.f32.mrf.mxu0
    %v3467 = vadd.f32 %v2216, %v3466
    %3468 = vdwg.mxu0
    %3469 = vmatpush.bf16.msra.mxu0 %v2877
    %3470 = vmatpush.bf16.msra.mxu0 %v2872
    %3471 = vmatpush.bf16.msra.mxu0 %v2867
    %3472 = vmatpush.bf16.msra.mxu0 %v2862
    %3473 = vmatpush.bf16.msra.mxu0 %v2857
    %3474 = vmatpush.bf16.msra.mxu0 %v2852
    %3475 = vmatpush.bf16.msra.mxu0 %v2847
    %3476 = vmatpush.bf16.msra.mxu0 %v2842
    %3477 = vmatmul.bf16.gmra.mxu0 %v2203
    %v3478 = vpop.f32.mrf.mxu0
    %v3479 = vadd.f32 %v3460, %v3478
    %v3480 = vpop.f32.mrf.mxu0
    %v3481 = vadd.f32 %v3462, %v3480
    %3482 = vmatmul.bf16.gmra.mxu0 %v2208
    %v3483 = vpop.f32.mrf.mxu0
    %v3484 = vadd.f32 %v3465, %v3483
    %v3485 = vpop.f32.mrf.mxu0
    %v3486 = vadd.f32 %v3467, %v3485
    %3487 = vdwg.mxu0
    %3488 = vmatpush.bf16.msra.mxu0 %v2917
    %3489 = vmatpush.bf16.msra.mxu0 %v2912
    %3490 = vmatpush.bf16.msra.mxu0 %v2907
    %3491 = vmatpush.bf16.msra.mxu0 %v2902
    %3492 = vmatpush.bf16.msra.mxu0 %v2897
    %3493 = vmatpush.bf16.msra.mxu0 %v2892
    %3494 = vmatpush.bf16.msra.mxu0 %v2887
    %3495 = vmatpush.bf16.msra.mxu0 %v2882
    %3496 = vmatmul.bf16.gmra.mxu0 %v2204
    %v3497 = vpop.f32.mrf.mxu0
    %v3498 = vadd.f32 %v3479, %v3497
    %v3499 = vpop.f32.mrf.mxu0
    %v3500 = vadd.f32 %v3481, %v3499
    %3501 = vmatmul.bf16.gmra.mxu0 %v2209
    %v3502 = vpop.f32.mrf.mxu0
    %v3503 = vadd.f32 %v3484, %v3502
    %v3504 = vpop.f32.mrf.mxu0
    %v3505 = vadd.f32 %v3486, %v3504
    %3506 = vdwg.mxu0
    %3507 = vmatpush.bf16.msra.mxu0 %v2957
    %3508 = vmatpush.bf16.msra.mxu0 %v2952
    %3509 = vmatpush.bf16.msra.mxu0 %v2947
    %3510 = vmatpush.bf16.msra.mxu0 %v2942
    %3511 = vmatpush.bf16.msra.mxu0 %v2937
    %3512 = vmatpush.bf16.msra.mxu0 %v2932
    %3513 = vmatpush.bf16.msra.mxu0 %v2927
    %3514 = vmatpush.bf16.msra.mxu0 %v2922
    %3515 = vmatmul.bf16.gmra.mxu0 %v2205
    %v3516 = vpop.f32.mrf.mxu0
    %v3517 = vadd.f32 %v3498, %v3516
    %v3518 = vpop.f32.mrf.mxu0
    %v3519 = vadd.f32 %v3500, %v3518
    %3520 = vmatmul.bf16.gmra.mxu0 %v2210
    %v3521 = vpop.f32.mrf.mxu0
    %v3522 = vadd.f32 %v3503, %v3521
    %v3523 = vpop.f32.mrf.mxu0
    %v3524 = vadd.f32 %v3505, %v3523
    %3525 = vdwg.mxu0
    %3526 = vmatpush.bf16.msra.mxu0 0
    %3527 = vmatpush.bf16.msra.mxu0 0
    %3528 = vmatpush.bf16.msra.mxu0 0
    %3529 = vmatpush.bf16.msra.mxu0 0
    %3530 = vmatpush.bf16.msra.mxu0 %v2977
    %3531 = vmatpush.bf16.msra.mxu0 %v2972
    %3532 = vmatpush.bf16.msra.mxu0 %v2967
    %3533 = vmatpush.bf16.msra.mxu0 %v2962
    %3534 = vmatmul.bf16.gmra.mxu0 %v3160
    %v3535 = vpop.f32.mrf.mxu0
    %v3536 = vadd.f32 %v3517, %v3535
    %v3537 = vpop.f32.mrf.mxu0
    %v3538 = vadd.f32 %v3519, %v3537
    %3539 = vmatmul.bf16.gmra.mxu0 %v3163
    %v3540 = vpop.f32.mrf.mxu0
    %v3541 = vadd.f32 %v3522, %v3540
    %v3542 = vpop.f32.mrf.mxu0
    %v3543 = vadd.f32 %v3524, %v3542
    %3544 = vdwg.mxu0
    %3545 = vmatpush.bf16.msra.mxu0 %v2838
    %3546 = vmatpush.bf16.msra.mxu0 %v2833
    %3547 = vmatpush.bf16.msra.mxu0 %v2828
    %3548 = vmatpush.bf16.msra.mxu0 %v2823
    %3549 = vmatpush.bf16.msra.mxu0 %v2818
    %3550 = vmatpush.bf16.msra.mxu0 %v2813
    %3551 = vmatpush.bf16.msra.mxu0 %v2808
    %3552 = vmatpush.bf16.msra.mxu0 %v2803
    %3553 = vmatmul.bf16.gmra.mxu0 %v2202
    %v3554 = vpop.f32.mrf.mxu0
    %v3555 = vadd.f32 %v2217, %v3554
    %v3556 = vpop.f32.mrf.mxu0
    %v3557 = vadd.f32 %v2217, %v3556
    %3558 = vmatmul.bf16.gmra.mxu0 %v2207
    %v3559 = vpop.f32.mrf.mxu0
    %v3560 = vadd.f32 %v2217, %v3559
    %v3561 = vpop.f32.mrf.mxu0
    %v3562 = vadd.f32 %v2217, %v3561
    %3563 = vdwg.mxu0
    %3564 = vmatpush.bf16.msra.mxu0 %v2878
    %3565 = vmatpush.bf16.msra.mxu0 %v2873
    %3566 = vmatpush.bf16.msra.mxu0 %v2868
    %3567 = vmatpush.bf16.msra.mxu0 %v2863
    %3568 = vmatpush.bf16.msra.mxu0 %v2858
    %3569 = vmatpush.bf16.msra.mxu0 %v2853
    %3570 = vmatpush.bf16.msra.mxu0 %v2848
    %3571 = vmatpush.bf16.msra.mxu0 %v2843
    %3572 = vmatmul.bf16.gmra.mxu0 %v2203
    %v3573 = vpop.f32.mrf.mxu0
    %v3574 = vadd.f32 %v3555, %v3573
    %v3575 = vpop.f32.mrf.mxu0
    %v3576 = vadd.f32 %v3557, %v3575
    %3577 = vmatmul.bf16.gmra.mxu0 %v2208
    %v3578 = vpop.f32.mrf.mxu0
    %v3579 = vadd.f32 %v3560, %v3578
    %v3580 = vpop.f32.mrf.mxu0
    %v3581 = vadd.f32 %v3562, %v3580
    %3582 = vdwg.mxu0
    %3583 = vmatpush.bf16.msra.mxu0 %v2918
    %3584 = vmatpush.bf16.msra.mxu0 %v2913
    %3585 = vmatpush.bf16.msra.mxu0 %v2908
    %3586 = vmatpush.bf16.msra.mxu0 %v2903
    %3587 = vmatpush.bf16.msra.mxu0 %v2898
    %3588 = vmatpush.bf16.msra.mxu0 %v2893
    %3589 = vmatpush.bf16.msra.mxu0 %v2888
    %3590 = vmatpush.bf16.msra.mxu0 %v2883
    %3591 = vmatmul.bf16.gmra.mxu0 %v2204
    %v3592 = vpop.f32.mrf.mxu0
    %v3593 = vadd.f32 %v3574, %v3592
    %v3594 = vpop.f32.mrf.mxu0
    %v3595 = vadd.f32 %v3576, %v3594
    %3596 = vmatmul.bf16.gmra.mxu0 %v2209
    %v3597 = vpop.f32.mrf.mxu0
    %v3598 = vadd.f32 %v3579, %v3597
    %v3599 = vpop.f32.mrf.mxu0
    %v3600 = vadd.f32 %v3581, %v3599
    %3601 = vdwg.mxu0
    %3602 = vmatpush.bf16.msra.mxu0 %v2958
    %3603 = vmatpush.bf16.msra.mxu0 %v2953
    %3604 = vmatpush.bf16.msra.mxu0 %v2948
    %3605 = vmatpush.bf16.msra.mxu0 %v2943
    %3606 = vmatpush.bf16.msra.mxu0 %v2938
    %3607 = vmatpush.bf16.msra.mxu0 %v2933
    %3608 = vmatpush.bf16.msra.mxu0 %v2928
    %3609 = vmatpush.bf16.msra.mxu0 %v2923
    %3610 = vmatmul.bf16.gmra.mxu0 %v2205
    %v3611 = vpop.f32.mrf.mxu0
    %v3612 = vadd.f32 %v3593, %v3611
    %v3613 = vpop.f32.mrf.mxu0
    %v3614 = vadd.f32 %v3595, %v3613
    %3615 = vmatmul.bf16.gmra.mxu0 %v2210
    %v3616 = vpop.f32.mrf.mxu0
    %v3617 = vadd.f32 %v3598, %v3616
    %v3618 = vpop.f32.mrf.mxu0
    %v3619 = vadd.f32 %v3600, %v3618
    %3620 = vdwg.mxu0
    %3621 = vmatpush.bf16.msra.mxu0 0
    %3622 = vmatpush.bf16.msra.mxu0 0
    %3623 = vmatpush.bf16.msra.mxu0 0
    %3624 = vmatpush.bf16.msra.mxu0 0
    %3625 = vmatpush.bf16.msra.mxu0 %v2978
    %3626 = vmatpush.bf16.msra.mxu0 %v2973
    %3627 = vmatpush.bf16.msra.mxu0 %v2968
    %3628 = vmatpush.bf16.msra.mxu0 %v2963
    %3629 = vmatmul.bf16.gmra.mxu0 %v3160
    %v3630 = vpop.f32.mrf.mxu0
    %v3631 = vadd.f32 %v3612, %v3630
    %v3632 = vpop.f32.mrf.mxu0
    %v3633 = vadd.f32 %v3614, %v3632
    %3634 = vmatmul.bf16.gmra.mxu0 %v3163
    %v3635 = vpop.f32.mrf.mxu0
    %v3636 = vadd.f32 %v3617, %v3635
    %v3637 = vpop.f32.mrf.mxu0
    %v3638 = vadd.f32 %v3619, %v3637
    %3639 = vdwg.mxu0
    %v3640 = vmax.f32 %v3251, 0.0
    %v3641 = vmax.f32 %v3346, 0.0
    %v3642 = vmax.f32 %v3441, 0.0
    %v3643 = vmax.f32 %v3536, 0.0
    %v3644 = vmax.f32 %v3631, 0.0
    %v3645 = vmax.f32 %v3253, 0.0
    %v3646 = vmax.f32 %v3348, 0.0
    %v3647 = vmax.f32 %v3443, 0.0
    %v3648 = vmax.f32 %v3538, 0.0
    %v3649 = vmax.f32 %v3633, 0.0
    %v3650 = vmax.f32 %v3256, 0.0
    %v3651 = vmax.f32 %v3351, 0.0
    %v3652 = vmax.f32 %v3446, 0.0
    %v3653 = vmax.f32 %v3541, 0.0
    %v3654 = vmax.f32 %v3636, 0.0
    %v3655 = vmax.f32 %v3258, 0.0
    %v3656 = vmax.f32 %v3353, 0.0
    %v3657 = vmax.f32 %v3448, 0.0
    %v3658 = vmax.f32 %v3543, 0.0
    %v3659 = vmax.f32 %v3638, 0.0
    %v3660 = vmax.f32 %v3640, -0.01
    %v3661 = vmax.f32 %v3641, -0.01
    %v3662 = vmax.f32 %v3642, -0.01
    %v3663 = vmax.f32 %v3643, -0.01
    %v3664 = vmax.f32 %v3644, -0.01
    %v3665 = vmax.f32 %v3645, -0.01
    %v3666 = vmax.f32 %v3646, -0.01
    %v3667 = vmax.f32 %v3647, -0.01
    %v3668 = vmax.f32 %v3648, -0.01
    %v3669 = vmax.f32 %v3649, -0.01
    %v3670 = vmax.f32 %v3650, -0.01
    %v3671 = vmax.f32 %v3651, -0.01
    %v3672 = vmax.f32 %v3652, -0.01
    %v3673 = vmax.f32 %v3653, -0.01
    %v3674 = vmax.f32 %v3654, -0.01
    %v3675 = vmax.f32 %v3655, -0.01
    %v3676 = vmax.f32 %v3656, -0.01
    %v3677 = vmax.f32 %v3657, -0.01
    %v3678 = vmax.f32 %v3658, -0.01
    %v3679 = vmax.f32 %v3659, -0.01
    %v3680 = vmin.f32 %v3660, 0.01
    %v3681 = vmin.f32 %v3661, 0.01
    %v3682 = vmin.f32 %v3662, 0.01
    %v3683 = vmin.f32 %v3663, 0.01
    %v3684 = vmin.f32 %v3664, 0.01
    %v3685 = vmin.f32 %v3665, 0.01
    %v3686 = vmin.f32 %v3666, 0.01
    %v3687 = vmin.f32 %v3667, 0.01
    %v3688 = vmin.f32 %v3668, 0.01
    %v3689 = vmin.f32 %v3669, 0.01
    %v3690 = vmin.f32 %v3670, 0.01
    %v3691 = vmin.f32 %v3671, 0.01
    %v3692 = vmin.f32 %v3672, 0.01
    %v3693 = vmin.f32 %v3673, 0.01
    %v3694 = vmin.f32 %v3674, 0.01
    %v3695 = vmin.f32 %v3675, 0.01
    %v3696 = vmin.f32 %v3676, 0.01
    %v3697 = vmin.f32 %v3677, 0.01
    %v3698 = vmin.f32 %v3678, 0.01
    %v3699 = vmin.f32 %v3679, 0.01
    %v3700 = vsub.f32 %v3640, %v3680
    %v3701 = vsub.f32 %v3641, %v3681
    %v3702 = vsub.f32 %v3642, %v3682
    %v3703 = vsub.f32 %v3643, %v3683
    %v3704 = vsub.f32 %v3644, %v3684
    %v3705 = vsub.f32 %v3645, %v3685
    %v3706 = vsub.f32 %v3646, %v3686
    %v3707 = vsub.f32 %v3647, %v3687
    %v3708 = vsub.f32 %v3648, %v3688
    %v3709 = vsub.f32 %v3649, %v3689
    %v3710 = vsub.f32 %v3650, %v3690
    %v3711 = vsub.f32 %v3651, %v3691
    %v3712 = vsub.f32 %v3652, %v3692
    %v3713 = vsub.f32 %v3653, %v3693
    %v3714 = vsub.f32 %v3654, %v3694
    %v3715 = vsub.f32 %v3655, %v3695
    %v3716 = vsub.f32 %v3656, %v3696
    %v3717 = vsub.f32 %v3657, %v3697
    %v3718 = vsub.f32 %v3658, %v3698
    %v3719 = vsub.f32 %v3659, %v3699
    %v3720 = vadd.f32 %v1962, %v3700
    %v3721 = vadd.f32 %v1963, %v3701
    %v3722 = vadd.f32 %v1964, %v3702
    %v3723 = vadd.f32 %v1965, %v3703
    %v3724 = vadd.f32 %v1966, %v3704
    %v3725 = vadd.f32 %v1967, %v3705
    %v3726 = vadd.f32 %v1968, %v3706
    %v3727 = vadd.f32 %v1969, %v3707
    %v3728 = vadd.f32 %v1970, %v3708
    %v3729 = vadd.f32 %v1971, %v3709
    %v3730 = vadd.f32 %v1972, %v3710
    %v3731 = vadd.f32 %v1973, %v3711
    %v3732 = vadd.f32 %v1974, %v3712
    %v3733 = vadd.f32 %v1975, %v3713
    %v3734 = vadd.f32 %v1976, %v3714
    %v3735 = vadd.f32 %v1977, %v3715
    %v3736 = vadd.f32 %v1978, %v3716
    %v3737 = vadd.f32 %v1979, %v3717
    %v3738 = vadd.f32 %v1980, %v3718
    %v3739 = vadd.f32 %v1981, %v3719
    %v3740 = vld [vmem:[%s2 + $0xb40] sm:$0xff]
    %v3741 = vld [vmem:[%s2 + $0xb48] sm:$0xff]
    %v3742 = vld [vmem:[%s2 + $0xb50] sm:$0xf]
    %v3743 = vld [vmem:[%s2 + $0xb54] sm:$0xff]
    %v3744 = vld [vmem:[%s2 + $0xb5c] sm:$0xff]
    %v3745 = vld [vmem:[%s2 + $0xb64] sm:$0xf]
    %v3746 = vld [vmem:[%s2 + $0xb68] sm:$0xff]
    %v3747 = vld [vmem:[%s2 + $0xb70] sm:$0xff]
    %v3748 = vld [vmem:[%s2 + $0xb78] sm:$0xf]
    %v3749 = vld [vmem:[%s2 + $0xb7c] sm:$0xff]
    %v3750 = vld [vmem:[%s2 + $0xb84] sm:$0xff]
    %v3751 = vld [vmem:[%s2 + $0xb8c] sm:$0xf]
    %v3752 = vld [vmem:[%s2 + $0xb90] sm:$0xff]
    %v3753 = vld [vmem:[%s2 + $0xb98] sm:$0xff]
    %v3754 = vld [vmem:[%s2 + $0xba0] sm:$0xf]
    %v3755 = vld [vmem:[%s2 + $0xba4] sm:$0xff]
    %v3756 = vld [vmem:[%s2 + $0xbac] sm:$0xff]
    %v3757 = vld [vmem:[%s2 + $0xbb4] sm:$0xf]
    %v3758 = vld [vmem:[%s2 + $0xbb8] sm:$0xff]
    %v3759 = vld [vmem:[%s2 + $0xbc0] sm:$0xff]
    %v3760 = vld [vmem:[%s2 + $0xbc8] sm:$0xf]
    %v3761 = vld [vmem:[%s2 + $0xbcc] sm:$0xff]
    %v3762 = vld [vmem:[%s2 + $0xbd4] sm:$0xff]
    %v3763 = vld [vmem:[%s2 + $0xbdc] sm:$0xf]
    %v3764 = vld [vmem:[%s2 + $0xbe0] sm:$0xff]
    %v3765 = vld [vmem:[%s2 + $0xbe8] sm:$0xff]
    %v3766 = vld [vmem:[%s2 + $0xbf0] sm:$0xf]
    %v3767 = vld [vmem:[%s2 + $0xbf4] sm:$0xff]
    %v3768 = vld [vmem:[%s2 + $0xbfc] sm:$0xff]
    %v3769 = vld [vmem:[%s2 + $0xc04] sm:$0xf]
    %v3770 = vld [vmem:[%s2 + $0xc08] sm:$0xff]
    %v3771 = vld [vmem:[%s2 + $0xc10] sm:$0xff]
    %v3772 = vld [vmem:[%s2 + $0xc18] sm:$0xf]
    %v3773 = vld [vmem:[%s2 + $0xc1c] sm:$0xff]
    %v3774 = vld [vmem:[%s2 + $0xc24] sm:$0xff]
    %v3775 = vld [vmem:[%s2 + $0xc2c] sm:$0xf]
    %v3776 = vld [vmem:[%s2 + $0xc30] sm:$0xff]
    %v3777 = vld [vmem:[%s2 + $0xc38] sm:$0xff]
    %v3778 = vld [vmem:[%s2 + $0xc40] sm:$0xf]
    %v3779 = vld [vmem:[%s2 + $0xc44] sm:$0xff]
    %v3780 = vld [vmem:[%s2 + $0xc4c] sm:$0xff]
    %v3781 = vld [vmem:[%s2 + $0xc54] sm:$0xf]
    %v3782 = vld [vmem:[%s2 + $0xc58] sm:$0xff]
    %v3783 = vld [vmem:[%s2 + $0xc60] sm:$0xff]
    %v3784 = vld [vmem:[%s2 + $0xc68] sm:$0xf]
    %v3785 = vld [vmem:[%s2 + $0xc6c] sm:$0xff]
    %v3786 = vld [vmem:[%s2 + $0xc74] sm:$0xff]
    %v3787 = vld [vmem:[%s2 + $0xc7c] sm:$0xf]
    %v3788 = vld [vmem:[%s2 + $0xc80] sm:$0xff]
    %v3789 = vld [vmem:[%s2 + $0xc88] sm:$0xff]
    %v3790 = vld [vmem:[%s2 + $0xc90] sm:$0xf]
    %v3791 = vld [vmem:[%s2 + $0xc94] sm:$0xff]
    %v3792 = vld [vmem:[%s2 + $0xc9c] sm:$0xff]
    %v3793 = vld [vmem:[%s2 + $0xca4] sm:$0xf]
    %v3794 = vld [vmem:[%s2 + $0xca8] sm:$0xff]
    %v3795 = vld [vmem:[%s2 + $0xcb0] sm:$0xff]
    %v3796 = vld [vmem:[%s2 + $0xcb8] sm:$0xf]
    %v3797 = vld [vmem:[%s2 + $0xcbc] sm:$0xff]
    %v3798 = vld [vmem:[%s2 + $0xcc4] sm:$0xff]
    %v3799 = vld [vmem:[%s2 + $0xccc] sm:$0xf]
    %v3800 = vld [vmem:[%s2 + $0xcd0] sm:$0xff]
    %v3801 = vld [vmem:[%s2 + $0xcd8] sm:$0xff]
    %v3802 = vld [vmem:[%s2 + $0xce0] sm:$0xf]
    %v3803 = vld [vmem:[%s2 + $0xce4] sm:$0xff]
    %v3804 = vld [vmem:[%s2 + $0xcec] sm:$0xff]
    %v3805 = vld [vmem:[%s2 + $0xcf4] sm:$0xf]
    %v3806 = vld [vmem:[%s2 + $0xcf8] sm:$0xff]
    %v3807 = vld [vmem:[%s2 + $0xd00] sm:$0xff]
    %v3808 = vld [vmem:[%s2 + $0xd08] sm:$0xf]
    %v3809 = vld [vmem:[%s2 + $0xd0c] sm:$0xff]
    %v3810 = vld [vmem:[%s2 + $0xd14] sm:$0xff]
    %v3811 = vld [vmem:[%s2 + $0xd1c] sm:$0xf]
    %v3812 = vld [vmem:[%s2 + $0xd20] sm:$0xff]
    %v3813 = vld [vmem:[%s2 + $0xd28] sm:$0xff]
    %v3814 = vld [vmem:[%s2 + $0xd30] sm:$0xf]
    %v3815 = vld [vmem:[%s2 + $0xd34] sm:$0xff]
    %v3816 = vld [vmem:[%s2 + $0xd3c] sm:$0xff]
    %v3817 = vld [vmem:[%s2 + $0xd44] sm:$0xf]
    %v3818 = vld [vmem:[%s2 + $0xd48] sm:$0xff]
    %v3819 = vld [vmem:[%s2 + $0xd50] sm:$0xff]
    %v3820 = vld [vmem:[%s2 + $0xd58] sm:$0xf]
    %v3821 = vld [vmem:[%s2 + $0xd5c] sm:$0xff]
    %v3822 = vld [vmem:[%s2 + $0xd64] sm:$0xff]
    %v3823 = vld [vmem:[%s2 + $0xd6c] sm:$0xf]
    %v3824 = vld [vmem:[%s2 + $0xd70] sm:$0xff]
    %v3825 = vld [vmem:[%s2 + $0xd78] sm:$0xff]
    %v3826 = vld [vmem:[%s2 + $0xd80] sm:$0xf]
    %v3827 = vld [vmem:[%s2 + $0xd84] sm:$0xff]
    %v3828 = vld [vmem:[%s2 + $0xd8c] sm:$0xff]
    %v3829 = vld [vmem:[%s2 + $0xd94] sm:$0xf]
    %v3830 = vld [vmem:[%s2 + $0xd98] sm:$0xff]
    %v3831 = vld [vmem:[%s2 + $0xda0] sm:$0xff]
    %v3832 = vld [vmem:[%s2 + $0xda8] sm:$0xf]
    %v3833 = vld [vmem:[%s2 + $0xdac] sm:$0xff]
    %v3834 = vld [vmem:[%s2 + $0xdb4] sm:$0xff]
    %v3835 = vld [vmem:[%s2 + $0xdbc] sm:$0xf]
    %v3836 = vld [vmem:[%s2 + $0xdc0] sm:$0xff]
    %v3837 = vld [vmem:[%s2 + $0xdc8] sm:$0xff]
    %v3838 = vld [vmem:[%s2 + $0xdd0] sm:$0xf]
    %v3839 = vld [vmem:[%s2 + $0xdd4] sm:$0xff]
    %v3840 = vld [vmem:[%s2 + $0xddc] sm:$0xff]
    %v3841 = vld [vmem:[%s2 + $0xde4] sm:$0xf]
    %v3842 = vld [vmem:[%s2 + $0xde8] sm:$0xff]
    %v3843 = vld [vmem:[%s2 + $0xdf0] sm:$0xff]
    %v3844 = vld [vmem:[%s2 + $0xdf8] sm:$0xf]
    %v3845 = vld [vmem:[%s2 + $0xdfc] sm:$0xff]
    %v3846 = vld [vmem:[%s2 + $0xe04] sm:$0xff]
    %v3847 = vld [vmem:[%s2 + $0xe0c] sm:$0xf]
    %v3848 = vld [vmem:[%s2 + $0xe10] sm:$0xff]
    %v3849 = vld [vmem:[%s2 + $0xe18] sm:$0xff]
    %v3850 = vld [vmem:[%s2 + $0xe20] sm:$0xf]
    %v3851 = vld [vmem:[%s2 + $0xe24] sm:$0xff]
    %v3852 = vld [vmem:[%s2 + $0xe2c] sm:$0xff]
    %v3853 = vld [vmem:[%s2 + $0xe34] sm:$0xf]
    %v3854 = vld [vmem:[%s2 + $0xe38] sm:$0xff]
    %v3855 = vld [vmem:[%s2 + $0xe40] sm:$0xff]
    %v3856 = vld [vmem:[%s2 + $0xe48] sm:$0xf]
    %v3857 = vld [vmem:[%s2 + $0xe4c] sm:$0xff]
    %v3858 = vld [vmem:[%s2 + $0xe54] sm:$0xff]
    %v3859 = vld [vmem:[%s2 + $0xe5c] sm:$0xf]
    %v3860 = vld [vmem:[%s2 + $0xe60] sm:$0xff]
    %v3861 = vld [vmem:[%s2 + $0xe68] sm:$0xff]
    %v3862 = vld [vmem:[%s2 + $0xe70] sm:$0xf]
    %v3863 = vld [vmem:[%s2 + $0xe74] sm:$0xff]
    %v3864 = vld [vmem:[%s2 + $0xe7c] sm:$0xff]
    %v3865 = vld [vmem:[%s2 + $0xe84] sm:$0xf]
    %v3866 = vld [vmem:[%s2 + $0xe88] sm:$0xff]
    %v3867 = vld [vmem:[%s2 + $0xe90] sm:$0xff]
    %v3868 = vld [vmem:[%s2 + $0xe98] sm:$0xf]
    %v3869 = vld [vmem:[%s2 + $0xe9c] sm:$0xff]
    %v3870 = vld [vmem:[%s2 + $0xea4] sm:$0xff]
    %v3871 = vld [vmem:[%s2 + $0xeac] sm:$0xf]
    %v3872 = vld [vmem:[%s2 + $0xeb0] sm:$0xff]
    %v3873 = vld [vmem:[%s2 + $0xeb8] sm:$0xff]
    %v3874 = vld [vmem:[%s2 + $0xec0] sm:$0xf]
    %v3875 = vld [vmem:[%s2 + $0xec4] sm:$0xff]
    %v3876 = vld [vmem:[%s2 + $0xecc] sm:$0xff]
    %v3877 = vld [vmem:[%s2 + $0xed4] sm:$0xf]
    %v3878 = vld [vmem:[%s2 + $0xed8] sm:$0xff]
    %v3879 = vld [vmem:[%s2 + $0xee0] sm:$0xff]
    %v3880 = vld [vmem:[%s2 + $0xee8] sm:$0xf]
    %v3881 = vld [vmem:[%s2 + $0xeec] sm:$0xff]
    %v3882 = vld [vmem:[%s2 + $0xef4] sm:$0xff]
    %v3883 = vld [vmem:[%s2 + $0xefc] sm:$0xf]
    %v3884 = vld [vmem:[%s2 + $0xf00] sm:$0xff]
    %v3885 = vld [vmem:[%s2 + $0xf08] sm:$0xff]
    %v3886 = vld [vmem:[%s2 + $0xf10] sm:$0xf]
    %v3887 = vld [vmem:[%s2 + $0xf14] sm:$0xff]
    %v3888 = vld [vmem:[%s2 + $0xf1c] sm:$0xff]
    %v3889 = vld [vmem:[%s2 + $0xf24] sm:$0xf]
    %v3890 = vld [vmem:[%s2 + $0xf28] sm:$0xff]
    %v3891 = vld [vmem:[%s2 + $0xf30] sm:$0xff]
    %v3892 = vld [vmem:[%s2 + $0xf38] sm:$0xf]
    %v3893 = vld [vmem:[%s2 + $0xf3c] sm:$0xff]
    %v3894 = vld [vmem:[%s2 + $0xf44] sm:$0xff]
    %v3895 = vld [vmem:[%s2 + $0xf4c] sm:$0xf]
    %v3896 = vld [vmem:[%s2 + $0xf50] sm:$0xff]
    %v3897 = vld [vmem:[%s2 + $0xf58] sm:$0xff]
    %v3898 = vld [vmem:[%s2 + $0xf60] sm:$0xf]
    %v3899 = vld [vmem:[%s2 + $0xf64] sm:$0xff]
    %v3900 = vld [vmem:[%s2 + $0xf6c] sm:$0xff]
    %v3901 = vld [vmem:[%s2 + $0xf74] sm:$0xf]
    %v3902 = vld [vmem:[%s2 + $0xf78] sm:$0xff]
    %v3903 = vld [vmem:[%s2 + $0xf80] sm:$0xff]
    %v3904 = vld [vmem:[%s2 + $0xf88] sm:$0xf]
    %v3905 = vld [vmem:[%s2 + $0xf8c] sm:$0xff]
    %v3906 = vld [vmem:[%s2 + $0xf94] sm:$0xff]
    %v3907 = vld [vmem:[%s2 + $0xf9c] sm:$0xf]
    %v3908 = vld [vmem:[%s2 + $0xfa0] sm:$0xff]
    %v3909 = vld [vmem:[%s2 + $0xfa8] sm:$0xff]
    %v3910 = vld [vmem:[%s2 + $0xfb0] sm:$0xf]
    %v3911 = vld [vmem:[%s2 + $0xfb4] sm:$0xff]
    %v3912 = vld [vmem:[%s2 + $0xfbc] sm:$0xff]
    %v3913 = vld [vmem:[%s2 + $0xfc4] sm:$0xf]
    %v3914 = vld [vmem:[%s2 + $0xfc8] sm:$0xff]
    %v3915 = vld [vmem:[%s2 + $0xfd0] sm:$0xff]
    %v3916 = vld [vmem:[%s2 + $0xfd8] sm:$0xf]
    %v3917 = vld [vmem:[%s2 + $0xfdc] sm:$0xff]
    %v3918 = vld [vmem:[%s2 + $0xfe4] sm:$0xff]
    %v3919 = vld [vmem:[%s2 + $0xfec] sm:$0xf]
    %v3920 = vld [vmem:[%s2 + $0xff0] sm:$0xff]
    %v3921 = vld [vmem:[%s2 + $0xff8] sm:$0xff]
    %v3922 = vld [vmem:[%s2 + $0x1000] sm:$0xf]
    %v3923 = vld [vmem:[%s2 + $0x1004] sm:$0xff]
    %v3924 = vld [vmem:[%s2 + $0x100c] sm:$0xff]
    %v3925 = vld [vmem:[%s2 + $0x1014] sm:$0xf]
    %v3926 = vld [vmem:[%s2 + $0x1018] sm:$0xff]
    %v3927 = vld [vmem:[%s2 + $0x1020] sm:$0xff]
    %v3928 = vld [vmem:[%s2 + $0x1028] sm:$0xf]
    %v3929 = vld [vmem:[%s2 + $0x102c] sm:$0xff]
    %v3930 = vld [vmem:[%s2 + $0x1034] sm:$0xff]
    %v3931 = vld [vmem:[%s2 + $0x103c] sm:$0xf]
    %v3932 = vld [vmem:[%s2 + $0x1040] sm:$0xff]
    %v3933 = vld [vmem:[%s2 + $0x1048] sm:$0xff]
    %v3934 = vld [vmem:[%s2 + $0x1050] sm:$0xf]
    %v3935 = vld [vmem:[%s2 + $0x1054] sm:$0xff]
    %v3936 = vld [vmem:[%s2 + $0x105c] sm:$0xff]
    %v3937 = vld [vmem:[%s2 + $0x1064] sm:$0xf]
    %v3938 = vld [vmem:[%s2 + $0x1068] sm:$0xff]
    %v3939 = vld [vmem:[%s2 + $0x1070] sm:$0xff]
    %v3940 = vld [vmem:[%s2 + $0x1078] sm:$0xf]
    %v3941 = vld [vmem:[%s2 + $0x107c] sm:$0xff]
    %v3942 = vld [vmem:[%s2 + $0x1084] sm:$0xff]
    %v3943 = vld [vmem:[%s2 + $0x108c] sm:$0xf]
    %v3944 = vld [vmem:[%s2 + $0x1090] sm:$0xff]
    %v3945 = vld [vmem:[%s2 + $0x1098] sm:$0xff]
    %v3946 = vld [vmem:[%s2 + $0x10a0] sm:$0xf]
    %v3947 = vld [vmem:[%s2 + $0x10a4] sm:$0xff]
    %v3948 = vld [vmem:[%s2 + $0x10ac] sm:$0xff]
    %v3949 = vld [vmem:[%s2 + $0x10b4] sm:$0xf]
    %v3950 = vld [vmem:[%s2 + $0x10b8] sm:$0xff]
    %v3951 = vld [vmem:[%s2 + $0x10c0] sm:$0xff]
    %v3952 = vld [vmem:[%s2 + $0x10c8] sm:$0xf]
    %v3953 = vld [vmem:[%s2 + $0x10cc] sm:$0xff]
    %v3954 = vld [vmem:[%s2 + $0x10d4] sm:$0xff]
    %v3955 = vld [vmem:[%s2 + $0x10dc] sm:$0xf]
    %s3956 = scalar_lea.vmem %s6, 2
    %v3957 = vld [vmem:[%s3956] ss:$8 sm:$0xf]
    %v3958 = vld [vmem:[%s3956] ss:$8 sm:$0x10]
    %v3959 = vor.u32 %v3957, %v3958
    %v3960 = vpack.c.bf16 %v3645, %v3640
    %v3961 = vpack.c.bf16 %v3646, %v3641
    %v3962 = vpack.c.bf16 %v3647, %v3642
    %v3963 = vpack.c.bf16 %v3648, %v3643
    %v3964 = vpack.c.bf16 %v3649, %v3644
    %v3965 = vpack.c.bf16 %v3655, %v3650
    %v3966 = vpack.c.bf16 %v3656, %v3651
    %v3967 = vpack.c.bf16 %v3657, %v3652
    %v3968 = vpack.c.bf16 %v3658, %v3653
    %v3969 = vpack.c.bf16 %v3659, %v3654
    %v3971 = vperm.slane %v3959, 0
    %v3972 = vperm.slane %v3959, 1
    %v3973 = vperm.slane %v3959, 2
    %v3974 = vperm.slane %v3959, 3
    %v3975 = vperm.slane %v3959, 4
    %v4197 = vunpack.c.l.b16 %v3740
    %v4198 = vunpack.c.h.b16 %v3740
    %v4199 = vunpack.c.l.b16 %v3741
    %v4200 = vunpack.c.h.b16 %v3741
    %v4201 = vunpack.c.l.b16 %v3742
    %v4202 = vunpack.c.l.b16 %v3743
    %v4203 = vunpack.c.h.b16 %v3743
    %v4204 = vunpack.c.l.b16 %v3744
    %v4205 = vunpack.c.h.b16 %v3744
    %v4206 = vunpack.c.l.b16 %v3745
    %v4207 = vunpack.c.l.b16 %v3746
    %v4208 = vunpack.c.h.b16 %v3746
    %v4209 = vunpack.c.l.b16 %v3747
    %v4210 = vunpack.c.h.b16 %v3747
    %v4211 = vunpack.c.l.b16 %v3748
    %v4212 = vunpack.c.l.b16 %v3749
    %v4213 = vunpack.c.h.b16 %v3749
    %v4214 = vunpack.c.l.b16 %v3750
    %v4215 = vunpack.c.h.b16 %v3750
    %v4216 = vunpack.c.l.b16 %v3751
    %v4217 = vunpack.c.l.b16 %v3752
    %v4218 = vunpack.c.h.b16 %v3752
    %v4219 = vunpack.c.l.b16 %v3753
    %v4220 = vunpack.c.h.b16 %v3753
    %v4221 = vunpack.c.l.b16 %v3754
    %v4222 = vunpack.c.l.b16 %v3755
    %v4223 = vunpack.c.h.b16 %v3755
    %v4224 = vunpack.c.l.b16 %v3756
    %v4225 = vunpack.c.h.b16 %v3756
    %v4226 = vunpack.c.l.b16 %v3757
    %v4227 = vunpack.c.l.b16 %v3758
    %v4228 = vunpack.c.h.b16 %v3758
    %v4229 = vunpack.c.l.b16 %v3759
    %v4230 = vunpack.c.h.b16 %v3759
    %v4231 = vunpack.c.l.b16 %v3760
    %v4232 = vunpack.c.l.b16 %v3761
    %v4233 = vunpack.c.h.b16 %v3761
    %v4234 = vunpack.c.l.b16 %v3762
    %v4235 = vunpack.c.h.b16 %v3762
    %v4236 = vunpack.c.l.b16 %v3763
    %v4237 = vunpack.c.l.b16 %v3764
    %v4238 = vunpack.c.h.b16 %v3764
    %v4239 = vunpack.c.l.b16 %v3765
    %v4240 = vunpack.c.h.b16 %v3765
    %v4241 = vunpack.c.l.b16 %v3766
    %v4242 = vunpack.c.l.b16 %v3767
    %v4243 = vunpack.c.h.b16 %v3767
    %v4244 = vunpack.c.l.b16 %v3768
    %v4245 = vunpack.c.h.b16 %v3768
    %v4246 = vunpack.c.l.b16 %v3769
    %v4247 = vunpack.c.l.b16 %v3770
    %v4248 = vunpack.c.h.b16 %v3770
    %v4249 = vunpack.c.l.b16 %v3771
    %v4250 = vunpack.c.h.b16 %v3771
    %v4251 = vunpack.c.l.b16 %v3772
    %v4252 = vunpack.c.l.b16 %v3773
    %v4253 = vunpack.c.h.b16 %v3773
    %v4254 = vunpack.c.l.b16 %v3774
    %v4255 = vunpack.c.h.b16 %v3774
    %v4256 = vunpack.c.l.b16 %v3775
    %v4257 = vunpack.c.l.b16 %v3776
    %v4258 = vunpack.c.h.b16 %v3776
    %v4259 = vunpack.c.l.b16 %v3777
    %v4260 = vunpack.c.h.b16 %v3777
    %v4261 = vunpack.c.l.b16 %v3778
    %v4262 = vunpack.c.l.b16 %v3779
    %v4263 = vunpack.c.h.b16 %v3779
    %v4264 = vunpack.c.l.b16 %v3780
    %v4265 = vunpack.c.h.b16 %v3780
    %v4266 = vunpack.c.l.b16 %v3781
    %v4267 = vunpack.c.l.b16 %v3782
    %v4268 = vunpack.c.h.b16 %v3782
    %v4269 = vunpack.c.l.b16 %v3783
    %v4270 = vunpack.c.h.b16 %v3783
    %v4271 = vunpack.c.l.b16 %v3784
    %v4272 = vunpack.c.l.b16 %v3785
    %v4273 = vunpack.c.h.b16 %v3785
    %v4274 = vunpack.c.l.b16 %v3786
    %v4275 = vunpack.c.h.b16 %v3786
    %v4276 = vunpack.c.l.b16 %v3787
    %v4277 = vunpack.c.l.b16 %v3788
    %v4278 = vunpack.c.h.b16 %v3788
    %v4279 = vunpack.c.l.b16 %v3789
    %v4280 = vunpack.c.h.b16 %v3789
    %v4281 = vunpack.c.l.b16 %v3790
    %v4282 = vunpack.c.l.b16 %v3791
    %v4283 = vunpack.c.h.b16 %v3791
    %v4284 = vunpack.c.l.b16 %v3792
    %v4285 = vunpack.c.h.b16 %v3792
    %v4286 = vunpack.c.l.b16 %v3793
    %v4287 = vunpack.c.l.b16 %v3794
    %v4288 = vunpack.c.h.b16 %v3794
    %v4289 = vunpack.c.l.b16 %v3795
    %v4290 = vunpack.c.h.b16 %v3795
    %v4291 = vunpack.c.l.b16 %v3796
    %v4292 = vunpack.c.l.b16 %v3797
    %v4293 = vunpack.c.h.b16 %v3797
    %v4294 = vunpack.c.l.b16 %v3798
    %v4295 = vunpack.c.h.b16 %v3798
    %v4296 = vunpack.c.l.b16 %v3799
    %v4297 = vunpack.c.l.b16 %v3800
    %v4298 = vunpack.c.h.b16 %v3800
    %v4299 = vunpack.c.l.b16 %v3801
    %v4300 = vunpack.c.h.b16 %v3801
    %v4301 = vunpack.c.l.b16 %v3802
    %v4302 = vunpack.c.l.b16 %v3803
    %v4303 = vunpack.c.h.b16 %v3803
    %v4304 = vunpack.c.l.b16 %v3804
    %v4305 = vunpack.c.h.b16 %v3804
    %v4306 = vunpack.c.l.b16 %v3805
    %v4307 = vunpack.c.l.b16 %v3806
    %v4308 = vunpack.c.h.b16 %v3806
    %v4309 = vunpack.c.l.b16 %v3807
    %v4310 = vunpack.c.h.b16 %v3807
    %v4311 = vunpack.c.l.b16 %v3808
    %v4312 = vunpack.c.l.b16 %v3809
    %v4313 = vunpack.c.h.b16 %v3809
    %v4314 = vunpack.c.l.b16 %v3810
    %v4315 = vunpack.c.h.b16 %v3810
    %v4316 = vunpack.c.l.b16 %v3811
    %v4317 = vunpack.c.l.b16 %v3812
    %v4318 = vunpack.c.h.b16 %v3812
    %v4319 = vunpack.c.l.b16 %v3813
    %v4320 = vunpack.c.h.b16 %v3813
    %v4321 = vunpack.c.l.b16 %v3814
    %v4322 = vunpack.c.l.b16 %v3815
    %v4323 = vunpack.c.h.b16 %v3815
    %v4324 = vunpack.c.l.b16 %v3816
    %v4325 = vunpack.c.h.b16 %v3816
    %v4326 = vunpack.c.l.b16 %v3817
    %v4327 = vunpack.c.l.b16 %v3818
    %v4328 = vunpack.c.h.b16 %v3818
    %v4329 = vunpack.c.l.b16 %v3819
    %v4330 = vunpack.c.h.b16 %v3819
    %v4331 = vunpack.c.l.b16 %v3820
    %v4332 = vunpack.c.l.b16 %v3821
    %v4333 = vunpack.c.h.b16 %v3821
    %v4334 = vunpack.c.l.b16 %v3822
    %v4335 = vunpack.c.h.b16 %v3822
    %v4336 = vunpack.c.l.b16 %v3823
    %v4337 = vunpack.c.l.b16 %v3824
    %v4338 = vunpack.c.h.b16 %v3824
    %v4339 = vunpack.c.l.b16 %v3825
    %v4340 = vunpack.c.h.b16 %v3825
    %v4341 = vunpack.c.l.b16 %v3826
    %v4342 = vunpack.c.l.b16 %v3827
    %v4343 = vunpack.c.h.b16 %v3827
    %v4344 = vunpack.c.l.b16 %v3828
    %v4345 = vunpack.c.h.b16 %v3828
    %v4346 = vunpack.c.l.b16 %v3829
    %v4347 = vunpack.c.l.b16 %v3830
    %v4348 = vunpack.c.h.b16 %v3830
    %v4349 = vunpack.c.l.b16 %v3831
    %v4350 = vunpack.c.h.b16 %v3831
    %v4351 = vunpack.c.l.b16 %v3832
    %v4352 = vunpack.c.l.b16 %v3833
    %v4353 = vunpack.c.h.b16 %v3833
    %v4354 = vunpack.c.l.b16 %v3834
    %v4355 = vunpack.c.h.b16 %v3834
    %v4356 = vunpack.c.l.b16 %v3835
    %v4357 = vunpack.c.l.b16 %v3836
    %v4358 = vunpack.c.h.b16 %v3836
    %v4359 = vunpack.c.l.b16 %v3837
    %v4360 = vunpack.c.h.b16 %v3837
    %v4361 = vunpack.c.l.b16 %v3838
    %v4362 = vunpack.c.l.b16 %v3839
    %v4363 = vunpack.c.h.b16 %v3839
    %v4364 = vunpack.c.l.b16 %v3840
    %v4365 = vunpack.c.h.b16 %v3840
    %v4366 = vunpack.c.l.b16 %v3841
    %v4367 = vunpack.c.l.b16 %v3842
    %v4368 = vunpack.c.h.b16 %v3842
    %v4369 = vunpack.c.l.b16 %v3843
    %v4370 = vunpack.c.h.b16 %v3843
    %v4371 = vunpack.c.l.b16 %v3844
    %v4372 = vunpack.c.l.b16 %v3845
    %v4373 = vunpack.c.h.b16 %v3845
    %v4374 = vunpack.c.l.b16 %v3846
    %v4375 = vunpack.c.h.b16 %v3846
    %v4376 = vunpack.c.l.b16 %v3847
    %v4377 = vunpack.c.l.b16 %v3848
    %v4378 = vunpack.c.h.b16 %v3848
    %v4379 = vunpack.c.l.b16 %v3849
    %v4380 = vunpack.c.h.b16 %v3849
    %v4381 = vunpack.c.l.b16 %v3850
    %v4382 = vunpack.c.l.b16 %v3851
    %v4383 = vunpack.c.h.b16 %v3851
    %v4384 = vunpack.c.l.b16 %v3852
    %v4385 = vunpack.c.h.b16 %v3852
    %v4386 = vunpack.c.l.b16 %v3853
    %v4387 = vunpack.c.l.b16 %v3854
    %v4388 = vunpack.c.h.b16 %v3854
    %v4389 = vunpack.c.l.b16 %v3855
    %v4390 = vunpack.c.h.b16 %v3855
    %v4391 = vunpack.c.l.b16 %v3856
    %v4392 = vunpack.c.l.b16 %v3857
    %v4393 = vunpack.c.h.b16 %v3857
    %v4394 = vunpack.c.l.b16 %v3858
    %v4395 = vunpack.c.h.b16 %v3858
    %v4396 = vunpack.c.l.b16 %v3859
    %v4397 = vunpack.c.l.b16 %v3860
    %v4398 = vunpack.c.h.b16 %v3860
    %v4399 = vunpack.c.l.b16 %v3861
    %v4400 = vunpack.c.h.b16 %v3861
    %v4401 = vunpack.c.l.b16 %v3862
    %v4402 = vunpack.c.l.b16 %v3863
    %v4403 = vunpack.c.h.b16 %v3863
    %v4404 = vunpack.c.l.b16 %v3864
    %v4405 = vunpack.c.h.b16 %v3864
    %v4406 = vunpack.c.l.b16 %v3865
    %v4407 = vunpack.c.l.b16 %v3866
    %v4408 = vunpack.c.h.b16 %v3866
    %v4409 = vunpack.c.l.b16 %v3867
    %v4410 = vunpack.c.h.b16 %v3867
    %v4411 = vunpack.c.l.b16 %v3868
    %v4412 = vunpack.c.l.b16 %v3869
    %v4413 = vunpack.c.h.b16 %v3869
    %v4414 = vunpack.c.l.b16 %v3870
    %v4415 = vunpack.c.h.b16 %v3870
    %v4416 = vunpack.c.l.b16 %v3871
    %v4417 = vunpack.c.l.b16 %v3872
    %v4418 = vunpack.c.h.b16 %v3872
    %v4419 = vunpack.c.l.b16 %v3873
    %v4420 = vunpack.c.h.b16 %v3873
    %v4421 = vunpack.c.l.b16 %v3874
    %v4422 = vunpack.c.l.b16 %v3875
    %v4423 = vunpack.c.h.b16 %v3875
    %v4424 = vunpack.c.l.b16 %v3876
    %v4425 = vunpack.c.h.b16 %v3876
    %v4426 = vunpack.c.l.b16 %v3877
    %v4427 = vunpack.c.l.b16 %v3878
    %v4428 = vunpack.c.h.b16 %v3878
    %v4429 = vunpack.c.l.b16 %v3879
    %v4430 = vunpack.c.h.b16 %v3879
    %v4431 = vunpack.c.l.b16 %v3880
    %v4432 = vunpack.c.l.b16 %v3881
    %v4433 = vunpack.c.h.b16 %v3881
    %v4434 = vunpack.c.l.b16 %v3882
    %v4435 = vunpack.c.h.b16 %v3882
    %v4436 = vunpack.c.l.b16 %v3883
    %v4437 = vunpack.c.l.b16 %v3884
    %v4438 = vunpack.c.h.b16 %v3884
    %v4439 = vunpack.c.l.b16 %v3885
    %v4440 = vunpack.c.h.b16 %v3885
    %v4441 = vunpack.c.l.b16 %v3886
    %v4442 = vunpack.c.l.b16 %v3887
    %v4443 = vunpack.c.h.b16 %v3887
    %v4444 = vunpack.c.l.b16 %v3888
    %v4445 = vunpack.c.h.b16 %v3888
    %v4446 = vunpack.c.l.b16 %v3889
    %v4447 = vunpack.c.l.b16 %v3890
    %v4448 = vunpack.c.h.b16 %v3890
    %v4449 = vunpack.c.l.b16 %v3891
    %v4450 = vunpack.c.h.b16 %v3891
    %v4451 = vunpack.c.l.b16 %v3892
    %v4452 = vunpack.c.l.b16 %v3893
    %v4453 = vunpack.c.h.b16 %v3893
    %v4454 = vunpack.c.l.b16 %v3894
    %v4455 = vunpack.c.h.b16 %v3894
    %v4456 = vunpack.c.l.b16 %v3895
    %v4457 = vunpack.c.l.b16 %v3896
    %v4458 = vunpack.c.h.b16 %v3896
    %v4459 = vunpack.c.l.b16 %v3897
    %v4460 = vunpack.c.h.b16 %v3897
    %v4461 = vunpack.c.l.b16 %v3898
    %v4462 = vunpack.c.l.b16 %v3899
    %v4463 = vunpack.c.h.b16 %v3899
    %v4464 = vunpack.c.l.b16 %v3900
    %v4465 = vunpack.c.h.b16 %v3900
    %v4466 = vunpack.c.l.b16 %v3901
    %v4467 = vunpack.c.l.b16 %v3902
    %v4468 = vunpack.c.h.b16 %v3902
    %v4469 = vunpack.c.l.b16 %v3903
    %v4470 = vunpack.c.h.b16 %v3903
    %v4471 = vunpack.c.l.b16 %v3904
    %v4472 = vunpack.c.l.b16 %v3905
    %v4473 = vunpack.c.h.b16 %v3905
    %v4474 = vunpack.c.l.b16 %v3906
    %v4475 = vunpack.c.h.b16 %v3906
    %v4476 = vunpack.c.l.b16 %v3907
    %v4477 = vunpack.c.l.b16 %v3908
    %v4478 = vunpack.c.h.b16 %v3908
    %v4479 = vunpack.c.l.b16 %v3909
    %v4480 = vunpack.c.h.b16 %v3909
    %v4481 = vunpack.c.l.b16 %v3910
    %v4482 = vunpack.c.l.b16 %v3911
    %v4483 = vunpack.c.h.b16 %v3911
    %v4484 = vunpack.c.l.b16 %v3912
    %v4485 = vunpack.c.h.b16 %v3912
    %v4486 = vunpack.c.l.b16 %v3913
    %v4487 = vunpack.c.l.b16 %v3914
    %v4488 = vunpack.c.h.b16 %v3914
    %v4489 = vunpack.c.l.b16 %v3915
    %v4490 = vunpack.c.h.b16 %v3915
    %v4491 = vunpack.c.l.b16 %v3916
    %v4492 = vunpack.c.l.b16 %v3917
    %v4493 = vunpack.c.h.b16 %v3917
    %v4494 = vunpack.c.l.b16 %v3918
    %v4495 = vunpack.c.h.b16 %v3918
    %v4496 = vunpack.c.l.b16 %v3919
    %v4497 = vunpack.c.l.b16 %v3920
    %v4498 = vunpack.c.h.b16 %v3920
    %v4499 = vunpack.c.l.b16 %v3921
    %v4500 = vunpack.c.h.b16 %v3921
    %v4501 = vunpack.c.l.b16 %v3922
    %v4502 = vunpack.c.l.b16 %v3923
    %v4503 = vunpack.c.h.b16 %v3923
    %v4504 = vunpack.c.l.b16 %v3924
    %v4505 = vunpack.c.h.b16 %v3924
    %v4506 = vunpack.c.l.b16 %v3925
    %v4507 = vunpack.c.l.b16 %v3926
    %v4508 = vunpack.c.h.b16 %v3926
    %v4509 = vunpack.c.l.b16 %v3927
    %v4510 = vunpack.c.h.b16 %v3927
    %v4511 = vunpack.c.l.b16 %v3928
    %v4512 = vunpack.c.l.b16 %v3929
    %v4513 = vunpack.c.h.b16 %v3929
    %v4514 = vunpack.c.l.b16 %v3930
    %v4515 = vunpack.c.h.b16 %v3930
    %v4516 = vunpack.c.l.b16 %v3931
    %v4517 = vunpack.c.l.b16 %v3932
    %v4518 = vunpack.c.h.b16 %v3932
    %v4519 = vunpack.c.l.b16 %v3933
    %v4520 = vunpack.c.h.b16 %v3933
    %v4521 = vunpack.c.l.b16 %v3934
    %v4522 = vunpack.c.l.b16 %v3935
    %v4523 = vunpack.c.h.b16 %v3935
    %v4524 = vunpack.c.l.b16 %v3936
    %v4525 = vunpack.c.h.b16 %v3936
    %v4526 = vunpack.c.l.b16 %v3937
    %v4527 = vunpack.c.l.b16 %v3938
    %v4528 = vunpack.c.h.b16 %v3938
    %v4529 = vunpack.c.l.b16 %v3939
    %v4530 = vunpack.c.h.b16 %v3939
    %v4531 = vunpack.c.l.b16 %v3940
    %v4532 = vunpack.c.l.b16 %v3941
    %v4533 = vunpack.c.h.b16 %v3941
    %v4534 = vunpack.c.l.b16 %v3942
    %v4535 = vunpack.c.h.b16 %v3942
    %v4536 = vunpack.c.l.b16 %v3943
    %v4537 = vunpack.c.l.b16 %v3944
    %v4538 = vunpack.c.h.b16 %v3944
    %v4539 = vunpack.c.l.b16 %v3945
    %v4540 = vunpack.c.h.b16 %v3945
    %v4541 = vunpack.c.l.b16 %v3946
    %v4542 = vunpack.c.l.b16 %v3947
    %v4543 = vunpack.c.h.b16 %v3947
    %v4544 = vunpack.c.l.b16 %v3948
    %v4545 = vunpack.c.h.b16 %v3948
    %v4546 = vunpack.c.l.b16 %v3949
    %v4547 = vunpack.c.l.b16 %v3950
    %v4548 = vunpack.c.h.b16 %v3950
    %v4549 = vunpack.c.l.b16 %v3951
    %v4550 = vunpack.c.h.b16 %v3951
    %v4551 = vunpack.c.l.b16 %v3952
    %v4552 = vunpack.c.l.b16 %v3953
    %v4553 = vunpack.c.h.b16 %v3953
    %v4554 = vunpack.c.l.b16 %v3954
    %v4555 = vunpack.c.h.b16 %v3954
    %v4556 = vunpack.c.l.b16 %v3955
    %v4557 = vpack.c.b16 %v4202, %v4197
    %v4558 = vpack.c.b16 %v4203, %v4198
    %v4559 = vpack.c.b16 %v4204, %v4199
    %v4560 = vpack.c.b16 %v4205, %v4200
    %v4561 = vpack.c.b16 %v4206, %v4201
    %v4562 = vpack.c.b16 %v4212, %v4207
    %v4563 = vpack.c.b16 %v4213, %v4208
    %v4564 = vpack.c.b16 %v4214, %v4209
    %v4565 = vpack.c.b16 %v4215, %v4210
    %v4566 = vpack.c.b16 %v4216, %v4211
    %v4567 = vpack.c.b16 %v4222, %v4217
    %v4568 = vpack.c.b16 %v4223, %v4218
    %v4569 = vpack.c.b16 %v4224, %v4219
    %v4570 = vpack.c.b16 %v4225, %v4220
    %v4571 = vpack.c.b16 %v4226, %v4221
    %v4572 = vpack.c.b16 %v4232, %v4227
    %v4573 = vpack.c.b16 %v4233, %v4228
    %v4574 = vpack.c.b16 %v4234, %v4229
    %v4575 = vpack.c.b16 %v4235, %v4230
    %v4576 = vpack.c.b16 %v4236, %v4231
    %v4577 = vpack.c.b16 %v4242, %v4237
    %v4578 = vpack.c.b16 %v4243, %v4238
    %v4579 = vpack.c.b16 %v4244, %v4239
    %v4580 = vpack.c.b16 %v4245, %v4240
    %v4581 = vpack.c.b16 %v4246, %v4241
    %v4582 = vpack.c.b16 %v4252, %v4247
    %v4583 = vpack.c.b16 %v4253, %v4248
    %v4584 = vpack.c.b16 %v4254, %v4249
    %v4585 = vpack.c.b16 %v4255, %v4250
    %v4586 = vpack.c.b16 %v4256, %v4251
    %v4587 = vpack.c.b16 %v4262, %v4257
    %v4588 = vpack.c.b16 %v4263, %v4258
    %v4589 = vpack.c.b16 %v4264, %v4259
    %v4590 = vpack.c.b16 %v4265, %v4260
    %v4591 = vpack.c.b16 %v4266, %v4261
    %v4592 = vpack.c.b16 %v4272, %v4267
    %v4593 = vpack.c.b16 %v4273, %v4268
    %v4594 = vpack.c.b16 %v4274, %v4269
    %v4595 = vpack.c.b16 %v4275, %v4270
    %v4596 = vpack.c.b16 %v4276, %v4271
    %v4597 = vpack.c.b16 %v4282, %v4277
    %v4598 = vpack.c.b16 %v4283, %v4278
    %v4599 = vpack.c.b16 %v4284, %v4279
    %v4600 = vpack.c.b16 %v4285, %v4280
    %v4601 = vpack.c.b16 %v4286, %v4281
    %v4602 = vpack.c.b16 %v4292, %v4287
    %v4603 = vpack.c.b16 %v4293, %v4288
    %v4604 = vpack.c.b16 %v4294, %v4289
    %v4605 = vpack.c.b16 %v4295, %v4290
    %v4606 = vpack.c.b16 %v4296, %v4291
    %v4607 = vpack.c.b16 %v4302, %v4297
    %v4608 = vpack.c.b16 %v4303, %v4298
    %v4609 = vpack.c.b16 %v4304, %v4299
    %v4610 = vpack.c.b16 %v4305, %v4300
    %v4611 = vpack.c.b16 %v4306, %v4301
    %v4612 = vpack.c.b16 %v4312, %v4307
    %v4613 = vpack.c.b16 %v4313, %v4308
    %v4614 = vpack.c.b16 %v4314, %v4309
    %v4615 = vpack.c.b16 %v4315, %v4310
    %v4616 = vpack.c.b16 %v4316, %v4311
    %v4617 = vpack.c.b16 %v4322, %v4317
    %v4618 = vpack.c.b16 %v4323, %v4318
    %v4619 = vpack.c.b16 %v4324, %v4319
    %v4620 = vpack.c.b16 %v4325, %v4320
    %v4621 = vpack.c.b16 %v4326, %v4321
    %v4622 = vpack.c.b16 %v4332, %v4327
    %v4623 = vpack.c.b16 %v4333, %v4328
    %v4624 = vpack.c.b16 %v4334, %v4329
    %v4625 = vpack.c.b16 %v4335, %v4330
    %v4626 = vpack.c.b16 %v4336, %v4331
    %v4627 = vpack.c.b16 %v4342, %v4337
    %v4628 = vpack.c.b16 %v4343, %v4338
    %v4629 = vpack.c.b16 %v4344, %v4339
    %v4630 = vpack.c.b16 %v4345, %v4340
    %v4631 = vpack.c.b16 %v4346, %v4341
    %v4632 = vpack.c.b16 %v4352, %v4347
    %v4633 = vpack.c.b16 %v4353, %v4348
    %v4634 = vpack.c.b16 %v4354, %v4349
    %v4635 = vpack.c.b16 %v4355, %v4350
    %v4636 = vpack.c.b16 %v4356, %v4351
    %v4637 = vpack.c.b16 %v4362, %v4357
    %v4638 = vpack.c.b16 %v4363, %v4358
    %v4639 = vpack.c.b16 %v4364, %v4359
    %v4640 = vpack.c.b16 %v4365, %v4360
    %v4641 = vpack.c.b16 %v4366, %v4361
    %v4642 = vpack.c.b16 %v4372, %v4367
    %v4643 = vpack.c.b16 %v4373, %v4368
    %v4644 = vpack.c.b16 %v4374, %v4369
    %v4645 = vpack.c.b16 %v4375, %v4370
    %v4646 = vpack.c.b16 %v4376, %v4371
    %v4647 = vpack.c.b16 %v4382, %v4377
    %v4648 = vpack.c.b16 %v4383, %v4378
    %v4649 = vpack.c.b16 %v4384, %v4379
    %v4650 = vpack.c.b16 %v4385, %v4380
    %v4651 = vpack.c.b16 %v4386, %v4381
    %v4652 = vpack.c.b16 %v4392, %v4387
    %v4653 = vpack.c.b16 %v4393, %v4388
    %v4654 = vpack.c.b16 %v4394, %v4389
    %v4655 = vpack.c.b16 %v4395, %v4390
    %v4656 = vpack.c.b16 %v4396, %v4391
    %v4657 = vpack.c.b16 %v4402, %v4397
    %v4658 = vpack.c.b16 %v4403, %v4398
    %v4659 = vpack.c.b16 %v4404, %v4399
    %v4660 = vpack.c.b16 %v4405, %v4400
    %v4661 = vpack.c.b16 %v4406, %v4401
    %v4662 = vpack.c.b16 %v4412, %v4407
    %v4663 = vpack.c.b16 %v4413, %v4408
    %v4664 = vpack.c.b16 %v4414, %v4409
    %v4665 = vpack.c.b16 %v4415, %v4410
    %v4666 = vpack.c.b16 %v4416, %v4411
    %v4667 = vpack.c.b16 %v4422, %v4417
    %v4668 = vpack.c.b16 %v4423, %v4418
    %v4669 = vpack.c.b16 %v4424, %v4419
    %v4670 = vpack.c.b16 %v4425, %v4420
    %v4671 = vpack.c.b16 %v4426, %v4421
    %v4672 = vpack.c.b16 %v4432, %v4427
    %v4673 = vpack.c.b16 %v4433, %v4428
    %v4674 = vpack.c.b16 %v4434, %v4429
    %v4675 = vpack.c.b16 %v4435, %v4430
    %v4676 = vpack.c.b16 %v4436, %v4431
    %v4677 = vpack.c.b16 %v4442, %v4437
    %v4678 = vpack.c.b16 %v4443, %v4438
    %v4679 = vpack.c.b16 %v4444, %v4439
    %v4680 = vpack.c.b16 %v4445, %v4440
    %v4681 = vpack.c.b16 %v4446, %v4441
    %v4682 = vpack.c.b16 %v4452, %v4447
    %v4683 = vpack.c.b16 %v4453, %v4448
    %v4684 = vpack.c.b16 %v4454, %v4449
    %v4685 = vpack.c.b16 %v4455, %v4450
    %v4686 = vpack.c.b16 %v4456, %v4451
    %v4687 = vpack.c.b16 %v4462, %v4457
    %v4688 = vpack.c.b16 %v4463, %v4458
    %v4689 = vpack.c.b16 %v4464, %v4459
    %v4690 = vpack.c.b16 %v4465, %v4460
    %v4691 = vpack.c.b16 %v4466, %v4461
    %v4692 = vpack.c.b16 %v4472, %v4467
    %v4693 = vpack.c.b16 %v4473, %v4468
    %v4694 = vpack.c.b16 %v4474, %v4469
    %v4695 = vpack.c.b16 %v4475, %v4470
    %v4696 = vpack.c.b16 %v4476, %v4471
    %v4697 = vpack.c.b16 %v4482, %v4477
    %v4698 = vpack.c.b16 %v4483, %v4478
    %v4699 = vpack.c.b16 %v4484, %v4479
    %v4700 = vpack.c.b16 %v4485, %v4480
    %v4701 = vpack.c.b16 %v4486, %v4481
    %v4702 = vpack.c.b16 %v4492, %v4487
    %v4703 = vpack.c.b16 %v4493, %v4488
    %v4704 = vpack.c.b16 %v4494, %v4489
    %v4705 = vpack.c.b16 %v4495, %v4490
    %v4706 = vpack.c.b16 %v4496, %v4491
    %v4707 = vpack.c.b16 %v4502, %v4497
    %v4708 = vpack.c.b16 %v4503, %v4498
    %v4709 = vpack.c.b16 %v4504, %v4499
    %v4710 = vpack.c.b16 %v4505, %v4500
    %v4711 = vpack.c.b16 %v4506, %v4501
    %v4712 = vpack.c.b16 %v4512, %v4507
    %v4713 = vpack.c.b16 %v4513, %v4508
    %v4714 = vpack.c.b16 %v4514, %v4509
    %v4715 = vpack.c.b16 %v4515, %v4510
    %v4716 = vpack.c.b16 %v4516, %v4511
    %v4717 = vpack.c.b16 %v4522, %v4517
    %v4718 = vpack.c.b16 %v4523, %v4518
    %v4719 = vpack.c.b16 %v4524, %v4519
    %v4720 = vpack.c.b16 %v4525, %v4520
    %v4721 = vpack.c.b16 %v4526, %v4521
    %v4722 = vpack.c.b16 %v4532, %v4527
    %v4723 = vpack.c.b16 %v4533, %v4528
    %v4724 = vpack.c.b16 %v4534, %v4529
    %v4725 = vpack.c.b16 %v4535, %v4530
    %v4726 = vpack.c.b16 %v4536, %v4531
    %v4727 = vpack.c.b16 %v4542, %v4537
    %v4728 = vpack.c.b16 %v4543, %v4538
    %v4729 = vpack.c.b16 %v4544, %v4539
    %v4730 = vpack.c.b16 %v4545, %v4540
    %v4731 = vpack.c.b16 %v4546, %v4541
    %v4732 = vpack.c.b16 %v4552, %v4547
    %v4733 = vpack.c.b16 %v4553, %v4548
    %v4734 = vpack.c.b16 %v4554, %v4549
    %v4735 = vpack.c.b16 %v4555, %v4550
    %v4736 = vpack.c.b16 %v4556, %v4551
    %v4918 = vsel %vm1400, %v3964, 0
    %v4921 = vsel %vm1400, %v3969, 0
    %4923 = vmatpush.bf16.msra.mxu0 %v4592
    %4924 = vmatpush.bf16.msra.mxu0 %v4587
    %4925 = vmatpush.bf16.msra.mxu0 %v4582
    %4926 = vmatpush.bf16.msra.mxu0 %v4577
    %4927 = vmatpush.bf16.msra.mxu0 %v4572
    %4928 = vmatpush.bf16.msra.mxu0 %v4567
    %4929 = vmatpush.bf16.msra.mxu0 %v4562
    %4930 = vmatpush.bf16.msra.mxu0 %v4557
    %4931 = vmatmul.bf16.gmra.mxu0 %v3960
    %v4932 = vpop.f32.mrf.mxu0
    %v4933 = vadd.f32 %v3971, %v4932
    %v4934 = vpop.f32.mrf.mxu0
    %v4935 = vadd.f32 %v3971, %v4934
    %4936 = vmatmul.bf16.gmra.mxu0 %v3965
    %v4937 = vpop.f32.mrf.mxu0
    %v4938 = vadd.f32 %v3971, %v4937
    %v4939 = vpop.f32.mrf.mxu0
    %v4940 = vadd.f32 %v3971, %v4939
    %4941 = vdwg.mxu0
    %4942 = vmatpush.bf16.msra.mxu0 %v4632
    %4943 = vmatpush.bf16.msra.mxu0 %v4627
    %4944 = vmatpush.bf16.msra.mxu0 %v4622
    %4945 = vmatpush.bf16.msra.mxu0 %v4617
    %4946 = vmatpush.bf16.msra.mxu0 %v4612
    %4947 = vmatpush.bf16.msra.mxu0 %v4607
    %4948 = vmatpush.bf16.msra.mxu0 %v4602
    %4949 = vmatpush.bf16.msra.mxu0 %v4597
    %4950 = vmatmul.bf16.gmra.mxu0 %v3961
    %v4951 = vpop.f32.mrf.mxu0
    %v4952 = vadd.f32 %v4933, %v4951
    %v4953 = vpop.f32.mrf.mxu0
    %v4954 = vadd.f32 %v4935, %v4953
    %4955 = vmatmul.bf16.gmra.mxu0 %v3966
    %v4956 = vpop.f32.mrf.mxu0
    %v4957 = vadd.f32 %v4938, %v4956
    %v4958 = vpop.f32.mrf.mxu0
    %v4959 = vadd.f32 %v4940, %v4958
    %4960 = vdwg.mxu0
    %4961 = vmatpush.bf16.msra.mxu0 %v4672
    %4962 = vmatpush.bf16.msra.mxu0 %v4667
    %4963 = vmatpush.bf16.msra.mxu0 %v4662
    %4964 = vmatpush.bf16.msra.mxu0 %v4657
    %4965 = vmatpush.bf16.msra.mxu0 %v4652
    %4966 = vmatpush.bf16.msra.mxu0 %v4647
    %4967 = vmatpush.bf16.msra.mxu0 %v4642
    %4968 = vmatpush.bf16.msra.mxu0 %v4637
    %4969 = vmatmul.bf16.gmra.mxu0 %v3962
    %v4970 = vpop.f32.mrf.mxu0
    %v4971 = vadd.f32 %v4952, %v4970
    %v4972 = vpop.f32.mrf.mxu0
    %v4973 = vadd.f32 %v4954, %v4972
    %4974 = vmatmul.bf16.gmra.mxu0 %v3967
    %v4975 = vpop.f32.mrf.mxu0
    %v4976 = vadd.f32 %v4957, %v4975
    %v4977 = vpop.f32.mrf.mxu0
    %v4978 = vadd.f32 %v4959, %v4977
    %4979 = vdwg.mxu0
    %4980 = vmatpush.bf16.msra.mxu0 %v4712
    %4981 = vmatpush.bf16.msra.mxu0 %v4707
    %4982 = vmatpush.bf16.msra.mxu0 %v4702
    %4983 = vmatpush.bf16.msra.mxu0 %v4697
    %4984 = vmatpush.bf16.msra.mxu0 %v4692
    %4985 = vmatpush.bf16.msra.mxu0 %v4687
    %4986 = vmatpush.bf16.msra.mxu0 %v4682
    %4987 = vmatpush.bf16.msra.mxu0 %v4677
    %4988 = vmatmul.bf16.gmra.mxu0 %v3963
    %v4989 = vpop.f32.mrf.mxu0
    %v4990 = vadd.f32 %v4971, %v4989
    %v4991 = vpop.f32.mrf.mxu0
    %v4992 = vadd.f32 %v4973, %v4991
    %4993 = vmatmul.bf16.gmra.mxu0 %v3968
    %v4994 = vpop.f32.mrf.mxu0
    %v4995 = vadd.f32 %v4976, %v4994
    %v4996 = vpop.f32.mrf.mxu0
    %v4997 = vadd.f32 %v4978, %v4996
    %4998 = vdwg.mxu0
    %4999 = vmatpush.bf16.msra.mxu0 0
    %5000 = vmatpush.bf16.msra.mxu0 0
    %5001 = vmatpush.bf16.msra.mxu0 0
    %5002 = vmatpush.bf16.msra.mxu0 0
    %5003 = vmatpush.bf16.msra.mxu0 %v4732
    %5004 = vmatpush.bf16.msra.mxu0 %v4727
    %5005 = vmatpush.bf16.msra.mxu0 %v4722
    %5006 = vmatpush.bf16.msra.mxu0 %v4717
    %5007 = vmatmul.bf16.gmra.mxu0 %v4918
    %v5008 = vpop.f32.mrf.mxu0
    %v5009 = vadd.f32 %v4990, %v5008
    %v5010 = vpop.f32.mrf.mxu0
    %v5011 = vadd.f32 %v4992, %v5010
    %5012 = vmatmul.bf16.gmra.mxu0 %v4921
    %v5013 = vpop.f32.mrf.mxu0
    %v5014 = vadd.f32 %v4995, %v5013
    %v5015 = vpop.f32.mrf.mxu0
    %v5016 = vadd.f32 %v4997, %v5015
    %5017 = vdwg.mxu0
    %5018 = vmatpush.bf16.msra.mxu0 %v4593
    %5019 = vmatpush.bf16.msra.mxu0 %v4588
    %5020 = vmatpush.bf16.msra.mxu0 %v4583
    %5021 = vmatpush.bf16.msra.mxu0 %v4578
    %5022 = vmatpush.bf16.msra.mxu0 %v4573
    %5023 = vmatpush.bf16.msra.mxu0 %v4568
    %5024 = vmatpush.bf16.msra.mxu0 %v4563
    %5025 = vmatpush.bf16.msra.mxu0 %v4558
    %5026 = vmatmul.bf16.gmra.mxu0 %v3960
    %v5027 = vpop.f32.mrf.mxu0
    %v5028 = vadd.f32 %v3972, %v5027
    %v5029 = vpop.f32.mrf.mxu0
    %v5030 = vadd.f32 %v3972, %v5029
    %5031 = vmatmul.bf16.gmra.mxu0 %v3965
    %v5032 = vpop.f32.mrf.mxu0
    %v5033 = vadd.f32 %v3972, %v5032
    %v5034 = vpop.f32.mrf.mxu0
    %v5035 = vadd.f32 %v3972, %v5034
    %5036 = vdwg.mxu0
    %5037 = vmatpush.bf16.msra.mxu0 %v4633
    %5038 = vmatpush.bf16.msra.mxu0 %v4628
    %5039 = vmatpush.bf16.msra.mxu0 %v4623
    %5040 = vmatpush.bf16.msra.mxu0 %v4618
    %5041 = vmatpush.bf16.msra.mxu0 %v4613
    %5042 = vmatpush.bf16.msra.mxu0 %v4608
    %5043 = vmatpush.bf16.msra.mxu0 %v4603
    %5044 = vmatpush.bf16.msra.mxu0 %v4598
    %5045 = vmatmul.bf16.gmra.mxu0 %v3961
    %v5046 = vpop.f32.mrf.mxu0
    %v5047 = vadd.f32 %v5028, %v5046
    %v5048 = vpop.f32.mrf.mxu0
    %v5049 = vadd.f32 %v5030, %v5048
    %5050 = vmatmul.bf16.gmra.mxu0 %v3966
    %v5051 = vpop.f32.mrf.mxu0
    %v5052 = vadd.f32 %v5033, %v5051
    %v5053 = vpop.f32.mrf.mxu0
    %v5054 = vadd.f32 %v5035, %v5053
    %5055 = vdwg.mxu0
    %5056 = vmatpush.bf16.msra.mxu0 %v4673
    %5057 = vmatpush.bf16.msra.mxu0 %v4668
    %5058 = vmatpush.bf16.msra.mxu0 %v4663
    %5059 = vmatpush.bf16.msra.mxu0 %v4658
    %5060 = vmatpush.bf16.msra.mxu0 %v4653
    %5061 = vmatpush.bf16.msra.mxu0 %v4648
    %5062 = vmatpush.bf16.msra.mxu0 %v4643
    %5063 = vmatpush.bf16.msra.mxu0 %v4638
    %5064 = vmatmul.bf16.gmra.mxu0 %v3962
    %v5065 = vpop.f32.mrf.mxu0
    %v5066 = vadd.f32 %v5047, %v5065
    %v5067 = vpop.f32.mrf.mxu0
    %v5068 = vadd.f32 %v5049, %v5067
    %5069 = vmatmul.bf16.gmra.mxu0 %v3967
    %v5070 = vpop.f32.mrf.mxu0
    %v5071 = vadd.f32 %v5052, %v5070
    %v5072 = vpop.f32.mrf.mxu0
    %v5073 = vadd.f32 %v5054, %v5072
    %5074 = vdwg.mxu0
    %5075 = vmatpush.bf16.msra.mxu0 %v4713
    %5076 = vmatpush.bf16.msra.mxu0 %v4708
    %5077 = vmatpush.bf16.msra.mxu0 %v4703
    %5078 = vmatpush.bf16.msra.mxu0 %v4698
    %5079 = vmatpush.bf16.msra.mxu0 %v4693
    %5080 = vmatpush.bf16.msra.mxu0 %v4688
    %5081 = vmatpush.bf16.msra.mxu0 %v4683
    %5082 = vmatpush.bf16.msra.mxu0 %v4678
    %5083 = vmatmul.bf16.gmra.mxu0 %v3963
    %v5084 = vpop.f32.mrf.mxu0
    %v5085 = vadd.f32 %v5066, %v5084
    %v5086 = vpop.f32.mrf.mxu0
    %v5087 = vadd.f32 %v5068, %v5086
    %5088 = vmatmul.bf16.gmra.mxu0 %v3968
    %v5089 = vpop.f32.mrf.mxu0
    %v5090 = vadd.f32 %v5071, %v5089
    %v5091 = vpop.f32.mrf.mxu0
    %v5092 = vadd.f32 %v5073, %v5091
    %5093 = vdwg.mxu0
    %5094 = vmatpush.bf16.msra.mxu0 0
    %5095 = vmatpush.bf16.msra.mxu0 0
    %5096 = vmatpush.bf16.msra.mxu0 0
    %5097 = vmatpush.bf16.msra.mxu0 0
    %5098 = vmatpush.bf16.msra.mxu0 %v4733
    %5099 = vmatpush.bf16.msra.mxu0 %v4728
    %5100 = vmatpush.bf16.msra.mxu0 %v4723
    %5101 = vmatpush.bf16.msra.mxu0 %v4718
    %5102 = vmatmul.bf16.gmra.mxu0 %v4918
    %v5103 = vpop.f32.mrf.mxu0
    %v5104 = vadd.f32 %v5085, %v5103
    %v5105 = vpop.f32.mrf.mxu0
    %v5106 = vadd.f32 %v5087, %v5105
    %5107 = vmatmul.bf16.gmra.mxu0 %v4921
    %v5108 = vpop.f32.mrf.mxu0
    %v5109 = vadd.f32 %v5090, %v5108
    %v5110 = vpop.f32.mrf.mxu0
    %v5111 = vadd.f32 %v5092, %v5110
    %5112 = vdwg.mxu0
    %5113 = vmatpush.bf16.msra.mxu0 %v4594
    %5114 = vmatpush.bf16.msra.mxu0 %v4589
    %5115 = vmatpush.bf16.msra.mxu0 %v4584
    %5116 = vmatpush.bf16.msra.mxu0 %v4579
    %5117 = vmatpush.bf16.msra.mxu0 %v4574
    %5118 = vmatpush.bf16.msra.mxu0 %v4569
    %5119 = vmatpush.bf16.msra.mxu0 %v4564
    %5120 = vmatpush.bf16.msra.mxu0 %v4559
    %5121 = vmatmul.bf16.gmra.mxu0 %v3960
    %v5122 = vpop.f32.mrf.mxu0
    %v5123 = vadd.f32 %v3973, %v5122
    %v5124 = vpop.f32.mrf.mxu0
    %v5125 = vadd.f32 %v3973, %v5124
    %5126 = vmatmul.bf16.gmra.mxu0 %v3965
    %v5127 = vpop.f32.mrf.mxu0
    %v5128 = vadd.f32 %v3973, %v5127
    %v5129 = vpop.f32.mrf.mxu0
    %v5130 = vadd.f32 %v3973, %v5129
    %5131 = vdwg.mxu0
    %5132 = vmatpush.bf16.msra.mxu0 %v4634
    %5133 = vmatpush.bf16.msra.mxu0 %v4629
    %5134 = vmatpush.bf16.msra.mxu0 %v4624
    %5135 = vmatpush.bf16.msra.mxu0 %v4619
    %5136 = vmatpush.bf16.msra.mxu0 %v4614
    %5137 = vmatpush.bf16.msra.mxu0 %v4609
    %5138 = vmatpush.bf16.msra.mxu0 %v4604
    %5139 = vmatpush.bf16.msra.mxu0 %v4599
    %5140 = vmatmul.bf16.gmra.mxu0 %v3961
    %v5141 = vpop.f32.mrf.mxu0
    %v5142 = vadd.f32 %v5123, %v5141
    %v5143 = vpop.f32.mrf.mxu0
    %v5144 = vadd.f32 %v5125, %v5143
    %5145 = vmatmul.bf16.gmra.mxu0 %v3966
    %v5146 = vpop.f32.mrf.mxu0
    %v5147 = vadd.f32 %v5128, %v5146
    %v5148 = vpop.f32.mrf.mxu0
    %v5149 = vadd.f32 %v5130, %v5148
    %5150 = vdwg.mxu0
    %5151 = vmatpush.bf16.msra.mxu0 %v4674
    %5152 = vmatpush.bf16.msra.mxu0 %v4669
    %5153 = vmatpush.bf16.msra.mxu0 %v4664
    %5154 = vmatpush.bf16.msra.mxu0 %v4659
    %5155 = vmatpush.bf16.msra.mxu0 %v4654
    %5156 = vmatpush.bf16.msra.mxu0 %v4649
    %5157 = vmatpush.bf16.msra.mxu0 %v4644
    %5158 = vmatpush.bf16.msra.mxu0 %v4639
    %5159 = vmatmul.bf16.gmra.mxu0 %v3962
    %v5160 = vpop.f32.mrf.mxu0
    %v5161 = vadd.f32 %v5142, %v5160
    %v5162 = vpop.f32.mrf.mxu0
    %v5163 = vadd.f32 %v5144, %v5162
    %5164 = vmatmul.bf16.gmra.mxu0 %v3967
    %v5165 = vpop.f32.mrf.mxu0
    %v5166 = vadd.f32 %v5147, %v5165
    %v5167 = vpop.f32.mrf.mxu0
    %v5168 = vadd.f32 %v5149, %v5167
    %5169 = vdwg.mxu0
    %5170 = vmatpush.bf16.msra.mxu0 %v4714
    %5171 = vmatpush.bf16.msra.mxu0 %v4709
    %5172 = vmatpush.bf16.msra.mxu0 %v4704
    %5173 = vmatpush.bf16.msra.mxu0 %v4699
    %5174 = vmatpush.bf16.msra.mxu0 %v4694
    %5175 = vmatpush.bf16.msra.mxu0 %v4689
    %5176 = vmatpush.bf16.msra.mxu0 %v4684
    %5177 = vmatpush.bf16.msra.mxu0 %v4679
    %5178 = vmatmul.bf16.gmra.mxu0 %v3963
    %v5179 = vpop.f32.mrf.mxu0
    %v5180 = vadd.f32 %v5161, %v5179
    %v5181 = vpop.f32.mrf.mxu0
    %v5182 = vadd.f32 %v5163, %v5181
    %5183 = vmatmul.bf16.gmra.mxu0 %v3968
    %v5184 = vpop.f32.mrf.mxu0
    %v5185 = vadd.f32 %v5166, %v5184
    %v5186 = vpop.f32.mrf.mxu0
    %v5187 = vadd.f32 %v5168, %v5186
    %5188 = vdwg.mxu0
    %5189 = vmatpush.bf16.msra.mxu0 0
    %5190 = vmatpush.bf16.msra.mxu0 0
    %5191 = vmatpush.bf16.msra.mxu0 0
    %5192 = vmatpush.bf16.msra.mxu0 0
    %5193 = vmatpush.bf16.msra.mxu0 %v4734
    %5194 = vmatpush.bf16.msra.mxu0 %v4729
    %5195 = vmatpush.bf16.msra.mxu0 %v4724
    %5196 = vmatpush.bf16.msra.mxu0 %v4719
    %5197 = vmatmul.bf16.gmra.mxu0 %v4918
    %v5198 = vpop.f32.mrf.mxu0
    %v5199 = vadd.f32 %v5180, %v5198
    %v5200 = vpop.f32.mrf.mxu0
    %v5201 = vadd.f32 %v5182, %v5200
    %5202 = vmatmul.bf16.gmra.mxu0 %v4921
    %v5203 = vpop.f32.mrf.mxu0
    %v5204 = vadd.f32 %v5185, %v5203
    %v5205 = vpop.f32.mrf.mxu0
    %v5206 = vadd.f32 %v5187, %v5205
    %5207 = vdwg.mxu0
    %5208 = vmatpush.bf16.msra.mxu0 %v4595
    %5209 = vmatpush.bf16.msra.mxu0 %v4590
    %5210 = vmatpush.bf16.msra.mxu0 %v4585
    %5211 = vmatpush.bf16.msra.mxu0 %v4580
    %5212 = vmatpush.bf16.msra.mxu0 %v4575
    %5213 = vmatpush.bf16.msra.mxu0 %v4570
    %5214 = vmatpush.bf16.msra.mxu0 %v4565
    %5215 = vmatpush.bf16.msra.mxu0 %v4560
    %5216 = vmatmul.bf16.gmra.mxu0 %v3960
    %v5217 = vpop.f32.mrf.mxu0
    %v5218 = vadd.f32 %v3974, %v5217
    %v5219 = vpop.f32.mrf.mxu0
    %v5220 = vadd.f32 %v3974, %v5219
    %5221 = vmatmul.bf16.gmra.mxu0 %v3965
    %v5222 = vpop.f32.mrf.mxu0
    %v5223 = vadd.f32 %v3974, %v5222
    %v5224 = vpop.f32.mrf.mxu0
    %v5225 = vadd.f32 %v3974, %v5224
    %5226 = vdwg.mxu0
    %5227 = vmatpush.bf16.msra.mxu0 %v4635
    %5228 = vmatpush.bf16.msra.mxu0 %v4630
    %5229 = vmatpush.bf16.msra.mxu0 %v4625
    %5230 = vmatpush.bf16.msra.mxu0 %v4620
    %5231 = vmatpush.bf16.msra.mxu0 %v4615
    %5232 = vmatpush.bf16.msra.mxu0 %v4610
    %5233 = vmatpush.bf16.msra.mxu0 %v4605
    %5234 = vmatpush.bf16.msra.mxu0 %v4600
    %5235 = vmatmul.bf16.gmra.mxu0 %v3961
    %v5236 = vpop.f32.mrf.mxu0
    %v5237 = vadd.f32 %v5218, %v5236
    %v5238 = vpop.f32.mrf.mxu0
    %v5239 = vadd.f32 %v5220, %v5238
    %5240 = vmatmul.bf16.gmra.mxu0 %v3966
    %v5241 = vpop.f32.mrf.mxu0
    %v5242 = vadd.f32 %v5223, %v5241
    %v5243 = vpop.f32.mrf.mxu0
    %v5244 = vadd.f32 %v5225, %v5243
    %5245 = vdwg.mxu0
    %5246 = vmatpush.bf16.msra.mxu0 %v4675
    %5247 = vmatpush.bf16.msra.mxu0 %v4670
    %5248 = vmatpush.bf16.msra.mxu0 %v4665
    %5249 = vmatpush.bf16.msra.mxu0 %v4660
    %5250 = vmatpush.bf16.msra.mxu0 %v4655
    %5251 = vmatpush.bf16.msra.mxu0 %v4650
    %5252 = vmatpush.bf16.msra.mxu0 %v4645
    %5253 = vmatpush.bf16.msra.mxu0 %v4640
    %5254 = vmatmul.bf16.gmra.mxu0 %v3962
    %v5255 = vpop.f32.mrf.mxu0
    %v5256 = vadd.f32 %v5237, %v5255
    %v5257 = vpop.f32.mrf.mxu0
    %v5258 = vadd.f32 %v5239, %v5257
    %5259 = vmatmul.bf16.gmra.mxu0 %v3967
    %v5260 = vpop.f32.mrf.mxu0
    %v5261 = vadd.f32 %v5242, %v5260
    %v5262 = vpop.f32.mrf.mxu0
    %v5263 = vadd.f32 %v5244, %v5262
    %5264 = vdwg.mxu0
    %5265 = vmatpush.bf16.msra.mxu0 %v4715
    %5266 = vmatpush.bf16.msra.mxu0 %v4710
    %5267 = vmatpush.bf16.msra.mxu0 %v4705
    %5268 = vmatpush.bf16.msra.mxu0 %v4700
    %5269 = vmatpush.bf16.msra.mxu0 %v4695
    %5270 = vmatpush.bf16.msra.mxu0 %v4690
    %5271 = vmatpush.bf16.msra.mxu0 %v4685
    %5272 = vmatpush.bf16.msra.mxu0 %v4680
    %5273 = vmatmul.bf16.gmra.mxu0 %v3963
    %v5274 = vpop.f32.mrf.mxu0
    %v5275 = vadd.f32 %v5256, %v5274
    %v5276 = vpop.f32.mrf.mxu0
    %v5277 = vadd.f32 %v5258, %v5276
    %5278 = vmatmul.bf16.gmra.mxu0 %v3968
    %v5279 = vpop.f32.mrf.mxu0
    %v5280 = vadd.f32 %v5261, %v5279
    %v5281 = vpop.f32.mrf.mxu0
    %v5282 = vadd.f32 %v5263, %v5281
    %5283 = vdwg.mxu0
    %5284 = vmatpush.bf16.msra.mxu0 0
    %5285 = vmatpush.bf16.msra.mxu0 0
    %5286 = vmatpush.bf16.msra.mxu0 0
    %5287 = vmatpush.bf16.msra.mxu0 0
    %5288 = vmatpush.bf16.msra.mxu0 %v4735
    %5289 = vmatpush.bf16.msra.mxu0 %v4730
    %5290 = vmatpush.bf16.msra.mxu0 %v4725
    %5291 = vmatpush.bf16.msra.mxu0 %v4720
    %5292 = vmatmul.bf16.gmra.mxu0 %v4918
    %v5293 = vpop.f32.mrf.mxu0
    %v5294 = vadd.f32 %v5275, %v5293
    %v5295 = vpop.f32.mrf.mxu0
    %v5296 = vadd.f32 %v5277, %v5295
    %5297 = vmatmul.bf16.gmra.mxu0 %v4921
    %v5298 = vpop.f32.mrf.mxu0
    %v5299 = vadd.f32 %v5280, %v5298
    %v5300 = vpop.f32.mrf.mxu0
    %v5301 = vadd.f32 %v5282, %v5300
    %5302 = vdwg.mxu0
    %5303 = vmatpush.bf16.msra.mxu0 %v4596
    %5304 = vmatpush.bf16.msra.mxu0 %v4591
    %5305 = vmatpush.bf16.msra.mxu0 %v4586
    %5306 = vmatpush.bf16.msra.mxu0 %v4581
    %5307 = vmatpush.bf16.msra.mxu0 %v4576
    %5308 = vmatpush.bf16.msra.mxu0 %v4571
    %5309 = vmatpush.bf16.msra.mxu0 %v4566
    %5310 = vmatpush.bf16.msra.mxu0 %v4561
    %5311 = vmatmul.bf16.gmra.mxu0 %v3960
    %v5312 = vpop.f32.mrf.mxu0
    %v5313 = vadd.f32 %v3975, %v5312
    %v5314 = vpop.f32.mrf.mxu0
    %v5315 = vadd.f32 %v3975, %v5314
    %5316 = vmatmul.bf16.gmra.mxu0 %v3965
    %v5317 = vpop.f32.mrf.mxu0
    %v5318 = vadd.f32 %v3975, %v5317
    %v5319 = vpop.f32.mrf.mxu0
    %v5320 = vadd.f32 %v3975, %v5319
    %5321 = vdwg.mxu0
    %5322 = vmatpush.bf16.msra.mxu0 %v4636
    %5323 = vmatpush.bf16.msra.mxu0 %v4631
    %5324 = vmatpush.bf16.msra.mxu0 %v4626
    %5325 = vmatpush.bf16.msra.mxu0 %v4621
    %5326 = vmatpush.bf16.msra.mxu0 %v4616
    %5327 = vmatpush.bf16.msra.mxu0 %v4611
    %5328 = vmatpush.bf16.msra.mxu0 %v4606
    %5329 = vmatpush.bf16.msra.mxu0 %v4601
    %5330 = vmatmul.bf16.gmra.mxu0 %v3961
    %v5331 = vpop.f32.mrf.mxu0
    %v5332 = vadd.f32 %v5313, %v5331
    %v5333 = vpop.f32.mrf.mxu0
    %v5334 = vadd.f32 %v5315, %v5333
    %5335 = vmatmul.bf16.gmra.mxu0 %v3966
    %v5336 = vpop.f32.mrf.mxu0
    %v5337 = vadd.f32 %v5318, %v5336
    %v5338 = vpop.f32.mrf.mxu0
    %v5339 = vadd.f32 %v5320, %v5338
    %5340 = vdwg.mxu0
    %5341 = vmatpush.bf16.msra.mxu0 %v4676
    %5342 = vmatpush.bf16.msra.mxu0 %v4671
    %5343 = vmatpush.bf16.msra.mxu0 %v4666
    %5344 = vmatpush.bf16.msra.mxu0 %v4661
    %5345 = vmatpush.bf16.msra.mxu0 %v4656
    %5346 = vmatpush.bf16.msra.mxu0 %v4651
    %5347 = vmatpush.bf16.msra.mxu0 %v4646
    %5348 = vmatpush.bf16.msra.mxu0 %v4641
    %5349 = vmatmul.bf16.gmra.mxu0 %v3962
    %v5350 = vpop.f32.mrf.mxu0
    %v5351 = vadd.f32 %v5332, %v5350
    %v5352 = vpop.f32.mrf.mxu0
    %v5353 = vadd.f32 %v5334, %v5352
    %5354 = vmatmul.bf16.gmra.mxu0 %v3967
    %v5355 = vpop.f32.mrf.mxu0
    %v5356 = vadd.f32 %v5337, %v5355
    %v5357 = vpop.f32.mrf.mxu0
    %v5358 = vadd.f32 %v5339, %v5357
    %5359 = vdwg.mxu0
    %5360 = vmatpush.bf16.msra.mxu0 %v4716
    %5361 = vmatpush.bf16.msra.mxu0 %v4711
    %5362 = vmatpush.bf16.msra.mxu0 %v4706
    %5363 = vmatpush.bf16.msra.mxu0 %v4701
    %5364 = vmatpush.bf16.msra.mxu0 %v4696
    %5365 = vmatpush.bf16.msra.mxu0 %v4691
    %5366 = vmatpush.bf16.msra.mxu0 %v4686
    %5367 = vmatpush.bf16.msra.mxu0 %v4681
    %5368 = vmatmul.bf16.gmra.mxu0 %v3963
    %v5369 = vpop.f32.mrf.mxu0
    %v5370 = vadd.f32 %v5351, %v5369
    %v5371 = vpop.f32.mrf.mxu0
    %v5372 = vadd.f32 %v5353, %v5371
    %5373 = vmatmul.bf16.gmra.mxu0 %v3968
    %v5374 = vpop.f32.mrf.mxu0
    %v5375 = vadd.f32 %v5356, %v5374
    %v5376 = vpop.f32.mrf.mxu0
    %v5377 = vadd.f32 %v5358, %v5376
    %5378 = vdwg.mxu0
    %5379 = vmatpush.bf16.msra.mxu0 0
    %5380 = vmatpush.bf16.msra.mxu0 0
    %5381 = vmatpush.bf16.msra.mxu0 0
    %5382 = vmatpush.bf16.msra.mxu0 0
    %5383 = vmatpush.bf16.msra.mxu0 %v4736
    %5384 = vmatpush.bf16.msra.mxu0 %v4731
    %5385 = vmatpush.bf16.msra.mxu0 %v4726
    %5386 = vmatpush.bf16.msra.mxu0 %v4721
    %5387 = vmatmul.bf16.gmra.mxu0 %v4918
    %v5388 = vpop.f32.mrf.mxu0
    %v5389 = vadd.f32 %v5370, %v5388
    %v5390 = vpop.f32.mrf.mxu0
    %v5391 = vadd.f32 %v5372, %v5390
    %5392 = vmatmul.bf16.gmra.mxu0 %v4921
    %v5393 = vpop.f32.mrf.mxu0
    %v5394 = vadd.f32 %v5375, %v5393
    %v5395 = vpop.f32.mrf.mxu0
    %v5396 = vadd.f32 %v5377, %v5395
    %5397 = vdwg.mxu0
    %v5398 = vmax.f32 %v5009, 0.0
    %v5399 = vmax.f32 %v5104, 0.0
    %v5400 = vmax.f32 %v5199, 0.0
    %v5401 = vmax.f32 %v5294, 0.0
    %v5402 = vmax.f32 %v5389, 0.0
    %v5403 = vmax.f32 %v5011, 0.0
    %v5404 = vmax.f32 %v5106, 0.0
    %v5405 = vmax.f32 %v5201, 0.0
    %v5406 = vmax.f32 %v5296, 0.0
    %v5407 = vmax.f32 %v5391, 0.0
    %v5408 = vmax.f32 %v5014, 0.0
    %v5409 = vmax.f32 %v5109, 0.0
    %v5410 = vmax.f32 %v5204, 0.0
    %v5411 = vmax.f32 %v5299, 0.0
    %v5412 = vmax.f32 %v5394, 0.0
    %v5413 = vmax.f32 %v5016, 0.0
    %v5414 = vmax.f32 %v5111, 0.0
    %v5415 = vmax.f32 %v5206, 0.0
    %v5416 = vmax.f32 %v5301, 0.0
    %v5417 = vmax.f32 %v5396, 0.0
    %v5418 = vmax.f32 %v5398, -0.01
    %v5419 = vmax.f32 %v5399, -0.01
    %v5420 = vmax.f32 %v5400, -0.01
    %v5421 = vmax.f32 %v5401, -0.01
    %v5422 = vmax.f32 %v5402, -0.01
    %v5423 = vmax.f32 %v5403, -0.01
    %v5424 = vmax.f32 %v5404, -0.01
    %v5425 = vmax.f32 %v5405, -0.01
    %v5426 = vmax.f32 %v5406, -0.01
    %v5427 = vmax.f32 %v5407, -0.01
    %v5428 = vmax.f32 %v5408, -0.01
    %v5429 = vmax.f32 %v5409, -0.01
    %v5430 = vmax.f32 %v5410, -0.01
    %v5431 = vmax.f32 %v5411, -0.01
    %v5432 = vmax.f32 %v5412, -0.01
    %v5433 = vmax.f32 %v5413, -0.01
    %v5434 = vmax.f32 %v5414, -0.01
    %v5435 = vmax.f32 %v5415, -0.01
    %v5436 = vmax.f32 %v5416, -0.01
    %v5437 = vmax.f32 %v5417, -0.01
    %v5438 = vmin.f32 %v5418, 0.01
    %v5439 = vmin.f32 %v5419, 0.01
    %v5440 = vmin.f32 %v5420, 0.01
    %v5441 = vmin.f32 %v5421, 0.01
    %v5442 = vmin.f32 %v5422, 0.01
    %v5443 = vmin.f32 %v5423, 0.01
    %v5444 = vmin.f32 %v5424, 0.01
    %v5445 = vmin.f32 %v5425, 0.01
    %v5446 = vmin.f32 %v5426, 0.01
    %v5447 = vmin.f32 %v5427, 0.01
    %v5448 = vmin.f32 %v5428, 0.01
    %v5449 = vmin.f32 %v5429, 0.01
    %v5450 = vmin.f32 %v5430, 0.01
    %v5451 = vmin.f32 %v5431, 0.01
    %v5452 = vmin.f32 %v5432, 0.01
    %v5453 = vmin.f32 %v5433, 0.01
    %v5454 = vmin.f32 %v5434, 0.01
    %v5455 = vmin.f32 %v5435, 0.01
    %v5456 = vmin.f32 %v5436, 0.01
    %v5457 = vmin.f32 %v5437, 0.01
    %v5458 = vsub.f32 %v5398, %v5438
    %v5459 = vsub.f32 %v5399, %v5439
    %v5460 = vsub.f32 %v5400, %v5440
    %v5461 = vsub.f32 %v5401, %v5441
    %v5462 = vsub.f32 %v5402, %v5442
    %v5463 = vsub.f32 %v5403, %v5443
    %v5464 = vsub.f32 %v5404, %v5444
    %v5465 = vsub.f32 %v5405, %v5445
    %v5466 = vsub.f32 %v5406, %v5446
    %v5467 = vsub.f32 %v5407, %v5447
    %v5468 = vsub.f32 %v5408, %v5448
    %v5469 = vsub.f32 %v5409, %v5449
    %v5470 = vsub.f32 %v5410, %v5450
    %v5471 = vsub.f32 %v5411, %v5451
    %v5472 = vsub.f32 %v5412, %v5452
    %v5473 = vsub.f32 %v5413, %v5453
    %v5474 = vsub.f32 %v5414, %v5454
    %v5475 = vsub.f32 %v5415, %v5455
    %v5476 = vsub.f32 %v5416, %v5456
    %v5477 = vsub.f32 %v5417, %v5457
    %v5478 = vadd.f32 %v3720, %v5458
    %v5479 = vadd.f32 %v3721, %v5459
    %v5480 = vadd.f32 %v3722, %v5460
    %v5481 = vadd.f32 %v3723, %v5461
    %v5482 = vadd.f32 %v3724, %v5462
    %v5483 = vadd.f32 %v3725, %v5463
    %v5484 = vadd.f32 %v3726, %v5464
    %v5485 = vadd.f32 %v3727, %v5465
    %v5486 = vadd.f32 %v3728, %v5466
    %v5487 = vadd.f32 %v3729, %v5467
    %v5488 = vadd.f32 %v3730, %v5468
    %v5489 = vadd.f32 %v3731, %v5469
    %v5490 = vadd.f32 %v3732, %v5470
    %v5491 = vadd.f32 %v3733, %v5471
    %v5492 = vadd.f32 %v3734, %v5472
    %v5493 = vadd.f32 %v3735, %v5473
    %v5494 = vadd.f32 %v3736, %v5474
    %v5495 = vadd.f32 %v3737, %v5475
    %v5496 = vadd.f32 %v3738, %v5476
    %v5497 = vadd.f32 %v3739, %v5477
    %v5498 = vld [vmem:[%s6 + $0x3] ss:$0 sm:$0xff]
    %v5499 = vpack.c.bf16 %v5483, %v5478
    %v5500 = vpack.c.bf16 %v5484, %v5479
    %v5501 = vpack.c.bf16 %v5485, %v5480
    %v5502 = vpack.c.bf16 %v5486, %v5481
    %v5503 = vpack.c.bf16 %v5487, %v5482
    %v5504 = vpack.c.bf16 %v5493, %v5488
    %v5505 = vpack.c.bf16 %v5494, %v5489
    %v5506 = vpack.c.bf16 %v5495, %v5490
    %v5507 = vpack.c.bf16 %v5496, %v5491
    %v5508 = vpack.c.bf16 %v5497, %v5492
    %v5509 = vld [vmem:[%s3] sm:$0xf]
    %v5510 = vld [vmem:[%s3 + $0x4] sm:$0xf]
    %v5511 = vld [vmem:[%s3 + $0x8] sm:$0xf]
    %v5512 = vld [vmem:[%s3 + $0xc] sm:$0xf]
    %v5513 = vld [vmem:[%s3 + $0x10] sm:$0xf]
    %v5514 = vld [vmem:[%s3 + $0x14] sm:$0xf]
    %v5515 = vld [vmem:[%s3 + $0x18] sm:$0xf]
    %v5516 = vld [vmem:[%s3 + $0x1c] sm:$0xf]
    %v5517 = vld [vmem:[%s3 + $0x20] sm:$0xf]
    %v5518 = vld [vmem:[%s3 + $0x24] sm:$0xf]
    %v5519 = vld [vmem:[%s3 + $0x28] sm:$0xf]
    %v5520 = vld [vmem:[%s3 + $0x2c] sm:$0xf]
    %v5521 = vld [vmem:[%s3 + $0x30] sm:$0xf]
    %v5522 = vld [vmem:[%s3 + $0x34] sm:$0xf]
    %v5523 = vld [vmem:[%s3 + $0x38] sm:$0xf]
    %v5524 = vld [vmem:[%s3 + $0x3c] sm:$0xf]
    %v5525 = vld [vmem:[%s3 + $0x40] sm:$0xf]
    %v5526 = vld [vmem:[%s3 + $0x44] sm:$0xf]
    %v5527 = vld [vmem:[%s3 + $0x48] sm:$0xf]
    %v5528 = vld [vmem:[%s3 + $0x4c] sm:$0xf]
    %v5529 = vld [vmem:[%s3 + $0x50] sm:$0xf]
    %v5530 = vld [vmem:[%s3 + $0x54] sm:$0xf]
    %v5531 = vld [vmem:[%s3 + $0x58] sm:$0xf]
    %v5532 = vld [vmem:[%s3 + $0x5c] sm:$0xf]
    %v5533 = vld [vmem:[%s3 + $0x60] sm:$0xf]
    %v5534 = vld [vmem:[%s3 + $0x64] sm:$0xf]
    %v5535 = vld [vmem:[%s3 + $0x68] sm:$0xf]
    %v5536 = vld [vmem:[%s3 + $0x6c] sm:$0xf]
    %v5537 = vld [vmem:[%s3 + $0x70] sm:$0xf]
    %v5538 = vld [vmem:[%s3 + $0x74] sm:$0xf]
    %v5539 = vld [vmem:[%s3 + $0x78] sm:$0xf]
    %v5540 = vld [vmem:[%s3 + $0x7c] sm:$0xf]
    %v5541 = vld [vmem:[%s3 + $0x80] sm:$0xf]
    %v5542 = vld [vmem:[%s3 + $0x84] sm:$0xf]
    %v5543 = vld [vmem:[%s3 + $0x88] sm:$0xf]
    %v5544 = vld [vmem:[%s3 + $0x8c] sm:$0xf]
    %v5545 = vld [vmem:[%s3 + $0x90] sm:$0xf]
    %v5546 = vld [vmem:[%s3 + $0x94] sm:$0xf]
    %v5547 = vld [vmem:[%s3 + $0x98] sm:$0xf]
    %v5548 = vld [vmem:[%s3 + $0x9c] sm:$0xf]
    %v5549 = vld [vmem:[%s3 + $0xa0] sm:$0xf]
    %v5550 = vld [vmem:[%s3 + $0xa4] sm:$0xf]
    %v5551 = vld [vmem:[%s3 + $0xa8] sm:$0xf]
    %v5552 = vld [vmem:[%s3 + $0xac] sm:$0xf]
    %v5553 = vld [vmem:[%s3 + $0xb0] sm:$0xf]
    %v5554 = vld [vmem:[%s3 + $0xb4] sm:$0xf]
    %v5555 = vld [vmem:[%s3 + $0xb8] sm:$0xf]
    %v5556 = vld [vmem:[%s3 + $0xbc] sm:$0xf]
    %v5557 = vld [vmem:[%s3 + $0xc0] sm:$0xf]
    %v5558 = vld [vmem:[%s3 + $0xc4] sm:$0xf]
    %v5559 = vld [vmem:[%s3 + $0xc8] sm:$0xf]
    %v5560 = vld [vmem:[%s3 + $0xcc] sm:$0xf]
    %v5561 = vld [vmem:[%s3 + $0xd0] sm:$0xf]
    %v5562 = vld [vmem:[%s3 + $0xd4] sm:$0xf]
    %v5563 = vld [vmem:[%s3 + $0xd8] sm:$0xf]
    %v5564 = vld [vmem:[%s3 + $0xdc] sm:$0xf]
    %v5565 = vld [vmem:[%s3 + $0xe0] sm:$0xf]
    %v5566 = vld [vmem:[%s3 + $0xe4] sm:$0xf]
    %v5567 = vld [vmem:[%s3 + $0xe8] sm:$0xf]
    %v5568 = vld [vmem:[%s3 + $0xec] sm:$0xf]
    %v5569 = vld [vmem:[%s3 + $0xf0] sm:$0xf]
    %v5570 = vld [vmem:[%s3 + $0xf4] sm:$0xf]
    %v5571 = vld [vmem:[%s3 + $0xf8] sm:$0xf]
    %v5572 = vld [vmem:[%s3 + $0xfc] sm:$0xf]
    %v5573 = vld [vmem:[%s3 + $0x100] sm:$0xf]
    %v5574 = vld [vmem:[%s3 + $0x104] sm:$0xf]
    %v5575 = vld [vmem:[%s3 + $0x108] sm:$0xf]
    %v5576 = vld [vmem:[%s3 + $0x10c] sm:$0xf]
    %v5577 = vld [vmem:[%s3 + $0x110] sm:$0xf]
    %v5578 = vld [vmem:[%s3 + $0x114] sm:$0xf]
    %v5579 = vld [vmem:[%s3 + $0x118] sm:$0xf]
    %v5580 = vld [vmem:[%s3 + $0x11c] sm:$0xf]
    %v5653 = vunpack.c.l.b16 %v5509
    %v5654 = vunpack.c.l.b16 %v5510
    %v5655 = vunpack.c.l.b16 %v5511
    %v5656 = vunpack.c.l.b16 %v5512
    %v5657 = vunpack.c.l.b16 %v5513
    %v5658 = vunpack.c.l.b16 %v5514
    %v5659 = vunpack.c.l.b16 %v5515
    %v5660 = vunpack.c.l.b16 %v5516
    %v5661 = vunpack.c.l.b16 %v5517
    %v5662 = vunpack.c.l.b16 %v5518
    %v5663 = vunpack.c.l.b16 %v5519
    %v5664 = vunpack.c.l.b16 %v5520
    %v5665 = vunpack.c.l.b16 %v5521
    %v5666 = vunpack.c.l.b16 %v5522
    %v5667 = vunpack.c.l.b16 %v5523
    %v5668 = vunpack.c.l.b16 %v5524
    %v5669 = vunpack.c.l.b16 %v5525
    %v5670 = vunpack.c.l.b16 %v5526
    %v5671 = vunpack.c.l.b16 %v5527
    %v5672 = vunpack.c.l.b16 %v5528
    %v5673 = vunpack.c.l.b16 %v5529
    %v5674 = vunpack.c.l.b16 %v5530
    %v5675 = vunpack.c.l.b16 %v5531
    %v5676 = vunpack.c.l.b16 %v5532
    %v5677 = vunpack.c.l.b16 %v5533
    %v5678 = vunpack.c.l.b16 %v5534
    %v5679 = vunpack.c.l.b16 %v5535
    %v5680 = vunpack.c.l.b16 %v5536
    %v5681 = vunpack.c.l.b16 %v5537
    %v5682 = vunpack.c.l.b16 %v5538
    %v5683 = vunpack.c.l.b16 %v5539
    %v5684 = vunpack.c.l.b16 %v5540
    %v5685 = vunpack.c.l.b16 %v5541
    %v5686 = vunpack.c.l.b16 %v5542
    %v5687 = vunpack.c.l.b16 %v5543
    %v5688 = vunpack.c.l.b16 %v5544
    %v5689 = vunpack.c.l.b16 %v5545
    %v5690 = vunpack.c.l.b16 %v5546
    %v5691 = vunpack.c.l.b16 %v5547
    %v5692 = vunpack.c.l.b16 %v5548
    %v5693 = vunpack.c.l.b16 %v5549
    %v5694 = vunpack.c.l.b16 %v5550
    %v5695 = vunpack.c.l.b16 %v5551
    %v5696 = vunpack.c.l.b16 %v5552
    %v5697 = vunpack.c.l.b16 %v5553
    %v5698 = vunpack.c.l.b16 %v5554
    %v5699 = vunpack.c.l.b16 %v5555
    %v5700 = vunpack.c.l.b16 %v5556
    %v5701 = vunpack.c.l.b16 %v5557
    %v5702 = vunpack.c.l.b16 %v5558
    %v5703 = vunpack.c.l.b16 %v5559
    %v5704 = vunpack.c.l.b16 %v5560
    %v5705 = vunpack.c.l.b16 %v5561
    %v5706 = vunpack.c.l.b16 %v5562
    %v5707 = vunpack.c.l.b16 %v5563
    %v5708 = vunpack.c.l.b16 %v5564
    %v5709 = vunpack.c.l.b16 %v5565
    %v5710 = vunpack.c.l.b16 %v5566
    %v5711 = vunpack.c.l.b16 %v5567
    %v5712 = vunpack.c.l.b16 %v5568
    %v5713 = vunpack.c.l.b16 %v5569
    %v5714 = vunpack.c.l.b16 %v5570
    %v5715 = vunpack.c.l.b16 %v5571
    %v5716 = vunpack.c.l.b16 %v5572
    %v5717 = vunpack.c.l.b16 %v5573
    %v5718 = vunpack.c.l.b16 %v5574
    %v5719 = vunpack.c.l.b16 %v5575
    %v5720 = vunpack.c.l.b16 %v5576
    %v5721 = vunpack.c.l.b16 %v5577
    %v5722 = vunpack.c.l.b16 %v5578
    %v5723 = vunpack.c.l.b16 %v5579
    %v5724 = vunpack.c.l.b16 %v5580
    %v5725 = vpack.c.b16 %v5654, %v5653
    %v5726 = vpack.c.b16 %v5656, %v5655
    %v5727 = vpack.c.b16 %v5658, %v5657
    %v5728 = vpack.c.b16 %v5660, %v5659
    %v5729 = vpack.c.b16 %v5662, %v5661
    %v5730 = vpack.c.b16 %v5664, %v5663
    %v5731 = vpack.c.b16 %v5666, %v5665
    %v5732 = vpack.c.b16 %v5668, %v5667
    %v5733 = vpack.c.b16 %v5670, %v5669
    %v5734 = vpack.c.b16 %v5672, %v5671
    %v5735 = vpack.c.b16 %v5674, %v5673
    %v5736 = vpack.c.b16 %v5676, %v5675
    %v5737 = vpack.c.b16 %v5678, %v5677
    %v5738 = vpack.c.b16 %v5680, %v5679
    %v5739 = vpack.c.b16 %v5682, %v5681
    %v5740 = vpack.c.b16 %v5684, %v5683
    %v5741 = vpack.c.b16 %v5686, %v5685
    %v5742 = vpack.c.b16 %v5688, %v5687
    %v5743 = vpack.c.b16 %v5690, %v5689
    %v5744 = vpack.c.b16 %v5692, %v5691
    %v5745 = vpack.c.b16 %v5694, %v5693
    %v5746 = vpack.c.b16 %v5696, %v5695
    %v5747 = vpack.c.b16 %v5698, %v5697
    %v5748 = vpack.c.b16 %v5700, %v5699
    %v5749 = vpack.c.b16 %v5702, %v5701
    %v5750 = vpack.c.b16 %v5704, %v5703
    %v5751 = vpack.c.b16 %v5706, %v5705
    %v5752 = vpack.c.b16 %v5708, %v5707
    %v5753 = vpack.c.b16 %v5710, %v5709
    %v5754 = vpack.c.b16 %v5712, %v5711
    %v5755 = vpack.c.b16 %v5714, %v5713
    %v5756 = vpack.c.b16 %v5716, %v5715
    %v5757 = vpack.c.b16 %v5718, %v5717
    %v5758 = vpack.c.b16 %v5720, %v5719
    %v5759 = vpack.c.b16 %v5722, %v5721
    %v5760 = vpack.c.b16 %v5724, %v5723
    %v5798 = vsel %vm1400, %v5503, 0
    %v5801 = vsel %vm1400, %v5508, 0
    %5803 = vmatpush.bf16.msra.mxu0 %v5732
    %5804 = vmatpush.bf16.msra.mxu0 %v5731
    %5805 = vmatpush.bf16.msra.mxu0 %v5730
    %5806 = vmatpush.bf16.msra.mxu0 %v5729
    %5807 = vmatpush.bf16.msra.mxu0 %v5728
    %5808 = vmatpush.bf16.msra.mxu0 %v5727
    %5809 = vmatpush.bf16.msra.mxu0 %v5726
    %5810 = vmatpush.bf16.msra.mxu0 %v5725
    %5811 = vmatmul.bf16.gmra.mxu0 %v5499
    %v5812 = vpop.f32.mrf.mxu0
    %v5813 = vadd.f32 %v5498, %v5812
    %v5814 = vpop.f32.mrf.mxu0
    %v5815 = vadd.f32 %v5498, %v5814
    %5816 = vmatmul.bf16.gmra.mxu0 %v5504
    %v5817 = vpop.f32.mrf.mxu0
    %v5818 = vadd.f32 %v5498, %v5817
    %v5819 = vpop.f32.mrf.mxu0
    %v5820 = vadd.f32 %v5498, %v5819
    %5821 = vdwg.mxu0
    %5822 = vmatpush.bf16.msra.mxu0 %v5740
    %5823 = vmatpush.bf16.msra.mxu0 %v5739
    %5824 = vmatpush.bf16.msra.mxu0 %v5738
    %5825 = vmatpush.bf16.msra.mxu0 %v5737
    %5826 = vmatpush.bf16.msra.mxu0 %v5736
    %5827 = vmatpush.bf16.msra.mxu0 %v5735
    %5828 = vmatpush.bf16.msra.mxu0 %v5734
    %5829 = vmatpush.bf16.msra.mxu0 %v5733
    %5830 = vmatmul.bf16.gmra.mxu0 %v5500
    %v5831 = vpop.f32.mrf.mxu0
    %v5832 = vadd.f32 %v5813, %v5831
    %v5833 = vpop.f32.mrf.mxu0
    %v5834 = vadd.f32 %v5815, %v5833
    %5835 = vmatmul.bf16.gmra.mxu0 %v5505
    %v5836 = vpop.f32.mrf.mxu0
    %v5837 = vadd.f32 %v5818, %v5836
    %v5838 = vpop.f32.mrf.mxu0
    %v5839 = vadd.f32 %v5820, %v5838
    %5840 = vdwg.mxu0
    %5841 = vmatpush.bf16.msra.mxu0 %v5748
    %5842 = vmatpush.bf16.msra.mxu0 %v5747
    %5843 = vmatpush.bf16.msra.mxu0 %v5746
    %5844 = vmatpush.bf16.msra.mxu0 %v5745
    %5845 = vmatpush.bf16.msra.mxu0 %v5744
    %5846 = vmatpush.bf16.msra.mxu0 %v5743
    %5847 = vmatpush.bf16.msra.mxu0 %v5742
    %5848 = vmatpush.bf16.msra.mxu0 %v5741
    %5849 = vmatmul.bf16.gmra.mxu0 %v5501
    %v5850 = vpop.f32.mrf.mxu0
    %v5851 = vadd.f32 %v5832, %v5850
    %v5852 = vpop.f32.mrf.mxu0
    %v5853 = vadd.f32 %v5834, %v5852
    %5854 = vmatmul.bf16.gmra.mxu0 %v5506
    %v5855 = vpop.f32.mrf.mxu0
    %v5856 = vadd.f32 %v5837, %v5855
    %v5857 = vpop.f32.mrf.mxu0
    %v5858 = vadd.f32 %v5839, %v5857
    %5859 = vdwg.mxu0
    %5860 = vmatpush.bf16.msra.mxu0 %v5756
    %5861 = vmatpush.bf16.msra.mxu0 %v5755
    %5862 = vmatpush.bf16.msra.mxu0 %v5754
    %5863 = vmatpush.bf16.msra.mxu0 %v5753
    %5864 = vmatpush.bf16.msra.mxu0 %v5752
    %5865 = vmatpush.bf16.msra.mxu0 %v5751
    %5866 = vmatpush.bf16.msra.mxu0 %v5750
    %5867 = vmatpush.bf16.msra.mxu0 %v5749
    %5868 = vmatmul.bf16.gmra.mxu0 %v5502
    %v5869 = vpop.f32.mrf.mxu0
    %v5870 = vadd.f32 %v5851, %v5869
    %v5871 = vpop.f32.mrf.mxu0
    %v5872 = vadd.f32 %v5853, %v5871
    %5873 = vmatmul.bf16.gmra.mxu0 %v5507
    %v5874 = vpop.f32.mrf.mxu0
    %v5875 = vadd.f32 %v5856, %v5874
    %v5876 = vpop.f32.mrf.mxu0
    %v5877 = vadd.f32 %v5858, %v5876
    %5878 = vdwg.mxu0
    %5879 = vmatpush.bf16.msra.mxu0 0
    %5880 = vmatpush.bf16.msra.mxu0 0
    %5881 = vmatpush.bf16.msra.mxu0 0
    %5882 = vmatpush.bf16.msra.mxu0 0
    %5883 = vmatpush.bf16.msra.mxu0 %v5760
    %5884 = vmatpush.bf16.msra.mxu0 %v5759
    %5885 = vmatpush.bf16.msra.mxu0 %v5758
    %5886 = vmatpush.bf16.msra.mxu0 %v5757
    %5887 = vmatmul.bf16.gmra.mxu0 %v5798
    %v5888 = vpop.f32.mrf.mxu0
    %v5889 = vadd.f32 %v5870, %v5888
    %v5890 = vpop.f32.mrf.mxu0
    %v5891 = vadd.f32 %v5872, %v5890
    %5892 = vmatmul.bf16.gmra.mxu0 %v5801
    %v5893 = vpop.f32.mrf.mxu0
    %v5894 = vadd.f32 %v5875, %v5893
    %v5895 = vpop.f32.mrf.mxu0
    %v5896 = vadd.f32 %v5877, %v5895
    %5897 = vdwg.mxu0
    %vm5898 = vcmp.gt.f32.partialorder %v5889, 0.0
    %vm5899 = vcmp.gt.f32.partialorder %v5891, 0.0
    %vm5900 = vcmp.gt.f32.partialorder %v5894, 0.0
    %vm5901 = vcmp.gt.f32.partialorder %v5896, 0.0
    %v5902 = vmul.f32 %v5889, 0.01
    %v5903 = vmul.f32 %v5891, 0.01
    %v5904 = vmul.f32 %v5894, 0.01
    %v5905 = vmul.f32 %v5896, 0.01
    %v5906 = vsel %vm5898, %v5889, %v5902
    %v5907 = vsel %vm5899, %v5891, %v5903
    %v5908 = vsel %vm5900, %v5894, %v5904
    %v5909 = vsel %vm5901, %v5896, %v5905
    %v5910 = vld [vmem:[%s6 + $0x4] ss:$0 sm:$0xff]
    %v5911 = vpack.c.bf16 %v5907, %v5906
    %v5912 = vpack.c.bf16 %v5909, %v5908
    %v5913 = vld [vmem:[%s4] sm:$0xf]
    %v5914 = vld [vmem:[%s4 + $0x4] sm:$0xf]
    %v5915 = vld [vmem:[%s4 + $0x8] sm:$0xf]
    %v5916 = vld [vmem:[%s4 + $0xc] sm:$0xf]
    %v5917 = vld [vmem:[%s4 + $0x10] sm:$0xf]
    %v5918 = vld [vmem:[%s4 + $0x14] sm:$0xf]
    %v5919 = vld [vmem:[%s4 + $0x18] sm:$0xf]
    %v5920 = vld [vmem:[%s4 + $0x1c] sm:$0xf]
    %v5929 = vunpack.c.l.b16 %v5913
    %v5930 = vunpack.c.l.b16 %v5914
    %v5931 = vunpack.c.l.b16 %v5915
    %v5932 = vunpack.c.l.b16 %v5916
    %v5933 = vunpack.c.l.b16 %v5917
    %v5934 = vunpack.c.l.b16 %v5918
    %v5935 = vunpack.c.l.b16 %v5919
    %v5936 = vunpack.c.l.b16 %v5920
    %v5937 = vpack.c.b16 %v5930, %v5929
    %v5938 = vpack.c.b16 %v5932, %v5931
    %v5939 = vpack.c.b16 %v5934, %v5933
    %v5940 = vpack.c.b16 %v5936, %v5935
    %v5946 = vsel %vm1400, %v5911, 0
    %v5949 = vsel %vm1400, %v5912, 0
    %5951 = vmatpush.bf16.msra.mxu0 0
    %5952 = vmatpush.bf16.msra.mxu0 0
    %5953 = vmatpush.bf16.msra.mxu0 0
    %5954 = vmatpush.bf16.msra.mxu0 0
    %5955 = vmatpush.bf16.msra.mxu0 %v5940
    %5956 = vmatpush.bf16.msra.mxu0 %v5939
    %5957 = vmatpush.bf16.msra.mxu0 %v5938
    %5958 = vmatpush.bf16.msra.mxu0 %v5937
    %5959 = vmatmul.bf16.gmra.mxu0 %v5946
    %v5960 = vpop.f32.mrf.mxu0
    %v5961 = vadd.f32 %v5910, %v5960
    %v5962 = vpop.f32.mrf.mxu0
    %v5963 = vadd.f32 %v5910, %v5962
    %5964 = vmatmul.bf16.gmra.mxu0 %v5949
    %v5965 = vpop.f32.mrf.mxu0
    %v5966 = vadd.f32 %v5910, %v5965
    %v5967 = vpop.f32.mrf.mxu0
    %v5968 = vadd.f32 %v5910, %v5967
    %5969 = vdwg.mxu0
    %vm5970 = vcmp.gt.f32.partialorder %v5961, 0.0
    %vm5971 = vcmp.gt.f32.partialorder %v5963, 0.0
    %vm5972 = vcmp.gt.f32.partialorder %v5966, 0.0
    %vm5973 = vcmp.gt.f32.partialorder %v5968, 0.0
    %v5974 = vmul.f32 %v5961, 0.01
    %v5975 = vmul.f32 %v5963, 0.01
    %v5976 = vmul.f32 %v5966, 0.01
    %v5977 = vmul.f32 %v5968, 0.01
    %v5978 = vsel %vm5970, %v5961, %v5974
    %v5979 = vsel %vm5971, %v5963, %v5975
    %v5980 = vsel %vm5972, %v5966, %v5976
    %v5981 = vsel %vm5973, %v5968, %v5977
    %v5982 = vld [vmem:[%s6 + $0x5] ss:$0 sm:$0xff]
    %v5983 = vpack.c.bf16 %v5979, %v5978
    %v5984 = vpack.c.bf16 %v5981, %v5980
    %v5985 = vld [vmem:[%s5] sm:$0xf]
    %v5986 = vld [vmem:[%s5 + $0x4] sm:$0xf]
    %v5987 = vld [vmem:[%s5 + $0x8] sm:$0xf]
    %v5988 = vld [vmem:[%s5 + $0xc] sm:$0xf]
    %v5993 = vunpack.c.l.b16 %v5985
    %v5994 = vunpack.c.l.b16 %v5986
    %v5995 = vunpack.c.l.b16 %v5987
    %v5996 = vunpack.c.l.b16 %v5988
    %v5997 = vpack.c.b16 %v5994, %v5993
    %v5998 = vpack.c.b16 %v5996, %v5995
    %vm6001 = vcmask 261120
    %v6003 = vsel %vm6001, %v5983, 0
    %v6006 = vsel %vm6001, %v5984, 0
    %6008 = vmatpush.bf16.msra.mxu0 0
    %6009 = vmatpush.bf16.msra.mxu0 0
    %6010 = vmatpush.bf16.msra.mxu0 0
    %6011 = vmatpush.bf16.msra.mxu0 0
    %6012 = vmatpush.bf16.msra.mxu0 0
    %6013 = vmatpush.bf16.msra.mxu0 0
    %6014 = vmatpush.bf16.msra.mxu0 %v5998
    %6015 = vmatpush.bf16.msra.mxu0 %v5997
    %6016 = vmatmul.bf16.gmra.mxu0 %v6003
    %v6017 = vpop.f32.mrf.mxu0
    %v6018 = vadd.f32 %v5982, %v6017
    %v6019 = vpop.f32.mrf.mxu0
    %v6020 = vadd.f32 %v5982, %v6019
    %6021 = vmatmul.bf16.gmra.mxu0 %v6006
    %v6022 = vpop.f32.mrf.mxu0
    %v6023 = vadd.f32 %v5982, %v6022
    %v6024 = vpop.f32.mrf.mxu0
    %v6025 = vadd.f32 %v5982, %v6024
    %6026 = vdwg.mxu0
    %v6027 = vmax.f32 %v6018, 0.0
    %v6028 = vmax.f32 %v6020, 0.0
    %v6029 = vmax.f32 %v6023, 0.0
    %v6030 = vmax.f32 %v6025, 0.0
    %v6031 = vsel %vm66, %v6027, 0.0
    %v6032 = vsel %vm66, %v6028, 0.0
    %v6033 = vadd.f32 %v6031, %v6032
    %v6034 = vsel %vm66, %v6029, 0.0
    %v6035 = vadd.f32 %v6033, %v6034
    %v6036 = vsel %vm66, %v6030, 0.0
    %v6037 = vadd.f32 %v6035, %v6036
    %v6038 = vrot.slane %v6037, 4
    %v6039 = vadd.f32 %v6037, %v6038
    %v6040 = vrot.slane %v6039, 2
    %v6041 = vadd.f32 %v6039, %v6040
    %v6042 = vrot.slane %v6041, 1
    %v6043 = vadd.f32 %v6041, %v6042
    %v6044 = vrcp.pop 32.0
    %v6045 = vmul.f32 32.0, %v6044
    %v6046 = vsub.f32 1.0, %v6045
    %v6047 = vmul.f32 %v6044, %v6046
    %v6048 = vadd.f32 %v6044, %v6047
    %vm6049 = vweird.f32 %v6044
    %v6050 = vsel %vm6049, %v6044, %v6048
    %v6051 = vmul.f32 %v6043, %v6050
    %v6052 = vsub.f32 %v6027, %v6051
    %v6053 = vsub.f32 %v6028, %v6051
    %v6054 = vsub.f32 %v6029, %v6051
    %v6055 = vsub.f32 %v6030, %v6051
    %v6056 = vmul.f32 %v6052, %v6052
    %v6057 = vmul.f32 %v6053, %v6053
    %v6058 = vmul.f32 %v6054, %v6054
    %v6059 = vmul.f32 %v6055, %v6055
    %v6060 = vsel %vm66, %v6056, 0.0
    %v6061 = vsel %vm66, %v6057, 0.0
    %v6062 = vadd.f32 %v6060, %v6061
    %v6063 = vsel %vm66, %v6058, 0.0
    %v6064 = vadd.f32 %v6062, %v6063
    %v6065 = vsel %vm66, %v6059, 0.0
    %v6066 = vadd.f32 %v6064, %v6065
    %v6067 = vrot.slane %v6066, 4
    %v6068 = vadd.f32 %v6066, %v6067
    %v6069 = vrot.slane %v6068, 2
    %v6070 = vadd.f32 %v6068, %v6069
    %v6071 = vrot.slane %v6070, 1
    %v6072 = vadd.f32 %v6070, %v6071
    %v6073 = vmul.f32 %v6072, %v6050
    %v6074 = vld [vmem:[%s6 + $0x6] ss:$0 sm:$0xff]
    %v6075 = vld [vmem:[%s6 + $0x7] ss:$0 sm:$0xff]
    %v6076 = vadd.f32 %v6073, 1e-05
    %v6077 = vrsqrt.pop %v6076
    %v6078 = vmul.f32 %v6077, %v6076
    %v6079 = vmul.f32 %v6078, %v6077
    %v6080 = vmul.f32 0.5, %v6079
    %v6081 = vsub.f32 1.5, %v6080
    %v6082 = vmul.f32 %v6077, %v6081
    %vm6083 = vweird.f32 %v6076
    %vm6084 = vweird.f32 %v6077
    %vm6085 = vmor %vm6083, %vm6084
    %v6086 = vsel %vm6085, %v6077, %v6082
    %v6087 = vmul.f32 %v6074, %v6086
    %v6088 = vmul.f32 %v6052, %v6087
    %v6089 = vmul.f32 %v6053, %v6087
    %v6090 = vmul.f32 %v6054, %v6087
    %v6091 = vmul.f32 %v6055, %v6087
    %v6092 = vadd.f32 %v6088, %v6075
    %v6093 = vadd.f32 %v6089, %v6075
    %v6094 = vadd.f32 %v6090, %v6075
    %v6095 = vadd.f32 %v6091, %v6075
    %v6096 = vld [vmem:[%s7] sm:$0xff]
    %v6097 = vld [vmem:[%s7 + $0x8] sm:$0xff]
    %v6098 = vld [vmem:[%s7 + $0x10] sm:$0xff]
    %v6099 = vld [vmem:[%s7 + $0x18] sm:$0xff]
    %v6100 = vld [vmem:[%s7 + $0x20] sm:$0xff]
    %v6101 = vld [vmem:[%s7 + $0x28] sm:$0xff]
    %v6102 = vld [vmem:[%s7 + $0x30] sm:$0xff]
    %v6103 = vld [vmem:[%s7 + $0x38] sm:$0xff]
    %v6104 = vld [vmem:[%s7 + $0x40] sm:$0xff]
    %v6105 = vld [vmem:[%s7 + $0x48] sm:$0xff]
    %v6107 = vsel %vm66, %v6092, 0
    %v6110 = vsel %vm66, %v6093, 0
    %v6113 = vsel %vm66, %v6094, 0
    %v6116 = vsel %vm66, %v6095, 0
    %6118 = vmatpush.msra.mxu0 0.0
    %6119 = vmatpush.msra.mxu0 0.0
    %6120 = vmatpush.msra.mxu0 0.0
    %6121 = vmatpush.msra.mxu0 0.0
    %6122 = vmatpush.msra.mxu0 0.0
    %6123 = vmatpush.msra.mxu0 0.0
    %6124 = vmatpush.msra.mxu0 0.0
    %6125 = vmatpush.msra.mxu0 0.0
    %6126 = vmatpush.msra.mxu0 0.0
    %6127 = vmatpush.msra.mxu0 0.0
    %6128 = vmatpush.msra.mxu0 0.0
    %6129 = vmatpush.msra.mxu0 0.0
    %6130 = vmatpush.msra.mxu0 0.0
    %6131 = vmatpush.msra.mxu0 0.0
    %6132 = vmatpush.msra.mxu0 %v6101
    %6133 = vmatpush.msra.mxu0 %v6096
    %6134 = vmatmul.f32.gmra.mxu0 %v6107
    %v6135 = vpop.f32.mrf.mxu0
    %v6136 = vadd.f32 0.0, %v6135
    %6137 = vmatmul.f32.gmra.mxu0 %v6110
    %v6138 = vpop.f32.mrf.mxu0
    %v6139 = vadd.f32 0.0, %v6138
    %6140 = vmatmul.f32.gmra.mxu0 %v6113
    %v6141 = vpop.f32.mrf.mxu0
    %v6142 = vadd.f32 0.0, %v6141
    %6143 = vmatmul.f32.gmra.mxu0 %v6116
    %v6144 = vpop.f32.mrf.mxu0
    %v6145 = vadd.f32 0.0, %v6144
    %6146 = vdwg.mxu0
    %6147 = vmatpush.msra.mxu0 0.0
    %6148 = vmatpush.msra.mxu0 0.0
    %6149 = vmatpush.msra.mxu0 0.0
    %6150 = vmatpush.msra.mxu0 0.0
    %6151 = vmatpush.msra.mxu0 0.0
    %6152 = vmatpush.msra.mxu0 0.0
    %6153 = vmatpush.msra.mxu0 0.0
    %6154 = vmatpush.msra.mxu0 0.0
    %6155 = vmatpush.msra.mxu0 0.0
    %6156 = vmatpush.msra.mxu0 0.0
    %6157 = vmatpush.msra.mxu0 0.0
    %6158 = vmatpush.msra.mxu0 0.0
    %6159 = vmatpush.msra.mxu0 0.0
    %6160 = vmatpush.msra.mxu0 0.0
    %6161 = vmatpush.msra.mxu0 %v6102
    %6162 = vmatpush.msra.mxu0 %v6097
    %6163 = vmatmul.f32.gmra.mxu0 %v6107
    %v6164 = vpop.f32.mrf.mxu0
    %v6165 = vadd.f32 0.0, %v6164
    %6166 = vmatmul.f32.gmra.mxu0 %v6110
    %v6167 = vpop.f32.mrf.mxu0
    %v6168 = vadd.f32 0.0, %v6167
    %6169 = vmatmul.f32.gmra.mxu0 %v6113
    %v6170 = vpop.f32.mrf.mxu0
    %v6171 = vadd.f32 0.0, %v6170
    %6172 = vmatmul.f32.gmra.mxu0 %v6116
    %v6173 = vpop.f32.mrf.mxu0
    %v6174 = vadd.f32 0.0, %v6173
    %6175 = vdwg.mxu0
    %6176 = vmatpush.msra.mxu0 0.0
    %6177 = vmatpush.msra.mxu0 0.0
    %6178 = vmatpush.msra.mxu0 0.0
    %6179 = vmatpush.msra.mxu0 0.0
    %6180 = vmatpush.msra.mxu0 0.0
    %6181 = vmatpush.msra.mxu0 0.0
    %6182 = vmatpush.msra.mxu0 0.0
    %6183 = vmatpush.msra.mxu0 0.0
    %6184 = vmatpush.msra.mxu0 0.0
    %6185 = vmatpush.msra.mxu0 0.0
    %6186 = vmatpush.msra.mxu0 0.0
    %6187 = vmatpush.msra.mxu0 0.0
    %6188 = vmatpush.msra.mxu0 0.0
    %6189 = vmatpush.msra.mxu0 0.0
    %6190 = vmatpush.msra.mxu0 %v6103
    %6191 = vmatpush.msra.mxu0 %v6098
    %6192 = vmatmul.f32.gmra.mxu0 %v6107
    %v6193 = vpop.f32.mrf.mxu0
    %v6194 = vadd.f32 0.0, %v6193
    %6195 = vmatmul.f32.gmra.mxu0 %v6110
    %v6196 = vpop.f32.mrf.mxu0
    %v6197 = vadd.f32 0.0, %v6196
    %6198 = vmatmul.f32.gmra.mxu0 %v6113
    %v6199 = vpop.f32.mrf.mxu0
    %v6200 = vadd.f32 0.0, %v6199
    %6201 = vmatmul.f32.gmra.mxu0 %v6116
    %v6202 = vpop.f32.mrf.mxu0
    %v6203 = vadd.f32 0.0, %v6202
    %6204 = vdwg.mxu0
    %6205 = vmatpush.msra.mxu0 0.0
    %6206 = vmatpush.msra.mxu0 0.0
    %6207 = vmatpush.msra.mxu0 0.0
    %6208 = vmatpush.msra.mxu0 0.0
    %6209 = vmatpush.msra.mxu0 0.0
    %6210 = vmatpush.msra.mxu0 0.0
    %6211 = vmatpush.msra.mxu0 0.0
    %6212 = vmatpush.msra.mxu0 0.0
    %6213 = vmatpush.msra.mxu0 0.0
    %6214 = vmatpush.msra.mxu0 0.0
    %6215 = vmatpush.msra.mxu0 0.0
    %6216 = vmatpush.msra.mxu0 0.0
    %6217 = vmatpush.msra.mxu0 0.0
    %6218 = vmatpush.msra.mxu0 0.0
    %6219 = vmatpush.msra.mxu0 %v6104
    %6220 = vmatpush.msra.mxu0 %v6099
    %6221 = vmatmul.f32.gmra.mxu0 %v6107
    %v6222 = vpop.f32.mrf.mxu0
    %v6223 = vadd.f32 0.0, %v6222
    %6224 = vmatmul.f32.gmra.mxu0 %v6110
    %v6225 = vpop.f32.mrf.mxu0
    %v6226 = vadd.f32 0.0, %v6225
    %6227 = vmatmul.f32.gmra.mxu0 %v6113
    %v6228 = vpop.f32.mrf.mxu0
    %v6229 = vadd.f32 0.0, %v6228
    %6230 = vmatmul.f32.gmra.mxu0 %v6116
    %v6231 = vpop.f32.mrf.mxu0
    %v6232 = vadd.f32 0.0, %v6231
    %6233 = vdwg.mxu0
    %6234 = vmatpush.msra.mxu0 0.0
    %6235 = vmatpush.msra.mxu0 0.0
    %6236 = vmatpush.msra.mxu0 0.0
    %6237 = vmatpush.msra.mxu0 0.0
    %6238 = vmatpush.msra.mxu0 0.0
    %6239 = vmatpush.msra.mxu0 0.0
    %6240 = vmatpush.msra.mxu0 0.0
    %6241 = vmatpush.msra.mxu0 0.0
    %6242 = vmatpush.msra.mxu0 0.0
    %6243 = vmatpush.msra.mxu0 0.0
    %6244 = vmatpush.msra.mxu0 0.0
    %6245 = vmatpush.msra.mxu0 0.0
    %6246 = vmatpush.msra.mxu0 0.0
    %6247 = vmatpush.msra.mxu0 0.0
    %6248 = vmatpush.msra.mxu0 %v6105
    %6249 = vmatpush.msra.mxu0 %v6100
    %6250 = vmatmul.f32.gmra.mxu0 %v6107
    %v6251 = vpop.f32.mrf.mxu0
    %v6252 = vadd.f32 0.0, %v6251
    %6253 = vmatmul.f32.gmra.mxu0 %v6110
    %v6254 = vpop.f32.mrf.mxu0
    %v6255 = vadd.f32 0.0, %v6254
    %6256 = vmatmul.f32.gmra.mxu0 %v6113
    %v6257 = vpop.f32.mrf.mxu0
    %v6258 = vadd.f32 0.0, %v6257
    %6259 = vmatmul.f32.gmra.mxu0 %v6116
    %v6260 = vpop.f32.mrf.mxu0
    %v6261 = vadd.f32 0.0, %v6260
    %6262 = vdwg.mxu0
    %v6263 = vld [vmem:[%s8] sm:$0xff]
    %v6264 = vld [vmem:[%s8 + $0x8] sm:$0xff]
    %v6265 = vld [vmem:[%s8 + $0x10] sm:$0xf]
    %v6266 = vld [vmem:[%s8 + $0x14] sm:$0xff]
    %v6267 = vld [vmem:[%s8 + $0x1c] sm:$0xff]
    %v6268 = vld [vmem:[%s8 + $0x24] sm:$0xf]
    %v6269 = vld [vmem:[%s8 + $0x28] sm:$0xff]
    %v6270 = vld [vmem:[%s8 + $0x30] sm:$0xff]
    %v6271 = vld [vmem:[%s8 + $0x38] sm:$0xf]
    %v6272 = vld [vmem:[%s8 + $0x3c] sm:$0xff]
    %v6273 = vld [vmem:[%s8 + $0x44] sm:$0xff]
    %v6274 = vld [vmem:[%s8 + $0x4c] sm:$0xf]
    %v6275 = vld [vmem:[%s8 + $0x50] sm:$0xff]
    %v6276 = vld [vmem:[%s8 + $0x58] sm:$0xff]
    %v6277 = vld [vmem:[%s8 + $0x60] sm:$0xf]
    %v6278 = vld [vmem:[%s8 + $0x64] sm:$0xff]
    %v6279 = vld [vmem:[%s8 + $0x6c] sm:$0xff]
    %v6280 = vld [vmem:[%s8 + $0x74] sm:$0xf]
    %v6281 = vld [vmem:[%s8 + $0x78] sm:$0xff]
    %v6282 = vld [vmem:[%s8 + $0x80] sm:$0xff]
    %v6283 = vld [vmem:[%s8 + $0x88] sm:$0xf]
    %v6284 = vld [vmem:[%s8 + $0x8c] sm:$0xff]
    %v6285 = vld [vmem:[%s8 + $0x94] sm:$0xff]
    %v6286 = vld [vmem:[%s8 + $0x9c] sm:$0xf]
    %v6287 = vld [vmem:[%s8 + $0xa0] sm:$0xff]
    %v6288 = vld [vmem:[%s8 + $0xa8] sm:$0xff]
    %v6289 = vld [vmem:[%s8 + $0xb0] sm:$0xf]
    %v6290 = vld [vmem:[%s8 + $0xb4] sm:$0xff]
    %v6291 = vld [vmem:[%s8 + $0xbc] sm:$0xff]
    %v6292 = vld [vmem:[%s8 + $0xc4] sm:$0xf]
    %v6293 = vld [vmem:[%s8 + $0xc8] sm:$0xff]
    %v6294 = vld [vmem:[%s8 + $0xd0] sm:$0xff]
    %v6295 = vld [vmem:[%s8 + $0xd8] sm:$0xf]
    %v6296 = vld [vmem:[%s8 + $0xdc] sm:$0xff]
    %v6297 = vld [vmem:[%s8 + $0xe4] sm:$0xff]
    %v6298 = vld [vmem:[%s8 + $0xec] sm:$0xf]
    %v6299 = vld [vmem:[%s8 + $0xf0] sm:$0xff]
    %v6300 = vld [vmem:[%s8 + $0xf8] sm:$0xff]
    %v6301 = vld [vmem:[%s8 + $0x100] sm:$0xf]
    %v6302 = vld [vmem:[%s8 + $0x104] sm:$0xff]
    %v6303 = vld [vmem:[%s8 + $0x10c] sm:$0xff]
    %v6304 = vld [vmem:[%s8 + $0x114] sm:$0xf]
    %v6305 = vld [vmem:[%s8 + $0x118] sm:$0xff]
    %v6306 = vld [vmem:[%s8 + $0x120] sm:$0xff]
    %v6307 = vld [vmem:[%s8 + $0x128] sm:$0xf]
    %v6308 = vld [vmem:[%s8 + $0x12c] sm:$0xff]
    %v6309 = vld [vmem:[%s8 + $0x134] sm:$0xff]
    %v6310 = vld [vmem:[%s8 + $0x13c] sm:$0xf]
    %v6311 = vld [vmem:[%s8 + $0x140] sm:$0xff]
    %v6312 = vld [vmem:[%s8 + $0x148] sm:$0xff]
    %v6313 = vld [vmem:[%s8 + $0x150] sm:$0xf]
    %v6314 = vld [vmem:[%s8 + $0x154] sm:$0xff]
    %v6315 = vld [vmem:[%s8 + $0x15c] sm:$0xff]
    %v6316 = vld [vmem:[%s8 + $0x164] sm:$0xf]
    %v6317 = vld [vmem:[%s8 + $0x168] sm:$0xff]
    %v6318 = vld [vmem:[%s8 + $0x170] sm:$0xff]
    %v6319 = vld [vmem:[%s8 + $0x178] sm:$0xf]
    %v6320 = vld [vmem:[%s8 + $0x17c] sm:$0xff]
    %v6321 = vld [vmem:[%s8 + $0x184] sm:$0xff]
    %v6322 = vld [vmem:[%s8 + $0x18c] sm:$0xf]
    %v6323 = vld [vmem:[%s8 + $0x190] sm:$0xff]
    %v6324 = vld [vmem:[%s8 + $0x198] sm:$0xff]
    %v6325 = vld [vmem:[%s8 + $0x1a0] sm:$0xf]
    %v6326 = vld [vmem:[%s8 + $0x1a4] sm:$0xff]
    %v6327 = vld [vmem:[%s8 + $0x1ac] sm:$0xff]
    %v6328 = vld [vmem:[%s8 + $0x1b4] sm:$0xf]
    %v6329 = vld [vmem:[%s8 + $0x1b8] sm:$0xff]
    %v6330 = vld [vmem:[%s8 + $0x1c0] sm:$0xff]
    %v6331 = vld [vmem:[%s8 + $0x1c8] sm:$0xf]
    %v6332 = vld [vmem:[%s8 + $0x1cc] sm:$0xff]
    %v6333 = vld [vmem:[%s8 + $0x1d4] sm:$0xff]
    %v6334 = vld [vmem:[%s8 + $0x1dc] sm:$0xf]
    %v6335 = vld [vmem:[%s8 + $0x1e0] sm:$0xff]
    %v6336 = vld [vmem:[%s8 + $0x1e8] sm:$0xff]
    %v6337 = vld [vmem:[%s8 + $0x1f0] sm:$0xf]
    %v6338 = vld [vmem:[%s8 + $0x1f4] sm:$0xff]
    %v6339 = vld [vmem:[%s8 + $0x1fc] sm:$0xff]
    %v6340 = vld [vmem:[%s8 + $0x204] sm:$0xf]
    %v6341 = vld [vmem:[%s8 + $0x208] sm:$0xff]
    %v6342 = vld [vmem:[%s8 + $0x210] sm:$0xff]
    %v6343 = vld [vmem:[%s8 + $0x218] sm:$0xf]
    %v6344 = vld [vmem:[%s8 + $0x21c] sm:$0xff]
    %v6345 = vld [vmem:[%s8 + $0x224] sm:$0xff]
    %v6346 = vld [vmem:[%s8 + $0x22c] sm:$0xf]
    %v6347 = vld [vmem:[%s8 + $0x230] sm:$0xff]
    %v6348 = vld [vmem:[%s8 + $0x238] sm:$0xff]
    %v6349 = vld [vmem:[%s8 + $0x240] sm:$0xf]
    %v6350 = vld [vmem:[%s8 + $0x244] sm:$0xff]
    %v6351 = vld [vmem:[%s8 + $0x24c] sm:$0xff]
    %v6352 = vld [vmem:[%s8 + $0x254] sm:$0xf]
    %v6353 = vld [vmem:[%s8 + $0x258] sm:$0xff]
    %v6354 = vld [vmem:[%s8 + $0x260] sm:$0xff]
    %v6355 = vld [vmem:[%s8 + $0x268] sm:$0xf]
    %v6356 = vld [vmem:[%s8 + $0x26c] sm:$0xff]
    %v6357 = vld [vmem:[%s8 + $0x274] sm:$0xff]
    %v6358 = vld [vmem:[%s8 + $0x27c] sm:$0xf]
    %v6359 = vld [vmem:[%s8 + $0x280] sm:$0xff]
    %v6360 = vld [vmem:[%s8 + $0x288] sm:$0xff]
    %v6361 = vld [vmem:[%s8 + $0x290] sm:$0xf]
    %v6362 = vld [vmem:[%s8 + $0x294] sm:$0xff]
    %v6363 = vld [vmem:[%s8 + $0x29c] sm:$0xff]
    %v6364 = vld [vmem:[%s8 + $0x2a4] sm:$0xf]
    %v6365 = vld [vmem:[%s8 + $0x2a8] sm:$0xff]
    %v6366 = vld [vmem:[%s8 + $0x2b0] sm:$0xff]
    %v6367 = vld [vmem:[%s8 + $0x2b8] sm:$0xf]
    %v6368 = vld [vmem:[%s8 + $0x2bc] sm:$0xff]
    %v6369 = vld [vmem:[%s8 + $0x2c4] sm:$0xff]
    %v6370 = vld [vmem:[%s8 + $0x2cc] sm:$0xf]
    %v6371 = vld [vmem:[%s8 + $0x2d0] sm:$0xff]
    %v6372 = vld [vmem:[%s8 + $0x2d8] sm:$0xff]
    %v6373 = vld [vmem:[%s8 + $0x2e0] sm:$0xf]
    %v6374 = vld [vmem:[%s8 + $0x2e4] sm:$0xff]
    %v6375 = vld [vmem:[%s8 + $0x2ec] sm:$0xff]
    %v6376 = vld [vmem:[%s8 + $0x2f4] sm:$0xf]
    %v6377 = vld [vmem:[%s8 + $0x2f8] sm:$0xff]
    %v6378 = vld [vmem:[%s8 + $0x300] sm:$0xff]
    %v6379 = vld [vmem:[%s8 + $0x308] sm:$0xf]
    %v6380 = vld [vmem:[%s8 + $0x30c] sm:$0xff]
    %v6381 = vld [vmem:[%s8 + $0x314] sm:$0xff]
    %v6382 = vld [vmem:[%s8 + $0x31c] sm:$0xf]
    %v6383 = vld [vmem:[%s8 + $0x320] sm:$0xff]
    %v6384 = vld [vmem:[%s8 + $0x328] sm:$0xff]
    %v6385 = vld [vmem:[%s8 + $0x330] sm:$0xf]
    %v6386 = vld [vmem:[%s8 + $0x334] sm:$0xff]
    %v6387 = vld [vmem:[%s8 + $0x33c] sm:$0xff]
    %v6388 = vld [vmem:[%s8 + $0x344] sm:$0xf]
    %v6389 = vld [vmem:[%s8 + $0x348] sm:$0xff]
    %v6390 = vld [vmem:[%s8 + $0x350] sm:$0xff]
    %v6391 = vld [vmem:[%s8 + $0x358] sm:$0xf]
    %v6392 = vld [vmem:[%s8 + $0x35c] sm:$0xff]
    %v6393 = vld [vmem:[%s8 + $0x364] sm:$0xff]
    %v6394 = vld [vmem:[%s8 + $0x36c] sm:$0xf]
    %v6395 = vld [vmem:[%s8 + $0x370] sm:$0xff]
    %v6396 = vld [vmem:[%s8 + $0x378] sm:$0xff]
    %v6397 = vld [vmem:[%s8 + $0x380] sm:$0xf]
    %v6398 = vld [vmem:[%s8 + $0x384] sm:$0xff]
    %v6399 = vld [vmem:[%s8 + $0x38c] sm:$0xff]
    %v6400 = vld [vmem:[%s8 + $0x394] sm:$0xf]
    %v6401 = vld [vmem:[%s8 + $0x398] sm:$0xff]
    %v6402 = vld [vmem:[%s8 + $0x3a0] sm:$0xff]
    %v6403 = vld [vmem:[%s8 + $0x3a8] sm:$0xf]
    %v6404 = vld [vmem:[%s8 + $0x3ac] sm:$0xff]
    %v6405 = vld [vmem:[%s8 + $0x3b4] sm:$0xff]
    %v6406 = vld [vmem:[%s8 + $0x3bc] sm:$0xf]
    %v6407 = vld [vmem:[%s8 + $0x3c0] sm:$0xff]
    %v6408 = vld [vmem:[%s8 + $0x3c8] sm:$0xff]
    %v6409 = vld [vmem:[%s8 + $0x3d0] sm:$0xf]
    %v6410 = vld [vmem:[%s8 + $0x3d4] sm:$0xff]
    %v6411 = vld [vmem:[%s8 + $0x3dc] sm:$0xff]
    %v6412 = vld [vmem:[%s8 + $0x3e4] sm:$0xf]
    %v6413 = vld [vmem:[%s8 + $0x3e8] sm:$0xff]
    %v6414 = vld [vmem:[%s8 + $0x3f0] sm:$0xff]
    %v6415 = vld [vmem:[%s8 + $0x3f8] sm:$0xf]
    %v6416 = vld [vmem:[%s8 + $0x3fc] sm:$0xff]
    %v6417 = vld [vmem:[%s8 + $0x404] sm:$0xff]
    %v6418 = vld [vmem:[%s8 + $0x40c] sm:$0xf]
    %v6419 = vld [vmem:[%s8 + $0x410] sm:$0xff]
    %v6420 = vld [vmem:[%s8 + $0x418] sm:$0xff]
    %v6421 = vld [vmem:[%s8 + $0x420] sm:$0xf]
    %v6422 = vld [vmem:[%s8 + $0x424] sm:$0xff]
    %v6423 = vld [vmem:[%s8 + $0x42c] sm:$0xff]
    %v6424 = vld [vmem:[%s8 + $0x434] sm:$0xf]
    %v6425 = vld [vmem:[%s8 + $0x438] sm:$0xff]
    %v6426 = vld [vmem:[%s8 + $0x440] sm:$0xff]
    %v6427 = vld [vmem:[%s8 + $0x448] sm:$0xf]
    %v6428 = vld [vmem:[%s8 + $0x44c] sm:$0xff]
    %v6429 = vld [vmem:[%s8 + $0x454] sm:$0xff]
    %v6430 = vld [vmem:[%s8 + $0x45c] sm:$0xf]
    %v6431 = vld [vmem:[%s8 + $0x460] sm:$0xff]
    %v6432 = vld [vmem:[%s8 + $0x468] sm:$0xff]
    %v6433 = vld [vmem:[%s8 + $0x470] sm:$0xf]
    %v6434 = vld [vmem:[%s8 + $0x474] sm:$0xff]
    %v6435 = vld [vmem:[%s8 + $0x47c] sm:$0xff]
    %v6436 = vld [vmem:[%s8 + $0x484] sm:$0xf]
    %v6437 = vld [vmem:[%s8 + $0x488] sm:$0xff]
    %v6438 = vld [vmem:[%s8 + $0x490] sm:$0xff]
    %v6439 = vld [vmem:[%s8 + $0x498] sm:$0xf]
    %v6440 = vld [vmem:[%s8 + $0x49c] sm:$0xff]
    %v6441 = vld [vmem:[%s8 + $0x4a4] sm:$0xff]
    %v6442 = vld [vmem:[%s8 + $0x4ac] sm:$0xf]
    %v6443 = vld [vmem:[%s8 + $0x4b0] sm:$0xff]
    %v6444 = vld [vmem:[%s8 + $0x4b8] sm:$0xff]
    %v6445 = vld [vmem:[%s8 + $0x4c0] sm:$0xf]
    %v6446 = vld [vmem:[%s8 + $0x4c4] sm:$0xff]
    %v6447 = vld [vmem:[%s8 + $0x4cc] sm:$0xff]
    %v6448 = vld [vmem:[%s8 + $0x4d4] sm:$0xf]
    %v6449 = vld [vmem:[%s8 + $0x4d8] sm:$0xff]
    %v6450 = vld [vmem:[%s8 + $0x4e0] sm:$0xff]
    %v6451 = vld [vmem:[%s8 + $0x4e8] sm:$0xf]
    %v6452 = vld [vmem:[%s8 + $0x4ec] sm:$0xff]
    %v6453 = vld [vmem:[%s8 + $0x4f4] sm:$0xff]
    %v6454 = vld [vmem:[%s8 + $0x4fc] sm:$0xf]
    %v6455 = vld [vmem:[%s8 + $0x500] sm:$0xff]
    %v6456 = vld [vmem:[%s8 + $0x508] sm:$0xff]
    %v6457 = vld [vmem:[%s8 + $0x510] sm:$0xf]
    %v6458 = vld [vmem:[%s8 + $0x514] sm:$0xff]
    %v6459 = vld [vmem:[%s8 + $0x51c] sm:$0xff]
    %v6460 = vld [vmem:[%s8 + $0x524] sm:$0xf]
    %v6461 = vld [vmem:[%s8 + $0x528] sm:$0xff]
    %v6462 = vld [vmem:[%s8 + $0x530] sm:$0xff]
    %v6463 = vld [vmem:[%s8 + $0x538] sm:$0xf]
    %v6464 = vld [vmem:[%s8 + $0x53c] sm:$0xff]
    %v6465 = vld [vmem:[%s8 + $0x544] sm:$0xff]
    %v6466 = vld [vmem:[%s8 + $0x54c] sm:$0xf]
    %v6467 = vld [vmem:[%s8 + $0x550] sm:$0xff]
    %v6468 = vld [vmem:[%s8 + $0x558] sm:$0xff]
    %v6469 = vld [vmem:[%s8 + $0x560] sm:$0xf]
    %v6470 = vld [vmem:[%s8 + $0x564] sm:$0xff]
    %v6471 = vld [vmem:[%s8 + $0x56c] sm:$0xff]
    %v6472 = vld [vmem:[%s8 + $0x574] sm:$0xf]
    %v6473 = vld [vmem:[%s8 + $0x578] sm:$0xff]
    %v6474 = vld [vmem:[%s8 + $0x580] sm:$0xff]
    %v6475 = vld [vmem:[%s8 + $0x588] sm:$0xf]
    %v6476 = vld [vmem:[%s8 + $0x58c] sm:$0xff]
    %v6477 = vld [vmem:[%s8 + $0x594] sm:$0xff]
    %v6478 = vld [vmem:[%s8 + $0x59c] sm:$0xf]
    %v6479 = vld [vmem:[%s12] ss:$8 sm:$0xf]
    %v6480 = vld [vmem:[%s12] ss:$8 sm:$0x10]
    %v6481 = vor.u32 %v6479, %v6480
    %v6482 = vpack.c.bf16 %v6139, %v6136
    %v6483 = vpack.c.bf16 %v6168, %v6165
    %v6484 = vpack.c.bf16 %v6197, %v6194
    %v6485 = vpack.c.bf16 %v6226, %v6223
    %v6486 = vpack.c.bf16 %v6255, %v6252
    %v6487 = vpack.c.bf16 %v6145, %v6142
    %v6488 = vpack.c.bf16 %v6174, %v6171
    %v6489 = vpack.c.bf16 %v6203, %v6200
    %v6490 = vpack.c.bf16 %v6232, %v6229
    %v6491 = vpack.c.bf16 %v6261, %v6258
    %v6493 = vperm.slane %v6481, 0
    %v6494 = vperm.slane %v6481, 1
    %v6495 = vperm.slane %v6481, 2
    %v6496 = vperm.slane %v6481, 3
    %v6497 = vperm.slane %v6481, 4
    %v6719 = vunpack.c.l.b16 %v6263
    %v6720 = vunpack.c.h.b16 %v6263
    %v6721 = vunpack.c.l.b16 %v6264
    %v6722 = vunpack.c.h.b16 %v6264
    %v6723 = vunpack.c.l.b16 %v6265
    %v6724 = vunpack.c.l.b16 %v6266
    %v6725 = vunpack.c.h.b16 %v6266
    %v6726 = vunpack.c.l.b16 %v6267
    %v6727 = vunpack.c.h.b16 %v6267
    %v6728 = vunpack.c.l.b16 %v6268
    %v6729 = vunpack.c.l.b16 %v6269
    %v6730 = vunpack.c.h.b16 %v6269
    %v6731 = vunpack.c.l.b16 %v6270
    %v6732 = vunpack.c.h.b16 %v6270
    %v6733 = vunpack.c.l.b16 %v6271
    %v6734 = vunpack.c.l.b16 %v6272
    %v6735 = vunpack.c.h.b16 %v6272
    %v6736 = vunpack.c.l.b16 %v6273
    %v6737 = vunpack.c.h.b16 %v6273
    %v6738 = vunpack.c.l.b16 %v6274
    %v6739 = vunpack.c.l.b16 %v6275
    %v6740 = vunpack.c.h.b16 %v6275
    %v6741 = vunpack.c.l.b16 %v6276
    %v6742 = vunpack.c.h.b16 %v6276
    %v6743 = vunpack.c.l.b16 %v6277
    %v6744 = vunpack.c.l.b16 %v6278
    %v6745 = vunpack.c.h.b16 %v6278
    %v6746 = vunpack.c.l.b16 %v6279
    %v6747 = vunpack.c.h.b16 %v6279
    %v6748 = vunpack.c.l.b16 %v6280
    %v6749 = vunpack.c.l.b16 %v6281
    %v6750 = vunpack.c.h.b16 %v6281
    %v6751 = vunpack.c.l.b16 %v6282
    %v6752 = vunpack.c.h.b16 %v6282
    %v6753 = vunpack.c.l.b16 %v6283
    %v6754 = vunpack.c.l.b16 %v6284
    %v6755 = vunpack.c.h.b16 %v6284
    %v6756 = vunpack.c.l.b16 %v6285
    %v6757 = vunpack.c.h.b16 %v6285
    %v6758 = vunpack.c.l.b16 %v6286
    %v6759 = vunpack.c.l.b16 %v6287
    %v6760 = vunpack.c.h.b16 %v6287
    %v6761 = vunpack.c.l.b16 %v6288
    %v6762 = vunpack.c.h.b16 %v6288
    %v6763 = vunpack.c.l.b16 %v6289
    %v6764 = vunpack.c.l.b16 %v6290
    %v6765 = vunpack.c.h.b16 %v6290
    %v6766 = vunpack.c.l.b16 %v6291
    %v6767 = vunpack.c.h.b16 %v6291
    %v6768 = vunpack.c.l.b16 %v6292
    %v6769 = vunpack.c.l.b16 %v6293
    %v6770 = vunpack.c.h.b16 %v6293
    %v6771 = vunpack.c.l.b16 %v6294
    %v6772 = vunpack.c.h.b16 %v6294
    %v6773 = vunpack.c.l.b16 %v6295
    %v6774 = vunpack.c.l.b16 %v6296
    %v6775 = vunpack.c.h.b16 %v6296
    %v6776 = vunpack.c.l.b16 %v6297
    %v6777 = vunpack.c.h.b16 %v6297
    %v6778 = vunpack.c.l.b16 %v6298
    %v6779 = vunpack.c.l.b16 %v6299
    %v6780 = vunpack.c.h.b16 %v6299
    %v6781 = vunpack.c.l.b16 %v6300
    %v6782 = vunpack.c.h.b16 %v6300
    %v6783 = vunpack.c.l.b16 %v6301
    %v6784 = vunpack.c.l.b16 %v6302
    %v6785 = vunpack.c.h.b16 %v6302
    %v6786 = vunpack.c.l.b16 %v6303
    %v6787 = vunpack.c.h.b16 %v6303
    %v6788 = vunpack.c.l.b16 %v6304
    %v6789 = vunpack.c.l.b16 %v6305
    %v6790 = vunpack.c.h.b16 %v6305
    %v6791 = vunpack.c.l.b16 %v6306
    %v6792 = vunpack.c.h.b16 %v6306
    %v6793 = vunpack.c.l.b16 %v6307
    %v6794 = vunpack.c.l.b16 %v6308
    %v6795 = vunpack.c.h.b16 %v6308
    %v6796 = vunpack.c.l.b16 %v6309
    %v6797 = vunpack.c.h.b16 %v6309
    %v6798 = vunpack.c.l.b16 %v6310
    %v6799 = vunpack.c.l.b16 %v6311
    %v6800 = vunpack.c.h.b16 %v6311
    %v6801 = vunpack.c.l.b16 %v6312
    %v6802 = vunpack.c.h.b16 %v6312
    %v6803 = vunpack.c.l.b16 %v6313
    %v6804 = vunpack.c.l.b16 %v6314
    %v6805 = vunpack.c.h.b16 %v6314
    %v6806 = vunpack.c.l.b16 %v6315
    %v6807 = vunpack.c.h.b16 %v6315
    %v6808 = vunpack.c.l.b16 %v6316
    %v6809 = vunpack.c.l.b16 %v6317
    %v6810 = vunpack.c.h.b16 %v6317
    %v6811 = vunpack.c.l.b16 %v6318
    %v6812 = vunpack.c.h.b16 %v6318
    %v6813 = vunpack.c.l.b16 %v6319
    %v6814 = vunpack.c.l.b16 %v6320
    %v6815 = vunpack.c.h.b16 %v6320
    %v6816 = vunpack.c.l.b16 %v6321
    %v6817 = vunpack.c.h.b16 %v6321
    %v6818 = vunpack.c.l.b16 %v6322
    %v6819 = vunpack.c.l.b16 %v6323
    %v6820 = vunpack.c.h.b16 %v6323
    %v6821 = vunpack.c.l.b16 %v6324
    %v6822 = vunpack.c.h.b16 %v6324
    %v6823 = vunpack.c.l.b16 %v6325
    %v6824 = vunpack.c.l.b16 %v6326
    %v6825 = vunpack.c.h.b16 %v6326
    %v6826 = vunpack.c.l.b16 %v6327
    %v6827 = vunpack.c.h.b16 %v6327
    %v6828 = vunpack.c.l.b16 %v6328
    %v6829 = vunpack.c.l.b16 %v6329
    %v6830 = vunpack.c.h.b16 %v6329
    %v6831 = vunpack.c.l.b16 %v6330
    %v6832 = vunpack.c.h.b16 %v6330
    %v6833 = vunpack.c.l.b16 %v6331
    %v6834 = vunpack.c.l.b16 %v6332
    %v6835 = vunpack.c.h.b16 %v6332
    %v6836 = vunpack.c.l.b16 %v6333
    %v6837 = vunpack.c.h.b16 %v6333
    %v6838 = vunpack.c.l.b16 %v6334
    %v6839 = vunpack.c.l.b16 %v6335
    %v6840 = vunpack.c.h.b16 %v6335
    %v6841 = vunpack.c.l.b16 %v6336
    %v6842 = vunpack.c.h.b16 %v6336
    %v6843 = vunpack.c.l.b16 %v6337
    %v6844 = vunpack.c.l.b16 %v6338
    %v6845 = vunpack.c.h.b16 %v6338
    %v6846 = vunpack.c.l.b16 %v6339
    %v6847 = vunpack.c.h.b16 %v6339
    %v6848 = vunpack.c.l.b16 %v6340
    %v6849 = vunpack.c.l.b16 %v6341
    %v6850 = vunpack.c.h.b16 %v6341
    %v6851 = vunpack.c.l.b16 %v6342
    %v6852 = vunpack.c.h.b16 %v6342
    %v6853 = vunpack.c.l.b16 %v6343
    %v6854 = vunpack.c.l.b16 %v6344
    %v6855 = vunpack.c.h.b16 %v6344
    %v6856 = vunpack.c.l.b16 %v6345
    %v6857 = vunpack.c.h.b16 %v6345
    %v6858 = vunpack.c.l.b16 %v6346
    %v6859 = vunpack.c.l.b16 %v6347
    %v6860 = vunpack.c.h.b16 %v6347
    %v6861 = vunpack.c.l.b16 %v6348
    %v6862 = vunpack.c.h.b16 %v6348
    %v6863 = vunpack.c.l.b16 %v6349
    %v6864 = vunpack.c.l.b16 %v6350
    %v6865 = vunpack.c.h.b16 %v6350
    %v6866 = vunpack.c.l.b16 %v6351
    %v6867 = vunpack.c.h.b16 %v6351
    %v6868 = vunpack.c.l.b16 %v6352
    %v6869 = vunpack.c.l.b16 %v6353
    %v6870 = vunpack.c.h.b16 %v6353
    %v6871 = vunpack.c.l.b16 %v6354
    %v6872 = vunpack.c.h.b16 %v6354
    %v6873 = vunpack.c.l.b16 %v6355
    %v6874 = vunpack.c.l.b16 %v6356
    %v6875 = vunpack.c.h.b16 %v6356
    %v6876 = vunpack.c.l.b16 %v6357
    %v6877 = vunpack.c.h.b16 %v6357
    %v6878 = vunpack.c.l.b16 %v6358
    %v6879 = vunpack.c.l.b16 %v6359
    %v6880 = vunpack.c.h.b16 %v6359
    %v6881 = vunpack.c.l.b16 %v6360
    %v6882 = vunpack.c.h.b16 %v6360
    %v6883 = vunpack.c.l.b16 %v6361
    %v6884 = vunpack.c.l.b16 %v6362
    %v6885 = vunpack.c.h.b16 %v6362
    %v6886 = vunpack.c.l.b16 %v6363
    %v6887 = vunpack.c.h.b16 %v6363
    %v6888 = vunpack.c.l.b16 %v6364
    %v6889 = vunpack.c.l.b16 %v6365
    %v6890 = vunpack.c.h.b16 %v6365
    %v6891 = vunpack.c.l.b16 %v6366
    %v6892 = vunpack.c.h.b16 %v6366
    %v6893 = vunpack.c.l.b16 %v6367
    %v6894 = vunpack.c.l.b16 %v6368
    %v6895 = vunpack.c.h.b16 %v6368
    %v6896 = vunpack.c.l.b16 %v6369
    %v6897 = vunpack.c.h.b16 %v6369
    %v6898 = vunpack.c.l.b16 %v6370
    %v6899 = vunpack.c.l.b16 %v6371
    %v6900 = vunpack.c.h.b16 %v6371
    %v6901 = vunpack.c.l.b16 %v6372
    %v6902 = vunpack.c.h.b16 %v6372
    %v6903 = vunpack.c.l.b16 %v6373
    %v6904 = vunpack.c.l.b16 %v6374
    %v6905 = vunpack.c.h.b16 %v6374
    %v6906 = vunpack.c.l.b16 %v6375
    %v6907 = vunpack.c.h.b16 %v6375
    %v6908 = vunpack.c.l.b16 %v6376
    %v6909 = vunpack.c.l.b16 %v6377
    %v6910 = vunpack.c.h.b16 %v6377
    %v6911 = vunpack.c.l.b16 %v6378
    %v6912 = vunpack.c.h.b16 %v6378
    %v6913 = vunpack.c.l.b16 %v6379
    %v6914 = vunpack.c.l.b16 %v6380
    %v6915 = vunpack.c.h.b16 %v6380
    %v6916 = vunpack.c.l.b16 %v6381
    %v6917 = vunpack.c.h.b16 %v6381
    %v6918 = vunpack.c.l.b16 %v6382
    %v6919 = vunpack.c.l.b16 %v6383
    %v6920 = vunpack.c.h.b16 %v6383
    %v6921 = vunpack.c.l.b16 %v6384
    %v6922 = vunpack.c.h.b16 %v6384
    %v6923 = vunpack.c.l.b16 %v6385
    %v6924 = vunpack.c.l.b16 %v6386
    %v6925 = vunpack.c.h.b16 %v6386
    %v6926 = vunpack.c.l.b16 %v6387
    %v6927 = vunpack.c.h.b16 %v6387
    %v6928 = vunpack.c.l.b16 %v6388
    %v6929 = vunpack.c.l.b16 %v6389
    %v6930 = vunpack.c.h.b16 %v6389
    %v6931 = vunpack.c.l.b16 %v6390
    %v6932 = vunpack.c.h.b16 %v6390
    %v6933 = vunpack.c.l.b16 %v6391
    %v6934 = vunpack.c.l.b16 %v6392
    %v6935 = vunpack.c.h.b16 %v6392
    %v6936 = vunpack.c.l.b16 %v6393
    %v6937 = vunpack.c.h.b16 %v6393
    %v6938 = vunpack.c.l.b16 %v6394
    %v6939 = vunpack.c.l.b16 %v6395
    %v6940 = vunpack.c.h.b16 %v6395
    %v6941 = vunpack.c.l.b16 %v6396
    %v6942 = vunpack.c.h.b16 %v6396
    %v6943 = vunpack.c.l.b16 %v6397
    %v6944 = vunpack.c.l.b16 %v6398
    %v6945 = vunpack.c.h.b16 %v6398
    %v6946 = vunpack.c.l.b16 %v6399
    %v6947 = vunpack.c.h.b16 %v6399
    %v6948 = vunpack.c.l.b16 %v6400
    %v6949 = vunpack.c.l.b16 %v6401
    %v6950 = vunpack.c.h.b16 %v6401
    %v6951 = vunpack.c.l.b16 %v6402
    %v6952 = vunpack.c.h.b16 %v6402
    %v6953 = vunpack.c.l.b16 %v6403
    %v6954 = vunpack.c.l.b16 %v6404
    %v6955 = vunpack.c.h.b16 %v6404
    %v6956 = vunpack.c.l.b16 %v6405
    %v6957 = vunpack.c.h.b16 %v6405
    %v6958 = vunpack.c.l.b16 %v6406
    %v6959 = vunpack.c.l.b16 %v6407
    %v6960 = vunpack.c.h.b16 %v6407
    %v6961 = vunpack.c.l.b16 %v6408
    %v6962 = vunpack.c.h.b16 %v6408
    %v6963 = vunpack.c.l.b16 %v6409
    %v6964 = vunpack.c.l.b16 %v6410
    %v6965 = vunpack.c.h.b16 %v6410
    %v6966 = vunpack.c.l.b16 %v6411
    %v6967 = vunpack.c.h.b16 %v6411
    %v6968 = vunpack.c.l.b16 %v6412
    %v6969 = vunpack.c.l.b16 %v6413
    %v6970 = vunpack.c.h.b16 %v6413
    %v6971 = vunpack.c.l.b16 %v6414
    %v6972 = vunpack.c.h.b16 %v6414
    %v6973 = vunpack.c.l.b16 %v6415
    %v6974 = vunpack.c.l.b16 %v6416
    %v6975 = vunpack.c.h.b16 %v6416
    %v6976 = vunpack.c.l.b16 %v6417
    %v6977 = vunpack.c.h.b16 %v6417
    %v6978 = vunpack.c.l.b16 %v6418
    %v6979 = vunpack.c.l.b16 %v6419
    %v6980 = vunpack.c.h.b16 %v6419
    %v6981 = vunpack.c.l.b16 %v6420
    %v6982 = vunpack.c.h.b16 %v6420
    %v6983 = vunpack.c.l.b16 %v6421
    %v6984 = vunpack.c.l.b16 %v6422
    %v6985 = vunpack.c.h.b16 %v6422
    %v6986 = vunpack.c.l.b16 %v6423
    %v6987 = vunpack.c.h.b16 %v6423
    %v6988 = vunpack.c.l.b16 %v6424
    %v6989 = vunpack.c.l.b16 %v6425
    %v6990 = vunpack.c.h.b16 %v6425
    %v6991 = vunpack.c.l.b16 %v6426
    %v6992 = vunpack.c.h.b16 %v6426
    %v6993 = vunpack.c.l.b16 %v6427
    %v6994 = vunpack.c.l.b16 %v6428
    %v6995 = vunpack.c.h.b16 %v6428
    %v6996 = vunpack.c.l.b16 %v6429
    %v6997 = vunpack.c.h.b16 %v6429
    %v6998 = vunpack.c.l.b16 %v6430
    %v6999 = vunpack.c.l.b16 %v6431
    %v7000 = vunpack.c.h.b16 %v6431
    %v7001 = vunpack.c.l.b16 %v6432
    %v7002 = vunpack.c.h.b16 %v6432
    %v7003 = vunpack.c.l.b16 %v6433
    %v7004 = vunpack.c.l.b16 %v6434
    %v7005 = vunpack.c.h.b16 %v6434
    %v7006 = vunpack.c.l.b16 %v6435
    %v7007 = vunpack.c.h.b16 %v6435
    %v7008 = vunpack.c.l.b16 %v6436
    %v7009 = vunpack.c.l.b16 %v6437
    %v7010 = vunpack.c.h.b16 %v6437
    %v7011 = vunpack.c.l.b16 %v6438
    %v7012 = vunpack.c.h.b16 %v6438
    %v7013 = vunpack.c.l.b16 %v6439
    %v7014 = vunpack.c.l.b16 %v6440
    %v7015 = vunpack.c.h.b16 %v6440
    %v7016 = vunpack.c.l.b16 %v6441
    %v7017 = vunpack.c.h.b16 %v6441
    %v7018 = vunpack.c.l.b16 %v6442
    %v7019 = vunpack.c.l.b16 %v6443
    %v7020 = vunpack.c.h.b16 %v6443
    %v7021 = vunpack.c.l.b16 %v6444
    %v7022 = vunpack.c.h.b16 %v6444
    %v7023 = vunpack.c.l.b16 %v6445
    %v7024 = vunpack.c.l.b16 %v6446
    %v7025 = vunpack.c.h.b16 %v6446
    %v7026 = vunpack.c.l.b16 %v6447
    %v7027 = vunpack.c.h.b16 %v6447
    %v7028 = vunpack.c.l.b16 %v6448
    %v7029 = vunpack.c.l.b16 %v6449
    %v7030 = vunpack.c.h.b16 %v6449
    %v7031 = vunpack.c.l.b16 %v6450
    %v7032 = vunpack.c.h.b16 %v6450
    %v7033 = vunpack.c.l.b16 %v6451
    %v7034 = vunpack.c.l.b16 %v6452
    %v7035 = vunpack.c.h.b16 %v6452
    %v7036 = vunpack.c.l.b16 %v6453
    %v7037 = vunpack.c.h.b16 %v6453
    %v7038 = vunpack.c.l.b16 %v6454
    %v7039 = vunpack.c.l.b16 %v6455
    %v7040 = vunpack.c.h.b16 %v6455
    %v7041 = vunpack.c.l.b16 %v6456
    %v7042 = vunpack.c.h.b16 %v6456
    %v7043 = vunpack.c.l.b16 %v6457
    %v7044 = vunpack.c.l.b16 %v6458
    %v7045 = vunpack.c.h.b16 %v6458
    %v7046 = vunpack.c.l.b16 %v6459
    %v7047 = vunpack.c.h.b16 %v6459
    %v7048 = vunpack.c.l.b16 %v6460
    %v7049 = vunpack.c.l.b16 %v6461
    %v7050 = vunpack.c.h.b16 %v6461
    %v7051 = vunpack.c.l.b16 %v6462
    %v7052 = vunpack.c.h.b16 %v6462
    %v7053 = vunpack.c.l.b16 %v6463
    %v7054 = vunpack.c.l.b16 %v6464
    %v7055 = vunpack.c.h.b16 %v6464
    %v7056 = vunpack.c.l.b16 %v6465
    %v7057 = vunpack.c.h.b16 %v6465
    %v7058 = vunpack.c.l.b16 %v6466
    %v7059 = vunpack.c.l.b16 %v6467
    %v7060 = vunpack.c.h.b16 %v6467
    %v7061 = vunpack.c.l.b16 %v6468
    %v7062 = vunpack.c.h.b16 %v6468
    %v7063 = vunpack.c.l.b16 %v6469
    %v7064 = vunpack.c.l.b16 %v6470
    %v7065 = vunpack.c.h.b16 %v6470
    %v7066 = vunpack.c.l.b16 %v6471
    %v7067 = vunpack.c.h.b16 %v6471
    %v7068 = vunpack.c.l.b16 %v6472
    %v7069 = vunpack.c.l.b16 %v6473
    %v7070 = vunpack.c.h.b16 %v6473
    %v7071 = vunpack.c.l.b16 %v6474
    %v7072 = vunpack.c.h.b16 %v6474
    %v7073 = vunpack.c.l.b16 %v6475
    %v7074 = vunpack.c.l.b16 %v6476
    %v7075 = vunpack.c.h.b16 %v6476
    %v7076 = vunpack.c.l.b16 %v6477
    %v7077 = vunpack.c.h.b16 %v6477
    %v7078 = vunpack.c.l.b16 %v6478
    %v7079 = vpack.c.b16 %v6724, %v6719
    %v7080 = vpack.c.b16 %v6725, %v6720
    %v7081 = vpack.c.b16 %v6726, %v6721
    %v7082 = vpack.c.b16 %v6727, %v6722
    %v7083 = vpack.c.b16 %v6728, %v6723
    %v7084 = vpack.c.b16 %v6734, %v6729
    %v7085 = vpack.c.b16 %v6735, %v6730
    %v7086 = vpack.c.b16 %v6736, %v6731
    %v7087 = vpack.c.b16 %v6737, %v6732
    %v7088 = vpack.c.b16 %v6738, %v6733
    %v7089 = vpack.c.b16 %v6744, %v6739
    %v7090 = vpack.c.b16 %v6745, %v6740
    %v7091 = vpack.c.b16 %v6746, %v6741
    %v7092 = vpack.c.b16 %v6747, %v6742
    %v7093 = vpack.c.b16 %v6748, %v6743
    %v7094 = vpack.c.b16 %v6754, %v6749
    %v7095 = vpack.c.b16 %v6755, %v6750
    %v7096 = vpack.c.b16 %v6756, %v6751
    %v7097 = vpack.c.b16 %v6757, %v6752
    %v7098 = vpack.c.b16 %v6758, %v6753
    %v7099 = vpack.c.b16 %v6764, %v6759
    %v7100 = vpack.c.b16 %v6765, %v6760
    %v7101 = vpack.c.b16 %v6766, %v6761
    %v7102 = vpack.c.b16 %v6767, %v6762
    %v7103 = vpack.c.b16 %v6768, %v6763
    %v7104 = vpack.c.b16 %v6774, %v6769
    %v7105 = vpack.c.b16 %v6775, %v6770
    %v7106 = vpack.c.b16 %v6776, %v6771
    %v7107 = vpack.c.b16 %v6777, %v6772
    %v7108 = vpack.c.b16 %v6778, %v6773
    %v7109 = vpack.c.b16 %v6784, %v6779
    %v7110 = vpack.c.b16 %v6785, %v6780
    %v7111 = vpack.c.b16 %v6786, %v6781
    %v7112 = vpack.c.b16 %v6787, %v6782
    %v7113 = vpack.c.b16 %v6788, %v6783
    %v7114 = vpack.c.b16 %v6794, %v6789
    %v7115 = vpack.c.b16 %v6795, %v6790
    %v7116 = vpack.c.b16 %v6796, %v6791
    %v7117 = vpack.c.b16 %v6797, %v6792
    %v7118 = vpack.c.b16 %v6798, %v6793
    %v7119 = vpack.c.b16 %v6804, %v6799
    %v7120 = vpack.c.b16 %v6805, %v6800
    %v7121 = vpack.c.b16 %v6806, %v6801
    %v7122 = vpack.c.b16 %v6807, %v6802
    %v7123 = vpack.c.b16 %v6808, %v6803
    %v7124 = vpack.c.b16 %v6814, %v6809
    %v7125 = vpack.c.b16 %v6815, %v6810
    %v7126 = vpack.c.b16 %v6816, %v6811
    %v7127 = vpack.c.b16 %v6817, %v6812
    %v7128 = vpack.c.b16 %v6818, %v6813
    %v7129 = vpack.c.b16 %v6824, %v6819
    %v7130 = vpack.c.b16 %v6825, %v6820
    %v7131 = vpack.c.b16 %v6826, %v6821
    %v7132 = vpack.c.b16 %v6827, %v6822
    %v7133 = vpack.c.b16 %v6828, %v6823
    %v7134 = vpack.c.b16 %v6834, %v6829
    %v7135 = vpack.c.b16 %v6835, %v6830
    %v7136 = vpack.c.b16 %v6836, %v6831
    %v7137 = vpack.c.b16 %v6837, %v6832
    %v7138 = vpack.c.b16 %v6838, %v6833
    %v7139 = vpack.c.b16 %v6844, %v6839
    %v7140 = vpack.c.b16 %v6845, %v6840
    %v7141 = vpack.c.b16 %v6846, %v6841
    %v7142 = vpack.c.b16 %v6847, %v6842
    %v7143 = vpack.c.b16 %v6848, %v6843
    %v7144 = vpack.c.b16 %v6854, %v6849
    %v7145 = vpack.c.b16 %v6855, %v6850
    %v7146 = vpack.c.b16 %v6856, %v6851
    %v7147 = vpack.c.b16 %v6857, %v6852
    %v7148 = vpack.c.b16 %v6858, %v6853
    %v7149 = vpack.c.b16 %v6864, %v6859
    %v7150 = vpack.c.b16 %v6865, %v6860
    %v7151 = vpack.c.b16 %v6866, %v6861
    %v7152 = vpack.c.b16 %v6867, %v6862
    %v7153 = vpack.c.b16 %v6868, %v6863
    %v7154 = vpack.c.b16 %v6874, %v6869
    %v7155 = vpack.c.b16 %v6875, %v6870
    %v7156 = vpack.c.b16 %v6876, %v6871
    %v7157 = vpack.c.b16 %v6877, %v6872
    %v7158 = vpack.c.b16 %v6878, %v6873
    %v7159 = vpack.c.b16 %v6884, %v6879
    %v7160 = vpack.c.b16 %v6885, %v6880
    %v7161 = vpack.c.b16 %v6886, %v6881
    %v7162 = vpack.c.b16 %v6887, %v6882
    %v7163 = vpack.c.b16 %v6888, %v6883
    %v7164 = vpack.c.b16 %v6894, %v6889
    %v7165 = vpack.c.b16 %v6895, %v6890
    %v7166 = vpack.c.b16 %v6896, %v6891
    %v7167 = vpack.c.b16 %v6897, %v6892
    %v7168 = vpack.c.b16 %v6898, %v6893
    %v7169 = vpack.c.b16 %v6904, %v6899
    %v7170 = vpack.c.b16 %v6905, %v6900
    %v7171 = vpack.c.b16 %v6906, %v6901
    %v7172 = vpack.c.b16 %v6907, %v6902
    %v7173 = vpack.c.b16 %v6908, %v6903
    %v7174 = vpack.c.b16 %v6914, %v6909
    %v7175 = vpack.c.b16 %v6915, %v6910
    %v7176 = vpack.c.b16 %v6916, %v6911
    %v7177 = vpack.c.b16 %v6917, %v6912
    %v7178 = vpack.c.b16 %v6918, %v6913
    %v7179 = vpack.c.b16 %v6924, %v6919
    %v7180 = vpack.c.b16 %v6925, %v6920
    %v7181 = vpack.c.b16 %v6926, %v6921
    %v7182 = vpack.c.b16 %v6927, %v6922
    %v7183 = vpack.c.b16 %v6928, %v6923
    %v7184 = vpack.c.b16 %v6934, %v6929
    %v7185 = vpack.c.b16 %v6935, %v6930
    %v7186 = vpack.c.b16 %v6936, %v6931
    %v7187 = vpack.c.b16 %v6937, %v6932
    %v7188 = vpack.c.b16 %v6938, %v6933
    %v7189 = vpack.c.b16 %v6944, %v6939
    %v7190 = vpack.c.b16 %v6945, %v6940
    %v7191 = vpack.c.b16 %v6946, %v6941
    %v7192 = vpack.c.b16 %v6947, %v6942
    %v7193 = vpack.c.b16 %v6948, %v6943
    %v7194 = vpack.c.b16 %v6954, %v6949
    %v7195 = vpack.c.b16 %v6955, %v6950
    %v7196 = vpack.c.b16 %v6956, %v6951
    %v7197 = vpack.c.b16 %v6957, %v6952
    %v7198 = vpack.c.b16 %v6958, %v6953
    %v7199 = vpack.c.b16 %v6964, %v6959
    %v7200 = vpack.c.b16 %v6965, %v6960
    %v7201 = vpack.c.b16 %v6966, %v6961
    %v7202 = vpack.c.b16 %v6967, %v6962
    %v7203 = vpack.c.b16 %v6968, %v6963
    %v7204 = vpack.c.b16 %v6974, %v6969
    %v7205 = vpack.c.b16 %v6975, %v6970
    %v7206 = vpack.c.b16 %v6976, %v6971
    %v7207 = vpack.c.b16 %v6977, %v6972
    %v7208 = vpack.c.b16 %v6978, %v6973
    %v7209 = vpack.c.b16 %v6984, %v6979
    %v7210 = vpack.c.b16 %v6985, %v6980
    %v7211 = vpack.c.b16 %v6986, %v6981
    %v7212 = vpack.c.b16 %v6987, %v6982
    %v7213 = vpack.c.b16 %v6988, %v6983
    %v7214 = vpack.c.b16 %v6994, %v6989
    %v7215 = vpack.c.b16 %v6995, %v6990
    %v7216 = vpack.c.b16 %v6996, %v6991
    %v7217 = vpack.c.b16 %v6997, %v6992
    %v7218 = vpack.c.b16 %v6998, %v6993
    %v7219 = vpack.c.b16 %v7004, %v6999
    %v7220 = vpack.c.b16 %v7005, %v7000
    %v7221 = vpack.c.b16 %v7006, %v7001
    %v7222 = vpack.c.b16 %v7007, %v7002
    %v7223 = vpack.c.b16 %v7008, %v7003
    %v7224 = vpack.c.b16 %v7014, %v7009
    %v7225 = vpack.c.b16 %v7015, %v7010
    %v7226 = vpack.c.b16 %v7016, %v7011
    %v7227 = vpack.c.b16 %v7017, %v7012
    %v7228 = vpack.c.b16 %v7018, %v7013
    %v7229 = vpack.c.b16 %v7024, %v7019
    %v7230 = vpack.c.b16 %v7025, %v7020
    %v7231 = vpack.c.b16 %v7026, %v7021
    %v7232 = vpack.c.b16 %v7027, %v7022
    %v7233 = vpack.c.b16 %v7028, %v7023
    %v7234 = vpack.c.b16 %v7034, %v7029
    %v7235 = vpack.c.b16 %v7035, %v7030
    %v7236 = vpack.c.b16 %v7036, %v7031
    %v7237 = vpack.c.b16 %v7037, %v7032
    %v7238 = vpack.c.b16 %v7038, %v7033
    %v7239 = vpack.c.b16 %v7044, %v7039
    %v7240 = vpack.c.b16 %v7045, %v7040
    %v7241 = vpack.c.b16 %v7046, %v7041
    %v7242 = vpack.c.b16 %v7047, %v7042
    %v7243 = vpack.c.b16 %v7048, %v7043
    %v7244 = vpack.c.b16 %v7054, %v7049
    %v7245 = vpack.c.b16 %v7055, %v7050
    %v7246 = vpack.c.b16 %v7056, %v7051
    %v7247 = vpack.c.b16 %v7057, %v7052
    %v7248 = vpack.c.b16 %v7058, %v7053
    %v7249 = vpack.c.b16 %v7064, %v7059
    %v7250 = vpack.c.b16 %v7065, %v7060
    %v7251 = vpack.c.b16 %v7066, %v7061
    %v7252 = vpack.c.b16 %v7067, %v7062
    %v7253 = vpack.c.b16 %v7068, %v7063
    %v7254 = vpack.c.b16 %v7074, %v7069
    %v7255 = vpack.c.b16 %v7075, %v7070
    %v7256 = vpack.c.b16 %v7076, %v7071
    %v7257 = vpack.c.b16 %v7077, %v7072
    %v7258 = vpack.c.b16 %v7078, %v7073
    %v7440 = vsel %vm1400, %v6486, 0
    %v7443 = vsel %vm1400, %v6491, 0
    %7445 = vmatpush.bf16.msra.mxu0 %v7114
    %7446 = vmatpush.bf16.msra.mxu0 %v7109
    %7447 = vmatpush.bf16.msra.mxu0 %v7104
    %7448 = vmatpush.bf16.msra.mxu0 %v7099
    %7449 = vmatpush.bf16.msra.mxu0 %v7094
    %7450 = vmatpush.bf16.msra.mxu0 %v7089
    %7451 = vmatpush.bf16.msra.mxu0 %v7084
    %7452 = vmatpush.bf16.msra.mxu0 %v7079
    %7453 = vmatmul.bf16.gmra.mxu0 %v6482
    %v7454 = vpop.f32.mrf.mxu0
    %v7455 = vadd.f32 %v6493, %v7454
    %v7456 = vpop.f32.mrf.mxu0
    %v7457 = vadd.f32 %v6493, %v7456
    %7458 = vmatmul.bf16.gmra.mxu0 %v6487
    %v7459 = vpop.f32.mrf.mxu0
    %v7460 = vadd.f32 %v6493, %v7459
    %v7461 = vpop.f32.mrf.mxu0
    %v7462 = vadd.f32 %v6493, %v7461
    %7463 = vdwg.mxu0
    %7464 = vmatpush.bf16.msra.mxu0 %v7154
    %7465 = vmatpush.bf16.msra.mxu0 %v7149
    %7466 = vmatpush.bf16.msra.mxu0 %v7144
    %7467 = vmatpush.bf16.msra.mxu0 %v7139
    %7468 = vmatpush.bf16.msra.mxu0 %v7134
    %7469 = vmatpush.bf16.msra.mxu0 %v7129
    %7470 = vmatpush.bf16.msra.mxu0 %v7124
    %7471 = vmatpush.bf16.msra.mxu0 %v7119
    %7472 = vmatmul.bf16.gmra.mxu0 %v6483
    %v7473 = vpop.f32.mrf.mxu0
    %v7474 = vadd.f32 %v7455, %v7473
    %v7475 = vpop.f32.mrf.mxu0
    %v7476 = vadd.f32 %v7457, %v7475
    %7477 = vmatmul.bf16.gmra.mxu0 %v6488
    %v7478 = vpop.f32.mrf.mxu0
    %v7479 = vadd.f32 %v7460, %v7478
    %v7480 = vpop.f32.mrf.mxu0
    %v7481 = vadd.f32 %v7462, %v7480
    %7482 = vdwg.mxu0
    %7483 = vmatpush.bf16.msra.mxu0 %v7194
    %7484 = vmatpush.bf16.msra.mxu0 %v7189
    %7485 = vmatpush.bf16.msra.mxu0 %v7184
    %7486 = vmatpush.bf16.msra.mxu0 %v7179
    %7487 = vmatpush.bf16.msra.mxu0 %v7174
    %7488 = vmatpush.bf16.msra.mxu0 %v7169
    %7489 = vmatpush.bf16.msra.mxu0 %v7164
    %7490 = vmatpush.bf16.msra.mxu0 %v7159
    %7491 = vmatmul.bf16.gmra.mxu0 %v6484
    %v7492 = vpop.f32.mrf.mxu0
    %v7493 = vadd.f32 %v7474, %v7492
    %v7494 = vpop.f32.mrf.mxu0
    %v7495 = vadd.f32 %v7476, %v7494
    %7496 = vmatmul.bf16.gmra.mxu0 %v6489
    %v7497 = vpop.f32.mrf.mxu0
    %v7498 = vadd.f32 %v7479, %v7497
    %v7499 = vpop.f32.mrf.mxu0
    %v7500 = vadd.f32 %v7481, %v7499
    %7501 = vdwg.mxu0
    %7502 = vmatpush.bf16.msra.mxu0 %v7234
    %7503 = vmatpush.bf16.msra.mxu0 %v7229
    %7504 = vmatpush.bf16.msra.mxu0 %v7224
    %7505 = vmatpush.bf16.msra.mxu0 %v7219
    %7506 = vmatpush.bf16.msra.mxu0 %v7214
    %7507 = vmatpush.bf16.msra.mxu0 %v7209
    %7508 = vmatpush.bf16.msra.mxu0 %v7204
    %7509 = vmatpush.bf16.msra.mxu0 %v7199
    %7510 = vmatmul.bf16.gmra.mxu0 %v6485
    %v7511 = vpop.f32.mrf.mxu0
    %v7512 = vadd.f32 %v7493, %v7511
    %v7513 = vpop.f32.mrf.mxu0
    %v7514 = vadd.f32 %v7495, %v7513
    %7515 = vmatmul.bf16.gmra.mxu0 %v6490
    %v7516 = vpop.f32.mrf.mxu0
    %v7517 = vadd.f32 %v7498, %v7516
    %v7518 = vpop.f32.mrf.mxu0
    %v7519 = vadd.f32 %v7500, %v7518
    %7520 = vdwg.mxu0
    %7521 = vmatpush.bf16.msra.mxu0 0
    %7522 = vmatpush.bf16.msra.mxu0 0
    %7523 = vmatpush.bf16.msra.mxu0 0
    %7524 = vmatpush.bf16.msra.mxu0 0
    %7525 = vmatpush.bf16.msra.mxu0 %v7254
    %7526 = vmatpush.bf16.msra.mxu0 %v7249
    %7527 = vmatpush.bf16.msra.mxu0 %v7244
    %7528 = vmatpush.bf16.msra.mxu0 %v7239
    %7529 = vmatmul.bf16.gmra.mxu0 %v7440
    %v7530 = vpop.f32.mrf.mxu0
    %v7531 = vadd.f32 %v7512, %v7530
    %v7532 = vpop.f32.mrf.mxu0
    %v7533 = vadd.f32 %v7514, %v7532
    %7534 = vmatmul.bf16.gmra.mxu0 %v7443
    %v7535 = vpop.f32.mrf.mxu0
    %v7536 = vadd.f32 %v7517, %v7535
    %v7537 = vpop.f32.mrf.mxu0
    %v7538 = vadd.f32 %v7519, %v7537
    %7539 = vdwg.mxu0
    %7540 = vmatpush.bf16.msra.mxu0 %v7115
    %7541 = vmatpush.bf16.msra.mxu0 %v7110
    %7542 = vmatpush.bf16.msra.mxu0 %v7105
    %7543 = vmatpush.bf16.msra.mxu0 %v7100
    %7544 = vmatpush.bf16.msra.mxu0 %v7095
    %7545 = vmatpush.bf16.msra.mxu0 %v7090
    %7546 = vmatpush.bf16.msra.mxu0 %v7085
    %7547 = vmatpush.bf16.msra.mxu0 %v7080
    %7548 = vmatmul.bf16.gmra.mxu0 %v6482
    %v7549 = vpop.f32.mrf.mxu0
    %v7550 = vadd.f32 %v6494, %v7549
    %v7551 = vpop.f32.mrf.mxu0
    %v7552 = vadd.f32 %v6494, %v7551
    %7553 = vmatmul.bf16.gmra.mxu0 %v6487
    %v7554 = vpop.f32.mrf.mxu0
    %v7555 = vadd.f32 %v6494, %v7554
    %v7556 = vpop.f32.mrf.mxu0
    %v7557 = vadd.f32 %v6494, %v7556
    %7558 = vdwg.mxu0
    %7559 = vmatpush.bf16.msra.mxu0 %v7155
    %7560 = vmatpush.bf16.msra.mxu0 %v7150
    %7561 = vmatpush.bf16.msra.mxu0 %v7145
    %7562 = vmatpush.bf16.msra.mxu0 %v7140
    %7563 = vmatpush.bf16.msra.mxu0 %v7135
    %7564 = vmatpush.bf16.msra.mxu0 %v7130
    %7565 = vmatpush.bf16.msra.mxu0 %v7125
    %7566 = vmatpush.bf16.msra.mxu0 %v7120
    %7567 = vmatmul.bf16.gmra.mxu0 %v6483
    %v7568 = vpop.f32.mrf.mxu0
    %v7569 = vadd.f32 %v7550, %v7568
    %v7570 = vpop.f32.mrf.mxu0
    %v7571 = vadd.f32 %v7552, %v7570
    %7572 = vmatmul.bf16.gmra.mxu0 %v6488
    %v7573 = vpop.f32.mrf.mxu0
    %v7574 = vadd.f32 %v7555, %v7573
    %v7575 = vpop.f32.mrf.mxu0
    %v7576 = vadd.f32 %v7557, %v7575
    %7577 = vdwg.mxu0
    %7578 = vmatpush.bf16.msra.mxu0 %v7195
    %7579 = vmatpush.bf16.msra.mxu0 %v7190
    %7580 = vmatpush.bf16.msra.mxu0 %v7185
    %7581 = vmatpush.bf16.msra.mxu0 %v7180
    %7582 = vmatpush.bf16.msra.mxu0 %v7175
    %7583 = vmatpush.bf16.msra.mxu0 %v7170
    %7584 = vmatpush.bf16.msra.mxu0 %v7165
    %7585 = vmatpush.bf16.msra.mxu0 %v7160
    %7586 = vmatmul.bf16.gmra.mxu0 %v6484
    %v7587 = vpop.f32.mrf.mxu0
    %v7588 = vadd.f32 %v7569, %v7587
    %v7589 = vpop.f32.mrf.mxu0
    %v7590 = vadd.f32 %v7571, %v7589
    %7591 = vmatmul.bf16.gmra.mxu0 %v6489
    %v7592 = vpop.f32.mrf.mxu0
    %v7593 = vadd.f32 %v7574, %v7592
    %v7594 = vpop.f32.mrf.mxu0
    %v7595 = vadd.f32 %v7576, %v7594
    %7596 = vdwg.mxu0
    %7597 = vmatpush.bf16.msra.mxu0 %v7235
    %7598 = vmatpush.bf16.msra.mxu0 %v7230
    %7599 = vmatpush.bf16.msra.mxu0 %v7225
    %7600 = vmatpush.bf16.msra.mxu0 %v7220
    %7601 = vmatpush.bf16.msra.mxu0 %v7215
    %7602 = vmatpush.bf16.msra.mxu0 %v7210
    %7603 = vmatpush.bf16.msra.mxu0 %v7205
    %7604 = vmatpush.bf16.msra.mxu0 %v7200
    %7605 = vmatmul.bf16.gmra.mxu0 %v6485
    %v7606 = vpop.f32.mrf.mxu0
    %v7607 = vadd.f32 %v7588, %v7606
    %v7608 = vpop.f32.mrf.mxu0
    %v7609 = vadd.f32 %v7590, %v7608
    %7610 = vmatmul.bf16.gmra.mxu0 %v6490
    %v7611 = vpop.f32.mrf.mxu0
    %v7612 = vadd.f32 %v7593, %v7611
    %v7613 = vpop.f32.mrf.mxu0
    %v7614 = vadd.f32 %v7595, %v7613
    %7615 = vdwg.mxu0
    %7616 = vmatpush.bf16.msra.mxu0 0
    %7617 = vmatpush.bf16.msra.mxu0 0
    %7618 = vmatpush.bf16.msra.mxu0 0
    %7619 = vmatpush.bf16.msra.mxu0 0
    %7620 = vmatpush.bf16.msra.mxu0 %v7255
    %7621 = vmatpush.bf16.msra.mxu0 %v7250
    %7622 = vmatpush.bf16.msra.mxu0 %v7245
    %7623 = vmatpush.bf16.msra.mxu0 %v7240
    %7624 = vmatmul.bf16.gmra.mxu0 %v7440
    %v7625 = vpop.f32.mrf.mxu0
    %v7626 = vadd.f32 %v7607, %v7625
    %v7627 = vpop.f32.mrf.mxu0
    %v7628 = vadd.f32 %v7609, %v7627
    %7629 = vmatmul.bf16.gmra.mxu0 %v7443
    %v7630 = vpop.f32.mrf.mxu0
    %v7631 = vadd.f32 %v7612, %v7630
    %v7632 = vpop.f32.mrf.mxu0
    %v7633 = vadd.f32 %v7614, %v7632
    %7634 = vdwg.mxu0
    %7635 = vmatpush.bf16.msra.mxu0 %v7116
    %7636 = vmatpush.bf16.msra.mxu0 %v7111
    %7637 = vmatpush.bf16.msra.mxu0 %v7106
    %7638 = vmatpush.bf16.msra.mxu0 %v7101
    %7639 = vmatpush.bf16.msra.mxu0 %v7096
    %7640 = vmatpush.bf16.msra.mxu0 %v7091
    %7641 = vmatpush.bf16.msra.mxu0 %v7086
    %7642 = vmatpush.bf16.msra.mxu0 %v7081
    %7643 = vmatmul.bf16.gmra.mxu0 %v6482
    %v7644 = vpop.f32.mrf.mxu0
    %v7645 = vadd.f32 %v6495, %v7644
    %v7646 = vpop.f32.mrf.mxu0
    %v7647 = vadd.f32 %v6495, %v7646
    %7648 = vmatmul.bf16.gmra.mxu0 %v6487
    %v7649 = vpop.f32.mrf.mxu0
    %v7650 = vadd.f32 %v6495, %v7649
    %v7651 = vpop.f32.mrf.mxu0
    %v7652 = vadd.f32 %v6495, %v7651
    %7653 = vdwg.mxu0
    %7654 = vmatpush.bf16.msra.mxu0 %v7156
    %7655 = vmatpush.bf16.msra.mxu0 %v7151
    %7656 = vmatpush.bf16.msra.mxu0 %v7146
    %7657 = vmatpush.bf16.msra.mxu0 %v7141
    %7658 = vmatpush.bf16.msra.mxu0 %v7136
    %7659 = vmatpush.bf16.msra.mxu0 %v7131
    %7660 = vmatpush.bf16.msra.mxu0 %v7126
    %7661 = vmatpush.bf16.msra.mxu0 %v7121
    %7662 = vmatmul.bf16.gmra.mxu0 %v6483
    %v7663 = vpop.f32.mrf.mxu0
    %v7664 = vadd.f32 %v7645, %v7663
    %v7665 = vpop.f32.mrf.mxu0
    %v7666 = vadd.f32 %v7647, %v7665
    %7667 = vmatmul.bf16.gmra.mxu0 %v6488
    %v7668 = vpop.f32.mrf.mxu0
    %v7669 = vadd.f32 %v7650, %v7668
    %v7670 = vpop.f32.mrf.mxu0
    %v7671 = vadd.f32 %v7652, %v7670
    %7672 = vdwg.mxu0
    %7673 = vmatpush.bf16.msra.mxu0 %v7196
    %7674 = vmatpush.bf16.msra.mxu0 %v7191
    %7675 = vmatpush.bf16.msra.mxu0 %v7186
    %7676 = vmatpush.bf16.msra.mxu0 %v7181
    %7677 = vmatpush.bf16.msra.mxu0 %v7176
    %7678 = vmatpush.bf16.msra.mxu0 %v7171
    %7679 = vmatpush.bf16.msra.mxu0 %v7166
    %7680 = vmatpush.bf16.msra.mxu0 %v7161
    %7681 = vmatmul.bf16.gmra.mxu0 %v6484
    %v7682 = vpop.f32.mrf.mxu0
    %v7683 = vadd.f32 %v7664, %v7682
    %v7684 = vpop.f32.mrf.mxu0
    %v7685 = vadd.f32 %v7666, %v7684
    %7686 = vmatmul.bf16.gmra.mxu0 %v6489
    %v7687 = vpop.f32.mrf.mxu0
    %v7688 = vadd.f32 %v7669, %v7687
    %v7689 = vpop.f32.mrf.mxu0
    %v7690 = vadd.f32 %v7671, %v7689
    %7691 = vdwg.mxu0
    %7692 = vmatpush.bf16.msra.mxu0 %v7236
    %7693 = vmatpush.bf16.msra.mxu0 %v7231
    %7694 = vmatpush.bf16.msra.mxu0 %v7226
    %7695 = vmatpush.bf16.msra.mxu0 %v7221
    %7696 = vmatpush.bf16.msra.mxu0 %v7216
    %7697 = vmatpush.bf16.msra.mxu0 %v7211
    %7698 = vmatpush.bf16.msra.mxu0 %v7206
    %7699 = vmatpush.bf16.msra.mxu0 %v7201
    %7700 = vmatmul.bf16.gmra.mxu0 %v6485
    %v7701 = vpop.f32.mrf.mxu0
    %v7702 = vadd.f32 %v7683, %v7701
    %v7703 = vpop.f32.mrf.mxu0
    %v7704 = vadd.f32 %v7685, %v7703
    %7705 = vmatmul.bf16.gmra.mxu0 %v6490
    %v7706 = vpop.f32.mrf.mxu0
    %v7707 = vadd.f32 %v7688, %v7706
    %v7708 = vpop.f32.mrf.mxu0
    %v7709 = vadd.f32 %v7690, %v7708
    %7710 = vdwg.mxu0
    %7711 = vmatpush.bf16.msra.mxu0 0
    %7712 = vmatpush.bf16.msra.mxu0 0
    %7713 = vmatpush.bf16.msra.mxu0 0
    %7714 = vmatpush.bf16.msra.mxu0 0
    %7715 = vmatpush.bf16.msra.mxu0 %v7256
    %7716 = vmatpush.bf16.msra.mxu0 %v7251
    %7717 = vmatpush.bf16.msra.mxu0 %v7246
    %7718 = vmatpush.bf16.msra.mxu0 %v7241
    %7719 = vmatmul.bf16.gmra.mxu0 %v7440
    %v7720 = vpop.f32.mrf.mxu0
    %v7721 = vadd.f32 %v7702, %v7720
    %v7722 = vpop.f32.mrf.mxu0
    %v7723 = vadd.f32 %v7704, %v7722
    %7724 = vmatmul.bf16.gmra.mxu0 %v7443
    %v7725 = vpop.f32.mrf.mxu0
    %v7726 = vadd.f32 %v7707, %v7725
    %v7727 = vpop.f32.mrf.mxu0
    %v7728 = vadd.f32 %v7709, %v7727
    %7729 = vdwg.mxu0
    %7730 = vmatpush.bf16.msra.mxu0 %v7117
    %7731 = vmatpush.bf16.msra.mxu0 %v7112
    %7732 = vmatpush.bf16.msra.mxu0 %v7107
    %7733 = vmatpush.bf16.msra.mxu0 %v7102
    %7734 = vmatpush.bf16.msra.mxu0 %v7097
    %7735 = vmatpush.bf16.msra.mxu0 %v7092
    %7736 = vmatpush.bf16.msra.mxu0 %v7087
    %7737 = vmatpush.bf16.msra.mxu0 %v7082
    %7738 = vmatmul.bf16.gmra.mxu0 %v6482
    %v7739 = vpop.f32.mrf.mxu0
    %v7740 = vadd.f32 %v6496, %v7739
    %v7741 = vpop.f32.mrf.mxu0
    %v7742 = vadd.f32 %v6496, %v7741
    %7743 = vmatmul.bf16.gmra.mxu0 %v6487
    %v7744 = vpop.f32.mrf.mxu0
    %v7745 = vadd.f32 %v6496, %v7744
    %v7746 = vpop.f32.mrf.mxu0
    %v7747 = vadd.f32 %v6496, %v7746
    %7748 = vdwg.mxu0
    %7749 = vmatpush.bf16.msra.mxu0 %v7157
    %7750 = vmatpush.bf16.msra.mxu0 %v7152
    %7751 = vmatpush.bf16.msra.mxu0 %v7147
    %7752 = vmatpush.bf16.msra.mxu0 %v7142
    %7753 = vmatpush.bf16.msra.mxu0 %v7137
    %7754 = vmatpush.bf16.msra.mxu0 %v7132
    %7755 = vmatpush.bf16.msra.mxu0 %v7127
    %7756 = vmatpush.bf16.msra.mxu0 %v7122
    %7757 = vmatmul.bf16.gmra.mxu0 %v6483
    %v7758 = vpop.f32.mrf.mxu0
    %v7759 = vadd.f32 %v7740, %v7758
    %v7760 = vpop.f32.mrf.mxu0
    %v7761 = vadd.f32 %v7742, %v7760
    %7762 = vmatmul.bf16.gmra.mxu0 %v6488
    %v7763 = vpop.f32.mrf.mxu0
    %v7764 = vadd.f32 %v7745, %v7763
    %v7765 = vpop.f32.mrf.mxu0
    %v7766 = vadd.f32 %v7747, %v7765
    %7767 = vdwg.mxu0
    %7768 = vmatpush.bf16.msra.mxu0 %v7197
    %7769 = vmatpush.bf16.msra.mxu0 %v7192
    %7770 = vmatpush.bf16.msra.mxu0 %v7187
    %7771 = vmatpush.bf16.msra.mxu0 %v7182
    %7772 = vmatpush.bf16.msra.mxu0 %v7177
    %7773 = vmatpush.bf16.msra.mxu0 %v7172
    %7774 = vmatpush.bf16.msra.mxu0 %v7167
    %7775 = vmatpush.bf16.msra.mxu0 %v7162
    %7776 = vmatmul.bf16.gmra.mxu0 %v6484
    %v7777 = vpop.f32.mrf.mxu0
    %v7778 = vadd.f32 %v7759, %v7777
    %v7779 = vpop.f32.mrf.mxu0
    %v7780 = vadd.f32 %v7761, %v7779
    %7781 = vmatmul.bf16.gmra.mxu0 %v6489
    %v7782 = vpop.f32.mrf.mxu0
    %v7783 = vadd.f32 %v7764, %v7782
    %v7784 = vpop.f32.mrf.mxu0
    %v7785 = vadd.f32 %v7766, %v7784
    %7786 = vdwg.mxu0
    %7787 = vmatpush.bf16.msra.mxu0 %v7237
    %7788 = vmatpush.bf16.msra.mxu0 %v7232
    %7789 = vmatpush.bf16.msra.mxu0 %v7227
    %7790 = vmatpush.bf16.msra.mxu0 %v7222
    %7791 = vmatpush.bf16.msra.mxu0 %v7217
    %7792 = vmatpush.bf16.msra.mxu0 %v7212
    %7793 = vmatpush.bf16.msra.mxu0 %v7207
    %7794 = vmatpush.bf16.msra.mxu0 %v7202
    %7795 = vmatmul.bf16.gmra.mxu0 %v6485
    %v7796 = vpop.f32.mrf.mxu0
    %v7797 = vadd.f32 %v7778, %v7796
    %v7798 = vpop.f32.mrf.mxu0
    %v7799 = vadd.f32 %v7780, %v7798
    %7800 = vmatmul.bf16.gmra.mxu0 %v6490
    %v7801 = vpop.f32.mrf.mxu0
    %v7802 = vadd.f32 %v7783, %v7801
    %v7803 = vpop.f32.mrf.mxu0
    %v7804 = vadd.f32 %v7785, %v7803
    %7805 = vdwg.mxu0
    %7806 = vmatpush.bf16.msra.mxu0 0
    %7807 = vmatpush.bf16.msra.mxu0 0
    %7808 = vmatpush.bf16.msra.mxu0 0
    %7809 = vmatpush.bf16.msra.mxu0 0
    %7810 = vmatpush.bf16.msra.mxu0 %v7257
    %7811 = vmatpush.bf16.msra.mxu0 %v7252
    %7812 = vmatpush.bf16.msra.mxu0 %v7247
    %7813 = vmatpush.bf16.msra.mxu0 %v7242
    %7814 = vmatmul.bf16.gmra.mxu0 %v7440
    %v7815 = vpop.f32.mrf.mxu0
    %v7816 = vadd.f32 %v7797, %v7815
    %v7817 = vpop.f32.mrf.mxu0
    %v7818 = vadd.f32 %v7799, %v7817
    %7819 = vmatmul.bf16.gmra.mxu0 %v7443
    %v7820 = vpop.f32.mrf.mxu0
    %v7821 = vadd.f32 %v7802, %v7820
    %v7822 = vpop.f32.mrf.mxu0
    %v7823 = vadd.f32 %v7804, %v7822
    %7824 = vdwg.mxu0
    %7825 = vmatpush.bf16.msra.mxu0 %v7118
    %7826 = vmatpush.bf16.msra.mxu0 %v7113
    %7827 = vmatpush.bf16.msra.mxu0 %v7108
    %7828 = vmatpush.bf16.msra.mxu0 %v7103
    %7829 = vmatpush.bf16.msra.mxu0 %v7098
    %7830 = vmatpush.bf16.msra.mxu0 %v7093
    %7831 = vmatpush.bf16.msra.mxu0 %v7088
    %7832 = vmatpush.bf16.msra.mxu0 %v7083
    %7833 = vmatmul.bf16.gmra.mxu0 %v6482
    %v7834 = vpop.f32.mrf.mxu0
    %v7835 = vadd.f32 %v6497, %v7834
    %v7836 = vpop.f32.mrf.mxu0
    %v7837 = vadd.f32 %v6497, %v7836
    %7838 = vmatmul.bf16.gmra.mxu0 %v6487
    %v7839 = vpop.f32.mrf.mxu0
    %v7840 = vadd.f32 %v6497, %v7839
    %v7841 = vpop.f32.mrf.mxu0
    %v7842 = vadd.f32 %v6497, %v7841
    %7843 = vdwg.mxu0
    %7844 = vmatpush.bf16.msra.mxu0 %v7158
    %7845 = vmatpush.bf16.msra.mxu0 %v7153
    %7846 = vmatpush.bf16.msra.mxu0 %v7148
    %7847 = vmatpush.bf16.msra.mxu0 %v7143
    %7848 = vmatpush.bf16.msra.mxu0 %v7138
    %7849 = vmatpush.bf16.msra.mxu0 %v7133
    %7850 = vmatpush.bf16.msra.mxu0 %v7128
    %7851 = vmatpush.bf16.msra.mxu0 %v7123
    %7852 = vmatmul.bf16.gmra.mxu0 %v6483
    %v7853 = vpop.f32.mrf.mxu0
    %v7854 = vadd.f32 %v7835, %v7853
    %v7855 = vpop.f32.mrf.mxu0
    %v7856 = vadd.f32 %v7837, %v7855
    %7857 = vmatmul.bf16.gmra.mxu0 %v6488
    %v7858 = vpop.f32.mrf.mxu0
    %v7859 = vadd.f32 %v7840, %v7858
    %v7860 = vpop.f32.mrf.mxu0
    %v7861 = vadd.f32 %v7842, %v7860
    %7862 = vdwg.mxu0
    %7863 = vmatpush.bf16.msra.mxu0 %v7198
    %7864 = vmatpush.bf16.msra.mxu0 %v7193
    %7865 = vmatpush.bf16.msra.mxu0 %v7188
    %7866 = vmatpush.bf16.msra.mxu0 %v7183
    %7867 = vmatpush.bf16.msra.mxu0 %v7178
    %7868 = vmatpush.bf16.msra.mxu0 %v7173
    %7869 = vmatpush.bf16.msra.mxu0 %v7168
    %7870 = vmatpush.bf16.msra.mxu0 %v7163
    %7871 = vmatmul.bf16.gmra.mxu0 %v6484
    %v7872 = vpop.f32.mrf.mxu0
    %v7873 = vadd.f32 %v7854, %v7872
    %v7874 = vpop.f32.mrf.mxu0
    %v7875 = vadd.f32 %v7856, %v7874
    %7876 = vmatmul.bf16.gmra.mxu0 %v6489
    %v7877 = vpop.f32.mrf.mxu0
    %v7878 = vadd.f32 %v7859, %v7877
    %v7879 = vpop.f32.mrf.mxu0
    %v7880 = vadd.f32 %v7861, %v7879
    %7881 = vdwg.mxu0
    %7882 = vmatpush.bf16.msra.mxu0 %v7238
    %7883 = vmatpush.bf16.msra.mxu0 %v7233
    %7884 = vmatpush.bf16.msra.mxu0 %v7228
    %7885 = vmatpush.bf16.msra.mxu0 %v7223
    %7886 = vmatpush.bf16.msra.mxu0 %v7218
    %7887 = vmatpush.bf16.msra.mxu0 %v7213
    %7888 = vmatpush.bf16.msra.mxu0 %v7208
    %7889 = vmatpush.bf16.msra.mxu0 %v7203
    %7890 = vmatmul.bf16.gmra.mxu0 %v6485
    %v7891 = vpop.f32.mrf.mxu0
    %v7892 = vadd.f32 %v7873, %v7891
    %v7893 = vpop.f32.mrf.mxu0
    %v7894 = vadd.f32 %v7875, %v7893
    %7895 = vmatmul.bf16.gmra.mxu0 %v6490
    %v7896 = vpop.f32.mrf.mxu0
    %v7897 = vadd.f32 %v7878, %v7896
    %v7898 = vpop.f32.mrf.mxu0
    %v7899 = vadd.f32 %v7880, %v7898
    %7900 = vdwg.mxu0
    %7901 = vmatpush.bf16.msra.mxu0 0
    %7902 = vmatpush.bf16.msra.mxu0 0
    %7903 = vmatpush.bf16.msra.mxu0 0
    %7904 = vmatpush.bf16.msra.mxu0 0
    %7905 = vmatpush.bf16.msra.mxu0 %v7258
    %7906 = vmatpush.bf16.msra.mxu0 %v7253
    %7907 = vmatpush.bf16.msra.mxu0 %v7248
    %7908 = vmatpush.bf16.msra.mxu0 %v7243
    %7909 = vmatmul.bf16.gmra.mxu0 %v7440
    %v7910 = vpop.f32.mrf.mxu0
    %v7911 = vadd.f32 %v7892, %v7910
    %v7912 = vpop.f32.mrf.mxu0
    %v7913 = vadd.f32 %v7894, %v7912
    %7914 = vmatmul.bf16.gmra.mxu0 %v7443
    %v7915 = vpop.f32.mrf.mxu0
    %v7916 = vadd.f32 %v7897, %v7915
    %v7917 = vpop.f32.mrf.mxu0
    %v7918 = vadd.f32 %v7899, %v7917
    %7919 = vdwg.mxu0
    %v7920 = vmax.f32 %v7531, 0.0
    %v7921 = vmax.f32 %v7626, 0.0
    %v7922 = vmax.f32 %v7721, 0.0
    %v7923 = vmax.f32 %v7816, 0.0
    %v7924 = vmax.f32 %v7911, 0.0
    %v7925 = vmax.f32 %v7533, 0.0
    %v7926 = vmax.f32 %v7628, 0.0
    %v7927 = vmax.f32 %v7723, 0.0
    %v7928 = vmax.f32 %v7818, 0.0
    %v7929 = vmax.f32 %v7913, 0.0
    %v7930 = vmax.f32 %v7536, 0.0
    %v7931 = vmax.f32 %v7631, 0.0
    %v7932 = vmax.f32 %v7726, 0.0
    %v7933 = vmax.f32 %v7821, 0.0
    %v7934 = vmax.f32 %v7916, 0.0
    %v7935 = vmax.f32 %v7538, 0.0
    %v7936 = vmax.f32 %v7633, 0.0
    %v7937 = vmax.f32 %v7728, 0.0
    %v7938 = vmax.f32 %v7823, 0.0
    %v7939 = vmax.f32 %v7918, 0.0
    %v7940 = vmax.f32 %v7920, -0.01
    %v7941 = vmax.f32 %v7921, -0.01
    %v7942 = vmax.f32 %v7922, -0.01
    %v7943 = vmax.f32 %v7923, -0.01
    %v7944 = vmax.f32 %v7924, -0.01
    %v7945 = vmax.f32 %v7925, -0.01
    %v7946 = vmax.f32 %v7926, -0.01
    %v7947 = vmax.f32 %v7927, -0.01
    %v7948 = vmax.f32 %v7928, -0.01
    %v7949 = vmax.f32 %v7929, -0.01
    %v7950 = vmax.f32 %v7930, -0.01
    %v7951 = vmax.f32 %v7931, -0.01
    %v7952 = vmax.f32 %v7932, -0.01
    %v7953 = vmax.f32 %v7933, -0.01
    %v7954 = vmax.f32 %v7934, -0.01
    %v7955 = vmax.f32 %v7935, -0.01
    %v7956 = vmax.f32 %v7936, -0.01
    %v7957 = vmax.f32 %v7937, -0.01
    %v7958 = vmax.f32 %v7938, -0.01
    %v7959 = vmax.f32 %v7939, -0.01
    %v7960 = vmin.f32 %v7940, 0.01
    %v7961 = vmin.f32 %v7941, 0.01
    %v7962 = vmin.f32 %v7942, 0.01
    %v7963 = vmin.f32 %v7943, 0.01
    %v7964 = vmin.f32 %v7944, 0.01
    %v7965 = vmin.f32 %v7945, 0.01
    %v7966 = vmin.f32 %v7946, 0.01
    %v7967 = vmin.f32 %v7947, 0.01
    %v7968 = vmin.f32 %v7948, 0.01
    %v7969 = vmin.f32 %v7949, 0.01
    %v7970 = vmin.f32 %v7950, 0.01
    %v7971 = vmin.f32 %v7951, 0.01
    %v7972 = vmin.f32 %v7952, 0.01
    %v7973 = vmin.f32 %v7953, 0.01
    %v7974 = vmin.f32 %v7954, 0.01
    %v7975 = vmin.f32 %v7955, 0.01
    %v7976 = vmin.f32 %v7956, 0.01
    %v7977 = vmin.f32 %v7957, 0.01
    %v7978 = vmin.f32 %v7958, 0.01
    %v7979 = vmin.f32 %v7959, 0.01
    %v7980 = vsub.f32 %v7920, %v7960
    %v7981 = vsub.f32 %v7921, %v7961
    %v7982 = vsub.f32 %v7922, %v7962
    %v7983 = vsub.f32 %v7923, %v7963
    %v7984 = vsub.f32 %v7924, %v7964
    %v7985 = vsub.f32 %v7925, %v7965
    %v7986 = vsub.f32 %v7926, %v7966
    %v7987 = vsub.f32 %v7927, %v7967
    %v7988 = vsub.f32 %v7928, %v7968
    %v7989 = vsub.f32 %v7929, %v7969
    %v7990 = vsub.f32 %v7930, %v7970
    %v7991 = vsub.f32 %v7931, %v7971
    %v7992 = vsub.f32 %v7932, %v7972
    %v7993 = vsub.f32 %v7933, %v7973
    %v7994 = vsub.f32 %v7934, %v7974
    %v7995 = vsub.f32 %v7935, %v7975
    %v7996 = vsub.f32 %v7936, %v7976
    %v7997 = vsub.f32 %v7937, %v7977
    %v7998 = vsub.f32 %v7938, %v7978
    %v7999 = vsub.f32 %v7939, %v7979
    %v8000 = vadd.f32 %v6136, %v7980
    %v8001 = vadd.f32 %v6165, %v7981
    %v8002 = vadd.f32 %v6194, %v7982
    %v8003 = vadd.f32 %v6223, %v7983
    %v8004 = vadd.f32 %v6252, %v7984
    %v8005 = vadd.f32 %v6139, %v7985
    %v8006 = vadd.f32 %v6168, %v7986
    %v8007 = vadd.f32 %v6197, %v7987
    %v8008 = vadd.f32 %v6226, %v7988
    %v8009 = vadd.f32 %v6255, %v7989
    %v8010 = vadd.f32 %v6142, %v7990
    %v8011 = vadd.f32 %v6171, %v7991
    %v8012 = vadd.f32 %v6200, %v7992
    %v8013 = vadd.f32 %v6229, %v7993
    %v8014 = vadd.f32 %v6258, %v7994
    %v8015 = vadd.f32 %v6145, %v7995
    %v8016 = vadd.f32 %v6174, %v7996
    %v8017 = vadd.f32 %v6203, %v7997
    %v8018 = vadd.f32 %v6232, %v7998
    %v8019 = vadd.f32 %v6261, %v7999
    %v8020 = vld [vmem:[%s8 + $0x5a0] sm:$0xff]
    %v8021 = vld [vmem:[%s8 + $0x5a8] sm:$0xff]
    %v8022 = vld [vmem:[%s8 + $0x5b0] sm:$0xf]
    %v8023 = vld [vmem:[%s8 + $0x5b4] sm:$0xff]
    %v8024 = vld [vmem:[%s8 + $0x5bc] sm:$0xff]
    %v8025 = vld [vmem:[%s8 + $0x5c4] sm:$0xf]
    %v8026 = vld [vmem:[%s8 + $0x5c8] sm:$0xff]
    %v8027 = vld [vmem:[%s8 + $0x5d0] sm:$0xff]
    %v8028 = vld [vmem:[%s8 + $0x5d8] sm:$0xf]
    %v8029 = vld [vmem:[%s8 + $0x5dc] sm:$0xff]
    %v8030 = vld [vmem:[%s8 + $0x5e4] sm:$0xff]
    %v8031 = vld [vmem:[%s8 + $0x5ec] sm:$0xf]
    %v8032 = vld [vmem:[%s8 + $0x5f0] sm:$0xff]
    %v8033 = vld [vmem:[%s8 + $0x5f8] sm:$0xff]
    %v8034 = vld [vmem:[%s8 + $0x600] sm:$0xf]
    %v8035 = vld [vmem:[%s8 + $0x604] sm:$0xff]
    %v8036 = vld [vmem:[%s8 + $0x60c] sm:$0xff]
    %v8037 = vld [vmem:[%s8 + $0x614] sm:$0xf]
    %v8038 = vld [vmem:[%s8 + $0x618] sm:$0xff]
    %v8039 = vld [vmem:[%s8 + $0x620] sm:$0xff]
    %v8040 = vld [vmem:[%s8 + $0x628] sm:$0xf]
    %v8041 = vld [vmem:[%s8 + $0x62c] sm:$0xff]
    %v8042 = vld [vmem:[%s8 + $0x634] sm:$0xff]
    %v8043 = vld [vmem:[%s8 + $0x63c] sm:$0xf]
    %v8044 = vld [vmem:[%s8 + $0x640] sm:$0xff]
    %v8045 = vld [vmem:[%s8 + $0x648] sm:$0xff]
    %v8046 = vld [vmem:[%s8 + $0x650] sm:$0xf]
    %v8047 = vld [vmem:[%s8 + $0x654] sm:$0xff]
    %v8048 = vld [vmem:[%s8 + $0x65c] sm:$0xff]
    %v8049 = vld [vmem:[%s8 + $0x664] sm:$0xf]
    %v8050 = vld [vmem:[%s8 + $0x668] sm:$0xff]
    %v8051 = vld [vmem:[%s8 + $0x670] sm:$0xff]
    %v8052 = vld [vmem:[%s8 + $0x678] sm:$0xf]
    %v8053 = vld [vmem:[%s8 + $0x67c] sm:$0xff]
    %v8054 = vld [vmem:[%s8 + $0x684] sm:$0xff]
    %v8055 = vld [vmem:[%s8 + $0x68c] sm:$0xf]
    %v8056 = vld [vmem:[%s8 + $0x690] sm:$0xff]
    %v8057 = vld [vmem:[%s8 + $0x698] sm:$0xff]
    %v8058 = vld [vmem:[%s8 + $0x6a0] sm:$0xf]
    %v8059 = vld [vmem:[%s8 + $0x6a4] sm:$0xff]
    %v8060 = vld [vmem:[%s8 + $0x6ac] sm:$0xff]
    %v8061 = vld [vmem:[%s8 + $0x6b4] sm:$0xf]
    %v8062 = vld [vmem:[%s8 + $0x6b8] sm:$0xff]
    %v8063 = vld [vmem:[%s8 + $0x6c0] sm:$0xff]
    %v8064 = vld [vmem:[%s8 + $0x6c8] sm:$0xf]
    %v8065 = vld [vmem:[%s8 + $0x6cc] sm:$0xff]
    %v8066 = vld [vmem:[%s8 + $0x6d4] sm:$0xff]
    %v8067 = vld [vmem:[%s8 + $0x6dc] sm:$0xf]
    %v8068 = vld [vmem:[%s8 + $0x6e0] sm:$0xff]
    %v8069 = vld [vmem:[%s8 + $0x6e8] sm:$0xff]
    %v8070 = vld [vmem:[%s8 + $0x6f0] sm:$0xf]
    %v8071 = vld [vmem:[%s8 + $0x6f4] sm:$0xff]
    %v8072 = vld [vmem:[%s8 + $0x6fc] sm:$0xff]
    %v8073 = vld [vmem:[%s8 + $0x704] sm:$0xf]
    %v8074 = vld [vmem:[%s8 + $0x708] sm:$0xff]
    %v8075 = vld [vmem:[%s8 + $0x710] sm:$0xff]
    %v8076 = vld [vmem:[%s8 + $0x718] sm:$0xf]
    %v8077 = vld [vmem:[%s8 + $0x71c] sm:$0xff]
    %v8078 = vld [vmem:[%s8 + $0x724] sm:$0xff]
    %v8079 = vld [vmem:[%s8 + $0x72c] sm:$0xf]
    %v8080 = vld [vmem:[%s8 + $0x730] sm:$0xff]
    %v8081 = vld [vmem:[%s8 + $0x738] sm:$0xff]
    %v8082 = vld [vmem:[%s8 + $0x740] sm:$0xf]
    %v8083 = vld [vmem:[%s8 + $0x744] sm:$0xff]
    %v8084 = vld [vmem:[%s8 + $0x74c] sm:$0xff]
    %v8085 = vld [vmem:[%s8 + $0x754] sm:$0xf]
    %v8086 = vld [vmem:[%s8 + $0x758] sm:$0xff]
    %v8087 = vld [vmem:[%s8 + $0x760] sm:$0xff]
    %v8088 = vld [vmem:[%s8 + $0x768] sm:$0xf]
    %v8089 = vld [vmem:[%s8 + $0x76c] sm:$0xff]
    %v8090 = vld [vmem:[%s8 + $0x774] sm:$0xff]
    %v8091 = vld [vmem:[%s8 + $0x77c] sm:$0xf]
    %v8092 = vld [vmem:[%s8 + $0x780] sm:$0xff]
    %v8093 = vld [vmem:[%s8 + $0x788] sm:$0xff]
    %v8094 = vld [vmem:[%s8 + $0x790] sm:$0xf]
    %v8095 = vld [vmem:[%s8 + $0x794] sm:$0xff]
    %v8096 = vld [vmem:[%s8 + $0x79c] sm:$0xff]
    %v8097 = vld [vmem:[%s8 + $0x7a4] sm:$0xf]
    %v8098 = vld [vmem:[%s8 + $0x7a8] sm:$0xff]
    %v8099 = vld [vmem:[%s8 + $0x7b0] sm:$0xff]
    %v8100 = vld [vmem:[%s8 + $0x7b8] sm:$0xf]
    %v8101 = vld [vmem:[%s8 + $0x7bc] sm:$0xff]
    %v8102 = vld [vmem:[%s8 + $0x7c4] sm:$0xff]
    %v8103 = vld [vmem:[%s8 + $0x7cc] sm:$0xf]
    %v8104 = vld [vmem:[%s8 + $0x7d0] sm:$0xff]
    %v8105 = vld [vmem:[%s8 + $0x7d8] sm:$0xff]
    %v8106 = vld [vmem:[%s8 + $0x7e0] sm:$0xf]
    %v8107 = vld [vmem:[%s8 + $0x7e4] sm:$0xff]
    %v8108 = vld [vmem:[%s8 + $0x7ec] sm:$0xff]
    %v8109 = vld [vmem:[%s8 + $0x7f4] sm:$0xf]
    %v8110 = vld [vmem:[%s8 + $0x7f8] sm:$0xff]
    %v8111 = vld [vmem:[%s8 + $0x800] sm:$0xff]
    %v8112 = vld [vmem:[%s8 + $0x808] sm:$0xf]
    %v8113 = vld [vmem:[%s8 + $0x80c] sm:$0xff]
    %v8114 = vld [vmem:[%s8 + $0x814] sm:$0xff]
    %v8115 = vld [vmem:[%s8 + $0x81c] sm:$0xf]
    %v8116 = vld [vmem:[%s8 + $0x820] sm:$0xff]
    %v8117 = vld [vmem:[%s8 + $0x828] sm:$0xff]
    %v8118 = vld [vmem:[%s8 + $0x830] sm:$0xf]
    %v8119 = vld [vmem:[%s8 + $0x834] sm:$0xff]
    %v8120 = vld [vmem:[%s8 + $0x83c] sm:$0xff]
    %v8121 = vld [vmem:[%s8 + $0x844] sm:$0xf]
    %v8122 = vld [vmem:[%s8 + $0x848] sm:$0xff]
    %v8123 = vld [vmem:[%s8 + $0x850] sm:$0xff]
    %v8124 = vld [vmem:[%s8 + $0x858] sm:$0xf]
    %v8125 = vld [vmem:[%s8 + $0x85c] sm:$0xff]
    %v8126 = vld [vmem:[%s8 + $0x864] sm:$0xff]
    %v8127 = vld [vmem:[%s8 + $0x86c] sm:$0xf]
    %v8128 = vld [vmem:[%s8 + $0x870] sm:$0xff]
    %v8129 = vld [vmem:[%s8 + $0x878] sm:$0xff]
    %v8130 = vld [vmem:[%s8 + $0x880] sm:$0xf]
    %v8131 = vld [vmem:[%s8 + $0x884] sm:$0xff]
    %v8132 = vld [vmem:[%s8 + $0x88c] sm:$0xff]
    %v8133 = vld [vmem:[%s8 + $0x894] sm:$0xf]
    %v8134 = vld [vmem:[%s8 + $0x898] sm:$0xff]
    %v8135 = vld [vmem:[%s8 + $0x8a0] sm:$0xff]
    %v8136 = vld [vmem:[%s8 + $0x8a8] sm:$0xf]
    %v8137 = vld [vmem:[%s8 + $0x8ac] sm:$0xff]
    %v8138 = vld [vmem:[%s8 + $0x8b4] sm:$0xff]
    %v8139 = vld [vmem:[%s8 + $0x8bc] sm:$0xf]
    %v8140 = vld [vmem:[%s8 + $0x8c0] sm:$0xff]
    %v8141 = vld [vmem:[%s8 + $0x8c8] sm:$0xff]
    %v8142 = vld [vmem:[%s8 + $0x8d0] sm:$0xf]
    %v8143 = vld [vmem:[%s8 + $0x8d4] sm:$0xff]
    %v8144 = vld [vmem:[%s8 + $0x8dc] sm:$0xff]
    %v8145 = vld [vmem:[%s8 + $0x8e4] sm:$0xf]
    %v8146 = vld [vmem:[%s8 + $0x8e8] sm:$0xff]
    %v8147 = vld [vmem:[%s8 + $0x8f0] sm:$0xff]
    %v8148 = vld [vmem:[%s8 + $0x8f8] sm:$0xf]
    %v8149 = vld [vmem:[%s8 + $0x8fc] sm:$0xff]
    %v8150 = vld [vmem:[%s8 + $0x904] sm:$0xff]
    %v8151 = vld [vmem:[%s8 + $0x90c] sm:$0xf]
    %v8152 = vld [vmem:[%s8 + $0x910] sm:$0xff]
    %v8153 = vld [vmem:[%s8 + $0x918] sm:$0xff]
    %v8154 = vld [vmem:[%s8 + $0x920] sm:$0xf]
    %v8155 = vld [vmem:[%s8 + $0x924] sm:$0xff]
    %v8156 = vld [vmem:[%s8 + $0x92c] sm:$0xff]
    %v8157 = vld [vmem:[%s8 + $0x934] sm:$0xf]
    %v8158 = vld [vmem:[%s8 + $0x938] sm:$0xff]
    %v8159 = vld [vmem:[%s8 + $0x940] sm:$0xff]
    %v8160 = vld [vmem:[%s8 + $0x948] sm:$0xf]
    %v8161 = vld [vmem:[%s8 + $0x94c] sm:$0xff]
    %v8162 = vld [vmem:[%s8 + $0x954] sm:$0xff]
    %v8163 = vld [vmem:[%s8 + $0x95c] sm:$0xf]
    %v8164 = vld [vmem:[%s8 + $0x960] sm:$0xff]
    %v8165 = vld [vmem:[%s8 + $0x968] sm:$0xff]
    %v8166 = vld [vmem:[%s8 + $0x970] sm:$0xf]
    %v8167 = vld [vmem:[%s8 + $0x974] sm:$0xff]
    %v8168 = vld [vmem:[%s8 + $0x97c] sm:$0xff]
    %v8169 = vld [vmem:[%s8 + $0x984] sm:$0xf]
    %v8170 = vld [vmem:[%s8 + $0x988] sm:$0xff]
    %v8171 = vld [vmem:[%s8 + $0x990] sm:$0xff]
    %v8172 = vld [vmem:[%s8 + $0x998] sm:$0xf]
    %v8173 = vld [vmem:[%s8 + $0x99c] sm:$0xff]
    %v8174 = vld [vmem:[%s8 + $0x9a4] sm:$0xff]
    %v8175 = vld [vmem:[%s8 + $0x9ac] sm:$0xf]
    %v8176 = vld [vmem:[%s8 + $0x9b0] sm:$0xff]
    %v8177 = vld [vmem:[%s8 + $0x9b8] sm:$0xff]
    %v8178 = vld [vmem:[%s8 + $0x9c0] sm:$0xf]
    %v8179 = vld [vmem:[%s8 + $0x9c4] sm:$0xff]
    %v8180 = vld [vmem:[%s8 + $0x9cc] sm:$0xff]
    %v8181 = vld [vmem:[%s8 + $0x9d4] sm:$0xf]
    %v8182 = vld [vmem:[%s8 + $0x9d8] sm:$0xff]
    %v8183 = vld [vmem:[%s8 + $0x9e0] sm:$0xff]
    %v8184 = vld [vmem:[%s8 + $0x9e8] sm:$0xf]
    %v8185 = vld [vmem:[%s8 + $0x9ec] sm:$0xff]
    %v8186 = vld [vmem:[%s8 + $0x9f4] sm:$0xff]
    %v8187 = vld [vmem:[%s8 + $0x9fc] sm:$0xf]
    %v8188 = vld [vmem:[%s8 + $0xa00] sm:$0xff]
    %v8189 = vld [vmem:[%s8 + $0xa08] sm:$0xff]
    %v8190 = vld [vmem:[%s8 + $0xa10] sm:$0xf]
    %v8191 = vld [vmem:[%s8 + $0xa14] sm:$0xff]
    %v8192 = vld [vmem:[%s8 + $0xa1c] sm:$0xff]
    %v8193 = vld [vmem:[%s8 + $0xa24] sm:$0xf]
    %v8194 = vld [vmem:[%s8 + $0xa28] sm:$0xff]
    %v8195 = vld [vmem:[%s8 + $0xa30] sm:$0xff]
    %v8196 = vld [vmem:[%s8 + $0xa38] sm:$0xf]
    %v8197 = vld [vmem:[%s8 + $0xa3c] sm:$0xff]
    %v8198 = vld [vmem:[%s8 + $0xa44] sm:$0xff]
    %v8199 = vld [vmem:[%s8 + $0xa4c] sm:$0xf]
    %v8200 = vld [vmem:[%s8 + $0xa50] sm:$0xff]
    %v8201 = vld [vmem:[%s8 + $0xa58] sm:$0xff]
    %v8202 = vld [vmem:[%s8 + $0xa60] sm:$0xf]
    %v8203 = vld [vmem:[%s8 + $0xa64] sm:$0xff]
    %v8204 = vld [vmem:[%s8 + $0xa6c] sm:$0xff]
    %v8205 = vld [vmem:[%s8 + $0xa74] sm:$0xf]
    %v8206 = vld [vmem:[%s8 + $0xa78] sm:$0xff]
    %v8207 = vld [vmem:[%s8 + $0xa80] sm:$0xff]
    %v8208 = vld [vmem:[%s8 + $0xa88] sm:$0xf]
    %v8209 = vld [vmem:[%s8 + $0xa8c] sm:$0xff]
    %v8210 = vld [vmem:[%s8 + $0xa94] sm:$0xff]
    %v8211 = vld [vmem:[%s8 + $0xa9c] sm:$0xf]
    %v8212 = vld [vmem:[%s8 + $0xaa0] sm:$0xff]
    %v8213 = vld [vmem:[%s8 + $0xaa8] sm:$0xff]
    %v8214 = vld [vmem:[%s8 + $0xab0] sm:$0xf]
    %v8215 = vld [vmem:[%s8 + $0xab4] sm:$0xff]
    %v8216 = vld [vmem:[%s8 + $0xabc] sm:$0xff]
    %v8217 = vld [vmem:[%s8 + $0xac4] sm:$0xf]
    %v8218 = vld [vmem:[%s8 + $0xac8] sm:$0xff]
    %v8219 = vld [vmem:[%s8 + $0xad0] sm:$0xff]
    %v8220 = vld [vmem:[%s8 + $0xad8] sm:$0xf]
    %v8221 = vld [vmem:[%s8 + $0xadc] sm:$0xff]
    %v8222 = vld [vmem:[%s8 + $0xae4] sm:$0xff]
    %v8223 = vld [vmem:[%s8 + $0xaec] sm:$0xf]
    %v8224 = vld [vmem:[%s8 + $0xaf0] sm:$0xff]
    %v8225 = vld [vmem:[%s8 + $0xaf8] sm:$0xff]
    %v8226 = vld [vmem:[%s8 + $0xb00] sm:$0xf]
    %v8227 = vld [vmem:[%s8 + $0xb04] sm:$0xff]
    %v8228 = vld [vmem:[%s8 + $0xb0c] sm:$0xff]
    %v8229 = vld [vmem:[%s8 + $0xb14] sm:$0xf]
    %v8230 = vld [vmem:[%s8 + $0xb18] sm:$0xff]
    %v8231 = vld [vmem:[%s8 + $0xb20] sm:$0xff]
    %v8232 = vld [vmem:[%s8 + $0xb28] sm:$0xf]
    %v8233 = vld [vmem:[%s8 + $0xb2c] sm:$0xff]
    %v8234 = vld [vmem:[%s8 + $0xb34] sm:$0xff]
    %v8235 = vld [vmem:[%s8 + $0xb3c] sm:$0xf]
    %s8236 = scalar_lea.vmem %s12, 1
    %v8237 = vld [vmem:[%s8236] ss:$8 sm:$0xf]
    %v8238 = vld [vmem:[%s8236] ss:$8 sm:$0x10]
    %v8239 = vor.u32 %v8237, %v8238
    %v8240 = vpack.c.bf16 %v7925, %v7920
    %v8241 = vpack.c.bf16 %v7926, %v7921
    %v8242 = vpack.c.bf16 %v7927, %v7922
    %v8243 = vpack.c.bf16 %v7928, %v7923
    %v8244 = vpack.c.bf16 %v7929, %v7924
    %v8245 = vpack.c.bf16 %v7935, %v7930
    %v8246 = vpack.c.bf16 %v7936, %v7931
    %v8247 = vpack.c.bf16 %v7937, %v7932
    %v8248 = vpack.c.bf16 %v7938, %v7933
    %v8249 = vpack.c.bf16 %v7939, %v7934
    %v8251 = vperm.slane %v8239, 0
    %v8252 = vperm.slane %v8239, 1
    %v8253 = vperm.slane %v8239, 2
    %v8254 = vperm.slane %v8239, 3
    %v8255 = vperm.slane %v8239, 4
    %v8477 = vunpack.c.l.b16 %v8020
    %v8478 = vunpack.c.h.b16 %v8020
    %v8479 = vunpack.c.l.b16 %v8021
    %v8480 = vunpack.c.h.b16 %v8021
    %v8481 = vunpack.c.l.b16 %v8022
    %v8482 = vunpack.c.l.b16 %v8023
    %v8483 = vunpack.c.h.b16 %v8023
    %v8484 = vunpack.c.l.b16 %v8024
    %v8485 = vunpack.c.h.b16 %v8024
    %v8486 = vunpack.c.l.b16 %v8025
    %v8487 = vunpack.c.l.b16 %v8026
    %v8488 = vunpack.c.h.b16 %v8026
    %v8489 = vunpack.c.l.b16 %v8027
    %v8490 = vunpack.c.h.b16 %v8027
    %v8491 = vunpack.c.l.b16 %v8028
    %v8492 = vunpack.c.l.b16 %v8029
    %v8493 = vunpack.c.h.b16 %v8029
    %v8494 = vunpack.c.l.b16 %v8030
    %v8495 = vunpack.c.h.b16 %v8030
    %v8496 = vunpack.c.l.b16 %v8031
    %v8497 = vunpack.c.l.b16 %v8032
    %v8498 = vunpack.c.h.b16 %v8032
    %v8499 = vunpack.c.l.b16 %v8033
    %v8500 = vunpack.c.h.b16 %v8033
    %v8501 = vunpack.c.l.b16 %v8034
    %v8502 = vunpack.c.l.b16 %v8035
    %v8503 = vunpack.c.h.b16 %v8035
    %v8504 = vunpack.c.l.b16 %v8036
    %v8505 = vunpack.c.h.b16 %v8036
    %v8506 = vunpack.c.l.b16 %v8037
    %v8507 = vunpack.c.l.b16 %v8038
    %v8508 = vunpack.c.h.b16 %v8038
    %v8509 = vunpack.c.l.b16 %v8039
    %v8510 = vunpack.c.h.b16 %v8039
    %v8511 = vunpack.c.l.b16 %v8040
    %v8512 = vunpack.c.l.b16 %v8041
    %v8513 = vunpack.c.h.b16 %v8041
    %v8514 = vunpack.c.l.b16 %v8042
    %v8515 = vunpack.c.h.b16 %v8042
    %v8516 = vunpack.c.l.b16 %v8043
    %v8517 = vunpack.c.l.b16 %v8044
    %v8518 = vunpack.c.h.b16 %v8044
    %v8519 = vunpack.c.l.b16 %v8045
    %v8520 = vunpack.c.h.b16 %v8045
    %v8521 = vunpack.c.l.b16 %v8046
    %v8522 = vunpack.c.l.b16 %v8047
    %v8523 = vunpack.c.h.b16 %v8047
    %v8524 = vunpack.c.l.b16 %v8048
    %v8525 = vunpack.c.h.b16 %v8048
    %v8526 = vunpack.c.l.b16 %v8049
    %v8527 = vunpack.c.l.b16 %v8050
    %v8528 = vunpack.c.h.b16 %v8050
    %v8529 = vunpack.c.l.b16 %v8051
    %v8530 = vunpack.c.h.b16 %v8051
    %v8531 = vunpack.c.l.b16 %v8052
    %v8532 = vunpack.c.l.b16 %v8053
    %v8533 = vunpack.c.h.b16 %v8053
    %v8534 = vunpack.c.l.b16 %v8054
    %v8535 = vunpack.c.h.b16 %v8054
    %v8536 = vunpack.c.l.b16 %v8055
    %v8537 = vunpack.c.l.b16 %v8056
    %v8538 = vunpack.c.h.b16 %v8056
    %v8539 = vunpack.c.l.b16 %v8057
    %v8540 = vunpack.c.h.b16 %v8057
    %v8541 = vunpack.c.l.b16 %v8058
    %v8542 = vunpack.c.l.b16 %v8059
    %v8543 = vunpack.c.h.b16 %v8059
    %v8544 = vunpack.c.l.b16 %v8060
    %v8545 = vunpack.c.h.b16 %v8060
    %v8546 = vunpack.c.l.b16 %v8061
    %v8547 = vunpack.c.l.b16 %v8062
    %v8548 = vunpack.c.h.b16 %v8062
    %v8549 = vunpack.c.l.b16 %v8063
    %v8550 = vunpack.c.h.b16 %v8063
    %v8551 = vunpack.c.l.b16 %v8064
    %v8552 = vunpack.c.l.b16 %v8065
    %v8553 = vunpack.c.h.b16 %v8065
    %v8554 = vunpack.c.l.b16 %v8066
    %v8555 = vunpack.c.h.b16 %v8066
    %v8556 = vunpack.c.l.b16 %v8067
    %v8557 = vunpack.c.l.b16 %v8068
    %v8558 = vunpack.c.h.b16 %v8068
    %v8559 = vunpack.c.l.b16 %v8069
    %v8560 = vunpack.c.h.b16 %v8069
    %v8561 = vunpack.c.l.b16 %v8070
    %v8562 = vunpack.c.l.b16 %v8071
    %v8563 = vunpack.c.h.b16 %v8071
    %v8564 = vunpack.c.l.b16 %v8072
    %v8565 = vunpack.c.h.b16 %v8072
    %v8566 = vunpack.c.l.b16 %v8073
    %v8567 = vunpack.c.l.b16 %v8074
    %v8568 = vunpack.c.h.b16 %v8074
    %v8569 = vunpack.c.l.b16 %v8075
    %v8570 = vunpack.c.h.b16 %v8075
    %v8571 = vunpack.c.l.b16 %v8076
    %v8572 = vunpack.c.l.b16 %v8077
    %v8573 = vunpack.c.h.b16 %v8077
    %v8574 = vunpack.c.l.b16 %v8078
    %v8575 = vunpack.c.h.b16 %v8078
    %v8576 = vunpack.c.l.b16 %v8079
    %v8577 = vunpack.c.l.b16 %v8080
    %v8578 = vunpack.c.h.b16 %v8080
    %v8579 = vunpack.c.l.b16 %v8081
    %v8580 = vunpack.c.h.b16 %v8081
    %v8581 = vunpack.c.l.b16 %v8082
    %v8582 = vunpack.c.l.b16 %v8083
    %v8583 = vunpack.c.h.b16 %v8083
    %v8584 = vunpack.c.l.b16 %v8084
    %v8585 = vunpack.c.h.b16 %v8084
    %v8586 = vunpack.c.l.b16 %v8085
    %v8587 = vunpack.c.l.b16 %v8086
    %v8588 = vunpack.c.h.b16 %v8086
    %v8589 = vunpack.c.l.b16 %v8087
    %v8590 = vunpack.c.h.b16 %v8087
    %v8591 = vunpack.c.l.b16 %v8088
    %v8592 = vunpack.c.l.b16 %v8089
    %v8593 = vunpack.c.h.b16 %v8089
    %v8594 = vunpack.c.l.b16 %v8090
    %v8595 = vunpack.c.h.b16 %v8090
    %v8596 = vunpack.c.l.b16 %v8091
    %v8597 = vunpack.c.l.b16 %v8092
    %v8598 = vunpack.c.h.b16 %v8092
    %v8599 = vunpack.c.l.b16 %v8093
    %v8600 = vunpack.c.h.b16 %v8093
    %v8601 = vunpack.c.l.b16 %v8094
    %v8602 = vunpack.c.l.b16 %v8095
    %v8603 = vunpack.c.h.b16 %v8095
    %v8604 = vunpack.c.l.b16 %v8096
    %v8605 = vunpack.c.h.b16 %v8096
    %v8606 = vunpack.c.l.b16 %v8097
    %v8607 = vunpack.c.l.b16 %v8098
    %v8608 = vunpack.c.h.b16 %v8098
    %v8609 = vunpack.c.l.b16 %v8099
    %v8610 = vunpack.c.h.b16 %v8099
    %v8611 = vunpack.c.l.b16 %v8100
    %v8612 = vunpack.c.l.b16 %v8101
    %v8613 = vunpack.c.h.b16 %v8101
    %v8614 = vunpack.c.l.b16 %v8102
    %v8615 = vunpack.c.h.b16 %v8102
    %v8616 = vunpack.c.l.b16 %v8103
    %v8617 = vunpack.c.l.b16 %v8104
    %v8618 = vunpack.c.h.b16 %v8104
    %v8619 = vunpack.c.l.b16 %v8105
    %v8620 = vunpack.c.h.b16 %v8105
    %v8621 = vunpack.c.l.b16 %v8106
    %v8622 = vunpack.c.l.b16 %v8107
    %v8623 = vunpack.c.h.b16 %v8107
    %v8624 = vunpack.c.l.b16 %v8108
    %v8625 = vunpack.c.h.b16 %v8108
    %v8626 = vunpack.c.l.b16 %v8109
    %v8627 = vunpack.c.l.b16 %v8110
    %v8628 = vunpack.c.h.b16 %v8110
    %v8629 = vunpack.c.l.b16 %v8111
    %v8630 = vunpack.c.h.b16 %v8111
    %v8631 = vunpack.c.l.b16 %v8112
    %v8632 = vunpack.c.l.b16 %v8113
    %v8633 = vunpack.c.h.b16 %v8113
    %v8634 = vunpack.c.l.b16 %v8114
    %v8635 = vunpack.c.h.b16 %v8114
    %v8636 = vunpack.c.l.b16 %v8115
    %v8637 = vunpack.c.l.b16 %v8116
    %v8638 = vunpack.c.h.b16 %v8116
    %v8639 = vunpack.c.l.b16 %v8117
    %v8640 = vunpack.c.h.b16 %v8117
    %v8641 = vunpack.c.l.b16 %v8118
    %v8642 = vunpack.c.l.b16 %v8119
    %v8643 = vunpack.c.h.b16 %v8119
    %v8644 = vunpack.c.l.b16 %v8120
    %v8645 = vunpack.c.h.b16 %v8120
    %v8646 = vunpack.c.l.b16 %v8121
    %v8647 = vunpack.c.l.b16 %v8122
    %v8648 = vunpack.c.h.b16 %v8122
    %v8649 = vunpack.c.l.b16 %v8123
    %v8650 = vunpack.c.h.b16 %v8123
    %v8651 = vunpack.c.l.b16 %v8124
    %v8652 = vunpack.c.l.b16 %v8125
    %v8653 = vunpack.c.h.b16 %v8125
    %v8654 = vunpack.c.l.b16 %v8126
    %v8655 = vunpack.c.h.b16 %v8126
    %v8656 = vunpack.c.l.b16 %v8127
    %v8657 = vunpack.c.l.b16 %v8128
    %v8658 = vunpack.c.h.b16 %v8128
    %v8659 = vunpack.c.l.b16 %v8129
    %v8660 = vunpack.c.h.b16 %v8129
    %v8661 = vunpack.c.l.b16 %v8130
    %v8662 = vunpack.c.l.b16 %v8131
    %v8663 = vunpack.c.h.b16 %v8131
    %v8664 = vunpack.c.l.b16 %v8132
    %v8665 = vunpack.c.h.b16 %v8132
    %v8666 = vunpack.c.l.b16 %v8133
    %v8667 = vunpack.c.l.b16 %v8134
    %v8668 = vunpack.c.h.b16 %v8134
    %v8669 = vunpack.c.l.b16 %v8135
    %v8670 = vunpack.c.h.b16 %v8135
    %v8671 = vunpack.c.l.b16 %v8136
    %v8672 = vunpack.c.l.b16 %v8137
    %v8673 = vunpack.c.h.b16 %v8137
    %v8674 = vunpack.c.l.b16 %v8138
    %v8675 = vunpack.c.h.b16 %v8138
    %v8676 = vunpack.c.l.b16 %v8139
    %v8677 = vunpack.c.l.b16 %v8140
    %v8678 = vunpack.c.h.b16 %v8140
    %v8679 = vunpack.c.l.b16 %v8141
    %v8680 = vunpack.c.h.b16 %v8141
    %v8681 = vunpack.c.l.b16 %v8142
    %v8682 = vunpack.c.l.b16 %v8143
    %v8683 = vunpack.c.h.b16 %v8143
    %v8684 = vunpack.c.l.b16 %v8144
    %v8685 = vunpack.c.h.b16 %v8144
    %v8686 = vunpack.c.l.b16 %v8145
    %v8687 = vunpack.c.l.b16 %v8146
    %v8688 = vunpack.c.h.b16 %v8146
    %v8689 = vunpack.c.l.b16 %v8147
    %v8690 = vunpack.c.h.b16 %v8147
    %v8691 = vunpack.c.l.b16 %v8148
    %v8692 = vunpack.c.l.b16 %v8149
    %v8693 = vunpack.c.h.b16 %v8149
    %v8694 = vunpack.c.l.b16 %v8150
    %v8695 = vunpack.c.h.b16 %v8150
    %v8696 = vunpack.c.l.b16 %v8151
    %v8697 = vunpack.c.l.b16 %v8152
    %v8698 = vunpack.c.h.b16 %v8152
    %v8699 = vunpack.c.l.b16 %v8153
    %v8700 = vunpack.c.h.b16 %v8153
    %v8701 = vunpack.c.l.b16 %v8154
    %v8702 = vunpack.c.l.b16 %v8155
    %v8703 = vunpack.c.h.b16 %v8155
    %v8704 = vunpack.c.l.b16 %v8156
    %v8705 = vunpack.c.h.b16 %v8156
    %v8706 = vunpack.c.l.b16 %v8157
    %v8707 = vunpack.c.l.b16 %v8158
    %v8708 = vunpack.c.h.b16 %v8158
    %v8709 = vunpack.c.l.b16 %v8159
    %v8710 = vunpack.c.h.b16 %v8159
    %v8711 = vunpack.c.l.b16 %v8160
    %v8712 = vunpack.c.l.b16 %v8161
    %v8713 = vunpack.c.h.b16 %v8161
    %v8714 = vunpack.c.l.b16 %v8162
    %v8715 = vunpack.c.h.b16 %v8162
    %v8716 = vunpack.c.l.b16 %v8163
    %v8717 = vunpack.c.l.b16 %v8164
    %v8718 = vunpack.c.h.b16 %v8164
    %v8719 = vunpack.c.l.b16 %v8165
    %v8720 = vunpack.c.h.b16 %v8165
    %v8721 = vunpack.c.l.b16 %v8166
    %v8722 = vunpack.c.l.b16 %v8167
    %v8723 = vunpack.c.h.b16 %v8167
    %v8724 = vunpack.c.l.b16 %v8168
    %v8725 = vunpack.c.h.b16 %v8168
    %v8726 = vunpack.c.l.b16 %v8169
    %v8727 = vunpack.c.l.b16 %v8170
    %v8728 = vunpack.c.h.b16 %v8170
    %v8729 = vunpack.c.l.b16 %v8171
    %v8730 = vunpack.c.h.b16 %v8171
    %v8731 = vunpack.c.l.b16 %v8172
    %v8732 = vunpack.c.l.b16 %v8173
    %v8733 = vunpack.c.h.b16 %v8173
    %v8734 = vunpack.c.l.b16 %v8174
    %v8735 = vunpack.c.h.b16 %v8174
    %v8736 = vunpack.c.l.b16 %v8175
    %v8737 = vunpack.c.l.b16 %v8176
    %v8738 = vunpack.c.h.b16 %v8176
    %v8739 = vunpack.c.l.b16 %v8177
    %v8740 = vunpack.c.h.b16 %v8177
    %v8741 = vunpack.c.l.b16 %v8178
    %v8742 = vunpack.c.l.b16 %v8179
    %v8743 = vunpack.c.h.b16 %v8179
    %v8744 = vunpack.c.l.b16 %v8180
    %v8745 = vunpack.c.h.b16 %v8180
    %v8746 = vunpack.c.l.b16 %v8181
    %v8747 = vunpack.c.l.b16 %v8182
    %v8748 = vunpack.c.h.b16 %v8182
    %v8749 = vunpack.c.l.b16 %v8183
    %v8750 = vunpack.c.h.b16 %v8183
    %v8751 = vunpack.c.l.b16 %v8184
    %v8752 = vunpack.c.l.b16 %v8185
    %v8753 = vunpack.c.h.b16 %v8185
    %v8754 = vunpack.c.l.b16 %v8186
    %v8755 = vunpack.c.h.b16 %v8186
    %v8756 = vunpack.c.l.b16 %v8187
    %v8757 = vunpack.c.l.b16 %v8188
    %v8758 = vunpack.c.h.b16 %v8188
    %v8759 = vunpack.c.l.b16 %v8189
    %v8760 = vunpack.c.h.b16 %v8189
    %v8761 = vunpack.c.l.b16 %v8190
    %v8762 = vunpack.c.l.b16 %v8191
    %v8763 = vunpack.c.h.b16 %v8191
    %v8764 = vunpack.c.l.b16 %v8192
    %v8765 = vunpack.c.h.b16 %v8192
    %v8766 = vunpack.c.l.b16 %v8193
    %v8767 = vunpack.c.l.b16 %v8194
    %v8768 = vunpack.c.h.b16 %v8194
    %v8769 = vunpack.c.l.b16 %v8195
    %v8770 = vunpack.c.h.b16 %v8195
    %v8771 = vunpack.c.l.b16 %v8196
    %v8772 = vunpack.c.l.b16 %v8197
    %v8773 = vunpack.c.h.b16 %v8197
    %v8774 = vunpack.c.l.b16 %v8198
    %v8775 = vunpack.c.h.b16 %v8198
    %v8776 = vunpack.c.l.b16 %v8199
    %v8777 = vunpack.c.l.b16 %v8200
    %v8778 = vunpack.c.h.b16 %v8200
    %v8779 = vunpack.c.l.b16 %v8201
    %v8780 = vunpack.c.h.b16 %v8201
    %v8781 = vunpack.c.l.b16 %v8202
    %v8782 = vunpack.c.l.b16 %v8203
    %v8783 = vunpack.c.h.b16 %v8203
    %v8784 = vunpack.c.l.b16 %v8204
    %v8785 = vunpack.c.h.b16 %v8204
    %v8786 = vunpack.c.l.b16 %v8205
    %v8787 = vunpack.c.l.b16 %v8206
    %v8788 = vunpack.c.h.b16 %v8206
    %v8789 = vunpack.c.l.b16 %v8207
    %v8790 = vunpack.c.h.b16 %v8207
    %v8791 = vunpack.c.l.b16 %v8208
    %v8792 = vunpack.c.l.b16 %v8209
    %v8793 = vunpack.c.h.b16 %v8209
    %v8794 = vunpack.c.l.b16 %v8210
    %v8795 = vunpack.c.h.b16 %v8210
    %v8796 = vunpack.c.l.b16 %v8211
    %v8797 = vunpack.c.l.b16 %v8212
    %v8798 = vunpack.c.h.b16 %v8212
    %v8799 = vunpack.c.l.b16 %v8213
    %v8800 = vunpack.c.h.b16 %v8213
    %v8801 = vunpack.c.l.b16 %v8214
    %v8802 = vunpack.c.l.b16 %v8215
    %v8803 = vunpack.c.h.b16 %v8215
    %v8804 = vunpack.c.l.b16 %v8216
    %v8805 = vunpack.c.h.b16 %v8216
    %v8806 = vunpack.c.l.b16 %v8217
    %v8807 = vunpack.c.l.b16 %v8218
    %v8808 = vunpack.c.h.b16 %v8218
    %v8809 = vunpack.c.l.b16 %v8219
    %v8810 = vunpack.c.h.b16 %v8219
    %v8811 = vunpack.c.l.b16 %v8220
    %v8812 = vunpack.c.l.b16 %v8221
    %v8813 = vunpack.c.h.b16 %v8221
    %v8814 = vunpack.c.l.b16 %v8222
    %v8815 = vunpack.c.h.b16 %v8222
    %v8816 = vunpack.c.l.b16 %v8223
    %v8817 = vunpack.c.l.b16 %v8224
    %v8818 = vunpack.c.h.b16 %v8224
    %v8819 = vunpack.c.l.b16 %v8225
    %v8820 = vunpack.c.h.b16 %v8225
    %v8821 = vunpack.c.l.b16 %v8226
    %v8822 = vunpack.c.l.b16 %v8227
    %v8823 = vunpack.c.h.b16 %v8227
    %v8824 = vunpack.c.l.b16 %v8228
    %v8825 = vunpack.c.h.b16 %v8228
    %v8826 = vunpack.c.l.b16 %v8229
    %v8827 = vunpack.c.l.b16 %v8230
    %v8828 = vunpack.c.h.b16 %v8230
    %v8829 = vunpack.c.l.b16 %v8231
    %v8830 = vunpack.c.h.b16 %v8231
    %v8831 = vunpack.c.l.b16 %v8232
    %v8832 = vunpack.c.l.b16 %v8233
    %v8833 = vunpack.c.h.b16 %v8233
    %v8834 = vunpack.c.l.b16 %v8234
    %v8835 = vunpack.c.h.b16 %v8234
    %v8836 = vunpack.c.l.b16 %v8235
    %v8837 = vpack.c.b16 %v8482, %v8477
    %v8838 = vpack.c.b16 %v8483, %v8478
    %v8839 = vpack.c.b16 %v8484, %v8479
    %v8840 = vpack.c.b16 %v8485, %v8480
    %v8841 = vpack.c.b16 %v8486, %v8481
    %v8842 = vpack.c.b16 %v8492, %v8487
    %v8843 = vpack.c.b16 %v8493, %v8488
    %v8844 = vpack.c.b16 %v8494, %v8489
    %v8845 = vpack.c.b16 %v8495, %v8490
    %v8846 = vpack.c.b16 %v8496, %v8491
    %v8847 = vpack.c.b16 %v8502, %v8497
    %v8848 = vpack.c.b16 %v8503, %v8498
    %v8849 = vpack.c.b16 %v8504, %v8499
    %v8850 = vpack.c.b16 %v8505, %v8500
    %v8851 = vpack.c.b16 %v8506, %v8501
    %v8852 = vpack.c.b16 %v8512, %v8507
    %v8853 = vpack.c.b16 %v8513, %v8508
    %v8854 = vpack.c.b16 %v8514, %v8509
    %v8855 = vpack.c.b16 %v8515, %v8510
    %v8856 = vpack.c.b16 %v8516, %v8511
    %v8857 = vpack.c.b16 %v8522, %v8517
    %v8858 = vpack.c.b16 %v8523, %v8518
    %v8859 = vpack.c.b16 %v8524, %v8519
    %v8860 = vpack.c.b16 %v8525, %v8520
    %v8861 = vpack.c.b16 %v8526, %v8521
    %v8862 = vpack.c.b16 %v8532, %v8527
    %v8863 = vpack.c.b16 %v8533, %v8528
    %v8864 = vpack.c.b16 %v8534, %v8529
    %v8865 = vpack.c.b16 %v8535, %v8530
    %v8866 = vpack.c.b16 %v8536, %v8531
    %v8867 = vpack.c.b16 %v8542, %v8537
    %v8868 = vpack.c.b16 %v8543, %v8538
    %v8869 = vpack.c.b16 %v8544, %v8539
    %v8870 = vpack.c.b16 %v8545, %v8540
    %v8871 = vpack.c.b16 %v8546, %v8541
    %v8872 = vpack.c.b16 %v8552, %v8547
    %v8873 = vpack.c.b16 %v8553, %v8548
    %v8874 = vpack.c.b16 %v8554, %v8549
    %v8875 = vpack.c.b16 %v8555, %v8550
    %v8876 = vpack.c.b16 %v8556, %v8551
    %v8877 = vpack.c.b16 %v8562, %v8557
    %v8878 = vpack.c.b16 %v8563, %v8558
    %v8879 = vpack.c.b16 %v8564, %v8559
    %v8880 = vpack.c.b16 %v8565, %v8560
    %v8881 = vpack.c.b16 %v8566, %v8561
    %v8882 = vpack.c.b16 %v8572, %v8567
    %v8883 = vpack.c.b16 %v8573, %v8568
    %v8884 = vpack.c.b16 %v8574, %v8569
    %v8885 = vpack.c.b16 %v8575, %v8570
    %v8886 = vpack.c.b16 %v8576, %v8571
    %v8887 = vpack.c.b16 %v8582, %v8577
    %v8888 = vpack.c.b16 %v8583, %v8578
    %v8889 = vpack.c.b16 %v8584, %v8579
    %v8890 = vpack.c.b16 %v8585, %v8580
    %v8891 = vpack.c.b16 %v8586, %v8581
    %v8892 = vpack.c.b16 %v8592, %v8587
    %v8893 = vpack.c.b16 %v8593, %v8588
    %v8894 = vpack.c.b16 %v8594, %v8589
    %v8895 = vpack.c.b16 %v8595, %v8590
    %v8896 = vpack.c.b16 %v8596, %v8591
    %v8897 = vpack.c.b16 %v8602, %v8597
    %v8898 = vpack.c.b16 %v8603, %v8598
    %v8899 = vpack.c.b16 %v8604, %v8599
    %v8900 = vpack.c.b16 %v8605, %v8600
    %v8901 = vpack.c.b16 %v8606, %v8601
    %v8902 = vpack.c.b16 %v8612, %v8607
    %v8903 = vpack.c.b16 %v8613, %v8608
    %v8904 = vpack.c.b16 %v8614, %v8609
    %v8905 = vpack.c.b16 %v8615, %v8610
    %v8906 = vpack.c.b16 %v8616, %v8611
    %v8907 = vpack.c.b16 %v8622, %v8617
    %v8908 = vpack.c.b16 %v8623, %v8618
    %v8909 = vpack.c.b16 %v8624, %v8619
    %v8910 = vpack.c.b16 %v8625, %v8620
    %v8911 = vpack.c.b16 %v8626, %v8621
    %v8912 = vpack.c.b16 %v8632, %v8627
    %v8913 = vpack.c.b16 %v8633, %v8628
    %v8914 = vpack.c.b16 %v8634, %v8629
    %v8915 = vpack.c.b16 %v8635, %v8630
    %v8916 = vpack.c.b16 %v8636, %v8631
    %v8917 = vpack.c.b16 %v8642, %v8637
    %v8918 = vpack.c.b16 %v8643, %v8638
    %v8919 = vpack.c.b16 %v8644, %v8639
    %v8920 = vpack.c.b16 %v8645, %v8640
    %v8921 = vpack.c.b16 %v8646, %v8641
    %v8922 = vpack.c.b16 %v8652, %v8647
    %v8923 = vpack.c.b16 %v8653, %v8648
    %v8924 = vpack.c.b16 %v8654, %v8649
    %v8925 = vpack.c.b16 %v8655, %v8650
    %v8926 = vpack.c.b16 %v8656, %v8651
    %v8927 = vpack.c.b16 %v8662, %v8657
    %v8928 = vpack.c.b16 %v8663, %v8658
    %v8929 = vpack.c.b16 %v8664, %v8659
    %v8930 = vpack.c.b16 %v8665, %v8660
    %v8931 = vpack.c.b16 %v8666, %v8661
    %v8932 = vpack.c.b16 %v8672, %v8667
    %v8933 = vpack.c.b16 %v8673, %v8668
    %v8934 = vpack.c.b16 %v8674, %v8669
    %v8935 = vpack.c.b16 %v8675, %v8670
    %v8936 = vpack.c.b16 %v8676, %v8671
    %v8937 = vpack.c.b16 %v8682, %v8677
    %v8938 = vpack.c.b16 %v8683, %v8678
    %v8939 = vpack.c.b16 %v8684, %v8679
    %v8940 = vpack.c.b16 %v8685, %v8680
    %v8941 = vpack.c.b16 %v8686, %v8681
    %v8942 = vpack.c.b16 %v8692, %v8687
    %v8943 = vpack.c.b16 %v8693, %v8688
    %v8944 = vpack.c.b16 %v8694, %v8689
    %v8945 = vpack.c.b16 %v8695, %v8690
    %v8946 = vpack.c.b16 %v8696, %v8691
    %v8947 = vpack.c.b16 %v8702, %v8697
    %v8948 = vpack.c.b16 %v8703, %v8698
    %v8949 = vpack.c.b16 %v8704, %v8699
    %v8950 = vpack.c.b16 %v8705, %v8700
    %v8951 = vpack.c.b16 %v8706, %v8701
    %v8952 = vpack.c.b16 %v8712, %v8707
    %v8953 = vpack.c.b16 %v8713, %v8708
    %v8954 = vpack.c.b16 %v8714, %v8709
    %v8955 = vpack.c.b16 %v8715, %v8710
    %v8956 = vpack.c.b16 %v8716, %v8711
    %v8957 = vpack.c.b16 %v8722, %v8717
    %v8958 = vpack.c.b16 %v8723, %v8718
    %v8959 = vpack.c.b16 %v8724, %v8719
    %v8960 = vpack.c.b16 %v8725, %v8720
    %v8961 = vpack.c.b16 %v8726, %v8721
    %v8962 = vpack.c.b16 %v8732, %v8727
    %v8963 = vpack.c.b16 %v8733, %v8728
    %v8964 = vpack.c.b16 %v8734, %v8729
    %v8965 = vpack.c.b16 %v8735, %v8730
    %v8966 = vpack.c.b16 %v8736, %v8731
    %v8967 = vpack.c.b16 %v8742, %v8737
    %v8968 = vpack.c.b16 %v8743, %v8738
    %v8969 = vpack.c.b16 %v8744, %v8739
    %v8970 = vpack.c.b16 %v8745, %v8740
    %v8971 = vpack.c.b16 %v8746, %v8741
    %v8972 = vpack.c.b16 %v8752, %v8747
    %v8973 = vpack.c.b16 %v8753, %v8748
    %v8974 = vpack.c.b16 %v8754, %v8749
    %v8975 = vpack.c.b16 %v8755, %v8750
    %v8976 = vpack.c.b16 %v8756, %v8751
    %v8977 = vpack.c.b16 %v8762, %v8757
    %v8978 = vpack.c.b16 %v8763, %v8758
    %v8979 = vpack.c.b16 %v8764, %v8759
    %v8980 = vpack.c.b16 %v8765, %v8760
    %v8981 = vpack.c.b16 %v8766, %v8761
    %v8982 = vpack.c.b16 %v8772, %v8767
    %v8983 = vpack.c.b16 %v8773, %v8768
    %v8984 = vpack.c.b16 %v8774, %v8769
    %v8985 = vpack.c.b16 %v8775, %v8770
    %v8986 = vpack.c.b16 %v8776, %v8771
    %v8987 = vpack.c.b16 %v8782, %v8777
    %v8988 = vpack.c.b16 %v8783, %v8778
    %v8989 = vpack.c.b16 %v8784, %v8779
    %v8990 = vpack.c.b16 %v8785, %v8780
    %v8991 = vpack.c.b16 %v8786, %v8781
    %v8992 = vpack.c.b16 %v8792, %v8787
    %v8993 = vpack.c.b16 %v8793, %v8788
    %v8994 = vpack.c.b16 %v8794, %v8789
    %v8995 = vpack.c.b16 %v8795, %v8790
    %v8996 = vpack.c.b16 %v8796, %v8791
    %v8997 = vpack.c.b16 %v8802, %v8797
    %v8998 = vpack.c.b16 %v8803, %v8798
    %v8999 = vpack.c.b16 %v8804, %v8799
    %v9000 = vpack.c.b16 %v8805, %v8800
    %v9001 = vpack.c.b16 %v8806, %v8801
    %v9002 = vpack.c.b16 %v8812, %v8807
    %v9003 = vpack.c.b16 %v8813, %v8808
    %v9004 = vpack.c.b16 %v8814, %v8809
    %v9005 = vpack.c.b16 %v8815, %v8810
    %v9006 = vpack.c.b16 %v8816, %v8811
    %v9007 = vpack.c.b16 %v8822, %v8817
    %v9008 = vpack.c.b16 %v8823, %v8818
    %v9009 = vpack.c.b16 %v8824, %v8819
    %v9010 = vpack.c.b16 %v8825, %v8820
    %v9011 = vpack.c.b16 %v8826, %v8821
    %v9012 = vpack.c.b16 %v8832, %v8827
    %v9013 = vpack.c.b16 %v8833, %v8828
    %v9014 = vpack.c.b16 %v8834, %v8829
    %v9015 = vpack.c.b16 %v8835, %v8830
    %v9016 = vpack.c.b16 %v8836, %v8831
    %v9198 = vsel %vm1400, %v8244, 0
    %v9201 = vsel %vm1400, %v8249, 0
    %9203 = vmatpush.bf16.msra.mxu0 %v8872
    %9204 = vmatpush.bf16.msra.mxu0 %v8867
    %9205 = vmatpush.bf16.msra.mxu0 %v8862
    %9206 = vmatpush.bf16.msra.mxu0 %v8857
    %9207 = vmatpush.bf16.msra.mxu0 %v8852
    %9208 = vmatpush.bf16.msra.mxu0 %v8847
    %9209 = vmatpush.bf16.msra.mxu0 %v8842
    %9210 = vmatpush.bf16.msra.mxu0 %v8837
    %9211 = vmatmul.bf16.gmra.mxu0 %v8240
    %v9212 = vpop.f32.mrf.mxu0
    %v9213 = vadd.f32 %v8251, %v9212
    %v9214 = vpop.f32.mrf.mxu0
    %v9215 = vadd.f32 %v8251, %v9214
    %9216 = vmatmul.bf16.gmra.mxu0 %v8245
    %v9217 = vpop.f32.mrf.mxu0
    %v9218 = vadd.f32 %v8251, %v9217
    %v9219 = vpop.f32.mrf.mxu0
    %v9220 = vadd.f32 %v8251, %v9219
    %9221 = vdwg.mxu0
    %9222 = vmatpush.bf16.msra.mxu0 %v8912
    %9223 = vmatpush.bf16.msra.mxu0 %v8907
    %9224 = vmatpush.bf16.msra.mxu0 %v8902
    %9225 = vmatpush.bf16.msra.mxu0 %v8897
    %9226 = vmatpush.bf16.msra.mxu0 %v8892
    %9227 = vmatpush.bf16.msra.mxu0 %v8887
    %9228 = vmatpush.bf16.msra.mxu0 %v8882
    %9229 = vmatpush.bf16.msra.mxu0 %v8877
    %9230 = vmatmul.bf16.gmra.mxu0 %v8241
    %v9231 = vpop.f32.mrf.mxu0
    %v9232 = vadd.f32 %v9213, %v9231
    %v9233 = vpop.f32.mrf.mxu0
    %v9234 = vadd.f32 %v9215, %v9233
    %9235 = vmatmul.bf16.gmra.mxu0 %v8246
    %v9236 = vpop.f32.mrf.mxu0
    %v9237 = vadd.f32 %v9218, %v9236
    %v9238 = vpop.f32.mrf.mxu0
    %v9239 = vadd.f32 %v9220, %v9238
    %9240 = vdwg.mxu0
    %9241 = vmatpush.bf16.msra.mxu0 %v8952
    %9242 = vmatpush.bf16.msra.mxu0 %v8947
    %9243 = vmatpush.bf16.msra.mxu0 %v8942
    %9244 = vmatpush.bf16.msra.mxu0 %v8937
    %9245 = vmatpush.bf16.msra.mxu0 %v8932
    %9246 = vmatpush.bf16.msra.mxu0 %v8927
    %9247 = vmatpush.bf16.msra.mxu0 %v8922
    %9248 = vmatpush.bf16.msra.mxu0 %v8917
    %9249 = vmatmul.bf16.gmra.mxu0 %v8242
    %v9250 = vpop.f32.mrf.mxu0
    %v9251 = vadd.f32 %v9232, %v9250
    %v9252 = vpop.f32.mrf.mxu0
    %v9253 = vadd.f32 %v9234, %v9252
    %9254 = vmatmul.bf16.gmra.mxu0 %v8247
    %v9255 = vpop.f32.mrf.mxu0
    %v9256 = vadd.f32 %v9237, %v9255
    %v9257 = vpop.f32.mrf.mxu0
    %v9258 = vadd.f32 %v9239, %v9257
    %9259 = vdwg.mxu0
    %9260 = vmatpush.bf16.msra.mxu0 %v8992
    %9261 = vmatpush.bf16.msra.mxu0 %v8987
    %9262 = vmatpush.bf16.msra.mxu0 %v8982
    %9263 = vmatpush.bf16.msra.mxu0 %v8977
    %9264 = vmatpush.bf16.msra.mxu0 %v8972
    %9265 = vmatpush.bf16.msra.mxu0 %v8967
    %9266 = vmatpush.bf16.msra.mxu0 %v8962
    %9267 = vmatpush.bf16.msra.mxu0 %v8957
    %9268 = vmatmul.bf16.gmra.mxu0 %v8243
    %v9269 = vpop.f32.mrf.mxu0
    %v9270 = vadd.f32 %v9251, %v9269
    %v9271 = vpop.f32.mrf.mxu0
    %v9272 = vadd.f32 %v9253, %v9271
    %9273 = vmatmul.bf16.gmra.mxu0 %v8248
    %v9274 = vpop.f32.mrf.mxu0
    %v9275 = vadd.f32 %v9256, %v9274
    %v9276 = vpop.f32.mrf.mxu0
    %v9277 = vadd.f32 %v9258, %v9276
    %9278 = vdwg.mxu0
    %9279 = vmatpush.bf16.msra.mxu0 0
    %9280 = vmatpush.bf16.msra.mxu0 0
    %9281 = vmatpush.bf16.msra.mxu0 0
    %9282 = vmatpush.bf16.msra.mxu0 0
    %9283 = vmatpush.bf16.msra.mxu0 %v9012
    %9284 = vmatpush.bf16.msra.mxu0 %v9007
    %9285 = vmatpush.bf16.msra.mxu0 %v9002
    %9286 = vmatpush.bf16.msra.mxu0 %v8997
    %9287 = vmatmul.bf16.gmra.mxu0 %v9198
    %v9288 = vpop.f32.mrf.mxu0
    %v9289 = vadd.f32 %v9270, %v9288
    %v9290 = vpop.f32.mrf.mxu0
    %v9291 = vadd.f32 %v9272, %v9290
    %9292 = vmatmul.bf16.gmra.mxu0 %v9201
    %v9293 = vpop.f32.mrf.mxu0
    %v9294 = vadd.f32 %v9275, %v9293
    %v9295 = vpop.f32.mrf.mxu0
    %v9296 = vadd.f32 %v9277, %v9295
    %9297 = vdwg.mxu0
    %9298 = vmatpush.bf16.msra.mxu0 %v8873
    %9299 = vmatpush.bf16.msra.mxu0 %v8868
    %9300 = vmatpush.bf16.msra.mxu0 %v8863
    %9301 = vmatpush.bf16.msra.mxu0 %v8858
    %9302 = vmatpush.bf16.msra.mxu0 %v8853
    %9303 = vmatpush.bf16.msra.mxu0 %v8848
    %9304 = vmatpush.bf16.msra.mxu0 %v8843
    %9305 = vmatpush.bf16.msra.mxu0 %v8838
    %9306 = vmatmul.bf16.gmra.mxu0 %v8240
    %v9307 = vpop.f32.mrf.mxu0
    %v9308 = vadd.f32 %v8252, %v9307
    %v9309 = vpop.f32.mrf.mxu0
    %v9310 = vadd.f32 %v8252, %v9309
    %9311 = vmatmul.bf16.gmra.mxu0 %v8245
    %v9312 = vpop.f32.mrf.mxu0
    %v9313 = vadd.f32 %v8252, %v9312
    %v9314 = vpop.f32.mrf.mxu0
    %v9315 = vadd.f32 %v8252, %v9314
    %9316 = vdwg.mxu0
    %9317 = vmatpush.bf16.msra.mxu0 %v8913
    %9318 = vmatpush.bf16.msra.mxu0 %v8908
    %9319 = vmatpush.bf16.msra.mxu0 %v8903
    %9320 = vmatpush.bf16.msra.mxu0 %v8898
    %9321 = vmatpush.bf16.msra.mxu0 %v8893
    %9322 = vmatpush.bf16.msra.mxu0 %v8888
    %9323 = vmatpush.bf16.msra.mxu0 %v8883
    %9324 = vmatpush.bf16.msra.mxu0 %v8878
    %9325 = vmatmul.bf16.gmra.mxu0 %v8241
    %v9326 = vpop.f32.mrf.mxu0
    %v9327 = vadd.f32 %v9308, %v9326
    %v9328 = vpop.f32.mrf.mxu0
    %v9329 = vadd.f32 %v9310, %v9328
    %9330 = vmatmul.bf16.gmra.mxu0 %v8246
    %v9331 = vpop.f32.mrf.mxu0
    %v9332 = vadd.f32 %v9313, %v9331
    %v9333 = vpop.f32.mrf.mxu0
    %v9334 = vadd.f32 %v9315, %v9333
    %9335 = vdwg.mxu0
    %9336 = vmatpush.bf16.msra.mxu0 %v8953
    %9337 = vmatpush.bf16.msra.mxu0 %v8948
    %9338 = vmatpush.bf16.msra.mxu0 %v8943
    %9339 = vmatpush.bf16.msra.mxu0 %v8938
    %9340 = vmatpush.bf16.msra.mxu0 %v8933
    %9341 = vmatpush.bf16.msra.mxu0 %v8928
    %9342 = vmatpush.bf16.msra.mxu0 %v8923
    %9343 = vmatpush.bf16.msra.mxu0 %v8918
    %9344 = vmatmul.bf16.gmra.mxu0 %v8242
    %v9345 = vpop.f32.mrf.mxu0
    %v9346 = vadd.f32 %v9327, %v9345
    %v9347 = vpop.f32.mrf.mxu0
    %v9348 = vadd.f32 %v9329, %v9347
    %9349 = vmatmul.bf16.gmra.mxu0 %v8247
    %v9350 = vpop.f32.mrf.mxu0
    %v9351 = vadd.f32 %v9332, %v9350
    %v9352 = vpop.f32.mrf.mxu0
    %v9353 = vadd.f32 %v9334, %v9352
    %9354 = vdwg.mxu0
    %9355 = vmatpush.bf16.msra.mxu0 %v8993
    %9356 = vmatpush.bf16.msra.mxu0 %v8988
    %9357 = vmatpush.bf16.msra.mxu0 %v8983
    %9358 = vmatpush.bf16.msra.mxu0 %v8978
    %9359 = vmatpush.bf16.msra.mxu0 %v8973
    %9360 = vmatpush.bf16.msra.mxu0 %v8968
    %9361 = vmatpush.bf16.msra.mxu0 %v8963
    %9362 = vmatpush.bf16.msra.mxu0 %v8958
    %9363 = vmatmul.bf16.gmra.mxu0 %v8243
    %v9364 = vpop.f32.mrf.mxu0
    %v9365 = vadd.f32 %v9346, %v9364
    %v9366 = vpop.f32.mrf.mxu0
    %v9367 = vadd.f32 %v9348, %v9366
    %9368 = vmatmul.bf16.gmra.mxu0 %v8248
    %v9369 = vpop.f32.mrf.mxu0
    %v9370 = vadd.f32 %v9351, %v9369
    %v9371 = vpop.f32.mrf.mxu0
    %v9372 = vadd.f32 %v9353, %v9371
    %9373 = vdwg.mxu0
    %9374 = vmatpush.bf16.msra.mxu0 0
    %9375 = vmatpush.bf16.msra.mxu0 0
    %9376 = vmatpush.bf16.msra.mxu0 0
    %9377 = vmatpush.bf16.msra.mxu0 0
    %9378 = vmatpush.bf16.msra.mxu0 %v9013
    %9379 = vmatpush.bf16.msra.mxu0 %v9008
    %9380 = vmatpush.bf16.msra.mxu0 %v9003
    %9381 = vmatpush.bf16.msra.mxu0 %v8998
    %9382 = vmatmul.bf16.gmra.mxu0 %v9198
    %v9383 = vpop.f32.mrf.mxu0
    %v9384 = vadd.f32 %v9365, %v9383
    %v9385 = vpop.f32.mrf.mxu0
    %v9386 = vadd.f32 %v9367, %v9385
    %9387 = vmatmul.bf16.gmra.mxu0 %v9201
    %v9388 = vpop.f32.mrf.mxu0
    %v9389 = vadd.f32 %v9370, %v9388
    %v9390 = vpop.f32.mrf.mxu0
    %v9391 = vadd.f32 %v9372, %v9390
    %9392 = vdwg.mxu0
    %9393 = vmatpush.bf16.msra.mxu0 %v8874
    %9394 = vmatpush.bf16.msra.mxu0 %v8869
    %9395 = vmatpush.bf16.msra.mxu0 %v8864
    %9396 = vmatpush.bf16.msra.mxu0 %v8859
    %9397 = vmatpush.bf16.msra.mxu0 %v8854
    %9398 = vmatpush.bf16.msra.mxu0 %v8849
    %9399 = vmatpush.bf16.msra.mxu0 %v8844
    %9400 = vmatpush.bf16.msra.mxu0 %v8839
    %9401 = vmatmul.bf16.gmra.mxu0 %v8240
    %v9402 = vpop.f32.mrf.mxu0
    %v9403 = vadd.f32 %v8253, %v9402
    %v9404 = vpop.f32.mrf.mxu0
    %v9405 = vadd.f32 %v8253, %v9404
    %9406 = vmatmul.bf16.gmra.mxu0 %v8245
    %v9407 = vpop.f32.mrf.mxu0
    %v9408 = vadd.f32 %v8253, %v9407
    %v9409 = vpop.f32.mrf.mxu0
    %v9410 = vadd.f32 %v8253, %v9409
    %9411 = vdwg.mxu0
    %9412 = vmatpush.bf16.msra.mxu0 %v8914
    %9413 = vmatpush.bf16.msra.mxu0 %v8909
    %9414 = vmatpush.bf16.msra.mxu0 %v8904
    %9415 = vmatpush.bf16.msra.mxu0 %v8899
    %9416 = vmatpush.bf16.msra.mxu0 %v8894
    %9417 = vmatpush.bf16.msra.mxu0 %v8889
    %9418 = vmatpush.bf16.msra.mxu0 %v8884
    %9419 = vmatpush.bf16.msra.mxu0 %v8879
    %9420 = vmatmul.bf16.gmra.mxu0 %v8241
    %v9421 = vpop.f32.mrf.mxu0
    %v9422 = vadd.f32 %v9403, %v9421
    %v9423 = vpop.f32.mrf.mxu0
    %v9424 = vadd.f32 %v9405, %v9423
    %9425 = vmatmul.bf16.gmra.mxu0 %v8246
    %v9426 = vpop.f32.mrf.mxu0
    %v9427 = vadd.f32 %v9408, %v9426
    %v9428 = vpop.f32.mrf.mxu0
    %v9429 = vadd.f32 %v9410, %v9428
    %9430 = vdwg.mxu0
    %9431 = vmatpush.bf16.msra.mxu0 %v8954
    %9432 = vmatpush.bf16.msra.mxu0 %v8949
    %9433 = vmatpush.bf16.msra.mxu0 %v8944
    %9434 = vmatpush.bf16.msra.mxu0 %v8939
    %9435 = vmatpush.bf16.msra.mxu0 %v8934
    %9436 = vmatpush.bf16.msra.mxu0 %v8929
    %9437 = vmatpush.bf16.msra.mxu0 %v8924
    %9438 = vmatpush.bf16.msra.mxu0 %v8919
    %9439 = vmatmul.bf16.gmra.mxu0 %v8242
    %v9440 = vpop.f32.mrf.mxu0
    %v9441 = vadd.f32 %v9422, %v9440
    %v9442 = vpop.f32.mrf.mxu0
    %v9443 = vadd.f32 %v9424, %v9442
    %9444 = vmatmul.bf16.gmra.mxu0 %v8247
    %v9445 = vpop.f32.mrf.mxu0
    %v9446 = vadd.f32 %v9427, %v9445
    %v9447 = vpop.f32.mrf.mxu0
    %v9448 = vadd.f32 %v9429, %v9447
    %9449 = vdwg.mxu0
    %9450 = vmatpush.bf16.msra.mxu0 %v8994
    %9451 = vmatpush.bf16.msra.mxu0 %v8989
    %9452 = vmatpush.bf16.msra.mxu0 %v8984
    %9453 = vmatpush.bf16.msra.mxu0 %v8979
    %9454 = vmatpush.bf16.msra.mxu0 %v8974
    %9455 = vmatpush.bf16.msra.mxu0 %v8969
    %9456 = vmatpush.bf16.msra.mxu0 %v8964
    %9457 = vmatpush.bf16.msra.mxu0 %v8959
    %9458 = vmatmul.bf16.gmra.mxu0 %v8243
    %v9459 = vpop.f32.mrf.mxu0
    %v9460 = vadd.f32 %v9441, %v9459
    %v9461 = vpop.f32.mrf.mxu0
    %v9462 = vadd.f32 %v9443, %v9461
    %9463 = vmatmul.bf16.gmra.mxu0 %v8248
    %v9464 = vpop.f32.mrf.mxu0
    %v9465 = vadd.f32 %v9446, %v9464
    %v9466 = vpop.f32.mrf.mxu0
    %v9467 = vadd.f32 %v9448, %v9466
    %9468 = vdwg.mxu0
    %9469 = vmatpush.bf16.msra.mxu0 0
    %9470 = vmatpush.bf16.msra.mxu0 0
    %9471 = vmatpush.bf16.msra.mxu0 0
    %9472 = vmatpush.bf16.msra.mxu0 0
    %9473 = vmatpush.bf16.msra.mxu0 %v9014
    %9474 = vmatpush.bf16.msra.mxu0 %v9009
    %9475 = vmatpush.bf16.msra.mxu0 %v9004
    %9476 = vmatpush.bf16.msra.mxu0 %v8999
    %9477 = vmatmul.bf16.gmra.mxu0 %v9198
    %v9478 = vpop.f32.mrf.mxu0
    %v9479 = vadd.f32 %v9460, %v9478
    %v9480 = vpop.f32.mrf.mxu0
    %v9481 = vadd.f32 %v9462, %v9480
    %9482 = vmatmul.bf16.gmra.mxu0 %v9201
    %v9483 = vpop.f32.mrf.mxu0
    %v9484 = vadd.f32 %v9465, %v9483
    %v9485 = vpop.f32.mrf.mxu0
    %v9486 = vadd.f32 %v9467, %v9485
    %9487 = vdwg.mxu0
    %9488 = vmatpush.bf16.msra.mxu0 %v8875
    %9489 = vmatpush.bf16.msra.mxu0 %v8870
    %9490 = vmatpush.bf16.msra.mxu0 %v8865
    %9491 = vmatpush.bf16.msra.mxu0 %v8860
    %9492 = vmatpush.bf16.msra.mxu0 %v8855
    %9493 = vmatpush.bf16.msra.mxu0 %v8850
    %9494 = vmatpush.bf16.msra.mxu0 %v8845
    %9495 = vmatpush.bf16.msra.mxu0 %v8840
    %9496 = vmatmul.bf16.gmra.mxu0 %v8240
    %v9497 = vpop.f32.mrf.mxu0
    %v9498 = vadd.f32 %v8254, %v9497
    %v9499 = vpop.f32.mrf.mxu0
    %v9500 = vadd.f32 %v8254, %v9499
    %9501 = vmatmul.bf16.gmra.mxu0 %v8245
    %v9502 = vpop.f32.mrf.mxu0
    %v9503 = vadd.f32 %v8254, %v9502
    %v9504 = vpop.f32.mrf.mxu0
    %v9505 = vadd.f32 %v8254, %v9504
    %9506 = vdwg.mxu0
    %9507 = vmatpush.bf16.msra.mxu0 %v8915
    %9508 = vmatpush.bf16.msra.mxu0 %v8910
    %9509 = vmatpush.bf16.msra.mxu0 %v8905
    %9510 = vmatpush.bf16.msra.mxu0 %v8900
    %9511 = vmatpush.bf16.msra.mxu0 %v8895
    %9512 = vmatpush.bf16.msra.mxu0 %v8890
    %9513 = vmatpush.bf16.msra.mxu0 %v8885
    %9514 = vmatpush.bf16.msra.mxu0 %v8880
    %9515 = vmatmul.bf16.gmra.mxu0 %v8241
    %v9516 = vpop.f32.mrf.mxu0
    %v9517 = vadd.f32 %v9498, %v9516
    %v9518 = vpop.f32.mrf.mxu0
    %v9519 = vadd.f32 %v9500, %v9518
    %9520 = vmatmul.bf16.gmra.mxu0 %v8246
    %v9521 = vpop.f32.mrf.mxu0
    %v9522 = vadd.f32 %v9503, %v9521
    %v9523 = vpop.f32.mrf.mxu0
    %v9524 = vadd.f32 %v9505, %v9523
    %9525 = vdwg.mxu0
    %9526 = vmatpush.bf16.msra.mxu0 %v8955
    %9527 = vmatpush.bf16.msra.mxu0 %v8950
    %9528 = vmatpush.bf16.msra.mxu0 %v8945
    %9529 = vmatpush.bf16.msra.mxu0 %v8940
    %9530 = vmatpush.bf16.msra.mxu0 %v8935
    %9531 = vmatpush.bf16.msra.mxu0 %v8930
    %9532 = vmatpush.bf16.msra.mxu0 %v8925
    %9533 = vmatpush.bf16.msra.mxu0 %v8920
    %9534 = vmatmul.bf16.gmra.mxu0 %v8242
    %v9535 = vpop.f32.mrf.mxu0
    %v9536 = vadd.f32 %v9517, %v9535
    %v9537 = vpop.f32.mrf.mxu0
    %v9538 = vadd.f32 %v9519, %v9537
    %9539 = vmatmul.bf16.gmra.mxu0 %v8247
    %v9540 = vpop.f32.mrf.mxu0
    %v9541 = vadd.f32 %v9522, %v9540
    %v9542 = vpop.f32.mrf.mxu0
    %v9543 = vadd.f32 %v9524, %v9542
    %9544 = vdwg.mxu0
    %9545 = vmatpush.bf16.msra.mxu0 %v8995
    %9546 = vmatpush.bf16.msra.mxu0 %v8990
    %9547 = vmatpush.bf16.msra.mxu0 %v8985
    %9548 = vmatpush.bf16.msra.mxu0 %v8980
    %9549 = vmatpush.bf16.msra.mxu0 %v8975
    %9550 = vmatpush.bf16.msra.mxu0 %v8970
    %9551 = vmatpush.bf16.msra.mxu0 %v8965
    %9552 = vmatpush.bf16.msra.mxu0 %v8960
    %9553 = vmatmul.bf16.gmra.mxu0 %v8243
    %v9554 = vpop.f32.mrf.mxu0
    %v9555 = vadd.f32 %v9536, %v9554
    %v9556 = vpop.f32.mrf.mxu0
    %v9557 = vadd.f32 %v9538, %v9556
    %9558 = vmatmul.bf16.gmra.mxu0 %v8248
    %v9559 = vpop.f32.mrf.mxu0
    %v9560 = vadd.f32 %v9541, %v9559
    %v9561 = vpop.f32.mrf.mxu0
    %v9562 = vadd.f32 %v9543, %v9561
    %9563 = vdwg.mxu0
    %9564 = vmatpush.bf16.msra.mxu0 0
    %9565 = vmatpush.bf16.msra.mxu0 0
    %9566 = vmatpush.bf16.msra.mxu0 0
    %9567 = vmatpush.bf16.msra.mxu0 0
    %9568 = vmatpush.bf16.msra.mxu0 %v9015
    %9569 = vmatpush.bf16.msra.mxu0 %v9010
    %9570 = vmatpush.bf16.msra.mxu0 %v9005
    %9571 = vmatpush.bf16.msra.mxu0 %v9000
    %9572 = vmatmul.bf16.gmra.mxu0 %v9198
    %v9573 = vpop.f32.mrf.mxu0
    %v9574 = vadd.f32 %v9555, %v9573
    %v9575 = vpop.f32.mrf.mxu0
    %v9576 = vadd.f32 %v9557, %v9575
    %9577 = vmatmul.bf16.gmra.mxu0 %v9201
    %v9578 = vpop.f32.mrf.mxu0
    %v9579 = vadd.f32 %v9560, %v9578
    %v9580 = vpop.f32.mrf.mxu0
    %v9581 = vadd.f32 %v9562, %v9580
    %9582 = vdwg.mxu0
    %9583 = vmatpush.bf16.msra.mxu0 %v8876
    %9584 = vmatpush.bf16.msra.mxu0 %v8871
    %9585 = vmatpush.bf16.msra.mxu0 %v8866
    %9586 = vmatpush.bf16.msra.mxu0 %v8861
    %9587 = vmatpush.bf16.msra.mxu0 %v8856
    %9588 = vmatpush.bf16.msra.mxu0 %v8851
    %9589 = vmatpush.bf16.msra.mxu0 %v8846
    %9590 = vmatpush.bf16.msra.mxu0 %v8841
    %9591 = vmatmul.bf16.gmra.mxu0 %v8240
    %v9592 = vpop.f32.mrf.mxu0
    %v9593 = vadd.f32 %v8255, %v9592
    %v9594 = vpop.f32.mrf.mxu0
    %v9595 = vadd.f32 %v8255, %v9594
    %9596 = vmatmul.bf16.gmra.mxu0 %v8245
    %v9597 = vpop.f32.mrf.mxu0
    %v9598 = vadd.f32 %v8255, %v9597
    %v9599 = vpop.f32.mrf.mxu0
    %v9600 = vadd.f32 %v8255, %v9599
    %9601 = vdwg.mxu0
    %9602 = vmatpush.bf16.msra.mxu0 %v8916
    %9603 = vmatpush.bf16.msra.mxu0 %v8911
    %9604 = vmatpush.bf16.msra.mxu0 %v8906
    %9605 = vmatpush.bf16.msra.mxu0 %v8901
    %9606 = vmatpush.bf16.msra.mxu0 %v8896
    %9607 = vmatpush.bf16.msra.mxu0 %v8891
    %9608 = vmatpush.bf16.msra.mxu0 %v8886
    %9609 = vmatpush.bf16.msra.mxu0 %v8881
    %9610 = vmatmul.bf16.gmra.mxu0 %v8241
    %v9611 = vpop.f32.mrf.mxu0
    %v9612 = vadd.f32 %v9593, %v9611
    %v9613 = vpop.f32.mrf.mxu0
    %v9614 = vadd.f32 %v9595, %v9613
    %9615 = vmatmul.bf16.gmra.mxu0 %v8246
    %v9616 = vpop.f32.mrf.mxu0
    %v9617 = vadd.f32 %v9598, %v9616
    %v9618 = vpop.f32.mrf.mxu0
    %v9619 = vadd.f32 %v9600, %v9618
    %9620 = vdwg.mxu0
    %9621 = vmatpush.bf16.msra.mxu0 %v8956
    %9622 = vmatpush.bf16.msra.mxu0 %v8951
    %9623 = vmatpush.bf16.msra.mxu0 %v8946
    %9624 = vmatpush.bf16.msra.mxu0 %v8941
    %9625 = vmatpush.bf16.msra.mxu0 %v8936
    %9626 = vmatpush.bf16.msra.mxu0 %v8931
    %9627 = vmatpush.bf16.msra.mxu0 %v8926
    %9628 = vmatpush.bf16.msra.mxu0 %v8921
    %9629 = vmatmul.bf16.gmra.mxu0 %v8242
    %v9630 = vpop.f32.mrf.mxu0
    %v9631 = vadd.f32 %v9612, %v9630
    %v9632 = vpop.f32.mrf.mxu0
    %v9633 = vadd.f32 %v9614, %v9632
    %9634 = vmatmul.bf16.gmra.mxu0 %v8247
    %v9635 = vpop.f32.mrf.mxu0
    %v9636 = vadd.f32 %v9617, %v9635
    %v9637 = vpop.f32.mrf.mxu0
    %v9638 = vadd.f32 %v9619, %v9637
    %9639 = vdwg.mxu0
    %9640 = vmatpush.bf16.msra.mxu0 %v8996
    %9641 = vmatpush.bf16.msra.mxu0 %v8991
    %9642 = vmatpush.bf16.msra.mxu0 %v8986
    %9643 = vmatpush.bf16.msra.mxu0 %v8981
    %9644 = vmatpush.bf16.msra.mxu0 %v8976
    %9645 = vmatpush.bf16.msra.mxu0 %v8971
    %9646 = vmatpush.bf16.msra.mxu0 %v8966
    %9647 = vmatpush.bf16.msra.mxu0 %v8961
    %9648 = vmatmul.bf16.gmra.mxu0 %v8243
    %v9649 = vpop.f32.mrf.mxu0
    %v9650 = vadd.f32 %v9631, %v9649
    %v9651 = vpop.f32.mrf.mxu0
    %v9652 = vadd.f32 %v9633, %v9651
    %9653 = vmatmul.bf16.gmra.mxu0 %v8248
    %v9654 = vpop.f32.mrf.mxu0
    %v9655 = vadd.f32 %v9636, %v9654
    %v9656 = vpop.f32.mrf.mxu0
    %v9657 = vadd.f32 %v9638, %v9656
    %9658 = vdwg.mxu0
    %9659 = vmatpush.bf16.msra.mxu0 0
    %9660 = vmatpush.bf16.msra.mxu0 0
    %9661 = vmatpush.bf16.msra.mxu0 0
    %9662 = vmatpush.bf16.msra.mxu0 0
    %9663 = vmatpush.bf16.msra.mxu0 %v9016
    %9664 = vmatpush.bf16.msra.mxu0 %v9011
    %9665 = vmatpush.bf16.msra.mxu0 %v9006
    %9666 = vmatpush.bf16.msra.mxu0 %v9001
    %9667 = vmatmul.bf16.gmra.mxu0 %v9198
    %v9668 = vpop.f32.mrf.mxu0
    %v9669 = vadd.f32 %v9650, %v9668
    %v9670 = vpop.f32.mrf.mxu0
    %v9671 = vadd.f32 %v9652, %v9670
    %9672 = vmatmul.bf16.gmra.mxu0 %v9201
    %v9673 = vpop.f32.mrf.mxu0
    %v9674 = vadd.f32 %v9655, %v9673
    %v9675 = vpop.f32.mrf.mxu0
    %v9676 = vadd.f32 %v9657, %v9675
    %9677 = vdwg.mxu0
    %v9678 = vmax.f32 %v9289, 0.0
    %v9679 = vmax.f32 %v9384, 0.0
    %v9680 = vmax.f32 %v9479, 0.0
    %v9681 = vmax.f32 %v9574, 0.0
    %v9682 = vmax.f32 %v9669, 0.0
    %v9683 = vmax.f32 %v9291, 0.0
    %v9684 = vmax.f32 %v9386, 0.0
    %v9685 = vmax.f32 %v9481, 0.0
    %v9686 = vmax.f32 %v9576, 0.0
    %v9687 = vmax.f32 %v9671, 0.0
    %v9688 = vmax.f32 %v9294, 0.0
    %v9689 = vmax.f32 %v9389, 0.0
    %v9690 = vmax.f32 %v9484, 0.0
    %v9691 = vmax.f32 %v9579, 0.0
    %v9692 = vmax.f32 %v9674, 0.0
    %v9693 = vmax.f32 %v9296, 0.0
    %v9694 = vmax.f32 %v9391, 0.0
    %v9695 = vmax.f32 %v9486, 0.0
    %v9696 = vmax.f32 %v9581, 0.0
    %v9697 = vmax.f32 %v9676, 0.0
    %v9698 = vmax.f32 %v9678, -0.01
    %v9699 = vmax.f32 %v9679, -0.01
    %v9700 = vmax.f32 %v9680, -0.01
    %v9701 = vmax.f32 %v9681, -0.01
    %v9702 = vmax.f32 %v9682, -0.01
    %v9703 = vmax.f32 %v9683, -0.01
    %v9704 = vmax.f32 %v9684, -0.01
    %v9705 = vmax.f32 %v9685, -0.01
    %v9706 = vmax.f32 %v9686, -0.01
    %v9707 = vmax.f32 %v9687, -0.01
    %v9708 = vmax.f32 %v9688, -0.01
    %v9709 = vmax.f32 %v9689, -0.01
    %v9710 = vmax.f32 %v9690, -0.01
    %v9711 = vmax.f32 %v9691, -0.01
    %v9712 = vmax.f32 %v9692, -0.01
    %v9713 = vmax.f32 %v9693, -0.01
    %v9714 = vmax.f32 %v9694, -0.01
    %v9715 = vmax.f32 %v9695, -0.01
    %v9716 = vmax.f32 %v9696, -0.01
    %v9717 = vmax.f32 %v9697, -0.01
    %v9718 = vmin.f32 %v9698, 0.01
    %v9719 = vmin.f32 %v9699, 0.01
    %v9720 = vmin.f32 %v9700, 0.01
    %v9721 = vmin.f32 %v9701, 0.01
    %v9722 = vmin.f32 %v9702, 0.01
    %v9723 = vmin.f32 %v9703, 0.01
    %v9724 = vmin.f32 %v9704, 0.01
    %v9725 = vmin.f32 %v9705, 0.01
    %v9726 = vmin.f32 %v9706, 0.01
    %v9727 = vmin.f32 %v9707, 0.01
    %v9728 = vmin.f32 %v9708, 0.01
    %v9729 = vmin.f32 %v9709, 0.01
    %v9730 = vmin.f32 %v9710, 0.01
    %v9731 = vmin.f32 %v9711, 0.01
    %v9732 = vmin.f32 %v9712, 0.01
    %v9733 = vmin.f32 %v9713, 0.01
    %v9734 = vmin.f32 %v9714, 0.01
    %v9735 = vmin.f32 %v9715, 0.01
    %v9736 = vmin.f32 %v9716, 0.01
    %v9737 = vmin.f32 %v9717, 0.01
    %v9738 = vsub.f32 %v9678, %v9718
    %v9739 = vsub.f32 %v9679, %v9719
    %v9740 = vsub.f32 %v9680, %v9720
    %v9741 = vsub.f32 %v9681, %v9721
    %v9742 = vsub.f32 %v9682, %v9722
    %v9743 = vsub.f32 %v9683, %v9723
    %v9744 = vsub.f32 %v9684, %v9724
    %v9745 = vsub.f32 %v9685, %v9725
    %v9746 = vsub.f32 %v9686, %v9726
    %v9747 = vsub.f32 %v9687, %v9727
    %v9748 = vsub.f32 %v9688, %v9728
    %v9749 = vsub.f32 %v9689, %v9729
    %v9750 = vsub.f32 %v9690, %v9730
    %v9751 = vsub.f32 %v9691, %v9731
    %v9752 = vsub.f32 %v9692, %v9732
    %v9753 = vsub.f32 %v9693, %v9733
    %v9754 = vsub.f32 %v9694, %v9734
    %v9755 = vsub.f32 %v9695, %v9735
    %v9756 = vsub.f32 %v9696, %v9736
    %v9757 = vsub.f32 %v9697, %v9737
    %v9758 = vadd.f32 %v8000, %v9738
    %v9759 = vadd.f32 %v8001, %v9739
    %v9760 = vadd.f32 %v8002, %v9740
    %v9761 = vadd.f32 %v8003, %v9741
    %v9762 = vadd.f32 %v8004, %v9742
    %v9763 = vadd.f32 %v8005, %v9743
    %v9764 = vadd.f32 %v8006, %v9744
    %v9765 = vadd.f32 %v8007, %v9745
    %v9766 = vadd.f32 %v8008, %v9746
    %v9767 = vadd.f32 %v8009, %v9747
    %v9768 = vadd.f32 %v8010, %v9748
    %v9769 = vadd.f32 %v8011, %v9749
    %v9770 = vadd.f32 %v8012, %v9750
    %v9771 = vadd.f32 %v8013, %v9751
    %v9772 = vadd.f32 %v8014, %v9752
    %v9773 = vadd.f32 %v8015, %v9753
    %v9774 = vadd.f32 %v8016, %v9754
    %v9775 = vadd.f32 %v8017, %v9755
    %v9776 = vadd.f32 %v8018, %v9756
    %v9777 = vadd.f32 %v8019, %v9757
    %v9778 = vld [vmem:[%s8 + $0xb40] sm:$0xff]
    %v9779 = vld [vmem:[%s8 + $0xb48] sm:$0xff]
    %v9780 = vld [vmem:[%s8 + $0xb50] sm:$0xf]
    %v9781 = vld [vmem:[%s8 + $0xb54] sm:$0xff]
    %v9782 = vld [vmem:[%s8 + $0xb5c] sm:$0xff]
    %v9783 = vld [vmem:[%s8 + $0xb64] sm:$0xf]
    %v9784 = vld [vmem:[%s8 + $0xb68] sm:$0xff]
    %v9785 = vld [vmem:[%s8 + $0xb70] sm:$0xff]
    %v9786 = vld [vmem:[%s8 + $0xb78] sm:$0xf]
    %v9787 = vld [vmem:[%s8 + $0xb7c] sm:$0xff]
    %v9788 = vld [vmem:[%s8 + $0xb84] sm:$0xff]
    %v9789 = vld [vmem:[%s8 + $0xb8c] sm:$0xf]
    %v9790 = vld [vmem:[%s8 + $0xb90] sm:$0xff]
    %v9791 = vld [vmem:[%s8 + $0xb98] sm:$0xff]
    %v9792 = vld [vmem:[%s8 + $0xba0] sm:$0xf]
    %v9793 = vld [vmem:[%s8 + $0xba4] sm:$0xff]
    %v9794 = vld [vmem:[%s8 + $0xbac] sm:$0xff]
    %v9795 = vld [vmem:[%s8 + $0xbb4] sm:$0xf]
    %v9796 = vld [vmem:[%s8 + $0xbb8] sm:$0xff]
    %v9797 = vld [vmem:[%s8 + $0xbc0] sm:$0xff]
    %v9798 = vld [vmem:[%s8 + $0xbc8] sm:$0xf]
    %v9799 = vld [vmem:[%s8 + $0xbcc] sm:$0xff]
    %v9800 = vld [vmem:[%s8 + $0xbd4] sm:$0xff]
    %v9801 = vld [vmem:[%s8 + $0xbdc] sm:$0xf]
    %v9802 = vld [vmem:[%s8 + $0xbe0] sm:$0xff]
    %v9803 = vld [vmem:[%s8 + $0xbe8] sm:$0xff]
    %v9804 = vld [vmem:[%s8 + $0xbf0] sm:$0xf]
    %v9805 = vld [vmem:[%s8 + $0xbf4] sm:$0xff]
    %v9806 = vld [vmem:[%s8 + $0xbfc] sm:$0xff]
    %v9807 = vld [vmem:[%s8 + $0xc04] sm:$0xf]
    %v9808 = vld [vmem:[%s8 + $0xc08] sm:$0xff]
    %v9809 = vld [vmem:[%s8 + $0xc10] sm:$0xff]
    %v9810 = vld [vmem:[%s8 + $0xc18] sm:$0xf]
    %v9811 = vld [vmem:[%s8 + $0xc1c] sm:$0xff]
    %v9812 = vld [vmem:[%s8 + $0xc24] sm:$0xff]
    %v9813 = vld [vmem:[%s8 + $0xc2c] sm:$0xf]
    %v9814 = vld [vmem:[%s8 + $0xc30] sm:$0xff]
    %v9815 = vld [vmem:[%s8 + $0xc38] sm:$0xff]
    %v9816 = vld [vmem:[%s8 + $0xc40] sm:$0xf]
    %v9817 = vld [vmem:[%s8 + $0xc44] sm:$0xff]
    %v9818 = vld [vmem:[%s8 + $0xc4c] sm:$0xff]
    %v9819 = vld [vmem:[%s8 + $0xc54] sm:$0xf]
    %v9820 = vld [vmem:[%s8 + $0xc58] sm:$0xff]
    %v9821 = vld [vmem:[%s8 + $0xc60] sm:$0xff]
    %v9822 = vld [vmem:[%s8 + $0xc68] sm:$0xf]
    %v9823 = vld [vmem:[%s8 + $0xc6c] sm:$0xff]
    %v9824 = vld [vmem:[%s8 + $0xc74] sm:$0xff]
    %v9825 = vld [vmem:[%s8 + $0xc7c] sm:$0xf]
    %v9826 = vld [vmem:[%s8 + $0xc80] sm:$0xff]
    %v9827 = vld [vmem:[%s8 + $0xc88] sm:$0xff]
    %v9828 = vld [vmem:[%s8 + $0xc90] sm:$0xf]
    %v9829 = vld [vmem:[%s8 + $0xc94] sm:$0xff]
    %v9830 = vld [vmem:[%s8 + $0xc9c] sm:$0xff]
    %v9831 = vld [vmem:[%s8 + $0xca4] sm:$0xf]
    %v9832 = vld [vmem:[%s8 + $0xca8] sm:$0xff]
    %v9833 = vld [vmem:[%s8 + $0xcb0] sm:$0xff]
    %v9834 = vld [vmem:[%s8 + $0xcb8] sm:$0xf]
    %v9835 = vld [vmem:[%s8 + $0xcbc] sm:$0xff]
    %v9836 = vld [vmem:[%s8 + $0xcc4] sm:$0xff]
    %v9837 = vld [vmem:[%s8 + $0xccc] sm:$0xf]
    %v9838 = vld [vmem:[%s8 + $0xcd0] sm:$0xff]
    %v9839 = vld [vmem:[%s8 + $0xcd8] sm:$0xff]
    %v9840 = vld [vmem:[%s8 + $0xce0] sm:$0xf]
    %v9841 = vld [vmem:[%s8 + $0xce4] sm:$0xff]
    %v9842 = vld [vmem:[%s8 + $0xcec] sm:$0xff]
    %v9843 = vld [vmem:[%s8 + $0xcf4] sm:$0xf]
    %v9844 = vld [vmem:[%s8 + $0xcf8] sm:$0xff]
    %v9845 = vld [vmem:[%s8 + $0xd00] sm:$0xff]
    %v9846 = vld [vmem:[%s8 + $0xd08] sm:$0xf]
    %v9847 = vld [vmem:[%s8 + $0xd0c] sm:$0xff]
    %v9848 = vld [vmem:[%s8 + $0xd14] sm:$0xff]
    %v9849 = vld [vmem:[%s8 + $0xd1c] sm:$0xf]
    %v9850 = vld [vmem:[%s8 + $0xd20] sm:$0xff]
    %v9851 = vld [vmem:[%s8 + $0xd28] sm:$0xff]
    %v9852 = vld [vmem:[%s8 + $0xd30] sm:$0xf]
    %v9853 = vld [vmem:[%s8 + $0xd34] sm:$0xff]
    %v9854 = vld [vmem:[%s8 + $0xd3c] sm:$0xff]
    %v9855 = vld [vmem:[%s8 + $0xd44] sm:$0xf]
    %v9856 = vld [vmem:[%s8 + $0xd48] sm:$0xff]
    %v9857 = vld [vmem:[%s8 + $0xd50] sm:$0xff]
    %v9858 = vld [vmem:[%s8 + $0xd58] sm:$0xf]
    %v9859 = vld [vmem:[%s8 + $0xd5c] sm:$0xff]
    %v9860 = vld [vmem:[%s8 + $0xd64] sm:$0xff]
    %v9861 = vld [vmem:[%s8 + $0xd6c] sm:$0xf]
    %v9862 = vld [vmem:[%s8 + $0xd70] sm:$0xff]
    %v9863 = vld [vmem:[%s8 + $0xd78] sm:$0xff]
    %v9864 = vld [vmem:[%s8 + $0xd80] sm:$0xf]
    %v9865 = vld [vmem:[%s8 + $0xd84] sm:$0xff]
    %v9866 = vld [vmem:[%s8 + $0xd8c] sm:$0xff]
    %v9867 = vld [vmem:[%s8 + $0xd94] sm:$0xf]
    %v9868 = vld [vmem:[%s8 + $0xd98] sm:$0xff]
    %v9869 = vld [vmem:[%s8 + $0xda0] sm:$0xff]
    %v9870 = vld [vmem:[%s8 + $0xda8] sm:$0xf]
    %v9871 = vld [vmem:[%s8 + $0xdac] sm:$0xff]
    %v9872 = vld [vmem:[%s8 + $0xdb4] sm:$0xff]
    %v9873 = vld [vmem:[%s8 + $0xdbc] sm:$0xf]
    %v9874 = vld [vmem:[%s8 + $0xdc0] sm:$0xff]
    %v9875 = vld [vmem:[%s8 + $0xdc8] sm:$0xff]
    %v9876 = vld [vmem:[%s8 + $0xdd0] sm:$0xf]
    %v9877 = vld [vmem:[%s8 + $0xdd4] sm:$0xff]
    %v9878 = vld [vmem:[%s8 + $0xddc] sm:$0xff]
    %v9879 = vld [vmem:[%s8 + $0xde4] sm:$0xf]
    %v9880 = vld [vmem:[%s8 + $0xde8] sm:$0xff]
    %v9881 = vld [vmem:[%s8 + $0xdf0] sm:$0xff]
    %v9882 = vld [vmem:[%s8 + $0xdf8] sm:$0xf]
    %v9883 = vld [vmem:[%s8 + $0xdfc] sm:$0xff]
    %v9884 = vld [vmem:[%s8 + $0xe04] sm:$0xff]
    %v9885 = vld [vmem:[%s8 + $0xe0c] sm:$0xf]
    %v9886 = vld [vmem:[%s8 + $0xe10] sm:$0xff]
    %v9887 = vld [vmem:[%s8 + $0xe18] sm:$0xff]
    %v9888 = vld [vmem:[%s8 + $0xe20] sm:$0xf]
    %v9889 = vld [vmem:[%s8 + $0xe24] sm:$0xff]
    %v9890 = vld [vmem:[%s8 + $0xe2c] sm:$0xff]
    %v9891 = vld [vmem:[%s8 + $0xe34] sm:$0xf]
    %v9892 = vld [vmem:[%s8 + $0xe38] sm:$0xff]
    %v9893 = vld [vmem:[%s8 + $0xe40] sm:$0xff]
    %v9894 = vld [vmem:[%s8 + $0xe48] sm:$0xf]
    %v9895 = vld [vmem:[%s8 + $0xe4c] sm:$0xff]
    %v9896 = vld [vmem:[%s8 + $0xe54] sm:$0xff]
    %v9897 = vld [vmem:[%s8 + $0xe5c] sm:$0xf]
    %v9898 = vld [vmem:[%s8 + $0xe60] sm:$0xff]
    %v9899 = vld [vmem:[%s8 + $0xe68] sm:$0xff]
    %v9900 = vld [vmem:[%s8 + $0xe70] sm:$0xf]
    %v9901 = vld [vmem:[%s8 + $0xe74] sm:$0xff]
    %v9902 = vld [vmem:[%s8 + $0xe7c] sm:$0xff]
    %v9903 = vld [vmem:[%s8 + $0xe84] sm:$0xf]
    %v9904 = vld [vmem:[%s8 + $0xe88] sm:$0xff]
    %v9905 = vld [vmem:[%s8 + $0xe90] sm:$0xff]
    %v9906 = vld [vmem:[%s8 + $0xe98] sm:$0xf]
    %v9907 = vld [vmem:[%s8 + $0xe9c] sm:$0xff]
    %v9908 = vld [vmem:[%s8 + $0xea4] sm:$0xff]
    %v9909 = vld [vmem:[%s8 + $0xeac] sm:$0xf]
    %v9910 = vld [vmem:[%s8 + $0xeb0] sm:$0xff]
    %v9911 = vld [vmem:[%s8 + $0xeb8] sm:$0xff]
    %v9912 = vld [vmem:[%s8 + $0xec0] sm:$0xf]
    %v9913 = vld [vmem:[%s8 + $0xec4] sm:$0xff]
    %v9914 = vld [vmem:[%s8 + $0xecc] sm:$0xff]
    %v9915 = vld [vmem:[%s8 + $0xed4] sm:$0xf]
    %v9916 = vld [vmem:[%s8 + $0xed8] sm:$0xff]
    %v9917 = vld [vmem:[%s8 + $0xee0] sm:$0xff]
    %v9918 = vld [vmem:[%s8 + $0xee8] sm:$0xf]
    %v9919 = vld [vmem:[%s8 + $0xeec] sm:$0xff]
    %v9920 = vld [vmem:[%s8 + $0xef4] sm:$0xff]
    %v9921 = vld [vmem:[%s8 + $0xefc] sm:$0xf]
    %v9922 = vld [vmem:[%s8 + $0xf00] sm:$0xff]
    %v9923 = vld [vmem:[%s8 + $0xf08] sm:$0xff]
    %v9924 = vld [vmem:[%s8 + $0xf10] sm:$0xf]
    %v9925 = vld [vmem:[%s8 + $0xf14] sm:$0xff]
    %v9926 = vld [vmem:[%s8 + $0xf1c] sm:$0xff]
    %v9927 = vld [vmem:[%s8 + $0xf24] sm:$0xf]
    %v9928 = vld [vmem:[%s8 + $0xf28] sm:$0xff]
    %v9929 = vld [vmem:[%s8 + $0xf30] sm:$0xff]
    %v9930 = vld [vmem:[%s8 + $0xf38] sm:$0xf]
    %v9931 = vld [vmem:[%s8 + $0xf3c] sm:$0xff]
    %v9932 = vld [vmem:[%s8 + $0xf44] sm:$0xff]
    %v9933 = vld [vmem:[%s8 + $0xf4c] sm:$0xf]
    %v9934 = vld [vmem:[%s8 + $0xf50] sm:$0xff]
    %v9935 = vld [vmem:[%s8 + $0xf58] sm:$0xff]
    %v9936 = vld [vmem:[%s8 + $0xf60] sm:$0xf]
    %v9937 = vld [vmem:[%s8 + $0xf64] sm:$0xff]
    %v9938 = vld [vmem:[%s8 + $0xf6c] sm:$0xff]
    %v9939 = vld [vmem:[%s8 + $0xf74] sm:$0xf]
    %v9940 = vld [vmem:[%s8 + $0xf78] sm:$0xff]
    %v9941 = vld [vmem:[%s8 + $0xf80] sm:$0xff]
    %v9942 = vld [vmem:[%s8 + $0xf88] sm:$0xf]
    %v9943 = vld [vmem:[%s8 + $0xf8c] sm:$0xff]
    %v9944 = vld [vmem:[%s8 + $0xf94] sm:$0xff]
    %v9945 = vld [vmem:[%s8 + $0xf9c] sm:$0xf]
    %v9946 = vld [vmem:[%s8 + $0xfa0] sm:$0xff]
    %v9947 = vld [vmem:[%s8 + $0xfa8] sm:$0xff]
    %v9948 = vld [vmem:[%s8 + $0xfb0] sm:$0xf]
    %v9949 = vld [vmem:[%s8 + $0xfb4] sm:$0xff]
    %v9950 = vld [vmem:[%s8 + $0xfbc] sm:$0xff]
    %v9951 = vld [vmem:[%s8 + $0xfc4] sm:$0xf]
    %v9952 = vld [vmem:[%s8 + $0xfc8] sm:$0xff]
    %v9953 = vld [vmem:[%s8 + $0xfd0] sm:$0xff]
    %v9954 = vld [vmem:[%s8 + $0xfd8] sm:$0xf]
    %v9955 = vld [vmem:[%s8 + $0xfdc] sm:$0xff]
    %v9956 = vld [vmem:[%s8 + $0xfe4] sm:$0xff]
    %v9957 = vld [vmem:[%s8 + $0xfec] sm:$0xf]
    %v9958 = vld [vmem:[%s8 + $0xff0] sm:$0xff]
    %v9959 = vld [vmem:[%s8 + $0xff8] sm:$0xff]
    %v9960 = vld [vmem:[%s8 + $0x1000] sm:$0xf]
    %v9961 = vld [vmem:[%s8 + $0x1004] sm:$0xff]
    %v9962 = vld [vmem:[%s8 + $0x100c] sm:$0xff]
    %v9963 = vld [vmem:[%s8 + $0x1014] sm:$0xf]
    %v9964 = vld [vmem:[%s8 + $0x1018] sm:$0xff]
    %v9965 = vld [vmem:[%s8 + $0x1020] sm:$0xff]
    %v9966 = vld [vmem:[%s8 + $0x1028] sm:$0xf]
    %v9967 = vld [vmem:[%s8 + $0x102c] sm:$0xff]
    %v9968 = vld [vmem:[%s8 + $0x1034] sm:$0xff]
    %v9969 = vld [vmem:[%s8 + $0x103c] sm:$0xf]
    %v9970 = vld [vmem:[%s8 + $0x1040] sm:$0xff]
    %v9971 = vld [vmem:[%s8 + $0x1048] sm:$0xff]
    %v9972 = vld [vmem:[%s8 + $0x1050] sm:$0xf]
    %v9973 = vld [vmem:[%s8 + $0x1054] sm:$0xff]
    %v9974 = vld [vmem:[%s8 + $0x105c] sm:$0xff]
    %v9975 = vld [vmem:[%s8 + $0x1064] sm:$0xf]
    %v9976 = vld [vmem:[%s8 + $0x1068] sm:$0xff]
    %v9977 = vld [vmem:[%s8 + $0x1070] sm:$0xff]
    %v9978 = vld [vmem:[%s8 + $0x1078] sm:$0xf]
    %v9979 = vld [vmem:[%s8 + $0x107c] sm:$0xff]
    %v9980 = vld [vmem:[%s8 + $0x1084] sm:$0xff]
    %v9981 = vld [vmem:[%s8 + $0x108c] sm:$0xf]
    %v9982 = vld [vmem:[%s8 + $0x1090] sm:$0xff]
    %v9983 = vld [vmem:[%s8 + $0x1098] sm:$0xff]
    %v9984 = vld [vmem:[%s8 + $0x10a0] sm:$0xf]
    %v9985 = vld [vmem:[%s8 + $0x10a4] sm:$0xff]
    %v9986 = vld [vmem:[%s8 + $0x10ac] sm:$0xff]
    %v9987 = vld [vmem:[%s8 + $0x10b4] sm:$0xf]
    %v9988 = vld [vmem:[%s8 + $0x10b8] sm:$0xff]
    %v9989 = vld [vmem:[%s8 + $0x10c0] sm:$0xff]
    %v9990 = vld [vmem:[%s8 + $0x10c8] sm:$0xf]
    %v9991 = vld [vmem:[%s8 + $0x10cc] sm:$0xff]
    %v9992 = vld [vmem:[%s8 + $0x10d4] sm:$0xff]
    %v9993 = vld [vmem:[%s8 + $0x10dc] sm:$0xf]
    %s9994 = scalar_lea.vmem %s12, 2
    %v9995 = vld [vmem:[%s9994] ss:$8 sm:$0xf]
    %v9996 = vld [vmem:[%s9994] ss:$8 sm:$0x10]
    %v9997 = vor.u32 %v9995, %v9996
    %v9998 = vpack.c.bf16 %v9683, %v9678
    %v9999 = vpack.c.bf16 %v9684, %v9679
    %v10000 = vpack.c.bf16 %v9685, %v9680
    %v10001 = vpack.c.bf16 %v9686, %v9681
    %v10002 = vpack.c.bf16 %v9687, %v9682
    %v10003 = vpack.c.bf16 %v9693, %v9688
    %v10004 = vpack.c.bf16 %v9694, %v9689
    %v10005 = vpack.c.bf16 %v9695, %v9690
    %v10006 = vpack.c.bf16 %v9696, %v9691
    %v10007 = vpack.c.bf16 %v9697, %v9692
    %v10009 = vperm.slane %v9997, 0
    %v10010 = vperm.slane %v9997, 1
    %v10011 = vperm.slane %v9997, 2
    %v10012 = vperm.slane %v9997, 3
    %v10013 = vperm.slane %v9997, 4
    %v10235 = vunpack.c.l.b16 %v9778
    %v10236 = vunpack.c.h.b16 %v9778
    %v10237 = vunpack.c.l.b16 %v9779
    %v10238 = vunpack.c.h.b16 %v9779
    %v10239 = vunpack.c.l.b16 %v9780
    %v10240 = vunpack.c.l.b16 %v9781
    %v10241 = vunpack.c.h.b16 %v9781
    %v10242 = vunpack.c.l.b16 %v9782
    %v10243 = vunpack.c.h.b16 %v9782
    %v10244 = vunpack.c.l.b16 %v9783
    %v10245 = vunpack.c.l.b16 %v9784
    %v10246 = vunpack.c.h.b16 %v9784
    %v10247 = vunpack.c.l.b16 %v9785
    %v10248 = vunpack.c.h.b16 %v9785
    %v10249 = vunpack.c.l.b16 %v9786
    %v10250 = vunpack.c.l.b16 %v9787
    %v10251 = vunpack.c.h.b16 %v9787
    %v10252 = vunpack.c.l.b16 %v9788
    %v10253 = vunpack.c.h.b16 %v9788
    %v10254 = vunpack.c.l.b16 %v9789
    %v10255 = vunpack.c.l.b16 %v9790
    %v10256 = vunpack.c.h.b16 %v9790
    %v10257 = vunpack.c.l.b16 %v9791
    %v10258 = vunpack.c.h.b16 %v9791
    %v10259 = vunpack.c.l.b16 %v9792
    %v10260 = vunpack.c.l.b16 %v9793
    %v10261 = vunpack.c.h.b16 %v9793
    %v10262 = vunpack.c.l.b16 %v9794
    %v10263 = vunpack.c.h.b16 %v9794
    %v10264 = vunpack.c.l.b16 %v9795
    %v10265 = vunpack.c.l.b16 %v9796
    %v10266 = vunpack.c.h.b16 %v9796
    %v10267 = vunpack.c.l.b16 %v9797
    %v10268 = vunpack.c.h.b16 %v9797
    %v10269 = vunpack.c.l.b16 %v9798
    %v10270 = vunpack.c.l.b16 %v9799
    %v10271 = vunpack.c.h.b16 %v9799
    %v10272 = vunpack.c.l.b16 %v9800
    %v10273 = vunpack.c.h.b16 %v9800
    %v10274 = vunpack.c.l.b16 %v9801
    %v10275 = vunpack.c.l.b16 %v9802
    %v10276 = vunpack.c.h.b16 %v9802
    %v10277 = vunpack.c.l.b16 %v9803
    %v10278 = vunpack.c.h.b16 %v9803
    %v10279 = vunpack.c.l.b16 %v9804
    %v10280 = vunpack.c.l.b16 %v9805
    %v10281 = vunpack.c.h.b16 %v9805
    %v10282 = vunpack.c.l.b16 %v9806
    %v10283 = vunpack.c.h.b16 %v9806
    %v10284 = vunpack.c.l.b16 %v9807
    %v10285 = vunpack.c.l.b16 %v9808
    %v10286 = vunpack.c.h.b16 %v9808
    %v10287 = vunpack.c.l.b16 %v9809
    %v10288 = vunpack.c.h.b16 %v9809
    %v10289 = vunpack.c.l.b16 %v9810
    %v10290 = vunpack.c.l.b16 %v9811
    %v10291 = vunpack.c.h.b16 %v9811
    %v10292 = vunpack.c.l.b16 %v9812
    %v10293 = vunpack.c.h.b16 %v9812
    %v10294 = vunpack.c.l.b16 %v9813
    %v10295 = vunpack.c.l.b16 %v9814
    %v10296 = vunpack.c.h.b16 %v9814
    %v10297 = vunpack.c.l.b16 %v9815
    %v10298 = vunpack.c.h.b16 %v9815
    %v10299 = vunpack.c.l.b16 %v9816
    %v10300 = vunpack.c.l.b16 %v9817
    %v10301 = vunpack.c.h.b16 %v9817
    %v10302 = vunpack.c.l.b16 %v9818
    %v10303 = vunpack.c.h.b16 %v9818
    %v10304 = vunpack.c.l.b16 %v9819
    %v10305 = vunpack.c.l.b16 %v9820
    %v10306 = vunpack.c.h.b16 %v9820
    %v10307 = vunpack.c.l.b16 %v9821
    %v10308 = vunpack.c.h.b16 %v9821
    %v10309 = vunpack.c.l.b16 %v9822
    %v10310 = vunpack.c.l.b16 %v9823
    %v10311 = vunpack.c.h.b16 %v9823
    %v10312 = vunpack.c.l.b16 %v9824
    %v10313 = vunpack.c.h.b16 %v9824
    %v10314 = vunpack.c.l.b16 %v9825
    %v10315 = vunpack.c.l.b16 %v9826
    %v10316 = vunpack.c.h.b16 %v9826
    %v10317 = vunpack.c.l.b16 %v9827
    %v10318 = vunpack.c.h.b16 %v9827
    %v10319 = vunpack.c.l.b16 %v9828
    %v10320 = vunpack.c.l.b16 %v9829
    %v10321 = vunpack.c.h.b16 %v9829
    %v10322 = vunpack.c.l.b16 %v9830
    %v10323 = vunpack.c.h.b16 %v9830
    %v10324 = vunpack.c.l.b16 %v9831
    %v10325 = vunpack.c.l.b16 %v9832
    %v10326 = vunpack.c.h.b16 %v9832
    %v10327 = vunpack.c.l.b16 %v9833
    %v10328 = vunpack.c.h.b16 %v9833
    %v10329 = vunpack.c.l.b16 %v9834
    %v10330 = vunpack.c.l.b16 %v9835
    %v10331 = vunpack.c.h.b16 %v9835
    %v10332 = vunpack.c.l.b16 %v9836
    %v10333 = vunpack.c.h.b16 %v9836
    %v10334 = vunpack.c.l.b16 %v9837
    %v10335 = vunpack.c.l.b16 %v9838
    %v10336 = vunpack.c.h.b16 %v9838
    %v10337 = vunpack.c.l.b16 %v9839
    %v10338 = vunpack.c.h.b16 %v9839
    %v10339 = vunpack.c.l.b16 %v9840
    %v10340 = vunpack.c.l.b16 %v9841
    %v10341 = vunpack.c.h.b16 %v9841
    %v10342 = vunpack.c.l.b16 %v9842
    %v10343 = vunpack.c.h.b16 %v9842
    %v10344 = vunpack.c.l.b16 %v9843
    %v10345 = vunpack.c.l.b16 %v9844
    %v10346 = vunpack.c.h.b16 %v9844
    %v10347 = vunpack.c.l.b16 %v9845
    %v10348 = vunpack.c.h.b16 %v9845
    %v10349 = vunpack.c.l.b16 %v9846
    %v10350 = vunpack.c.l.b16 %v9847
    %v10351 = vunpack.c.h.b16 %v9847
    %v10352 = vunpack.c.l.b16 %v9848
    %v10353 = vunpack.c.h.b16 %v9848
    %v10354 = vunpack.c.l.b16 %v9849
    %v10355 = vunpack.c.l.b16 %v9850
    %v10356 = vunpack.c.h.b16 %v9850
    %v10357 = vunpack.c.l.b16 %v9851
    %v10358 = vunpack.c.h.b16 %v9851
    %v10359 = vunpack.c.l.b16 %v9852
    %v10360 = vunpack.c.l.b16 %v9853
    %v10361 = vunpack.c.h.b16 %v9853
    %v10362 = vunpack.c.l.b16 %v9854
    %v10363 = vunpack.c.h.b16 %v9854
    %v10364 = vunpack.c.l.b16 %v9855
    %v10365 = vunpack.c.l.b16 %v9856
    %v10366 = vunpack.c.h.b16 %v9856
    %v10367 = vunpack.c.l.b16 %v9857
    %v10368 = vunpack.c.h.b16 %v9857
    %v10369 = vunpack.c.l.b16 %v9858
    %v10370 = vunpack.c.l.b16 %v9859
    %v10371 = vunpack.c.h.b16 %v9859
    %v10372 = vunpack.c.l.b16 %v9860
    %v10373 = vunpack.c.h.b16 %v9860
    %v10374 = vunpack.c.l.b16 %v9861
    %v10375 = vunpack.c.l.b16 %v9862
    %v10376 = vunpack.c.h.b16 %v9862
    %v10377 = vunpack.c.l.b16 %v9863
    %v10378 = vunpack.c.h.b16 %v9863
    %v10379 = vunpack.c.l.b16 %v9864
    %v10380 = vunpack.c.l.b16 %v9865
    %v10381 = vunpack.c.h.b16 %v9865
    %v10382 = vunpack.c.l.b16 %v9866
    %v10383 = vunpack.c.h.b16 %v9866
    %v10384 = vunpack.c.l.b16 %v9867
    %v10385 = vunpack.c.l.b16 %v9868
    %v10386 = vunpack.c.h.b16 %v9868
    %v10387 = vunpack.c.l.b16 %v9869
    %v10388 = vunpack.c.h.b16 %v9869
    %v10389 = vunpack.c.l.b16 %v9870
    %v10390 = vunpack.c.l.b16 %v9871
    %v10391 = vunpack.c.h.b16 %v9871
    %v10392 = vunpack.c.l.b16 %v9872
    %v10393 = vunpack.c.h.b16 %v9872
    %v10394 = vunpack.c.l.b16 %v9873
    %v10395 = vunpack.c.l.b16 %v9874
    %v10396 = vunpack.c.h.b16 %v9874
    %v10397 = vunpack.c.l.b16 %v9875
    %v10398 = vunpack.c.h.b16 %v9875
    %v10399 = vunpack.c.l.b16 %v9876
    %v10400 = vunpack.c.l.b16 %v9877
    %v10401 = vunpack.c.h.b16 %v9877
    %v10402 = vunpack.c.l.b16 %v9878
    %v10403 = vunpack.c.h.b16 %v9878
    %v10404 = vunpack.c.l.b16 %v9879
    %v10405 = vunpack.c.l.b16 %v9880
    %v10406 = vunpack.c.h.b16 %v9880
    %v10407 = vunpack.c.l.b16 %v9881
    %v10408 = vunpack.c.h.b16 %v9881
    %v10409 = vunpack.c.l.b16 %v9882
    %v10410 = vunpack.c.l.b16 %v9883
    %v10411 = vunpack.c.h.b16 %v9883
    %v10412 = vunpack.c.l.b16 %v9884
    %v10413 = vunpack.c.h.b16 %v9884
    %v10414 = vunpack.c.l.b16 %v9885
    %v10415 = vunpack.c.l.b16 %v9886
    %v10416 = vunpack.c.h.b16 %v9886
    %v10417 = vunpack.c.l.b16 %v9887
    %v10418 = vunpack.c.h.b16 %v9887
    %v10419 = vunpack.c.l.b16 %v9888
    %v10420 = vunpack.c.l.b16 %v9889
    %v10421 = vunpack.c.h.b16 %v9889
    %v10422 = vunpack.c.l.b16 %v9890
    %v10423 = vunpack.c.h.b16 %v9890
    %v10424 = vunpack.c.l.b16 %v9891
    %v10425 = vunpack.c.l.b16 %v9892
    %v10426 = vunpack.c.h.b16 %v9892
    %v10427 = vunpack.c.l.b16 %v9893
    %v10428 = vunpack.c.h.b16 %v9893
    %v10429 = vunpack.c.l.b16 %v9894
    %v10430 = vunpack.c.l.b16 %v9895
    %v10431 = vunpack.c.h.b16 %v9895
    %v10432 = vunpack.c.l.b16 %v9896
    %v10433 = vunpack.c.h.b16 %v9896
    %v10434 = vunpack.c.l.b16 %v9897
    %v10435 = vunpack.c.l.b16 %v9898
    %v10436 = vunpack.c.h.b16 %v9898
    %v10437 = vunpack.c.l.b16 %v9899
    %v10438 = vunpack.c.h.b16 %v9899
    %v10439 = vunpack.c.l.b16 %v9900
    %v10440 = vunpack.c.l.b16 %v9901
    %v10441 = vunpack.c.h.b16 %v9901
    %v10442 = vunpack.c.l.b16 %v9902
    %v10443 = vunpack.c.h.b16 %v9902
    %v10444 = vunpack.c.l.b16 %v9903
    %v10445 = vunpack.c.l.b16 %v9904
    %v10446 = vunpack.c.h.b16 %v9904
    %v10447 = vunpack.c.l.b16 %v9905
    %v10448 = vunpack.c.h.b16 %v9905
    %v10449 = vunpack.c.l.b16 %v9906
    %v10450 = vunpack.c.l.b16 %v9907
    %v10451 = vunpack.c.h.b16 %v9907
    %v10452 = vunpack.c.l.b16 %v9908
    %v10453 = vunpack.c.h.b16 %v9908
    %v10454 = vunpack.c.l.b16 %v9909
    %v10455 = vunpack.c.l.b16 %v9910
    %v10456 = vunpack.c.h.b16 %v9910
    %v10457 = vunpack.c.l.b16 %v9911
    %v10458 = vunpack.c.h.b16 %v9911
    %v10459 = vunpack.c.l.b16 %v9912
    %v10460 = vunpack.c.l.b16 %v9913
    %v10461 = vunpack.c.h.b16 %v9913
    %v10462 = vunpack.c.l.b16 %v9914
    %v10463 = vunpack.c.h.b16 %v9914
    %v10464 = vunpack.c.l.b16 %v9915
    %v10465 = vunpack.c.l.b16 %v9916
    %v10466 = vunpack.c.h.b16 %v9916
    %v10467 = vunpack.c.l.b16 %v9917
    %v10468 = vunpack.c.h.b16 %v9917
    %v10469 = vunpack.c.l.b16 %v9918
    %v10470 = vunpack.c.l.b16 %v9919
    %v10471 = vunpack.c.h.b16 %v9919
    %v10472 = vunpack.c.l.b16 %v9920
    %v10473 = vunpack.c.h.b16 %v9920
    %v10474 = vunpack.c.l.b16 %v9921
    %v10475 = vunpack.c.l.b16 %v9922
    %v10476 = vunpack.c.h.b16 %v9922
    %v10477 = vunpack.c.l.b16 %v9923
    %v10478 = vunpack.c.h.b16 %v9923
    %v10479 = vunpack.c.l.b16 %v9924
    %v10480 = vunpack.c.l.b16 %v9925
    %v10481 = vunpack.c.h.b16 %v9925
    %v10482 = vunpack.c.l.b16 %v9926
    %v10483 = vunpack.c.h.b16 %v9926
    %v10484 = vunpack.c.l.b16 %v9927
    %v10485 = vunpack.c.l.b16 %v9928
    %v10486 = vunpack.c.h.b16 %v9928
    %v10487 = vunpack.c.l.b16 %v9929
    %v10488 = vunpack.c.h.b16 %v9929
    %v10489 = vunpack.c.l.b16 %v9930
    %v10490 = vunpack.c.l.b16 %v9931
    %v10491 = vunpack.c.h.b16 %v9931
    %v10492 = vunpack.c.l.b16 %v9932
    %v10493 = vunpack.c.h.b16 %v9932
    %v10494 = vunpack.c.l.b16 %v9933
    %v10495 = vunpack.c.l.b16 %v9934
    %v10496 = vunpack.c.h.b16 %v9934
    %v10497 = vunpack.c.l.b16 %v9935
    %v10498 = vunpack.c.h.b16 %v9935
    %v10499 = vunpack.c.l.b16 %v9936
    %v10500 = vunpack.c.l.b16 %v9937
    %v10501 = vunpack.c.h.b16 %v9937
    %v10502 = vunpack.c.l.b16 %v9938
    %v10503 = vunpack.c.h.b16 %v9938
    %v10504 = vunpack.c.l.b16 %v9939
    %v10505 = vunpack.c.l.b16 %v9940
    %v10506 = vunpack.c.h.b16 %v9940
    %v10507 = vunpack.c.l.b16 %v9941
    %v10508 = vunpack.c.h.b16 %v9941
    %v10509 = vunpack.c.l.b16 %v9942
    %v10510 = vunpack.c.l.b16 %v9943
    %v10511 = vunpack.c.h.b16 %v9943
    %v10512 = vunpack.c.l.b16 %v9944
    %v10513 = vunpack.c.h.b16 %v9944
    %v10514 = vunpack.c.l.b16 %v9945
    %v10515 = vunpack.c.l.b16 %v9946
    %v10516 = vunpack.c.h.b16 %v9946
    %v10517 = vunpack.c.l.b16 %v9947
    %v10518 = vunpack.c.h.b16 %v9947
    %v10519 = vunpack.c.l.b16 %v9948
    %v10520 = vunpack.c.l.b16 %v9949
    %v10521 = vunpack.c.h.b16 %v9949
    %v10522 = vunpack.c.l.b16 %v9950
    %v10523 = vunpack.c.h.b16 %v9950
    %v10524 = vunpack.c.l.b16 %v9951
    %v10525 = vunpack.c.l.b16 %v9952
    %v10526 = vunpack.c.h.b16 %v9952
    %v10527 = vunpack.c.l.b16 %v9953
    %v10528 = vunpack.c.h.b16 %v9953
    %v10529 = vunpack.c.l.b16 %v9954
    %v10530 = vunpack.c.l.b16 %v9955
    %v10531 = vunpack.c.h.b16 %v9955
    %v10532 = vunpack.c.l.b16 %v9956
    %v10533 = vunpack.c.h.b16 %v9956
    %v10534 = vunpack.c.l.b16 %v9957
    %v10535 = vunpack.c.l.b16 %v9958
    %v10536 = vunpack.c.h.b16 %v9958
    %v10537 = vunpack.c.l.b16 %v9959
    %v10538 = vunpack.c.h.b16 %v9959
    %v10539 = vunpack.c.l.b16 %v9960
    %v10540 = vunpack.c.l.b16 %v9961
    %v10541 = vunpack.c.h.b16 %v9961
    %v10542 = vunpack.c.l.b16 %v9962
    %v10543 = vunpack.c.h.b16 %v9962
    %v10544 = vunpack.c.l.b16 %v9963
    %v10545 = vunpack.c.l.b16 %v9964
    %v10546 = vunpack.c.h.b16 %v9964
    %v10547 = vunpack.c.l.b16 %v9965
    %v10548 = vunpack.c.h.b16 %v9965
    %v10549 = vunpack.c.l.b16 %v9966
    %v10550 = vunpack.c.l.b16 %v9967
    %v10551 = vunpack.c.h.b16 %v9967
    %v10552 = vunpack.c.l.b16 %v9968
    %v10553 = vunpack.c.h.b16 %v9968
    %v10554 = vunpack.c.l.b16 %v9969
    %v10555 = vunpack.c.l.b16 %v9970
    %v10556 = vunpack.c.h.b16 %v9970
    %v10557 = vunpack.c.l.b16 %v9971
    %v10558 = vunpack.c.h.b16 %v9971
    %v10559 = vunpack.c.l.b16 %v9972
    %v10560 = vunpack.c.l.b16 %v9973
    %v10561 = vunpack.c.h.b16 %v9973
    %v10562 = vunpack.c.l.b16 %v9974
    %v10563 = vunpack.c.h.b16 %v9974
    %v10564 = vunpack.c.l.b16 %v9975
    %v10565 = vunpack.c.l.b16 %v9976
    %v10566 = vunpack.c.h.b16 %v9976
    %v10567 = vunpack.c.l.b16 %v9977
    %v10568 = vunpack.c.h.b16 %v9977
    %v10569 = vunpack.c.l.b16 %v9978
    %v10570 = vunpack.c.l.b16 %v9979
    %v10571 = vunpack.c.h.b16 %v9979
    %v10572 = vunpack.c.l.b16 %v9980
    %v10573 = vunpack.c.h.b16 %v9980
    %v10574 = vunpack.c.l.b16 %v9981
    %v10575 = vunpack.c.l.b16 %v9982
    %v10576 = vunpack.c.h.b16 %v9982
    %v10577 = vunpack.c.l.b16 %v9983
    %v10578 = vunpack.c.h.b16 %v9983
    %v10579 = vunpack.c.l.b16 %v9984
    %v10580 = vunpack.c.l.b16 %v9985
    %v10581 = vunpack.c.h.b16 %v9985
    %v10582 = vunpack.c.l.b16 %v9986
    %v10583 = vunpack.c.h.b16 %v9986
    %v10584 = vunpack.c.l.b16 %v9987
    %v10585 = vunpack.c.l.b16 %v9988
    %v10586 = vunpack.c.h.b16 %v9988
    %v10587 = vunpack.c.l.b16 %v9989
    %v10588 = vunpack.c.h.b16 %v9989
    %v10589 = vunpack.c.l.b16 %v9990
    %v10590 = vunpack.c.l.b16 %v9991
    %v10591 = vunpack.c.h.b16 %v9991
    %v10592 = vunpack.c.l.b16 %v9992
    %v10593 = vunpack.c.h.b16 %v9992
    %v10594 = vunpack.c.l.b16 %v9993
    %v10595 = vpack.c.b16 %v10240, %v10235
    %v10596 = vpack.c.b16 %v10241, %v10236
    %v10597 = vpack.c.b16 %v10242, %v10237
    %v10598 = vpack.c.b16 %v10243, %v10238
    %v10599 = vpack.c.b16 %v10244, %v10239
    %v10600 = vpack.c.b16 %v10250, %v10245
    %v10601 = vpack.c.b16 %v10251, %v10246
    %v10602 = vpack.c.b16 %v10252, %v10247
    %v10603 = vpack.c.b16 %v10253, %v10248
    %v10604 = vpack.c.b16 %v10254, %v10249
    %v10605 = vpack.c.b16 %v10260, %v10255
    %v10606 = vpack.c.b16 %v10261, %v10256
    %v10607 = vpack.c.b16 %v10262, %v10257
    %v10608 = vpack.c.b16 %v10263, %v10258
    %v10609 = vpack.c.b16 %v10264, %v10259
    %v10610 = vpack.c.b16 %v10270, %v10265
    %v10611 = vpack.c.b16 %v10271, %v10266
    %v10612 = vpack.c.b16 %v10272, %v10267
    %v10613 = vpack.c.b16 %v10273, %v10268
    %v10614 = vpack.c.b16 %v10274, %v10269
    %v10615 = vpack.c.b16 %v10280, %v10275
    %v10616 = vpack.c.b16 %v10281, %v10276
    %v10617 = vpack.c.b16 %v10282, %v10277
    %v10618 = vpack.c.b16 %v10283, %v10278
    %v10619 = vpack.c.b16 %v10284, %v10279
    %v10620 = vpack.c.b16 %v10290, %v10285
    %v10621 = vpack.c.b16 %v10291, %v10286
    %v10622 = vpack.c.b16 %v10292, %v10287
    %v10623 = vpack.c.b16 %v10293, %v10288
    %v10624 = vpack.c.b16 %v10294, %v10289
    %v10625 = vpack.c.b16 %v10300, %v10295
    %v10626 = vpack.c.b16 %v10301, %v10296
    %v10627 = vpack.c.b16 %v10302, %v10297
    %v10628 = vpack.c.b16 %v10303, %v10298
    %v10629 = vpack.c.b16 %v10304, %v10299
    %v10630 = vpack.c.b16 %v10310, %v10305
    %v10631 = vpack.c.b16 %v10311, %v10306
    %v10632 = vpack.c.b16 %v10312, %v10307
    %v10633 = vpack.c.b16 %v10313, %v10308
    %v10634 = vpack.c.b16 %v10314, %v10309
    %v10635 = vpack.c.b16 %v10320, %v10315
    %v10636 = vpack.c.b16 %v10321, %v10316
    %v10637 = vpack.c.b16 %v10322, %v10317
    %v10638 = vpack.c.b16 %v10323, %v10318
    %v10639 = vpack.c.b16 %v10324, %v10319
    %v10640 = vpack.c.b16 %v10330, %v10325
    %v10641 = vpack.c.b16 %v10331, %v10326
    %v10642 = vpack.c.b16 %v10332, %v10327
    %v10643 = vpack.c.b16 %v10333, %v10328
    %v10644 = vpack.c.b16 %v10334, %v10329
    %v10645 = vpack.c.b16 %v10340, %v10335
    %v10646 = vpack.c.b16 %v10341, %v10336
    %v10647 = vpack.c.b16 %v10342, %v10337
    %v10648 = vpack.c.b16 %v10343, %v10338
    %v10649 = vpack.c.b16 %v10344, %v10339
    %v10650 = vpack.c.b16 %v10350, %v10345
    %v10651 = vpack.c.b16 %v10351, %v10346
    %v10652 = vpack.c.b16 %v10352, %v10347
    %v10653 = vpack.c.b16 %v10353, %v10348
    %v10654 = vpack.c.b16 %v10354, %v10349
    %v10655 = vpack.c.b16 %v10360, %v10355
    %v10656 = vpack.c.b16 %v10361, %v10356
    %v10657 = vpack.c.b16 %v10362, %v10357
    %v10658 = vpack.c.b16 %v10363, %v10358
    %v10659 = vpack.c.b16 %v10364, %v10359
    %v10660 = vpack.c.b16 %v10370, %v10365
    %v10661 = vpack.c.b16 %v10371, %v10366
    %v10662 = vpack.c.b16 %v10372, %v10367
    %v10663 = vpack.c.b16 %v10373, %v10368
    %v10664 = vpack.c.b16 %v10374, %v10369
    %v10665 = vpack.c.b16 %v10380, %v10375
    %v10666 = vpack.c.b16 %v10381, %v10376
    %v10667 = vpack.c.b16 %v10382, %v10377
    %v10668 = vpack.c.b16 %v10383, %v10378
    %v10669 = vpack.c.b16 %v10384, %v10379
    %v10670 = vpack.c.b16 %v10390, %v10385
    %v10671 = vpack.c.b16 %v10391, %v10386
    %v10672 = vpack.c.b16 %v10392, %v10387
    %v10673 = vpack.c.b16 %v10393, %v10388
    %v10674 = vpack.c.b16 %v10394, %v10389
    %v10675 = vpack.c.b16 %v10400, %v10395
    %v10676 = vpack.c.b16 %v10401, %v10396
    %v10677 = vpack.c.b16 %v10402, %v10397
    %v10678 = vpack.c.b16 %v10403, %v10398
    %v10679 = vpack.c.b16 %v10404, %v10399
    %v10680 = vpack.c.b16 %v10410, %v10405
    %v10681 = vpack.c.b16 %v10411, %v10406
    %v10682 = vpack.c.b16 %v10412, %v10407
    %v10683 = vpack.c.b16 %v10413, %v10408
    %v10684 = vpack.c.b16 %v10414, %v10409
    %v10685 = vpack.c.b16 %v10420, %v10415
    %v10686 = vpack.c.b16 %v10421, %v10416
    %v10687 = vpack.c.b16 %v10422, %v10417
    %v10688 = vpack.c.b16 %v10423, %v10418
    %v10689 = vpack.c.b16 %v10424, %v10419
    %v10690 = vpack.c.b16 %v10430, %v10425
    %v10691 = vpack.c.b16 %v10431, %v10426
    %v10692 = vpack.c.b16 %v10432, %v10427
    %v10693 = vpack.c.b16 %v10433, %v10428
    %v10694 = vpack.c.b16 %v10434, %v10429
    %v10695 = vpack.c.b16 %v10440, %v10435
    %v10696 = vpack.c.b16 %v10441, %v10436
    %v10697 = vpack.c.b16 %v10442, %v10437
    %v10698 = vpack.c.b16 %v10443, %v10438
    %v10699 = vpack.c.b16 %v10444, %v10439
    %v10700 = vpack.c.b16 %v10450, %v10445
    %v10701 = vpack.c.b16 %v10451, %v10446
    %v10702 = vpack.c.b16 %v10452, %v10447
    %v10703 = vpack.c.b16 %v10453, %v10448
    %v10704 = vpack.c.b16 %v10454, %v10449
    %v10705 = vpack.c.b16 %v10460, %v10455
    %v10706 = vpack.c.b16 %v10461, %v10456
    %v10707 = vpack.c.b16 %v10462, %v10457
    %v10708 = vpack.c.b16 %v10463, %v10458
    %v10709 = vpack.c.b16 %v10464, %v10459
    %v10710 = vpack.c.b16 %v10470, %v10465
    %v10711 = vpack.c.b16 %v10471, %v10466
    %v10712 = vpack.c.b16 %v10472, %v10467
    %v10713 = vpack.c.b16 %v10473, %v10468
    %v10714 = vpack.c.b16 %v10474, %v10469
    %v10715 = vpack.c.b16 %v10480, %v10475
    %v10716 = vpack.c.b16 %v10481, %v10476
    %v10717 = vpack.c.b16 %v10482, %v10477
    %v10718 = vpack.c.b16 %v10483, %v10478
    %v10719 = vpack.c.b16 %v10484, %v10479
    %v10720 = vpack.c.b16 %v10490, %v10485
    %v10721 = vpack.c.b16 %v10491, %v10486
    %v10722 = vpack.c.b16 %v10492, %v10487
    %v10723 = vpack.c.b16 %v10493, %v10488
    %v10724 = vpack.c.b16 %v10494, %v10489
    %v10725 = vpack.c.b16 %v10500, %v10495
    %v10726 = vpack.c.b16 %v10501, %v10496
    %v10727 = vpack.c.b16 %v10502, %v10497
    %v10728 = vpack.c.b16 %v10503, %v10498
    %v10729 = vpack.c.b16 %v10504, %v10499
    %v10730 = vpack.c.b16 %v10510, %v10505
    %v10731 = vpack.c.b16 %v10511, %v10506
    %v10732 = vpack.c.b16 %v10512, %v10507
    %v10733 = vpack.c.b16 %v10513, %v10508
    %v10734 = vpack.c.b16 %v10514, %v10509
    %v10735 = vpack.c.b16 %v10520, %v10515
    %v10736 = vpack.c.b16 %v10521, %v10516
    %v10737 = vpack.c.b16 %v10522, %v10517
    %v10738 = vpack.c.b16 %v10523, %v10518
    %v10739 = vpack.c.b16 %v10524, %v10519
    %v10740 = vpack.c.b16 %v10530, %v10525
    %v10741 = vpack.c.b16 %v10531, %v10526
    %v10742 = vpack.c.b16 %v10532, %v10527
    %v10743 = vpack.c.b16 %v10533, %v10528
    %v10744 = vpack.c.b16 %v10534, %v10529
    %v10745 = vpack.c.b16 %v10540, %v10535
    %v10746 = vpack.c.b16 %v10541, %v10536
    %v10747 = vpack.c.b16 %v10542, %v10537
    %v10748 = vpack.c.b16 %v10543, %v10538
    %v10749 = vpack.c.b16 %v10544, %v10539
    %v10750 = vpack.c.b16 %v10550, %v10545
    %v10751 = vpack.c.b16 %v10551, %v10546
    %v10752 = vpack.c.b16 %v10552, %v10547
    %v10753 = vpack.c.b16 %v10553, %v10548
    %v10754 = vpack.c.b16 %v10554, %v10549
    %v10755 = vpack.c.b16 %v10560, %v10555
    %v10756 = vpack.c.b16 %v10561, %v10556
    %v10757 = vpack.c.b16 %v10562, %v10557
    %v10758 = vpack.c.b16 %v10563, %v10558
    %v10759 = vpack.c.b16 %v10564, %v10559
    %v10760 = vpack.c.b16 %v10570, %v10565
    %v10761 = vpack.c.b16 %v10571, %v10566
    %v10762 = vpack.c.b16 %v10572, %v10567
    %v10763 = vpack.c.b16 %v10573, %v10568
    %v10764 = vpack.c.b16 %v10574, %v10569
    %v10765 = vpack.c.b16 %v10580, %v10575
    %v10766 = vpack.c.b16 %v10581, %v10576
    %v10767 = vpack.c.b16 %v10582, %v10577
    %v10768 = vpack.c.b16 %v10583, %v10578
    %v10769 = vpack.c.b16 %v10584, %v10579
    %v10770 = vpack.c.b16 %v10590, %v10585
    %v10771 = vpack.c.b16 %v10591, %v10586
    %v10772 = vpack.c.b16 %v10592, %v10587
    %v10773 = vpack.c.b16 %v10593, %v10588
    %v10774 = vpack.c.b16 %v10594, %v10589
    %v10956 = vsel %vm1400, %v10002, 0
    %v10959 = vsel %vm1400, %v10007, 0
    %10961 = vmatpush.bf16.msra.mxu0 %v10630
    %10962 = vmatpush.bf16.msra.mxu0 %v10625
    %10963 = vmatpush.bf16.msra.mxu0 %v10620
    %10964 = vmatpush.bf16.msra.mxu0 %v10615
    %10965 = vmatpush.bf16.msra.mxu0 %v10610
    %10966 = vmatpush.bf16.msra.mxu0 %v10605
    %10967 = vmatpush.bf16.msra.mxu0 %v10600
    %10968 = vmatpush.bf16.msra.mxu0 %v10595
    %10969 = vmatmul.bf16.gmra.mxu0 %v9998
    %v10970 = vpop.f32.mrf.mxu0
    %v10971 = vadd.f32 %v10009, %v10970
    %v10972 = vpop.f32.mrf.mxu0
    %v10973 = vadd.f32 %v10009, %v10972
    %10974 = vmatmul.bf16.gmra.mxu0 %v10003
    %v10975 = vpop.f32.mrf.mxu0
    %v10976 = vadd.f32 %v10009, %v10975
    %v10977 = vpop.f32.mrf.mxu0
    %v10978 = vadd.f32 %v10009, %v10977
    %10979 = vdwg.mxu0
    %10980 = vmatpush.bf16.msra.mxu0 %v10670
    %10981 = vmatpush.bf16.msra.mxu0 %v10665
    %10982 = vmatpush.bf16.msra.mxu0 %v10660
    %10983 = vmatpush.bf16.msra.mxu0 %v10655
    %10984 = vmatpush.bf16.msra.mxu0 %v10650
    %10985 = vmatpush.bf16.msra.mxu0 %v10645
    %10986 = vmatpush.bf16.msra.mxu0 %v10640
    %10987 = vmatpush.bf16.msra.mxu0 %v10635
    %10988 = vmatmul.bf16.gmra.mxu0 %v9999
    %v10989 = vpop.f32.mrf.mxu0
    %v10990 = vadd.f32 %v10971, %v10989
    %v10991 = vpop.f32.mrf.mxu0
    %v10992 = vadd.f32 %v10973, %v10991
    %10993 = vmatmul.bf16.gmra.mxu0 %v10004
    %v10994 = vpop.f32.mrf.mxu0
    %v10995 = vadd.f32 %v10976, %v10994
    %v10996 = vpop.f32.mrf.mxu0
    %v10997 = vadd.f32 %v10978, %v10996
    %10998 = vdwg.mxu0
    %10999 = vmatpush.bf16.msra.mxu0 %v10710
    %11000 = vmatpush.bf16.msra.mxu0 %v10705
    %11001 = vmatpush.bf16.msra.mxu0 %v10700
    %11002 = vmatpush.bf16.msra.mxu0 %v10695
    %11003 = vmatpush.bf16.msra.mxu0 %v10690
    %11004 = vmatpush.bf16.msra.mxu0 %v10685
    %11005 = vmatpush.bf16.msra.mxu0 %v10680
    %11006 = vmatpush.bf16.msra.mxu0 %v10675
    %11007 = vmatmul.bf16.gmra.mxu0 %v10000
    %v11008 = vpop.f32.mrf.mxu0
    %v11009 = vadd.f32 %v10990, %v11008
    %v11010 = vpop.f32.mrf.mxu0
    %v11011 = vadd.f32 %v10992, %v11010
    %11012 = vmatmul.bf16.gmra.mxu0 %v10005
    %v11013 = vpop.f32.mrf.mxu0
    %v11014 = vadd.f32 %v10995, %v11013
    %v11015 = vpop.f32.mrf.mxu0
    %v11016 = vadd.f32 %v10997, %v11015
    %11017 = vdwg.mxu0
    %11018 = vmatpush.bf16.msra.mxu0 %v10750
    %11019 = vmatpush.bf16.msra.mxu0 %v10745
    %11020 = vmatpush.bf16.msra.mxu0 %v10740
    %11021 = vmatpush.bf16.msra.mxu0 %v10735
    %11022 = vmatpush.bf16.msra.mxu0 %v10730
    %11023 = vmatpush.bf16.msra.mxu0 %v10725
    %11024 = vmatpush.bf16.msra.mxu0 %v10720
    %11025 = vmatpush.bf16.msra.mxu0 %v10715
    %11026 = vmatmul.bf16.gmra.mxu0 %v10001
    %v11027 = vpop.f32.mrf.mxu0
    %v11028 = vadd.f32 %v11009, %v11027
    %v11029 = vpop.f32.mrf.mxu0
    %v11030 = vadd.f32 %v11011, %v11029
    %11031 = vmatmul.bf16.gmra.mxu0 %v10006
    %v11032 = vpop.f32.mrf.mxu0
    %v11033 = vadd.f32 %v11014, %v11032
    %v11034 = vpop.f32.mrf.mxu0
    %v11035 = vadd.f32 %v11016, %v11034
    %11036 = vdwg.mxu0
    %11037 = vmatpush.bf16.msra.mxu0 0
    %11038 = vmatpush.bf16.msra.mxu0 0
    %11039 = vmatpush.bf16.msra.mxu0 0
    %11040 = vmatpush.bf16.msra.mxu0 0
    %11041 = vmatpush.bf16.msra.mxu0 %v10770
    %11042 = vmatpush.bf16.msra.mxu0 %v10765
    %11043 = vmatpush.bf16.msra.mxu0 %v10760
    %11044 = vmatpush.bf16.msra.mxu0 %v10755
    %11045 = vmatmul.bf16.gmra.mxu0 %v10956
    %v11046 = vpop.f32.mrf.mxu0
    %v11047 = vadd.f32 %v11028, %v11046
    %v11048 = vpop.f32.mrf.mxu0
    %v11049 = vadd.f32 %v11030, %v11048
    %11050 = vmatmul.bf16.gmra.mxu0 %v10959
    %v11051 = vpop.f32.mrf.mxu0
    %v11052 = vadd.f32 %v11033, %v11051
    %v11053 = vpop.f32.mrf.mxu0
    %v11054 = vadd.f32 %v11035, %v11053
    %11055 = vdwg.mxu0
    %11056 = vmatpush.bf16.msra.mxu0 %v10631
    %11057 = vmatpush.bf16.msra.mxu0 %v10626
    %11058 = vmatpush.bf16.msra.mxu0 %v10621
    %11059 = vmatpush.bf16.msra.mxu0 %v10616
    %11060 = vmatpush.bf16.msra.mxu0 %v10611
    %11061 = vmatpush.bf16.msra.mxu0 %v10606
    %11062 = vmatpush.bf16.msra.mxu0 %v10601
    %11063 = vmatpush.bf16.msra.mxu0 %v10596
    %11064 = vmatmul.bf16.gmra.mxu0 %v9998
    %v11065 = vpop.f32.mrf.mxu0
    %v11066 = vadd.f32 %v10010, %v11065
    %v11067 = vpop.f32.mrf.mxu0
    %v11068 = vadd.f32 %v10010, %v11067
    %11069 = vmatmul.bf16.gmra.mxu0 %v10003
    %v11070 = vpop.f32.mrf.mxu0
    %v11071 = vadd.f32 %v10010, %v11070
    %v11072 = vpop.f32.mrf.mxu0
    %v11073 = vadd.f32 %v10010, %v11072
    %11074 = vdwg.mxu0
    %11075 = vmatpush.bf16.msra.mxu0 %v10671
    %11076 = vmatpush.bf16.msra.mxu0 %v10666
    %11077 = vmatpush.bf16.msra.mxu0 %v10661
    %11078 = vmatpush.bf16.msra.mxu0 %v10656
    %11079 = vmatpush.bf16.msra.mxu0 %v10651
    %11080 = vmatpush.bf16.msra.mxu0 %v10646
    %11081 = vmatpush.bf16.msra.mxu0 %v10641
    %11082 = vmatpush.bf16.msra.mxu0 %v10636
    %11083 = vmatmul.bf16.gmra.mxu0 %v9999
    %v11084 = vpop.f32.mrf.mxu0
    %v11085 = vadd.f32 %v11066, %v11084
    %v11086 = vpop.f32.mrf.mxu0
    %v11087 = vadd.f32 %v11068, %v11086
    %11088 = vmatmul.bf16.gmra.mxu0 %v10004
    %v11089 = vpop.f32.mrf.mxu0
    %v11090 = vadd.f32 %v11071, %v11089
    %v11091 = vpop.f32.mrf.mxu0
    %v11092 = vadd.f32 %v11073, %v11091
    %11093 = vdwg.mxu0
    %11094 = vmatpush.bf16.msra.mxu0 %v10711
    %11095 = vmatpush.bf16.msra.mxu0 %v10706
    %11096 = vmatpush.bf16.msra.mxu0 %v10701
    %11097 = vmatpush.bf16.msra.mxu0 %v10696
    %11098 = vmatpush.bf16.msra.mxu0 %v10691
    %11099 = vmatpush.bf16.msra.mxu0 %v10686
    %11100 = vmatpush.bf16.msra.mxu0 %v10681
    %11101 = vmatpush.bf16.msra.mxu0 %v10676
    %11102 = vmatmul.bf16.gmra.mxu0 %v10000
    %v11103 = vpop.f32.mrf.mxu0
    %v11104 = vadd.f32 %v11085, %v11103
    %v11105 = vpop.f32.mrf.mxu0
    %v11106 = vadd.f32 %v11087, %v11105
    %11107 = vmatmul.bf16.gmra.mxu0 %v10005
    %v11108 = vpop.f32.mrf.mxu0
    %v11109 = vadd.f32 %v11090, %v11108
    %v11110 = vpop.f32.mrf.mxu0
    %v11111 = vadd.f32 %v11092, %v11110
    %11112 = vdwg.mxu0
    %11113 = vmatpush.bf16.msra.mxu0 %v10751
    %11114 = vmatpush.bf16.msra.mxu0 %v10746
    %11115 = vmatpush.bf16.msra.mxu0 %v10741
    %11116 = vmatpush.bf16.msra.mxu0 %v10736
    %11117 = vmatpush.bf16.msra.mxu0 %v10731
    %11118 = vmatpush.bf16.msra.mxu0 %v10726
    %11119 = vmatpush.bf16.msra.mxu0 %v10721
    %11120 = vmatpush.bf16.msra.mxu0 %v10716
    %11121 = vmatmul.bf16.gmra.mxu0 %v10001
    %v11122 = vpop.f32.mrf.mxu0
    %v11123 = vadd.f32 %v11104, %v11122
    %v11124 = vpop.f32.mrf.mxu0
    %v11125 = vadd.f32 %v11106, %v11124
    %11126 = vmatmul.bf16.gmra.mxu0 %v10006
    %v11127 = vpop.f32.mrf.mxu0
    %v11128 = vadd.f32 %v11109, %v11127
    %v11129 = vpop.f32.mrf.mxu0
    %v11130 = vadd.f32 %v11111, %v11129
    %11131 = vdwg.mxu0
    %11132 = vmatpush.bf16.msra.mxu0 0
    %11133 = vmatpush.bf16.msra.mxu0 0
    %11134 = vmatpush.bf16.msra.mxu0 0
    %11135 = vmatpush.bf16.msra.mxu0 0
    %11136 = vmatpush.bf16.msra.mxu0 %v10771
    %11137 = vmatpush.bf16.msra.mxu0 %v10766
    %11138 = vmatpush.bf16.msra.mxu0 %v10761
    %11139 = vmatpush.bf16.msra.mxu0 %v10756
    %11140 = vmatmul.bf16.gmra.mxu0 %v10956
    %v11141 = vpop.f32.mrf.mxu0
    %v11142 = vadd.f32 %v11123, %v11141
    %v11143 = vpop.f32.mrf.mxu0
    %v11144 = vadd.f32 %v11125, %v11143
    %11145 = vmatmul.bf16.gmra.mxu0 %v10959
    %v11146 = vpop.f32.mrf.mxu0
    %v11147 = vadd.f32 %v11128, %v11146
    %v11148 = vpop.f32.mrf.mxu0
    %v11149 = vadd.f32 %v11130, %v11148
    %11150 = vdwg.mxu0
    %11151 = vmatpush.bf16.msra.mxu0 %v10632
    %11152 = vmatpush.bf16.msra.mxu0 %v10627
    %11153 = vmatpush.bf16.msra.mxu0 %v10622
    %11154 = vmatpush.bf16.msra.mxu0 %v10617
    %11155 = vmatpush.bf16.msra.mxu0 %v10612
    %11156 = vmatpush.bf16.msra.mxu0 %v10607
    %11157 = vmatpush.bf16.msra.mxu0 %v10602
    %11158 = vmatpush.bf16.msra.mxu0 %v10597
    %11159 = vmatmul.bf16.gmra.mxu0 %v9998
    %v11160 = vpop.f32.mrf.mxu0
    %v11161 = vadd.f32 %v10011, %v11160
    %v11162 = vpop.f32.mrf.mxu0
    %v11163 = vadd.f32 %v10011, %v11162
    %11164 = vmatmul.bf16.gmra.mxu0 %v10003
    %v11165 = vpop.f32.mrf.mxu0
    %v11166 = vadd.f32 %v10011, %v11165
    %v11167 = vpop.f32.mrf.mxu0
    %v11168 = vadd.f32 %v10011, %v11167
    %11169 = vdwg.mxu0
    %11170 = vmatpush.bf16.msra.mxu0 %v10672
    %11171 = vmatpush.bf16.msra.mxu0 %v10667
    %11172 = vmatpush.bf16.msra.mxu0 %v10662
    %11173 = vmatpush.bf16.msra.mxu0 %v10657
    %11174 = vmatpush.bf16.msra.mxu0 %v10652
    %11175 = vmatpush.bf16.msra.mxu0 %v10647
    %11176 = vmatpush.bf16.msra.mxu0 %v10642
    %11177 = vmatpush.bf16.msra.mxu0 %v10637
    %11178 = vmatmul.bf16.gmra.mxu0 %v9999
    %v11179 = vpop.f32.mrf.mxu0
    %v11180 = vadd.f32 %v11161, %v11179
    %v11181 = vpop.f32.mrf.mxu0
    %v11182 = vadd.f32 %v11163, %v11181
    %11183 = vmatmul.bf16.gmra.mxu0 %v10004
    %v11184 = vpop.f32.mrf.mxu0
    %v11185 = vadd.f32 %v11166, %v11184
    %v11186 = vpop.f32.mrf.mxu0
    %v11187 = vadd.f32 %v11168, %v11186
    %11188 = vdwg.mxu0
    %11189 = vmatpush.bf16.msra.mxu0 %v10712
    %11190 = vmatpush.bf16.msra.mxu0 %v10707
    %11191 = vmatpush.bf16.msra.mxu0 %v10702
    %11192 = vmatpush.bf16.msra.mxu0 %v10697
    %11193 = vmatpush.bf16.msra.mxu0 %v10692
    %11194 = vmatpush.bf16.msra.mxu0 %v10687
    %11195 = vmatpush.bf16.msra.mxu0 %v10682
    %11196 = vmatpush.bf16.msra.mxu0 %v10677
    %11197 = vmatmul.bf16.gmra.mxu0 %v10000
    %v11198 = vpop.f32.mrf.mxu0
    %v11199 = vadd.f32 %v11180, %v11198
    %v11200 = vpop.f32.mrf.mxu0
    %v11201 = vadd.f32 %v11182, %v11200
    %11202 = vmatmul.bf16.gmra.mxu0 %v10005
    %v11203 = vpop.f32.mrf.mxu0
    %v11204 = vadd.f32 %v11185, %v11203
    %v11205 = vpop.f32.mrf.mxu0
    %v11206 = vadd.f32 %v11187, %v11205
    %11207 = vdwg.mxu0
    %11208 = vmatpush.bf16.msra.mxu0 %v10752
    %11209 = vmatpush.bf16.msra.mxu0 %v10747
    %11210 = vmatpush.bf16.msra.mxu0 %v10742
    %11211 = vmatpush.bf16.msra.mxu0 %v10737
    %11212 = vmatpush.bf16.msra.mxu0 %v10732
    %11213 = vmatpush.bf16.msra.mxu0 %v10727
    %11214 = vmatpush.bf16.msra.mxu0 %v10722
    %11215 = vmatpush.bf16.msra.mxu0 %v10717
    %11216 = vmatmul.bf16.gmra.mxu0 %v10001
    %v11217 = vpop.f32.mrf.mxu0
    %v11218 = vadd.f32 %v11199, %v11217
    %v11219 = vpop.f32.mrf.mxu0
    %v11220 = vadd.f32 %v11201, %v11219
    %11221 = vmatmul.bf16.gmra.mxu0 %v10006
    %v11222 = vpop.f32.mrf.mxu0
    %v11223 = vadd.f32 %v11204, %v11222
    %v11224 = vpop.f32.mrf.mxu0
    %v11225 = vadd.f32 %v11206, %v11224
    %11226 = vdwg.mxu0
    %11227 = vmatpush.bf16.msra.mxu0 0
    %11228 = vmatpush.bf16.msra.mxu0 0
    %11229 = vmatpush.bf16.msra.mxu0 0
    %11230 = vmatpush.bf16.msra.mxu0 0
    %11231 = vmatpush.bf16.msra.mxu0 %v10772
    %11232 = vmatpush.bf16.msra.mxu0 %v10767
    %11233 = vmatpush.bf16.msra.mxu0 %v10762
    %11234 = vmatpush.bf16.msra.mxu0 %v10757
    %11235 = vmatmul.bf16.gmra.mxu0 %v10956
    %v11236 = vpop.f32.mrf.mxu0
    %v11237 = vadd.f32 %v11218, %v11236
    %v11238 = vpop.f32.mrf.mxu0
    %v11239 = vadd.f32 %v11220, %v11238
    %11240 = vmatmul.bf16.gmra.mxu0 %v10959
    %v11241 = vpop.f32.mrf.mxu0
    %v11242 = vadd.f32 %v11223, %v11241
    %v11243 = vpop.f32.mrf.mxu0
    %v11244 = vadd.f32 %v11225, %v11243
    %11245 = vdwg.mxu0
    %11246 = vmatpush.bf16.msra.mxu0 %v10633
    %11247 = vmatpush.bf16.msra.mxu0 %v10628
    %11248 = vmatpush.bf16.msra.mxu0 %v10623
    %11249 = vmatpush.bf16.msra.mxu0 %v10618
    %11250 = vmatpush.bf16.msra.mxu0 %v10613
    %11251 = vmatpush.bf16.msra.mxu0 %v10608
    %11252 = vmatpush.bf16.msra.mxu0 %v10603
    %11253 = vmatpush.bf16.msra.mxu0 %v10598
    %11254 = vmatmul.bf16.gmra.mxu0 %v9998
    %v11255 = vpop.f32.mrf.mxu0
    %v11256 = vadd.f32 %v10012, %v11255
    %v11257 = vpop.f32.mrf.mxu0
    %v11258 = vadd.f32 %v10012, %v11257
    %11259 = vmatmul.bf16.gmra.mxu0 %v10003
    %v11260 = vpop.f32.mrf.mxu0
    %v11261 = vadd.f32 %v10012, %v11260
    %v11262 = vpop.f32.mrf.mxu0
    %v11263 = vadd.f32 %v10012, %v11262
    %11264 = vdwg.mxu0
    %11265 = vmatpush.bf16.msra.mxu0 %v10673
    %11266 = vmatpush.bf16.msra.mxu0 %v10668
    %11267 = vmatpush.bf16.msra.mxu0 %v10663
    %11268 = vmatpush.bf16.msra.mxu0 %v10658
    %11269 = vmatpush.bf16.msra.mxu0 %v10653
    %11270 = vmatpush.bf16.msra.mxu0 %v10648
    %11271 = vmatpush.bf16.msra.mxu0 %v10643
    %11272 = vmatpush.bf16.msra.mxu0 %v10638
    %11273 = vmatmul.bf16.gmra.mxu0 %v9999
    %v11274 = vpop.f32.mrf.mxu0
    %v11275 = vadd.f32 %v11256, %v11274
    %v11276 = vpop.f32.mrf.mxu0
    %v11277 = vadd.f32 %v11258, %v11276
    %11278 = vmatmul.bf16.gmra.mxu0 %v10004
    %v11279 = vpop.f32.mrf.mxu0
    %v11280 = vadd.f32 %v11261, %v11279
    %v11281 = vpop.f32.mrf.mxu0
    %v11282 = vadd.f32 %v11263, %v11281
    %11283 = vdwg.mxu0
    %11284 = vmatpush.bf16.msra.mxu0 %v10713
    %11285 = vmatpush.bf16.msra.mxu0 %v10708
    %11286 = vmatpush.bf16.msra.mxu0 %v10703
    %11287 = vmatpush.bf16.msra.mxu0 %v10698
    %11288 = vmatpush.bf16.msra.mxu0 %v10693
    %11289 = vmatpush.bf16.msra.mxu0 %v10688
    %11290 = vmatpush.bf16.msra.mxu0 %v10683
    %11291 = vmatpush.bf16.msra.mxu0 %v10678
    %11292 = vmatmul.bf16.gmra.mxu0 %v10000
    %v11293 = vpop.f32.mrf.mxu0
    %v11294 = vadd.f32 %v11275, %v11293
    %v11295 = vpop.f32.mrf.mxu0
    %v11296 = vadd.f32 %v11277, %v11295
    %11297 = vmatmul.bf16.gmra.mxu0 %v10005
    %v11298 = vpop.f32.mrf.mxu0
    %v11299 = vadd.f32 %v11280, %v11298
    %v11300 = vpop.f32.mrf.mxu0
    %v11301 = vadd.f32 %v11282, %v11300
    %11302 = vdwg.mxu0
    %11303 = vmatpush.bf16.msra.mxu0 %v10753
    %11304 = vmatpush.bf16.msra.mxu0 %v10748
    %11305 = vmatpush.bf16.msra.mxu0 %v10743
    %11306 = vmatpush.bf16.msra.mxu0 %v10738
    %11307 = vmatpush.bf16.msra.mxu0 %v10733
    %11308 = vmatpush.bf16.msra.mxu0 %v10728
    %11309 = vmatpush.bf16.msra.mxu0 %v10723
    %11310 = vmatpush.bf16.msra.mxu0 %v10718
    %11311 = vmatmul.bf16.gmra.mxu0 %v10001
    %v11312 = vpop.f32.mrf.mxu0
    %v11313 = vadd.f32 %v11294, %v11312
    %v11314 = vpop.f32.mrf.mxu0
    %v11315 = vadd.f32 %v11296, %v11314
    %11316 = vmatmul.bf16.gmra.mxu0 %v10006
    %v11317 = vpop.f32.mrf.mxu0
    %v11318 = vadd.f32 %v11299, %v11317
    %v11319 = vpop.f32.mrf.mxu0
    %v11320 = vadd.f32 %v11301, %v11319
    %11321 = vdwg.mxu0
    %11322 = vmatpush.bf16.msra.mxu0 0
    %11323 = vmatpush.bf16.msra.mxu0 0
    %11324 = vmatpush.bf16.msra.mxu0 0
    %11325 = vmatpush.bf16.msra.mxu0 0
    %11326 = vmatpush.bf16.msra.mxu0 %v10773
    %11327 = vmatpush.bf16.msra.mxu0 %v10768
    %11328 = vmatpush.bf16.msra.mxu0 %v10763
    %11329 = vmatpush.bf16.msra.mxu0 %v10758
    %11330 = vmatmul.bf16.gmra.mxu0 %v10956
    %v11331 = vpop.f32.mrf.mxu0
    %v11332 = vadd.f32 %v11313, %v11331
    %v11333 = vpop.f32.mrf.mxu0
    %v11334 = vadd.f32 %v11315, %v11333
    %11335 = vmatmul.bf16.gmra.mxu0 %v10959
    %v11336 = vpop.f32.mrf.mxu0
    %v11337 = vadd.f32 %v11318, %v11336
    %v11338 = vpop.f32.mrf.mxu0
    %v11339 = vadd.f32 %v11320, %v11338
    %11340 = vdwg.mxu0
    %11341 = vmatpush.bf16.msra.mxu0 %v10634
    %11342 = vmatpush.bf16.msra.mxu0 %v10629
    %11343 = vmatpush.bf16.msra.mxu0 %v10624
    %11344 = vmatpush.bf16.msra.mxu0 %v10619
    %11345 = vmatpush.bf16.msra.mxu0 %v10614
    %11346 = vmatpush.bf16.msra.mxu0 %v10609
    %11347 = vmatpush.bf16.msra.mxu0 %v10604
    %11348 = vmatpush.bf16.msra.mxu0 %v10599
    %11349 = vmatmul.bf16.gmra.mxu0 %v9998
    %v11350 = vpop.f32.mrf.mxu0
    %v11351 = vadd.f32 %v10013, %v11350
    %v11352 = vpop.f32.mrf.mxu0
    %v11353 = vadd.f32 %v10013, %v11352
    %11354 = vmatmul.bf16.gmra.mxu0 %v10003
    %v11355 = vpop.f32.mrf.mxu0
    %v11356 = vadd.f32 %v10013, %v11355
    %v11357 = vpop.f32.mrf.mxu0
    %v11358 = vadd.f32 %v10013, %v11357
    %11359 = vdwg.mxu0
    %11360 = vmatpush.bf16.msra.mxu0 %v10674
    %11361 = vmatpush.bf16.msra.mxu0 %v10669
    %11362 = vmatpush.bf16.msra.mxu0 %v10664
    %11363 = vmatpush.bf16.msra.mxu0 %v10659
    %11364 = vmatpush.bf16.msra.mxu0 %v10654
    %11365 = vmatpush.bf16.msra.mxu0 %v10649
    %11366 = vmatpush.bf16.msra.mxu0 %v10644
    %11367 = vmatpush.bf16.msra.mxu0 %v10639
    %11368 = vmatmul.bf16.gmra.mxu0 %v9999
    %v11369 = vpop.f32.mrf.mxu0
    %v11370 = vadd.f32 %v11351, %v11369
    %v11371 = vpop.f32.mrf.mxu0
    %v11372 = vadd.f32 %v11353, %v11371
    %11373 = vmatmul.bf16.gmra.mxu0 %v10004
    %v11374 = vpop.f32.mrf.mxu0
    %v11375 = vadd.f32 %v11356, %v11374
    %v11376 = vpop.f32.mrf.mxu0
    %v11377 = vadd.f32 %v11358, %v11376
    %11378 = vdwg.mxu0
    %11379 = vmatpush.bf16.msra.mxu0 %v10714
    %11380 = vmatpush.bf16.msra.mxu0 %v10709
    %11381 = vmatpush.bf16.msra.mxu0 %v10704
    %11382 = vmatpush.bf16.msra.mxu0 %v10699
    %11383 = vmatpush.bf16.msra.mxu0 %v10694
    %11384 = vmatpush.bf16.msra.mxu0 %v10689
    %11385 = vmatpush.bf16.msra.mxu0 %v10684
    %11386 = vmatpush.bf16.msra.mxu0 %v10679
    %11387 = vmatmul.bf16.gmra.mxu0 %v10000
    %v11388 = vpop.f32.mrf.mxu0
    %v11389 = vadd.f32 %v11370, %v11388
    %v11390 = vpop.f32.mrf.mxu0
    %v11391 = vadd.f32 %v11372, %v11390
    %11392 = vmatmul.bf16.gmra.mxu0 %v10005
    %v11393 = vpop.f32.mrf.mxu0
    %v11394 = vadd.f32 %v11375, %v11393
    %v11395 = vpop.f32.mrf.mxu0
    %v11396 = vadd.f32 %v11377, %v11395
    %11397 = vdwg.mxu0
    %11398 = vmatpush.bf16.msra.mxu0 %v10754
    %11399 = vmatpush.bf16.msra.mxu0 %v10749
    %11400 = vmatpush.bf16.msra.mxu0 %v10744
    %11401 = vmatpush.bf16.msra.mxu0 %v10739
    %11402 = vmatpush.bf16.msra.mxu0 %v10734
    %11403 = vmatpush.bf16.msra.mxu0 %v10729
    %11404 = vmatpush.bf16.msra.mxu0 %v10724
    %11405 = vmatpush.bf16.msra.mxu0 %v10719
    %11406 = vmatmul.bf16.gmra.mxu0 %v10001
    %v11407 = vpop.f32.mrf.mxu0
    %v11408 = vadd.f32 %v11389, %v11407
    %v11409 = vpop.f32.mrf.mxu0
    %v11410 = vadd.f32 %v11391, %v11409
    %11411 = vmatmul.bf16.gmra.mxu0 %v10006
    %v11412 = vpop.f32.mrf.mxu0
    %v11413 = vadd.f32 %v11394, %v11412
    %v11414 = vpop.f32.mrf.mxu0
    %v11415 = vadd.f32 %v11396, %v11414
    %11416 = vdwg.mxu0
    %11417 = vmatpush.bf16.msra.mxu0 0
    %11418 = vmatpush.bf16.msra.mxu0 0
    %11419 = vmatpush.bf16.msra.mxu0 0
    %11420 = vmatpush.bf16.msra.mxu0 0
    %11421 = vmatpush.bf16.msra.mxu0 %v10774
    %11422 = vmatpush.bf16.msra.mxu0 %v10769
    %11423 = vmatpush.bf16.msra.mxu0 %v10764
    %11424 = vmatpush.bf16.msra.mxu0 %v10759
    %11425 = vmatmul.bf16.gmra.mxu0 %v10956
    %v11426 = vpop.f32.mrf.mxu0
    %v11427 = vadd.f32 %v11408, %v11426
    %v11428 = vpop.f32.mrf.mxu0
    %v11429 = vadd.f32 %v11410, %v11428
    %11430 = vmatmul.bf16.gmra.mxu0 %v10959
    %v11431 = vpop.f32.mrf.mxu0
    %v11432 = vadd.f32 %v11413, %v11431
    %v11433 = vpop.f32.mrf.mxu0
    %v11434 = vadd.f32 %v11415, %v11433
    %11435 = vdwg.mxu0
    %v11436 = vmax.f32 %v11047, 0.0
    %v11437 = vmax.f32 %v11142, 0.0
    %v11438 = vmax.f32 %v11237, 0.0
    %v11439 = vmax.f32 %v11332, 0.0
    %v11440 = vmax.f32 %v11427, 0.0
    %v11441 = vmax.f32 %v11049, 0.0
    %v11442 = vmax.f32 %v11144, 0.0
    %v11443 = vmax.f32 %v11239, 0.0
    %v11444 = vmax.f32 %v11334, 0.0
    %v11445 = vmax.f32 %v11429, 0.0
    %v11446 = vmax.f32 %v11052, 0.0
    %v11447 = vmax.f32 %v11147, 0.0
    %v11448 = vmax.f32 %v11242, 0.0
    %v11449 = vmax.f32 %v11337, 0.0
    %v11450 = vmax.f32 %v11432, 0.0
    %v11451 = vmax.f32 %v11054, 0.0
    %v11452 = vmax.f32 %v11149, 0.0
    %v11453 = vmax.f32 %v11244, 0.0
    %v11454 = vmax.f32 %v11339, 0.0
    %v11455 = vmax.f32 %v11434, 0.0
    %v11456 = vmax.f32 %v11436, -0.01
    %v11457 = vmax.f32 %v11437, -0.01
    %v11458 = vmax.f32 %v11438, -0.01
    %v11459 = vmax.f32 %v11439, -0.01
    %v11460 = vmax.f32 %v11440, -0.01
    %v11461 = vmax.f32 %v11441, -0.01
    %v11462 = vmax.f32 %v11442, -0.01
    %v11463 = vmax.f32 %v11443, -0.01
    %v11464 = vmax.f32 %v11444, -0.01
    %v11465 = vmax.f32 %v11445, -0.01
    %v11466 = vmax.f32 %v11446, -0.01
    %v11467 = vmax.f32 %v11447, -0.01
    %v11468 = vmax.f32 %v11448, -0.01
    %v11469 = vmax.f32 %v11449, -0.01
    %v11470 = vmax.f32 %v11450, -0.01
    %v11471 = vmax.f32 %v11451, -0.01
    %v11472 = vmax.f32 %v11452, -0.01
    %v11473 = vmax.f32 %v11453, -0.01
    %v11474 = vmax.f32 %v11454, -0.01
    %v11475 = vmax.f32 %v11455, -0.01
    %v11476 = vmin.f32 %v11456, 0.01
    %v11477 = vmin.f32 %v11457, 0.01
    %v11478 = vmin.f32 %v11458, 0.01
    %v11479 = vmin.f32 %v11459, 0.01
    %v11480 = vmin.f32 %v11460, 0.01
    %v11481 = vmin.f32 %v11461, 0.01
    %v11482 = vmin.f32 %v11462, 0.01
    %v11483 = vmin.f32 %v11463, 0.01
    %v11484 = vmin.f32 %v11464, 0.01
    %v11485 = vmin.f32 %v11465, 0.01
    %v11486 = vmin.f32 %v11466, 0.01
    %v11487 = vmin.f32 %v11467, 0.01
    %v11488 = vmin.f32 %v11468, 0.01
    %v11489 = vmin.f32 %v11469, 0.01
    %v11490 = vmin.f32 %v11470, 0.01
    %v11491 = vmin.f32 %v11471, 0.01
    %v11492 = vmin.f32 %v11472, 0.01
    %v11493 = vmin.f32 %v11473, 0.01
    %v11494 = vmin.f32 %v11474, 0.01
    %v11495 = vmin.f32 %v11475, 0.01
    %v11496 = vsub.f32 %v11436, %v11476
    %v11497 = vsub.f32 %v11437, %v11477
    %v11498 = vsub.f32 %v11438, %v11478
    %v11499 = vsub.f32 %v11439, %v11479
    %v11500 = vsub.f32 %v11440, %v11480
    %v11501 = vsub.f32 %v11441, %v11481
    %v11502 = vsub.f32 %v11442, %v11482
    %v11503 = vsub.f32 %v11443, %v11483
    %v11504 = vsub.f32 %v11444, %v11484
    %v11505 = vsub.f32 %v11445, %v11485
    %v11506 = vsub.f32 %v11446, %v11486
    %v11507 = vsub.f32 %v11447, %v11487
    %v11508 = vsub.f32 %v11448, %v11488
    %v11509 = vsub.f32 %v11449, %v11489
    %v11510 = vsub.f32 %v11450, %v11490
    %v11511 = vsub.f32 %v11451, %v11491
    %v11512 = vsub.f32 %v11452, %v11492
    %v11513 = vsub.f32 %v11453, %v11493
    %v11514 = vsub.f32 %v11454, %v11494
    %v11515 = vsub.f32 %v11455, %v11495
    %v11516 = vadd.f32 %v9758, %v11496
    %v11517 = vadd.f32 %v9759, %v11497
    %v11518 = vadd.f32 %v9760, %v11498
    %v11519 = vadd.f32 %v9761, %v11499
    %v11520 = vadd.f32 %v9762, %v11500
    %v11521 = vadd.f32 %v9763, %v11501
    %v11522 = vadd.f32 %v9764, %v11502
    %v11523 = vadd.f32 %v9765, %v11503
    %v11524 = vadd.f32 %v9766, %v11504
    %v11525 = vadd.f32 %v9767, %v11505
    %v11526 = vadd.f32 %v9768, %v11506
    %v11527 = vadd.f32 %v9769, %v11507
    %v11528 = vadd.f32 %v9770, %v11508
    %v11529 = vadd.f32 %v9771, %v11509
    %v11530 = vadd.f32 %v9772, %v11510
    %v11531 = vadd.f32 %v9773, %v11511
    %v11532 = vadd.f32 %v9774, %v11512
    %v11533 = vadd.f32 %v9775, %v11513
    %v11534 = vadd.f32 %v9776, %v11514
    %v11535 = vadd.f32 %v9777, %v11515
    %v11536 = vld [vmem:[%s12 + $0x3] ss:$0 sm:$0xff]
    %v11537 = vpack.c.bf16 %v11521, %v11516
    %v11538 = vpack.c.bf16 %v11522, %v11517
    %v11539 = vpack.c.bf16 %v11523, %v11518
    %v11540 = vpack.c.bf16 %v11524, %v11519
    %v11541 = vpack.c.bf16 %v11525, %v11520
    %v11542 = vpack.c.bf16 %v11531, %v11526
    %v11543 = vpack.c.bf16 %v11532, %v11527
    %v11544 = vpack.c.bf16 %v11533, %v11528
    %v11545 = vpack.c.bf16 %v11534, %v11529
    %v11546 = vpack.c.bf16 %v11535, %v11530
    %v11547 = vld [vmem:[%s9] sm:$0xf]
    %v11548 = vld [vmem:[%s9 + $0x4] sm:$0xf]
    %v11549 = vld [vmem:[%s9 + $0x8] sm:$0xf]
    %v11550 = vld [vmem:[%s9 + $0xc] sm:$0xf]
    %v11551 = vld [vmem:[%s9 + $0x10] sm:$0xf]
    %v11552 = vld [vmem:[%s9 + $0x14] sm:$0xf]
    %v11553 = vld [vmem:[%s9 + $0x18] sm:$0xf]
    %v11554 = vld [vmem:[%s9 + $0x1c] sm:$0xf]
    %v11555 = vld [vmem:[%s9 + $0x20] sm:$0xf]
    %v11556 = vld [vmem:[%s9 + $0x24] sm:$0xf]
    %v11557 = vld [vmem:[%s9 + $0x28] sm:$0xf]
    %v11558 = vld [vmem:[%s9 + $0x2c] sm:$0xf]
    %v11559 = vld [vmem:[%s9 + $0x30] sm:$0xf]
    %v11560 = vld [vmem:[%s9 + $0x34] sm:$0xf]
    %v11561 = vld [vmem:[%s9 + $0x38] sm:$0xf]
    %v11562 = vld [vmem:[%s9 + $0x3c] sm:$0xf]
    %v11563 = vld [vmem:[%s9 + $0x40] sm:$0xf]
    %v11564 = vld [vmem:[%s9 + $0x44] sm:$0xf]
    %v11565 = vld [vmem:[%s9 + $0x48] sm:$0xf]
    %v11566 = vld [vmem:[%s9 + $0x4c] sm:$0xf]
    %v11567 = vld [vmem:[%s9 + $0x50] sm:$0xf]
    %v11568 = vld [vmem:[%s9 + $0x54] sm:$0xf]
    %v11569 = vld [vmem:[%s9 + $0x58] sm:$0xf]
    %v11570 = vld [vmem:[%s9 + $0x5c] sm:$0xf]
    %v11571 = vld [vmem:[%s9 + $0x60] sm:$0xf]
    %v11572 = vld [vmem:[%s9 + $0x64] sm:$0xf]
    %v11573 = vld [vmem:[%s9 + $0x68] sm:$0xf]
    %v11574 = vld [vmem:[%s9 + $0x6c] sm:$0xf]
    %v11575 = vld [vmem:[%s9 + $0x70] sm:$0xf]
    %v11576 = vld [vmem:[%s9 + $0x74] sm:$0xf]
    %v11577 = vld [vmem:[%s9 + $0x78] sm:$0xf]
    %v11578 = vld [vmem:[%s9 + $0x7c] sm:$0xf]
    %v11579 = vld [vmem:[%s9 + $0x80] sm:$0xf]
    %v11580 = vld [vmem:[%s9 + $0x84] sm:$0xf]
    %v11581 = vld [vmem:[%s9 + $0x88] sm:$0xf]
    %v11582 = vld [vmem:[%s9 + $0x8c] sm:$0xf]
    %v11583 = vld [vmem:[%s9 + $0x90] sm:$0xf]
    %v11584 = vld [vmem:[%s9 + $0x94] sm:$0xf]
    %v11585 = vld [vmem:[%s9 + $0x98] sm:$0xf]
    %v11586 = vld [vmem:[%s9 + $0x9c] sm:$0xf]
    %v11587 = vld [vmem:[%s9 + $0xa0] sm:$0xf]
    %v11588 = vld [vmem:[%s9 + $0xa4] sm:$0xf]
    %v11589 = vld [vmem:[%s9 + $0xa8] sm:$0xf]
    %v11590 = vld [vmem:[%s9 + $0xac] sm:$0xf]
    %v11591 = vld [vmem:[%s9 + $0xb0] sm:$0xf]
    %v11592 = vld [vmem:[%s9 + $0xb4] sm:$0xf]
    %v11593 = vld [vmem:[%s9 + $0xb8] sm:$0xf]
    %v11594 = vld [vmem:[%s9 + $0xbc] sm:$0xf]
    %v11595 = vld [vmem:[%s9 + $0xc0] sm:$0xf]
    %v11596 = vld [vmem:[%s9 + $0xc4] sm:$0xf]
    %v11597 = vld [vmem:[%s9 + $0xc8] sm:$0xf]
    %v11598 = vld [vmem:[%s9 + $0xcc] sm:$0xf]
    %v11599 = vld [vmem:[%s9 + $0xd0] sm:$0xf]
    %v11600 = vld [vmem:[%s9 + $0xd4] sm:$0xf]
    %v11601 = vld [vmem:[%s9 + $0xd8] sm:$0xf]
    %v11602 = vld [vmem:[%s9 + $0xdc] sm:$0xf]
    %v11603 = vld [vmem:[%s9 + $0xe0] sm:$0xf]
    %v11604 = vld [vmem:[%s9 + $0xe4] sm:$0xf]
    %v11605 = vld [vmem:[%s9 + $0xe8] sm:$0xf]
    %v11606 = vld [vmem:[%s9 + $0xec] sm:$0xf]
    %v11607 = vld [vmem:[%s9 + $0xf0] sm:$0xf]
    %v11608 = vld [vmem:[%s9 + $0xf4] sm:$0xf]
    %v11609 = vld [vmem:[%s9 + $0xf8] sm:$0xf]
    %v11610 = vld [vmem:[%s9 + $0xfc] sm:$0xf]
    %v11611 = vld [vmem:[%s9 + $0x100] sm:$0xf]
    %v11612 = vld [vmem:[%s9 + $0x104] sm:$0xf]
    %v11613 = vld [vmem:[%s9 + $0x108] sm:$0xf]
    %v11614 = vld [vmem:[%s9 + $0x10c] sm:$0xf]
    %v11615 = vld [vmem:[%s9 + $0x110] sm:$0xf]
    %v11616 = vld [vmem:[%s9 + $0x114] sm:$0xf]
    %v11617 = vld [vmem:[%s9 + $0x118] sm:$0xf]
    %v11618 = vld [vmem:[%s9 + $0x11c] sm:$0xf]
    %v11691 = vunpack.c.l.b16 %v11547
    %v11692 = vunpack.c.l.b16 %v11548
    %v11693 = vunpack.c.l.b16 %v11549
    %v11694 = vunpack.c.l.b16 %v11550
    %v11695 = vunpack.c.l.b16 %v11551
    %v11696 = vunpack.c.l.b16 %v11552
    %v11697 = vunpack.c.l.b16 %v11553
    %v11698 = vunpack.c.l.b16 %v11554
    %v11699 = vunpack.c.l.b16 %v11555
    %v11700 = vunpack.c.l.b16 %v11556
    %v11701 = vunpack.c.l.b16 %v11557
    %v11702 = vunpack.c.l.b16 %v11558
    %v11703 = vunpack.c.l.b16 %v11559
    %v11704 = vunpack.c.l.b16 %v11560
    %v11705 = vunpack.c.l.b16 %v11561
    %v11706 = vunpack.c.l.b16 %v11562
    %v11707 = vunpack.c.l.b16 %v11563
    %v11708 = vunpack.c.l.b16 %v11564
    %v11709 = vunpack.c.l.b16 %v11565
    %v11710 = vunpack.c.l.b16 %v11566
    %v11711 = vunpack.c.l.b16 %v11567
    %v11712 = vunpack.c.l.b16 %v11568
    %v11713 = vunpack.c.l.b16 %v11569
    %v11714 = vunpack.c.l.b16 %v11570
    %v11715 = vunpack.c.l.b16 %v11571
    %v11716 = vunpack.c.l.b16 %v11572
    %v11717 = vunpack.c.l.b16 %v11573
    %v11718 = vunpack.c.l.b16 %v11574
    %v11719 = vunpack.c.l.b16 %v11575
    %v11720 = vunpack.c.l.b16 %v11576
    %v11721 = vunpack.c.l.b16 %v11577
    %v11722 = vunpack.c.l.b16 %v11578
    %v11723 = vunpack.c.l.b16 %v11579
    %v11724 = vunpack.c.l.b16 %v11580
    %v11725 = vunpack.c.l.b16 %v11581
    %v11726 = vunpack.c.l.b16 %v11582
    %v11727 = vunpack.c.l.b16 %v11583
    %v11728 = vunpack.c.l.b16 %v11584
    %v11729 = vunpack.c.l.b16 %v11585
    %v11730 = vunpack.c.l.b16 %v11586
    %v11731 = vunpack.c.l.b16 %v11587
    %v11732 = vunpack.c.l.b16 %v11588
    %v11733 = vunpack.c.l.b16 %v11589
    %v11734 = vunpack.c.l.b16 %v11590
    %v11735 = vunpack.c.l.b16 %v11591
    %v11736 = vunpack.c.l.b16 %v11592
    %v11737 = vunpack.c.l.b16 %v11593
    %v11738 = vunpack.c.l.b16 %v11594
    %v11739 = vunpack.c.l.b16 %v11595
    %v11740 = vunpack.c.l.b16 %v11596
    %v11741 = vunpack.c.l.b16 %v11597
    %v11742 = vunpack.c.l.b16 %v11598
    %v11743 = vunpack.c.l.b16 %v11599
    %v11744 = vunpack.c.l.b16 %v11600
    %v11745 = vunpack.c.l.b16 %v11601
    %v11746 = vunpack.c.l.b16 %v11602
    %v11747 = vunpack.c.l.b16 %v11603
    %v11748 = vunpack.c.l.b16 %v11604
    %v11749 = vunpack.c.l.b16 %v11605
    %v11750 = vunpack.c.l.b16 %v11606
    %v11751 = vunpack.c.l.b16 %v11607
    %v11752 = vunpack.c.l.b16 %v11608
    %v11753 = vunpack.c.l.b16 %v11609
    %v11754 = vunpack.c.l.b16 %v11610
    %v11755 = vunpack.c.l.b16 %v11611
    %v11756 = vunpack.c.l.b16 %v11612
    %v11757 = vunpack.c.l.b16 %v11613
    %v11758 = vunpack.c.l.b16 %v11614
    %v11759 = vunpack.c.l.b16 %v11615
    %v11760 = vunpack.c.l.b16 %v11616
    %v11761 = vunpack.c.l.b16 %v11617
    %v11762 = vunpack.c.l.b16 %v11618
    %v11763 = vpack.c.b16 %v11692, %v11691
    %v11764 = vpack.c.b16 %v11694, %v11693
    %v11765 = vpack.c.b16 %v11696, %v11695
    %v11766 = vpack.c.b16 %v11698, %v11697
    %v11767 = vpack.c.b16 %v11700, %v11699
    %v11768 = vpack.c.b16 %v11702, %v11701
    %v11769 = vpack.c.b16 %v11704, %v11703
    %v11770 = vpack.c.b16 %v11706, %v11705
    %v11771 = vpack.c.b16 %v11708, %v11707
    %v11772 = vpack.c.b16 %v11710, %v11709
    %v11773 = vpack.c.b16 %v11712, %v11711
    %v11774 = vpack.c.b16 %v11714, %v11713
    %v11775 = vpack.c.b16 %v11716, %v11715
    %v11776 = vpack.c.b16 %v11718, %v11717
    %v11777 = vpack.c.b16 %v11720, %v11719
    %v11778 = vpack.c.b16 %v11722, %v11721
    %v11779 = vpack.c.b16 %v11724, %v11723
    %v11780 = vpack.c.b16 %v11726, %v11725
    %v11781 = vpack.c.b16 %v11728, %v11727
    %v11782 = vpack.c.b16 %v11730, %v11729
    %v11783 = vpack.c.b16 %v11732, %v11731
    %v11784 = vpack.c.b16 %v11734, %v11733
    %v11785 = vpack.c.b16 %v11736, %v11735
    %v11786 = vpack.c.b16 %v11738, %v11737
    %v11787 = vpack.c.b16 %v11740, %v11739
    %v11788 = vpack.c.b16 %v11742, %v11741
    %v11789 = vpack.c.b16 %v11744, %v11743
    %v11790 = vpack.c.b16 %v11746, %v11745
    %v11791 = vpack.c.b16 %v11748, %v11747
    %v11792 = vpack.c.b16 %v11750, %v11749
    %v11793 = vpack.c.b16 %v11752, %v11751
    %v11794 = vpack.c.b16 %v11754, %v11753
    %v11795 = vpack.c.b16 %v11756, %v11755
    %v11796 = vpack.c.b16 %v11758, %v11757
    %v11797 = vpack.c.b16 %v11760, %v11759
    %v11798 = vpack.c.b16 %v11762, %v11761
    %v11836 = vsel %vm1400, %v11541, 0
    %v11839 = vsel %vm1400, %v11546, 0
    %11841 = vmatpush.bf16.msra.mxu0 %v11770
    %11842 = vmatpush.bf16.msra.mxu0 %v11769
    %11843 = vmatpush.bf16.msra.mxu0 %v11768
    %11844 = vmatpush.bf16.msra.mxu0 %v11767
    %11845 = vmatpush.bf16.msra.mxu0 %v11766
    %11846 = vmatpush.bf16.msra.mxu0 %v11765
    %11847 = vmatpush.bf16.msra.mxu0 %v11764
    %11848 = vmatpush.bf16.msra.mxu0 %v11763
    %11849 = vmatmul.bf16.gmra.mxu0 %v11537
    %v11850 = vpop.f32.mrf.mxu0
    %v11851 = vadd.f32 %v11536, %v11850
    %v11852 = vpop.f32.mrf.mxu0
    %v11853 = vadd.f32 %v11536, %v11852
    %11854 = vmatmul.bf16.gmra.mxu0 %v11542
    %v11855 = vpop.f32.mrf.mxu0
    %v11856 = vadd.f32 %v11536, %v11855
    %v11857 = vpop.f32.mrf.mxu0
    %v11858 = vadd.f32 %v11536, %v11857
    %11859 = vdwg.mxu0
    %11860 = vmatpush.bf16.msra.mxu0 %v11778
    %11861 = vmatpush.bf16.msra.mxu0 %v11777
    %11862 = vmatpush.bf16.msra.mxu0 %v11776
    %11863 = vmatpush.bf16.msra.mxu0 %v11775
    %11864 = vmatpush.bf16.msra.mxu0 %v11774
    %11865 = vmatpush.bf16.msra.mxu0 %v11773
    %11866 = vmatpush.bf16.msra.mxu0 %v11772
    %11867 = vmatpush.bf16.msra.mxu0 %v11771
    %11868 = vmatmul.bf16.gmra.mxu0 %v11538
    %v11869 = vpop.f32.mrf.mxu0
    %v11870 = vadd.f32 %v11851, %v11869
    %v11871 = vpop.f32.mrf.mxu0
    %v11872 = vadd.f32 %v11853, %v11871
    %11873 = vmatmul.bf16.gmra.mxu0 %v11543
    %v11874 = vpop.f32.mrf.mxu0
    %v11875 = vadd.f32 %v11856, %v11874
    %v11876 = vpop.f32.mrf.mxu0
    %v11877 = vadd.f32 %v11858, %v11876
    %11878 = vdwg.mxu0
    %11879 = vmatpush.bf16.msra.mxu0 %v11786
    %11880 = vmatpush.bf16.msra.mxu0 %v11785
    %11881 = vmatpush.bf16.msra.mxu0 %v11784
    %11882 = vmatpush.bf16.msra.mxu0 %v11783
    %11883 = vmatpush.bf16.msra.mxu0 %v11782
    %11884 = vmatpush.bf16.msra.mxu0 %v11781
    %11885 = vmatpush.bf16.msra.mxu0 %v11780
    %11886 = vmatpush.bf16.msra.mxu0 %v11779
    %11887 = vmatmul.bf16.gmra.mxu0 %v11539
    %v11888 = vpop.f32.mrf.mxu0
    %v11889 = vadd.f32 %v11870, %v11888
    %v11890 = vpop.f32.mrf.mxu0
    %v11891 = vadd.f32 %v11872, %v11890
    %11892 = vmatmul.bf16.gmra.mxu0 %v11544
    %v11893 = vpop.f32.mrf.mxu0
    %v11894 = vadd.f32 %v11875, %v11893
    %v11895 = vpop.f32.mrf.mxu0
    %v11896 = vadd.f32 %v11877, %v11895
    %11897 = vdwg.mxu0
    %11898 = vmatpush.bf16.msra.mxu0 %v11794
    %11899 = vmatpush.bf16.msra.mxu0 %v11793
    %11900 = vmatpush.bf16.msra.mxu0 %v11792
    %11901 = vmatpush.bf16.msra.mxu0 %v11791
    %11902 = vmatpush.bf16.msra.mxu0 %v11790
    %11903 = vmatpush.bf16.msra.mxu0 %v11789
    %11904 = vmatpush.bf16.msra.mxu0 %v11788
    %11905 = vmatpush.bf16.msra.mxu0 %v11787
    %11906 = vmatmul.bf16.gmra.mxu0 %v11540
    %v11907 = vpop.f32.mrf.mxu0
    %v11908 = vadd.f32 %v11889, %v11907
    %v11909 = vpop.f32.mrf.mxu0
    %v11910 = vadd.f32 %v11891, %v11909
    %11911 = vmatmul.bf16.gmra.mxu0 %v11545
    %v11912 = vpop.f32.mrf.mxu0
    %v11913 = vadd.f32 %v11894, %v11912
    %v11914 = vpop.f32.mrf.mxu0
    %v11915 = vadd.f32 %v11896, %v11914
    %11916 = vdwg.mxu0
    %11917 = vmatpush.bf16.msra.mxu0 0
    %11918 = vmatpush.bf16.msra.mxu0 0
    %11919 = vmatpush.bf16.msra.mxu0 0
    %11920 = vmatpush.bf16.msra.mxu0 0
    %11921 = vmatpush.bf16.msra.mxu0 %v11798
    %11922 = vmatpush.bf16.msra.mxu0 %v11797
    %11923 = vmatpush.bf16.msra.mxu0 %v11796
    %11924 = vmatpush.bf16.msra.mxu0 %v11795
    %11925 = vmatmul.bf16.gmra.mxu0 %v11836
    %v11926 = vpop.f32.mrf.mxu0
    %v11927 = vadd.f32 %v11908, %v11926
    %v11928 = vpop.f32.mrf.mxu0
    %v11929 = vadd.f32 %v11910, %v11928
    %11930 = vmatmul.bf16.gmra.mxu0 %v11839
    %v11931 = vpop.f32.mrf.mxu0
    %v11932 = vadd.f32 %v11913, %v11931
    %v11933 = vpop.f32.mrf.mxu0
    %v11934 = vadd.f32 %v11915, %v11933
    %11935 = vdwg.mxu0
    %vm11936 = vcmp.gt.f32.partialorder %v11927, 0.0
    %vm11937 = vcmp.gt.f32.partialorder %v11929, 0.0
    %vm11938 = vcmp.gt.f32.partialorder %v11932, 0.0
    %vm11939 = vcmp.gt.f32.partialorder %v11934, 0.0
    %v11940 = vmul.f32 %v11927, 0.01
    %v11941 = vmul.f32 %v11929, 0.01
    %v11942 = vmul.f32 %v11932, 0.01
    %v11943 = vmul.f32 %v11934, 0.01
    %v11944 = vsel %vm11936, %v11927, %v11940
    %v11945 = vsel %vm11937, %v11929, %v11941
    %v11946 = vsel %vm11938, %v11932, %v11942
    %v11947 = vsel %vm11939, %v11934, %v11943
    %v11948 = vld [vmem:[%s12 + $0x4] ss:$0 sm:$0xff]
    %v11949 = vpack.c.bf16 %v11945, %v11944
    %v11950 = vpack.c.bf16 %v11947, %v11946
    %v11951 = vld [vmem:[%s10] sm:$0xf]
    %v11952 = vld [vmem:[%s10 + $0x4] sm:$0xf]
    %v11953 = vld [vmem:[%s10 + $0x8] sm:$0xf]
    %v11954 = vld [vmem:[%s10 + $0xc] sm:$0xf]
    %v11955 = vld [vmem:[%s10 + $0x10] sm:$0xf]
    %v11956 = vld [vmem:[%s10 + $0x14] sm:$0xf]
    %v11957 = vld [vmem:[%s10 + $0x18] sm:$0xf]
    %v11958 = vld [vmem:[%s10 + $0x1c] sm:$0xf]
    %v11967 = vunpack.c.l.b16 %v11951
    %v11968 = vunpack.c.l.b16 %v11952
    %v11969 = vunpack.c.l.b16 %v11953
    %v11970 = vunpack.c.l.b16 %v11954
    %v11971 = vunpack.c.l.b16 %v11955
    %v11972 = vunpack.c.l.b16 %v11956
    %v11973 = vunpack.c.l.b16 %v11957
    %v11974 = vunpack.c.l.b16 %v11958
    %v11975 = vpack.c.b16 %v11968, %v11967
    %v11976 = vpack.c.b16 %v11970, %v11969
    %v11977 = vpack.c.b16 %v11972, %v11971
    %v11978 = vpack.c.b16 %v11974, %v11973
    %v11984 = vsel %vm1400, %v11949, 0
    %v11987 = vsel %vm1400, %v11950, 0
    %11989 = vmatpush.bf16.msra.mxu0 0
    %11990 = vmatpush.bf16.msra.mxu0 0
    %11991 = vmatpush.bf16.msra.mxu0 0
    %11992 = vmatpush.bf16.msra.mxu0 0
    %11993 = vmatpush.bf16.msra.mxu0 %v11978
    %11994 = vmatpush.bf16.msra.mxu0 %v11977
    %11995 = vmatpush.bf16.msra.mxu0 %v11976
    %11996 = vmatpush.bf16.msra.mxu0 %v11975
    %11997 = vmatmul.bf16.gmra.mxu0 %v11984
    %v11998 = vpop.f32.mrf.mxu0
    %v11999 = vadd.f32 %v11948, %v11998
    %v12000 = vpop.f32.mrf.mxu0
    %v12001 = vadd.f32 %v11948, %v12000
    %12002 = vmatmul.bf16.gmra.mxu0 %v11987
    %v12003 = vpop.f32.mrf.mxu0
    %v12004 = vadd.f32 %v11948, %v12003
    %v12005 = vpop.f32.mrf.mxu0
    %v12006 = vadd.f32 %v11948, %v12005
    %12007 = vdwg.mxu0
    %vm12008 = vcmp.gt.f32.partialorder %v11999, 0.0
    %vm12009 = vcmp.gt.f32.partialorder %v12001, 0.0
    %vm12010 = vcmp.gt.f32.partialorder %v12004, 0.0
    %vm12011 = vcmp.gt.f32.partialorder %v12006, 0.0
    %v12012 = vmul.f32 %v11999, 0.01
    %v12013 = vmul.f32 %v12001, 0.01
    %v12014 = vmul.f32 %v12004, 0.01
    %v12015 = vmul.f32 %v12006, 0.01
    %v12016 = vsel %vm12008, %v11999, %v12012
    %v12017 = vsel %vm12009, %v12001, %v12013
    %v12018 = vsel %vm12010, %v12004, %v12014
    %v12019 = vsel %vm12011, %v12006, %v12015
    %v12020 = vld [vmem:[%s12 + $0x5] ss:$0 sm:$0xff]
    %v12021 = vpack.c.bf16 %v12017, %v12016
    %v12022 = vpack.c.bf16 %v12019, %v12018
    %v12023 = vld [vmem:[%s11] sm:$0xf]
    %v12024 = vld [vmem:[%s11 + $0x4] sm:$0xf]
    %v12025 = vld [vmem:[%s11 + $0x8] sm:$0xf]
    %v12026 = vld [vmem:[%s11 + $0xc] sm:$0xf]
    %v12031 = vunpack.c.l.b16 %v12023
    %v12032 = vunpack.c.l.b16 %v12024
    %v12033 = vunpack.c.l.b16 %v12025
    %v12034 = vunpack.c.l.b16 %v12026
    %v12035 = vpack.c.b16 %v12032, %v12031
    %v12036 = vpack.c.b16 %v12034, %v12033
    %v12040 = vsel %vm6001, %v12021, 0
    %v12043 = vsel %vm6001, %v12022, 0
    %12045 = vmatpush.bf16.msra.mxu0 0
    %12046 = vmatpush.bf16.msra.mxu0 0
    %12047 = vmatpush.bf16.msra.mxu0 0
    %12048 = vmatpush.bf16.msra.mxu0 0
    %12049 = vmatpush.bf16.msra.mxu0 0
    %12050 = vmatpush.bf16.msra.mxu0 0
    %12051 = vmatpush.bf16.msra.mxu0 %v12036
    %12052 = vmatpush.bf16.msra.mxu0 %v12035
    %12053 = vmatmul.bf16.gmra.mxu0 %v12040
    %v12054 = vpop.f32.mrf.mxu0
    %v12055 = vadd.f32 %v12020, %v12054
    %v12056 = vpop.f32.mrf.mxu0
    %v12057 = vadd.f32 %v12020, %v12056
    %12058 = vmatmul.bf16.gmra.mxu0 %v12043
    %v12059 = vpop.f32.mrf.mxu0
    %v12060 = vadd.f32 %v12020, %v12059
    %v12061 = vpop.f32.mrf.mxu0
    %v12062 = vadd.f32 %v12020, %v12061
    %12063 = vdwg.mxu0
    %v12064 = vmax.f32 %v12055, 0.0
    %v12065 = vmax.f32 %v12057, 0.0
    %v12066 = vmax.f32 %v12060, 0.0
    %v12067 = vmax.f32 %v12062, 0.0
    %v12068 = vsel %vm66, %v12064, 0.0
    %v12069 = vsel %vm66, %v12065, 0.0
    %v12070 = vadd.f32 %v12068, %v12069
    %v12071 = vsel %vm66, %v12066, 0.0
    %v12072 = vadd.f32 %v12070, %v12071
    %v12073 = vsel %vm66, %v12067, 0.0
    %v12074 = vadd.f32 %v12072, %v12073
    %v12075 = vrot.slane %v12074, 4
    %v12076 = vadd.f32 %v12074, %v12075
    %v12077 = vrot.slane %v12076, 2
    %v12078 = vadd.f32 %v12076, %v12077
    %v12079 = vrot.slane %v12078, 1
    %v12080 = vadd.f32 %v12078, %v12079
    %v12081 = vmul.f32 %v12080, %v6050
    %v12082 = vsub.f32 %v12064, %v12081
    %v12083 = vsub.f32 %v12065, %v12081
    %v12084 = vsub.f32 %v12066, %v12081
    %v12085 = vsub.f32 %v12067, %v12081
    %v12086 = vmul.f32 %v12082, %v12082
    %v12087 = vmul.f32 %v12083, %v12083
    %v12088 = vmul.f32 %v12084, %v12084
    %v12089 = vmul.f32 %v12085, %v12085
    %v12090 = vsel %vm66, %v12086, 0.0
    %v12091 = vsel %vm66, %v12087, 0.0
    %v12092 = vadd.f32 %v12090, %v12091
    %v12093 = vsel %vm66, %v12088, 0.0
    %v12094 = vadd.f32 %v12092, %v12093
    %v12095 = vsel %vm66, %v12089, 0.0
    %v12096 = vadd.f32 %v12094, %v12095
    %v12097 = vrot.slane %v12096, 4
    %v12098 = vadd.f32 %v12096, %v12097
    %v12099 = vrot.slane %v12098, 2
    %v12100 = vadd.f32 %v12098, %v12099
    %v12101 = vrot.slane %v12100, 1
    %v12102 = vadd.f32 %v12100, %v12101
    %v12103 = vmul.f32 %v12102, %v6050
    %v12104 = vld [vmem:[%s12 + $0x6] ss:$0 sm:$0xff]
    %v12105 = vld [vmem:[%s12 + $0x7] ss:$0 sm:$0xff]
    %v12106 = vadd.f32 %v12103, 1e-05
    %v12107 = vrsqrt.pop %v12106
    %v12108 = vmul.f32 %v12107, %v12106
    %v12109 = vmul.f32 %v12108, %v12107
    %v12110 = vmul.f32 0.5, %v12109
    %v12111 = vsub.f32 1.5, %v12110
    %v12112 = vmul.f32 %v12107, %v12111
    %vm12113 = vweird.f32 %v12106
    %vm12114 = vweird.f32 %v12107
    %vm12115 = vmor %vm12113, %vm12114
    %v12116 = vsel %vm12115, %v12107, %v12112
    %v12117 = vmul.f32 %v12104, %v12116
    %v12118 = vmul.f32 %v12082, %v12117
    %v12119 = vmul.f32 %v12083, %v12117
    %v12120 = vmul.f32 %v12084, %v12117
    %v12121 = vmul.f32 %v12085, %v12117
    %v12122 = vadd.f32 %v12118, %v12105
    %v12123 = vadd.f32 %v12119, %v12105
    %v12124 = vadd.f32 %v12120, %v12105
    %v12125 = vadd.f32 %v12121, %v12105
    %12130 = vrot.lane.b32.xlu0 %v12122, 16
    %v12131 = vpop.permute.xlu0 %12130
    %12132 = vrot.lane.b32.xlu0 %v12123, 16
    %v12133 = vpop.permute.xlu0 %12132
    %12134 = vrot.lane.b32.xlu0 %v12124, 16
    %v12135 = vpop.permute.xlu0 %12134
    %12136 = vrot.lane.b32.xlu0 %v12125, 16
    %v12137 = vpop.permute.xlu0 %12136
    %v12142 = vsel %vm66, %v6092, %v12131
    %v12143 = vsel %vm66, %v6093, %v12133
    %v12144 = vsel %vm66, %v6094, %v12135
    %v12145 = vsel %vm66, %v6095, %v12137
    %12146 = vst.msk [vmem:[#allocation2] sm:$0xff] %vm6001, %v12142
    %12147 = vst.msk [vmem:[#allocation2 + $0x8] sm:$0xff] %vm6001, %v12143
    %12148 = vst.msk [vmem:[#allocation2 + $0x10] sm:$0xff] %vm6001, %v12144
    %12149 = vst.msk [vmem:[#allocation2 + $0x18] sm:$0xff] %vm6001, %v12145
    %v12150 = vld [vmem:[%s13] sm:$0xf]
    %v12152 = vsel %vm6001, %v12150, 0
    %12154 = vmatpush.msra.mxu0 0.0
    %12155 = vmatpush.msra.mxu0 0.0
    %12156 = vmatpush.msra.mxu0 0.0
    %12157 = vmatpush.msra.mxu0 0.0
    %12158 = vmatpush.msra.mxu0 0.0
    %12159 = vmatpush.msra.mxu0 0.0
    %12160 = vmatpush.msra.mxu0 0.0
    %12161 = vmatpush.msra.mxu0 0.0
    %12162 = vmatpush.msra.mxu0 0.0
    %12163 = vmatpush.msra.mxu0 0.0
    %12164 = vmatpush.msra.mxu0 0.0
    %12165 = vmatpush.msra.mxu0 0.0
    %12166 = vmatpush.msra.mxu0 %v12145
    %12167 = vmatpush.msra.mxu0 %v12144
    %12168 = vmatpush.msra.mxu0 %v12143
    %12169 = vmatpush.msra.mxu0 %v12142
    %12170 = vmatmul.f32.gmra.mxu0 %v12152
    %v12171 = vpop.f32.mrf.mxu0
    %v12172 = vadd.f32 0.0, %v12171
    %12173 = vdwg.mxu0
    %vm12174 = vcmask 257024
    %12175 = vst.msk [vmem:[#allocation4] sm:$0xf] %vm12174, %v12172
    // Predicated region
    $region58: #{tpu_custom_call.1} parent=1 // pred_check
      _
    $region59: #{tpu_custom_call.1} parent=1 // pred_check_branch
      %12177 = sbr.rel (0) target = $region61
    $region60: #{tpu_custom_call.1} parent=1 // pred_region
      %12179 = vsyncadd [#allocation3], 0
      %s12180 = sshll.u32 [#allocation2], 4
      %s12181 = int_to_ptr.vmem [resolvable:$true] %s12180
      %s12182 = sshll.u32 %s14, 4
      %s12183 = int_to_ptr.hbm [resolvable:$true] %s12182
      %12188 = dma.vmem_to_hbm [thread:$0]  %s12181, 512, %s12183, [#allocation3], 128, 128, 8
    $region61: #{tpu_custom_call.1} parent=1 // pred_fallthru
      _
    // Predicated region
    $region62: #{tpu_custom_call.1} parent=1 // pred_check
      _
    $region63: #{tpu_custom_call.1} parent=1 // pred_check_branch
      %12190 = sbr.rel (0) target = $region65
    $region64: #{tpu_custom_call.1} parent=1 // pred_region
      %12192 = vsyncadd [#allocation5], 0
      %s12194 = sshll.u32 [#allocation4], 4
      %s12195 = int_to_ptr.vmem [resolvable:$true] %s12194
      %s12196 = sshll.u32 %s15, 4
      %s12197 = int_to_ptr.hbm [resolvable:$true] %s12196
      %12199 = dma.vmem_to_hbm [thread:$0]  %s12195, 64, %s12197, [#allocation5]
    $region65: #{tpu_custom_call.1} parent=1 // pred_fallthru
      _
    // Predicated region
    $region66: #{tpu_custom_call.1} parent=1 // pred_check
      _
    $region67: #{tpu_custom_call.1} parent=1 // pred_check_branch
      %12201 = sbr.rel (0) target = $region69
    $region68: #{tpu_custom_call.1} parent=1 // pred_region
      %12203 = dma.done [#allocation3], 512
    $region69: #{tpu_custom_call.1} parent=1 // pred_fallthru
      _
    // Predicated region
    $region70: #{tpu_custom_call.1} parent=1 // pred_check
      _
    $region71: #{tpu_custom_call.1} parent=1 // pred_check_branch
      %12205 = sbr.rel (0) target = $region73
    $region72: #{tpu_custom_call.1} parent=1 // pred_region
      %12207 = dma.done [#allocation5], 64
    $region73: #{tpu_custom_call.1} parent=1 // pred_fallthru
      _
    %12208 = vsyncpa [#allocation3], 1
    %12209 = vsyncpa [#allocation5], 1

</llo_original>
